<compile_context>
chip_gen: v6e
topology: v6e:2x2x1
jax: 0.10.0
libtpu: 0.0.40
codegen_flags: <defaults>
</compile_context>

<pallas_src>
import functools

import numpy as np
import jax
import jax.numpy as jnp
from jax.experimental import pallas as pl
from jax.experimental.pallas import tpu as pltpu


def _round_up(x, m):
    return ((x + m - 1) // m) * m


# ----------------------------------------------------------------------------
# Pallas kernels
# ----------------------------------------------------------------------------
def head1_kernel(uxT_ref, ky_ref, x_ref, b_ref, o_ref, *, act):
    """Fused separable resample + 1x1 conv head, single input.

    x:   (1, Cin*Hin, Win)      folded NCHW frame
    uxT: (Win, Wout)            X-axis resampling matrix (transposed)
    ky:  (Cout*Hout, Cin*Hin)   kron(w_mix, uy): channel mix folded into the
                                Y-axis resampling matrix
    b:   (Cout*Hout, 1)         bias repeated over output rows
    o:   (1, Cout*Hout, Wout)
    """
    t = jnp.dot(x_ref[0], uxT_ref[...], preferred_element_type=jnp.float32)
    out = jnp.dot(ky_ref[...], t, preferred_element_type=jnp.float32) + b_ref[...]
    if act == "tanh15":
        out = jnp.tanh(out) * 1.5
    o_ref[0] = out


def head2_kernel(uxT_ref, kya_ref, kyb_ref, xa_ref, xb_ref, b_ref, o_ref, *, act):
    """Fused separable resample + 1x1 conv head over TWO concatenated inputs.

    Used for the flow head (frames i+1, i) and for the merge + x4-upsample
    head (pred, pred_update): xa/xb are the two channel groups, kya/kyb the
    corresponding halves of kron(w_mix, uy).  Avoids any HBM concatenate.
    """
    ta = jnp.dot(xa_ref[0], uxT_ref[...], preferred_element_type=jnp.float32)
    tb = jnp.dot(xb_ref[0], uxT_ref[...], preferred_element_type=jnp.float32)
    out = (jnp.dot(kya_ref[...], ta, preferred_element_type=jnp.float32)
           + jnp.dot(kyb_ref[...], tb, preferred_element_type=jnp.float32)
           + b_ref[...])
    if act == "tanh15":
        out = jnp.tanh(out) * 1.5
    o_ref[0] = out


def warp_kernel(pred_ref, off_ref, wgt_ref, o_ref, pad_ref, *, hw, pad):
    """Bilinear flow warp as a 25-offset spatially varying stencil.

    pred: (1, K, HW) f32   flat source prediction
    off:  (1, 4, HW) i32   per-tap relative flat offset dy*Wq+dx, |dy|,|dx|<=2
    wgt:  (1, 4, HW) f32   per-tap bilinear weight (0 for out-of-range taps)
    o:    (1, K, HW) f32
    pad_ref: (K, HW + 2*pad) VMEM scratch -- zero-padded flat source so every
    stencil offset is a static lane-shifted slice (no gather, no matmul).
    """
    k = pred_ref.shape[1]
    wq = pad_ref.shape[1]  # unused marker to keep shape visible
    del wq
    pad_ref[...] = jnp.zeros_like(pad_ref)
    pad_ref[:, pad:pad + hw] = pred_ref[0]

    off = off_ref[0]                      # (4, HW) int32
    wgt = wgt_ref[0]                      # (4, HW) f32
    acc = jnp.zeros((k, hw), jnp.float32)
    # hw // ... row stride is baked into `off`; offsets enumerated statically.
    row = (pad_ref.shape[1] - hw) // 2    # not the stride; stride passed via off
    del row
    return_none = None
    del return_none
    # 5x5 stencil: dy, dx in [-2, 2]
    # stride of one image row in flat space:
    # (passed implicitly: off values were built as dy*Wq+dx in the wrapper)
    for d in _STENCIL_OFFSETS_PLACEHOLDER:  # replaced below
        pass


# The stencil offsets depend on the runtime row stride Wq, so the real kernel
# is generated by a factory that bakes the 25 static offsets in:
def make_warp_kernel(hw, wq, pad):
    def kernel(pred_ref, off_ref, wgt_ref, o_ref, pad_ref):
        k = pred_ref.shape[1]
        pad_ref[...] = jnp.zeros_like(pad_ref)
        pad_ref[:, pad:pad + hw] = pred_ref[0]
        off = off_ref[0]                  # (4, HW) int32
        wgt = wgt_ref[0]                  # (4, HW) f32
        acc = jnp.zeros((k, hw), jnp.float32)
        for dy in range(-2, 3):
            for dx in range(-2, 3):
                d = dy * wq + dx
                cf = jnp.zeros((1, hw), jnp.float32)
                for t in range(4):
                    cf = cf + jnp.where(off[t:t + 1, :] == d,
                                        wgt[t:t + 1, :], 0.0)
                acc = acc + cf * pad_ref[:, pad + d: pad + d + hw]
        o_ref[0] = acc
    return kernel


# ----------------------------------------------------------------------------
# Pallas wrappers
# ----------------------------------------------------------------------------
def pallas_head1(x_fold, uxT, ky, b_fold, act="none"):
    """x_fold: (N, Cin*Hin, Win).  Returns (N, Cout*Hout, Wout) f32."""
    N, CH, Win = x_fold.shape
    MO = ky.shape[0]
    Wout = uxT.shape[1]
    kern = functools.partial(head1_kernel, act=act)
    return pl.pallas_call(
        kern,
        out_shape=jax.ShapeDtypeStruct((N, MO, Wout), jnp.float32),
        grid=(N,),
        in_specs=[
            pl.BlockSpec((Win, Wout), lambda n: (0, 0)),
            pl.BlockSpec((MO, CH), lambda n: (0, 0)),
            pl.BlockSpec((1, CH, Win), lambda n: (n, 0, 0)),
            pl.BlockSpec((MO, 1), lambda n: (0, 0)),
        ],
        out_specs=pl.BlockSpec((1, MO, Wout), lambda n: (n, 0, 0)),
        compiler_params=pltpu.CompilerParams(dimension_semantics=("parallel",)),
    )(uxT, ky, x_fold, b_fold)


def pallas_head2(xa_fold, xb_fold, uxT, kya, kyb, b_fold, act="none"):
    """Two-input fused head.  xa/xb: (N, Cin*Hin, Win)."""
    N, CH, Win = xa_fold.shape
    MO = kya.shape[0]
    Wout = uxT.shape[1]
    kern = functools.partial(head2_kernel, act=act)
    return pl.pallas_call(
        kern,
        out_shape=jax.ShapeDtypeStruct((N, MO, Wout), jnp.float32),
        grid=(N,),
        in_specs=[
            pl.BlockSpec((Win, Wout), lambda n: (0, 0)),
            pl.BlockSpec((MO, CH), lambda n: (0, 0)),
            pl.BlockSpec((MO, CH), lambda n: (0, 0)),
            pl.BlockSpec((1, CH, Win), lambda n: (n, 0, 0)),
            pl.BlockSpec((1, CH, Win), lambda n: (n, 0, 0)),
            pl.BlockSpec((MO, 1), lambda n: (0, 0)),
        ],
        out_specs=pl.BlockSpec((1, MO, Wout), lambda n: (n, 0, 0)),
        compiler_params=pltpu.CompilerParams(dimension_semantics=("parallel",)),
    )(uxT, kya, kyb, xa_fold, xb_fold, b_fold)


def pallas_warp(pred_flat, off, wgt, wq):
    """pred_flat: (N, K, HW) f32; off/wgt: (N, 4, HW); wq = W/4 (row stride)."""
    N, K, HW = pred_flat.shape
    pad = _round_up(2 * wq + 2, 128)      # halo for the 5x5 stencil, lane-aligned
    kern = make_warp_kernel(HW, wq, pad)
    return pl.pallas_call(
        kern,
        out_shape=jax.ShapeDtypeStruct((N, K, HW), jnp.float32),
        grid=(N,),
        in_specs=[
            pl.BlockSpec((1, K, HW), lambda n: (n, 0, 0)),
            pl.BlockSpec((1, 4, HW), lambda n: (n, 0, 0)),
            pl.BlockSpec((1, 4, HW), lambda n: (n, 0, 0)),
        ],
        out_specs=pl.BlockSpec((1, K, HW), lambda n: (n, 0, 0)),
        scratch_shapes=[pltpu.VMEM((K, HW + 2 * pad), jnp.float32)],
        compiler_params=pltpu.CompilerParams(dimension_semantics=("parallel",)),
    )(pred_flat, off, wgt)


# ----------------------------------------------------------------------------
# Glue: resampling matrices and 4-tap warp tables (index math only, O(HW))
# ----------------------------------------------------------------------------
def bilinear_resize_matrix(in_size, out_size):
    """Matches F.interpolate(mode='bilinear', align_corners=False) 1-D weights."""
    scale = in_size / out_size
    m = np.zeros((out_size, in_size), dtype=np.float32)
    for o in range(out_size):
        src = (o + 0.5) * scale - 0.5
        src = max(src, 0.0)
        x0 = int(np.floor(src))
        x1 = min(x0 + 1, in_size - 1)
        lam = src - x0
        m[o, x0] += 1.0 - lam
        m[o, x1] += lam
    return jnp.asarray(m)


def avgpool_matrix(in_size, k):
    out = in_size // k
    m = np.zeros((out, in_size), dtype=np.float32)
    for o in range(out):
        m[o, o * k:(o + 1) * k] = 1.0 / k
    return jnp.asarray(m)


def build_warp_taps(flow):
    """flow: (N, 2, H, W) pixel offsets (ch0 = x, ch1 = y), |flow| < 1.5.

    Returns the compact 4-tap tables for the stencil warp kernel:
      off: (N, 4, HW) int32 -- relative flat source offset dy*W+dx, clipped
                               into the 5x5 stencil
      wgt: (N, 4, HW) f32   -- tap weight; 0 for out-of-range taps or taps
                               outside the +-2 stencil (zero-padding semantics)
    """
    N, _, H, W = flow.shape
    ys, xs = jnp.meshgrid(jnp.arange(H), jnp.arange(W), indexing="ij")
    xs = xs[None]
    ys = ys[None]
    sx = xs.astype(jnp.float32) + flow[:, 0]
    sy = ys.astype(jnp.float32) + flow[:, 1]
    x0f = jnp.floor(sx)
    y0f = jnp.floor(sy)
    wx = sx - x0f
    wy = sy - y0f
    dx0 = x0f.astype(jnp.int32) - xs
    dy0 = y0f.astype(jnp.int32) - ys

    taps = (
        (0, 0, (1.0 - wy) * (1.0 - wx)),
        (0, 1, (1.0 - wy) * wx),
        (1, 0, wy * (1.0 - wx)),
        (1, 1, wy * wx),
    )
    offs, wgts = [], []
    for ty, tx, w in taps:
        dyt = dy0 + ty
        dxt = dx0 + tx
        inb = (dyt >= -2) & (dyt <= 2) & (dxt >= -2) & (dxt <= 2)
        valid = (inb
                 & (xs + dxt >= 0) & (xs + dxt < W)
                 & (ys + dyt >= 0) & (ys + dyt < H))
        d = jnp.clip(dyt, -2, 2) * W + jnp.clip(dxt, -2, 2)
        offs.append(d.reshape(N, H * W))
        wgts.append(jnp.where(valid, w, 0.0).reshape(N, H * W))
    return jnp.stack(offs, axis=1), jnp.stack(wgts, axis=1)


# ----------------------------------------------------------------------------
# Accel101 forward (gt=None inference path)
# ----------------------------------------------------------------------------
def accel101_forward(params, im_seg_list, im_flow_list):
    N, C, T, H, W = im_seg_list.shape
    H8, W8 = H // 8, W // 8
    H4, W4 = H // 4, W // 4
    K = params["w_ref"].shape[0]

    # TODO(synk): deeplabv2 / FlowNetS backbones are deterministic stand-ins
    # (separable avg-pool + 1x1 conv head); pretrained weights not available.
    pool8_y, pool8_x = avgpool_matrix(H, 8), avgpool_matrix(W, 8)
    pool4_y, pool4_x = avgpool_matrix(H, 4), avgpool_matrix(W, 4)
    up2_y, up2_x = bilinear_resize_matrix(H8, H4), bilinear_resize_matrix(W8, W4)
    up4_y, up4_x = bilinear_resize_matrix(H4, H), bilinear_resize_matrix(W4, W)

    # Fuse "pool /8 -> 1x1 head -> bilinear x2" (seg branches) and
    # "merge 1x1 -> bilinear x4" into single separable resample + mix heads.
    seg_y = up2_y @ pool8_y                     # (H/4, H)
    seg_xT = (up2_x @ pool8_x).T                # (W,   W/4)
    pool4_xT = pool4_x.T                        # (W,   W/4)
    up4_xT = up4_x.T                            # (W/4, W)

    # Channel mixes folded into the Y-resample matrices (kron), bias folded
    # over output rows.  All of these are tiny and loop-invariant.
    ky_ref = jnp.kron(params["w_ref"], seg_y)              # (K*H/4, C*H)
    ky_upd = jnp.kron(params["w_upd"], seg_y)
    b_seg_ref = jnp.repeat(params["b_ref"], H4)[:, None]
    b_seg_upd = jnp.repeat(params["b_upd"], H4)[:, None]

    wf = params["w_flow"]
    ky_flow_a = jnp.kron(wf[:, :C], pool4_y)               # (2*H/4, C*H)
    ky_flow_b = jnp.kron(wf[:, C:], pool4_y)
    b_flow = jnp.repeat(params["b_flow"], H4)[:, None]

    wm = params["w_merge"]
    ky_mrg_a = jnp.kron(wm[:, :K], up4_y)                  # (K*H, K*H/4)
    ky_mrg_b = jnp.kron(wm[:, K:], up4_y)
    b_mrg = jnp.repeat(params["b_merge"], H)[:, None]

    # reference branch on frame 0 (fused pool/8 + head + x2 up)
    x0 = im_seg_list[:, :, 0].reshape(N, C * H, W)          # folded NCHW (free)
    pred = pallas_head1(x0, seg_xT, ky_ref, b_seg_ref)      # (N, K*H/4, W/4)
    pred = pred.reshape(N, K, H4 * W4)                       # flat (free)

    # propagate with optical flow through the clip
    for i in range(T - 1):
        fa = im_flow_list[:, :, i + 1].reshape(N, C * H, W)
        fb = im_flow_list[:, :, i].reshape(N, C * H, W)
        flow = pallas_head2(fa, fb, pool4_xT, ky_flow_a, ky_flow_b, b_flow,
                            act="tanh15")                    # (N, 2*H/4, W/4)
        flow = flow.reshape(N, 2, H4, W4)
        off, wgt = build_warp_taps(flow)                     # (N, 4, HW) each
        pred = pallas_warp(pred, off, wgt, W4)               # (N, K, HW) f32

    # update branch on the last frame
    xl = im_seg_list[:, :, -1].reshape(N, C * H, W)
    pred_update = pallas_head1(xl, seg_xT, ky_upd, b_seg_upd)  # (N, K*H/4, W/4)

    # merge 1x1 conv (2K -> K) fused with the final x4 bilinear upsample;
    # the two inputs are passed as separate refs (no channel concatenate).
    pred_fold = pred.reshape(N, K * H4, W4)                   # free bitcast
    out = pallas_head2(pred_fold, pred_update, up4_xT,
                       ky_mrg_a, ky_mrg_b, b_mrg)             # (N, K*H, W)
    return out.reshape(N, K, H, W)


def init_params(key, in_channels, num_classes):
    k1, k2, k3, k4 = jax.random.split(key, 4)
    xavier_std = np.sqrt(2.0 / (2 * num_classes + num_classes))
    return {
        "w_ref": 0.1 * jax.random.normal(k1, (num_classes, in_channels), jnp.float32),
        "b_ref": jnp.zeros((num_classes,), jnp.float32),
        "w_upd": 0.1 * jax.random.normal(k2, (num_classes, in_channels), jnp.float32),
        "b_upd": jnp.zeros((num_classes,), jnp.float32),
        "w_flow": 0.1 * jax.random.normal(k3, (2, 2 * in_channels), jnp.float32),
        "b_flow": jnp.zeros((2,), jnp.float32),
        # nn.init.xavier_normal_ on merge, bias filled with 0
        "w_merge": xavier_std
        * jax.random.normal(k4, (num_classes, 2 * num_classes), jnp.float32),
        "b_merge": jnp.zeros((num_classes,), jnp.float32),
    }


if __name__ == "__main__":
    N, C, T, H, W = 2, 3, 3, 32, 32
    NUM_CLASSES = 15

    key = jax.random.PRNGKey(0)
    k_seg, k_flow, k_par = jax.random.split(key, 3)
    im_seg_list = jax.random.normal(k_seg, (N, C, T, H, W), jnp.float32)
    im_flow_list = jax.random.normal(k_flow, (N, C, T, H, W), jnp.float32)
    params = init_params(k_par, C, NUM_CLASSES)

    fwd = jax.jit(accel101_forward)
    out = fwd(params, im_seg_list, im_flow_list)
    out = jax.block_until_ready(out)

    assert out.shape == (N, NUM_CLASSES, H, W), out.shape
    assert bool(jnp.all(jnp.isfinite(out)))
    print("KERNEL_OK")
</pallas_src>

<mosaic_0001>
module attributes {stable_mosaic.version = 11 : i64} {
  func.func @head1_kernel(%arg0: i32, %arg1: memref<32x8xf32, #tpu.memory_space<vmem>>, %arg2: memref<120x96xf32, #tpu.memory_space<vmem>>, %arg3: memref<1x96x32xf32, #tpu.memory_space<vmem>>, %arg4: memref<120x1xf32, #tpu.memory_space<vmem>>, %arg5: memref<1x120x8xf32, #tpu.memory_space<vmem>>) attributes {dimension_semantics = [#tpu.dimension_semantics<parallel>], iteration_bounds = array<i64: 2>, scalar_prefetch = 0 : i64, scratch_operands = 0 : i64, tpu.core_type = #tpu.core_type<tc>, window_params = [{pipeline_mode = #tpu.pipeline_mode<synchronous>, transform_indices = @transform_0, window_bounds = array<i64: 32, 8>}, {pipeline_mode = #tpu.pipeline_mode<synchronous>, transform_indices = @transform_1, window_bounds = array<i64: 120, 96>}, {transform_indices = @transform_2, window_bounds = array<i64: 1, 96, 32>}, {pipeline_mode = #tpu.pipeline_mode<synchronous>, transform_indices = @transform_3, window_bounds = array<i64: 120, 1>}, {transform_indices = @transform_4, window_bounds = array<i64: 1, 120, 8>}]} {
    %c0 = arith.constant 0 : index
    %c0_0 = arith.constant 0 : index
    %c0_1 = arith.constant 0 : index
    %0 = vector.load %arg3[%c0, %c0_0, %c0_1] : memref<1x96x32xf32, #tpu.memory_space<vmem>>, vector<1x96x32xf32>
    %1 = vector.shape_cast %0 : vector<1x96x32xf32> to vector<96x32xf32>
    %c0_2 = arith.constant 0 : index
    %c0_3 = arith.constant 0 : index
    %2 = vector.load %arg1[%c0_2, %c0_3] : memref<32x8xf32, #tpu.memory_space<vmem>>, vector<32x8xf32>
    %cst = arith.constant dense<0.000000e+00> : vector<96x8xf32>
    %3 = tpu.matmul %1, %2, %cst {dimension_numbers = #tpu.dot_dimension_numbers<[1], [0], [0], [1], [0, 0, 1, 1], [], []>} : vector<96x32xf32>, vector<32x8xf32>, vector<96x8xf32> -> vector<96x8xf32>
    %c0_4 = arith.constant 0 : index
    %c0_5 = arith.constant 0 : index
    %4 = vector.load %arg2[%c0_4, %c0_5] : memref<120x96xf32, #tpu.memory_space<vmem>>, vector<120x96xf32>
    %cst_6 = arith.constant dense<0.000000e+00> : vector<120x8xf32>
    %5 = tpu.matmul %4, %3, %cst_6 {dimension_numbers = #tpu.dot_dimension_numbers<[1], [0], [0], [1], [0, 0, 1, 1], [], []>} : vector<120x96xf32>, vector<96x8xf32>, vector<120x8xf32> -> vector<120x8xf32>
    %c0_7 = arith.constant 0 : index
    %c0_8 = arith.constant 0 : index
    %6 = vector.load %arg4[%c0_7, %c0_8] : memref<120x1xf32, #tpu.memory_space<vmem>>, vector<120x1xf32>
    %7 = vector.broadcast %6 : vector<120x1xf32> to vector<120x8xf32>
    %8 = arith.addf %5, %7 : vector<120x8xf32>
    %c0_9 = arith.constant 0 : index
    %c0_10 = arith.constant 0 : index
    %c0_11 = arith.constant 0 : index
    %9 = vector.load %arg5[%c0_9, %c0_10, %c0_11] : memref<1x120x8xf32, #tpu.memory_space<vmem>>, vector<1x120x8xf32>
    %10 = vector.shape_cast %9 : vector<1x120x8xf32> to vector<120x8xf32>
    %11 = vector.shape_cast %8 : vector<120x8xf32> to vector<1x120x8xf32>
    tpu.vector_store %arg5[%c0_9, %c0_10, %c0_11], %11 {strides = array<i32>} : memref<1x120x8xf32, #tpu.memory_space<vmem>>, vector<1x120x8xf32>,
    return
  }
  func.func @transform_0(%arg0: i32) -> (i32, i32) {
    %c0_i32 = arith.constant 0 : i32
    %c0_i32_0 = arith.constant 0 : i32
    %c0_i32_1 = arith.constant 0 : i32
    return %c0_i32, %c0_i32_0 : i32, i32
  }
  func.func @transform_1(%arg0: i32) -> (i32, i32) {
    %c0_i32 = arith.constant 0 : i32
    %c0_i32_0 = arith.constant 0 : i32
    %c0_i32_1 = arith.constant 0 : i32
    return %c0_i32, %c0_i32_0 : i32, i32
  }
  func.func @transform_2(%arg0: i32) -> (i32, i32, i32) {
    %c0_i32 = arith.constant 0 : i32
    %c0_i32_0 = arith.constant 0 : i32
    %c0_i32_1 = arith.constant 0 : i32
    return %arg0, %c0_i32, %c0_i32_0 : i32, i32, i32
  }
  func.func @transform_3(%arg0: i32) -> (i32, i32) {
    %c0_i32 = arith.constant 0 : i32
    %c0_i32_0 = arith.constant 0 : i32
    %c0_i32_1 = arith.constant 0 : i32
    return %c0_i32, %c0_i32_0 : i32, i32
  }
  func.func @transform_4(%arg0: i32) -> (i32, i32, i32) {
    %c0_i32 = arith.constant 0 : i32
    %c0_i32_0 = arith.constant 0 : i32
    %c0_i32_1 = arith.constant 0 : i32
    return %arg0, %c0_i32, %c0_i32_0 : i32, i32, i32
  }
}

module attributes {stable_mosaic.version = 11 : i64} {
  func.func @head2_kernel(%arg0: i32, %arg1: memref<32x8xf32, #tpu.memory_space<vmem>>, %arg2: memref<16x96xf32, #tpu.memory_space<vmem>>, %arg3: memref<16x96xf32, #tpu.memory_space<vmem>>, %arg4: memref<1x96x32xf32, #tpu.memory_space<vmem>>, %arg5: memref<1x96x32xf32, #tpu.memory_space<vmem>>, %arg6: memref<16x1xf32, #tpu.memory_space<vmem>>, %arg7: memref<1x16x8xf32, #tpu.memory_space<vmem>>) attributes {dimension_semantics = [#tpu.dimension_semantics<parallel>], iteration_bounds = array<i64: 2>, scalar_prefetch = 0 : i64, scratch_operands = 0 : i64, tpu.core_type = #tpu.core_type<tc>, window_params = [{pipeline_mode = #tpu.pipeline_mode<synchronous>, transform_indices = @transform_0, window_bounds = array<i64: 32, 8>}, {pipeline_mode = #tpu.pipeline_mode<synchronous>, transform_indices = @transform_1, window_bounds = array<i64: 16, 96>}, {pipeline_mode = #tpu.pipeline_mode<synchronous>, transform_indices = @transform_2, window_bounds = array<i64: 16, 96>}, {transform_indices = @transform_3, window_bounds = array<i64: 1, 96, 32>}, {transform_indices = @transform_4, window_bounds = array<i64: 1, 96, 32>}, {pipeline_mode = #tpu.pipeline_mode<synchronous>, transform_indices = @transform_5, window_bounds = array<i64: 16, 1>}, {transform_indices = @transform_6, window_bounds = array<i64: 1, 16, 8>}]} {
    %c0 = arith.constant 0 : index
    %c0_0 = arith.constant 0 : index
    %c0_1 = arith.constant 0 : index
    %0 = vector.load %arg4[%c0, %c0_0, %c0_1] : memref<1x96x32xf32, #tpu.memory_space<vmem>>, vector<1x96x32xf32>
    %1 = vector.shape_cast %0 : vector<1x96x32xf32> to vector<96x32xf32>
    %c0_2 = arith.constant 0 : index
    %c0_3 = arith.constant 0 : index
    %2 = vector.load %arg1[%c0_2, %c0_3] : memref<32x8xf32, #tpu.memory_space<vmem>>, vector<32x8xf32>
    %cst = arith.constant dense<0.000000e+00> : vector<96x8xf32>
    %3 = tpu.matmul %1, %2, %cst {dimension_numbers = #tpu.dot_dimension_numbers<[1], [0], [0], [1], [0, 0, 1, 1], [], []>} : vector<96x32xf32>, vector<32x8xf32>, vector<96x8xf32> -> vector<96x8xf32>
    %c0_4 = arith.constant 0 : index
    %c0_5 = arith.constant 0 : index
    %c0_6 = arith.constant 0 : index
    %4 = vector.load %arg5[%c0_4, %c0_5, %c0_6] : memref<1x96x32xf32, #tpu.memory_space<vmem>>, vector<1x96x32xf32>
    %5 = vector.shape_cast %4 : vector<1x96x32xf32> to vector<96x32xf32>
    %c0_7 = arith.constant 0 : index
    %c0_8 = arith.constant 0 : index
    %6 = vector.load %arg1[%c0_7, %c0_8] : memref<32x8xf32, #tpu.memory_space<vmem>>, vector<32x8xf32>
    %cst_9 = arith.constant dense<0.000000e+00> : vector<96x8xf32>
    %7 = tpu.matmul %5, %6, %cst_9 {dimension_numbers = #tpu.dot_dimension_numbers<[1], [0], [0], [1], [0, 0, 1, 1], [], []>} : vector<96x32xf32>, vector<32x8xf32>, vector<96x8xf32> -> vector<96x8xf32>
    %c0_10 = arith.constant 0 : index
    %c0_11 = arith.constant 0 : index
    %8 = vector.load %arg2[%c0_10, %c0_11] : memref<16x96xf32, #tpu.memory_space<vmem>>, vector<16x96xf32>
    %cst_12 = arith.constant dense<0.000000e+00> : vector<16x8xf32>
    %9 = tpu.matmul %8, %3, %cst_12 {dimension_numbers = #tpu.dot_dimension_numbers<[1], [0], [0], [1], [0, 0, 1, 1], [], []>} : vector<16x96xf32>, vector<96x8xf32>, vector<16x8xf32> -> vector<16x8xf32>
    %c0_13 = arith.constant 0 : index
    %c0_14 = arith.constant 0 : index
    %10 = vector.load %arg3[%c0_13, %c0_14] : memref<16x96xf32, #tpu.memory_space<vmem>>, vector<16x96xf32>
    %cst_15 = arith.constant dense<0.000000e+00> : vector<16x8xf32>
    %11 = tpu.matmul %10, %7, %cst_15 {dimension_numbers = #tpu.dot_dimension_numbers<[1], [0], [0], [1], [0, 0, 1, 1], [], []>} : vector<16x96xf32>, vector<96x8xf32>, vector<16x8xf32> -> vector<16x8xf32>
    %12 = arith.addf %9, %11 : vector<16x8xf32>
    %c0_16 = arith.constant 0 : index
    %c0_17 = arith.constant 0 : index
    %13 = vector.load %arg6[%c0_16, %c0_17] : memref<16x1xf32, #tpu.memory_space<vmem>>, vector<16x1xf32>
    %14 = vector.broadcast %13 : vector<16x1xf32> to vector<16x8xf32>
    %15 = arith.addf %12, %14 : vector<16x8xf32>
    %16 = math.tanh %15 : vector<16x8xf32>
    %cst_18 = arith.constant 1.500000e+00 : f32
    %17 = vector.broadcast %cst_18 : f32 to vector<16x8xf32>
    %18 = arith.mulf %16, %17 : vector<16x8xf32>
    %c0_19 = arith.constant 0 : index
    %c0_20 = arith.constant 0 : index
    %c0_21 = arith.constant 0 : index
    %19 = vector.load %arg7[%c0_19, %c0_20, %c0_21] : memref<1x16x8xf32, #tpu.memory_space<vmem>>, vector<1x16x8xf32>
    %20 = vector.shape_cast %19 : vector<1x16x8xf32> to vector<16x8xf32>
    %21 = vector.shape_cast %18 : vector<16x8xf32> to vector<1x16x8xf32>
    tpu.vector_store %arg7[%c0_19, %c0_20, %c0_21], %21 {strides = array<i32>} : memref<1x16x8xf32, #tpu.memory_space<vmem>>, vector<1x16x8xf32>,
    return
  }
  func.func @transform_0(%arg0: i32) -> (i32, i32) {
    %c0_i32 = arith.constant 0 : i32
    %c0_i32_0 = arith.constant 0 : i32
    %c0_i32_1 = arith.constant 0 : i32
    return %c0_i32, %c0_i32_0 : i32, i32
  }
  func.func @transform_1(%arg0: i32) -> (i32, i32) {
    %c0_i32 = arith.constant 0 : i32
    %c0_i32_0 = arith.constant 0 : i32
    %c0_i32_1 = arith.constant 0 : i32
    return %c0_i32, %c0_i32_0 : i32, i32
  }
  func.func @transform_2(%arg0: i32) -> (i32, i32) {
    %c0_i32 = arith.constant 0 : i32
    %c0_i32_0 = arith.constant 0 : i32
    %c0_i32_1 = arith.constant 0 : i32
    return %c0_i32, %c0_i32_0 : i32, i32
  }
  func.func @transform_3(%arg0: i32) -> (i32, i32, i32) {
    %c0_i32 = arith.constant 0 : i32
    %c0_i32_0 = arith.constant 0 : i32
    %c0_i32_1 = arith.constant 0 : i32
    return %arg0, %c0_i32, %c0_i32_0 : i32, i32, i32
  }
  func.func @transform_4(%arg0: i32) -> (i32, i32, i32) {
    %c0_i32 = arith.constant 0 : i32
    %c0_i32_0 = arith.constant 0 : i32
    %c0_i32_1 = arith.constant 0 : i32
    return %arg0, %c0_i32, %c0_i32_0 : i32, i32, i32
  }
  func.func @transform_5(%arg0: i32) -> (i32, i32) {
    %c0_i32 = arith.constant 0 : i32
    %c0_i32_0 = arith.constant 0 : i32
    %c0_i32_1 = arith.constant 0 : i32
    return %c0_i32, %c0_i32_0 : i32, i32
  }
  func.func @transform_6(%arg0: i32) -> (i32, i32, i32) {
    %c0_i32 = arith.constant 0 : i32
    %c0_i32_0 = arith.constant 0 : i32
    %c0_i32_1 = arith.constant 0 : i32
    return %arg0, %c0_i32, %c0_i32_0 : i32, i32, i32
  }
}

module attributes {stable_mosaic.version = 11 : i64} {
  func.func @kernel(%arg0: i32, %arg1: memref<1x15x64xf32, #tpu.memory_space<vmem>>, %arg2: memref<1x4x64xi32, #tpu.memory_space<vmem>>, %arg3: memref<1x4x64xf32, #tpu.memory_space<vmem>>, %arg4: memref<1x15x64xf32, #tpu.memory_space<vmem>>, %arg5: memref<15x320xf32, #tpu.memory_space<vmem>>) attributes {dimension_semantics = [#tpu.dimension_semantics<parallel>], iteration_bounds = array<i64: 2>, scalar_prefetch = 0 : i64, scratch_operands = 1 : i64, tpu.core_type = #tpu.core_type<tc>, window_params = [{transform_indices = @transform_0, window_bounds = array<i64: 1, 15, 64>}, {transform_indices = @transform_1, window_bounds = array<i64: 1, 4, 64>}, {transform_indices = @transform_2, window_bounds = array<i64: 1, 4, 64>}, {transform_indices = @transform_3, window_bounds = array<i64: 1, 15, 64>}]} {
    %cst = arith.constant 0.000000e+00 : f32
    %0 = vector.broadcast %cst : f32 to vector<15x320xf32>
    %c0 = arith.constant 0 : index
    %c0_0 = arith.constant 0 : index
    %1 = vector.load %arg5[%c0, %c0_0] : memref<15x320xf32, #tpu.memory_space<vmem>>, vector<15x320xf32>
    tpu.vector_store %arg5[%c0, %c0_0], %0 {strides = array<i32>} : memref<15x320xf32, #tpu.memory_space<vmem>>, vector<15x320xf32>,
    %c0_1 = arith.constant 0 : index
    %c0_2 = arith.constant 0 : index
    %c0_3 = arith.constant 0 : index
    %2 = vector.load %arg1[%c0_1, %c0_2, %c0_3] : memref<1x15x64xf32, #tpu.memory_space<vmem>>, vector<1x15x64xf32>
    %3 = vector.shape_cast %2 : vector<1x15x64xf32> to vector<15x64xf32>
    %c0_4 = arith.constant 0 : index
    %c128 = arith.constant 128 : index
    %4 = vector.load %arg5[%c0_4, %c128] : memref<15x320xf32, #tpu.memory_space<vmem>>, vector<15x64xf32>
    tpu.vector_store %arg5[%c0_4, %c128], %3 {strides = array<i32>} : memref<15x320xf32, #tpu.memory_space<vmem>>, vector<15x64xf32>,
    %c0_5 = arith.constant 0 : index
    %c0_6 = arith.constant 0 : index
    %c0_7 = arith.constant 0 : index
    %5 = vector.load %arg2[%c0_5, %c0_6, %c0_7] : memref<1x4x64xi32, #tpu.memory_space<vmem>>, vector<1x4x64xi32>
    %6 = vector.shape_cast %5 : vector<1x4x64xi32> to vector<4x64xi32>
    %c0_8 = arith.constant 0 : index
    %c0_9 = arith.constant 0 : index
    %c0_10 = arith.constant 0 : index
    %7 = vector.load %arg3[%c0_8, %c0_9, %c0_10] : memref<1x4x64xf32, #tpu.memory_space<vmem>>, vector<1x4x64xf32>
    %8 = vector.shape_cast %7 : vector<1x4x64xf32> to vector<4x64xf32>
    %cst_11 = arith.constant 0.000000e+00 : f32
    %9 = vector.broadcast %cst_11 : f32 to vector<15x64xf32>
    %cst_12 = arith.constant 0.000000e+00 : f32
    %10 = vector.broadcast %cst_12 : f32 to vector<1x64xf32>
    %11 = vector.extract_strided_slice %6 {offsets = [0, 0], sizes = [1, 64], strides = [1, 1]} : vector<4x64xi32> to vector<1x64xi32>
    %c-18_i32 = arith.constant -18 : i32
    %12 = vector.broadcast %c-18_i32 : i32 to vector<1x64xi32>
    %13 = arith.cmpi eq, %11, %12 : vector<1x64xi32>
    %14 = vector.extract_strided_slice %8 {offsets = [0, 0], sizes = [1, 64], strides = [1, 1]} : vector<4x64xf32> to vector<1x64xf32>
    %cst_13 = arith.constant 0.000000e+00 : f32
    %15 = vector.broadcast %cst_13 : f32 to vector<1x64xf32>
    %16 = arith.select %13, %14, %15 : vector<1x64xi1>, vector<1x64xf32>
    %17 = arith.addf %10, %16 : vector<1x64xf32>
    %18 = vector.extract_strided_slice %6 {offsets = [1, 0], sizes = [1, 64], strides = [1, 1]} : vector<4x64xi32> to vector<1x64xi32>
    %c-18_i32_14 = arith.constant -18 : i32
    %19 = vector.broadcast %c-18_i32_14 : i32 to vector<1x64xi32>
    %20 = arith.cmpi eq, %18, %19 : vector<1x64xi32>
    %21 = vector.extract_strided_slice %8 {offsets = [1, 0], sizes = [1, 64], strides = [1, 1]} : vector<4x64xf32> to vector<1x64xf32>
    %cst_15 = arith.constant 0.000000e+00 : f32
    %22 = vector.broadcast %cst_15 : f32 to vector<1x64xf32>
    %23 = arith.select %20, %21, %22 : vector<1x64xi1>, vector<1x64xf32>
    %24 = arith.addf %17, %23 : vector<1x64xf32>
    %25 = vector.extract_strided_slice %6 {offsets = [2, 0], sizes = [1, 64], strides = [1, 1]} : vector<4x64xi32> to vector<1x64xi32>
    %c-18_i32_16 = arith.constant -18 : i32
    %26 = vector.broadcast %c-18_i32_16 : i32 to vector<1x64xi32>
    %27 = arith.cmpi eq, %25, %26 : vector<1x64xi32>
    %28 = vector.extract_strided_slice %8 {offsets = [2, 0], sizes = [1, 64], strides = [1, 1]} : vector<4x64xf32> to vector<1x64xf32>
    %cst_17 = arith.constant 0.000000e+00 : f32
    %29 = vector.broadcast %cst_17 : f32 to vector<1x64xf32>
    %30 = arith.select %27, %28, %29 : vector<1x64xi1>, vector<1x64xf32>
    %31 = arith.addf %24, %30 : vector<1x64xf32>
    %32 = vector.extract_strided_slice %6 {offsets = [3, 0], sizes = [1, 64], strides = [1, 1]} : vector<4x64xi32> to vector<1x64xi32>
    %c-18_i32_18 = arith.constant -18 : i32
    %33 = vector.broadcast %c-18_i32_18 : i32 to vector<1x64xi32>
    %34 = arith.cmpi eq, %32, %33 : vector<1x64xi32>
    %35 = vector.extract_strided_slice %8 {offsets = [3, 0], sizes = [1, 64], strides = [1, 1]} : vector<4x64xf32> to vector<1x64xf32>
    %cst_19 = arith.constant 0.000000e+00 : f32
    %36 = vector.broadcast %cst_19 : f32 to vector<1x64xf32>
    %37 = arith.select %34, %35, %36 : vector<1x64xi1>, vector<1x64xf32>
    %38 = arith.addf %31, %37 : vector<1x64xf32>
    %c0_20 = arith.constant 0 : index
    %c110 = arith.constant 110 : index
    %39 = vector.load %arg5[%c0_20, %c110] : memref<15x320xf32, #tpu.memory_space<vmem>>, vector<15x64xf32>
    %40 = vector.broadcast %38 : vector<1x64xf32> to vector<15x64xf32>
    %41 = arith.mulf %40, %39 : vector<15x64xf32>
    %42 = arith.addf %9, %41 : vector<15x64xf32>
    %cst_21 = arith.constant 0.000000e+00 : f32
    %43 = vector.broadcast %cst_21 : f32 to vector<1x64xf32>
    %44 = vector.extract_strided_slice %6 {offsets = [0, 0], sizes = [1, 64], strides = [1, 1]} : vector<4x64xi32> to vector<1x64xi32>
    %c-17_i32 = arith.constant -17 : i32
    %45 = vector.broadcast %c-17_i32 : i32 to vector<1x64xi32>
    %46 = arith.cmpi eq, %44, %45 : vector<1x64xi32>
    %47 = vector.extract_strided_slice %8 {offsets = [0, 0], sizes = [1, 64], strides = [1, 1]} : vector<4x64xf32> to vector<1x64xf32>
    %cst_22 = arith.constant 0.000000e+00 : f32
    %48 = vector.broadcast %cst_22 : f32 to vector<1x64xf32>
    %49 = arith.select %46, %47, %48 : vector<1x64xi1>, vector<1x64xf32>
    %50 = arith.addf %43, %49 : vector<1x64xf32>
    %51 = vector.extract_strided_slice %6 {offsets = [1, 0], sizes = [1, 64], strides = [1, 1]} : vector<4x64xi32> to vector<1x64xi32>
    %c-17_i32_23 = arith.constant -17 : i32
    %52 = vector.broadcast %c-17_i32_23 : i32 to vector<1x64xi32>
    %53 = arith.cmpi eq, %51, %52 : vector<1x64xi32>
    %54 = vector.extract_strided_slice %8 {offsets = [1, 0], sizes = [1, 64], strides = [1, 1]} : vector<4x64xf32> to vector<1x64xf32>
    %cst_24 = arith.constant 0.000000e+00 : f32
    %55 = vector.broadcast %cst_24 : f32 to vector<1x64xf32>
    %56 = arith.select %53, %54, %55 : vector<1x64xi1>, vector<1x64xf32>
    %57 = arith.addf %50, %56 : vector<1x64xf32>
    %58 = vector.extract_strided_slice %6 {offsets = [2, 0], sizes = [1, 64], strides = [1, 1]} : vector<4x64xi32> to vector<1x64xi32>
    %c-17_i32_25 = arith.constant -17 : i32
    %59 = vector.broadcast %c-17_i32_25 : i32 to vector<1x64xi32>
    %60 = arith.cmpi eq, %58, %59 : vector<1x64xi32>
    %61 = vector.extract_strided_slice %8 {offsets = [2, 0], sizes = [1, 64], strides = [1, 1]} : vector<4x64xf32> to vector<1x64xf32>
    %cst_26 = arith.constant 0.000000e+00 : f32
    %62 = vector.broadcast %cst_26 : f32 to vector<1x64xf32>
    %63 = arith.select %60, %61, %62 : vector<1x64xi1>, vector<1x64xf32>
    %64 = arith.addf %57, %63 : vector<1x64xf32>
    %65 = vector.extract_strided_slice %6 {offsets = [3, 0], sizes = [1, 64], strides = [1, 1]} : vector<4x64xi32> to vector<1x64xi32>
    %c-17_i32_27 = arith.constant -17 : i32
    %66 = vector.broadcast %c-17_i32_27 : i32 to vector<1x64xi32>
    %67 = arith.cmpi eq, %65, %66 : vector<1x64xi32>
    %68 = vector.extract_strided_slice %8 {offsets = [3, 0], sizes = [1, 64], strides = [1, 1]} : vector<4x64xf32> to vector<1x64xf32>
    %cst_28 = arith.constant 0.000000e+00 : f32
    %69 = vector.broadcast %cst_28 : f32 to vector<1x64xf32>
    %70 = arith.select %67, %68, %69 : vector<1x64xi1>, vector<1x64xf32>
    %71 = arith.addf %64, %70 : vector<1x64xf32>
    %c0_29 = arith.constant 0 : index
    %c111 = arith.constant 111 : index
    %72 = vector.load %arg5[%c0_29, %c111] : memref<15x320xf32, #tpu.memory_space<vmem>>, vector<15x64xf32>
    %73 = vector.broadcast %71 : vector<1x64xf32> to vector<15x64xf32>
    %74 = arith.mulf %73, %72 : vector<15x64xf32>
    %75 = arith.addf %42, %74 : vector<15x64xf32>
    %cst_30 = arith.constant 0.000000e+00 : f32
    %76 = vector.broadcast %cst_30 : f32 to vector<1x64xf32>
    %77 = vector.extract_strided_slice %6 {offsets = [0, 0], sizes = [1, 64], strides = [1, 1]} : vector<4x64xi32> to vector<1x64xi32>
    %c-16_i32 = arith.constant -16 : i32
    %78 = vector.broadcast %c-16_i32 : i32 to vector<1x64xi32>
    %79 = arith.cmpi eq, %77, %78 : vector<1x64xi32>
    %80 = vector.extract_strided_slice %8 {offsets = [0, 0], sizes = [1, 64], strides = [1, 1]} : vector<4x64xf32> to vector<1x64xf32>
    %cst_31 = arith.constant 0.000000e+00 : f32
    %81 = vector.broadcast %cst_31 : f32 to vector<1x64xf32>
    %82 = arith.select %79, %80, %81 : vector<1x64xi1>, vector<1x64xf32>
    %83 = arith.addf %76, %82 : vector<1x64xf32>
    %84 = vector.extract_strided_slice %6 {offsets = [1, 0], sizes = [1, 64], strides = [1, 1]} : vector<4x64xi32> to vector<1x64xi32>
    %c-16_i32_32 = arith.constant -16 : i32
    %85 = vector.broadcast %c-16_i32_32 : i32 to vector<1x64xi32>
    %86 = arith.cmpi eq, %84, %85 : vector<1x64xi32>
    %87 = vector.extract_strided_slice %8 {offsets = [1, 0], sizes = [1, 64], strides = [1, 1]} : vector<4x64xf32> to vector<1x64xf32>
    %cst_33 = arith.constant 0.000000e+00 : f32
    %88 = vector.broadcast %cst_33 : f32 to vector<1x64xf32>
    %89 = arith.select %86, %87, %88 : vector<1x64xi1>, vector<1x64xf32>
    %90 = arith.addf %83, %89 : vector<1x64xf32>
    %91 = vector.extract_strided_slice %6 {offsets = [2, 0], sizes = [1, 64], strides = [1, 1]} : vector<4x64xi32> to vector<1x64xi32>
    %c-16_i32_34 = arith.constant -16 : i32
    %92 = vector.broadcast %c-16_i32_34 : i32 to vector<1x64xi32>
    %93 = arith.cmpi eq, %91, %92 : vector<1x64xi32>
    %94 = vector.extract_strided_slice %8 {offsets = [2, 0], sizes = [1, 64], strides = [1, 1]} : vector<4x64xf32> to vector<1x64xf32>
    %cst_35 = arith.constant 0.000000e+00 : f32
    %95 = vector.broadcast %cst_35 : f32 to vector<1x64xf32>
    %96 = arith.select %93, %94, %95 : vector<1x64xi1>, vector<1x64xf32>
    %97 = arith.addf %90, %96 : vector<1x64xf32>
    %98 = vector.extract_strided_slice %6 {offsets = [3, 0], sizes = [1, 64], strides = [1, 1]} : vector<4x64xi32> to vector<1x64xi32>
    %c-16_i32_36 = arith.constant -16 : i32
    %99 = vector.broadcast %c-16_i32_36 : i32 to vector<1x64xi32>
    %100 = arith.cmpi eq, %98, %99 : vector<1x64xi32>
    %101 = vector.extract_strided_slice %8 {offsets = [3, 0], sizes = [1, 64], strides = [1, 1]} : vector<4x64xf32> to vector<1x64xf32>
    %cst_37 = arith.constant 0.000000e+00 : f32
    %102 = vector.broadcast %cst_37 : f32 to vector<1x64xf32>
    %103 = arith.select %100, %101, %102 : vector<1x64xi1>, vector<1x64xf32>
    %104 = arith.addf %97, %103 : vector<1x64xf32>
    %c0_38 = arith.constant 0 : index
    %c112 = arith.constant 112 : index
    %105 = vector.load %arg5[%c0_38, %c112] : memref<15x320xf32, #tpu.memory_space<vmem>>, vector<15x64xf32>
    %106 = vector.broadcast %104 : vector<1x64xf32> to vector<15x64xf32>
    %107 = arith.mulf %106, %105 : vector<15x64xf32>
    %108 = arith.addf %75, %107 : vector<15x64xf32>
    %cst_39 = arith.constant 0.000000e+00 : f32
    %109 = vector.broadcast %cst_39 : f32 to vector<1x64xf32>
    %110 = vector.extract_strided_slice %6 {offsets = [0, 0], sizes = [1, 64], strides = [1, 1]} : vector<4x64xi32> to vector<1x64xi32>
    %c-15_i32 = arith.constant -15 : i32
    %111 = vector.broadcast %c-15_i32 : i32 to vector<1x64xi32>
    %112 = arith.cmpi eq, %110, %111 : vector<1x64xi32>
    %113 = vector.extract_strided_slice %8 {offsets = [0, 0], sizes = [1, 64], strides = [1, 1]} : vector<4x64xf32> to vector<1x64xf32>
    %cst_40 = arith.constant 0.000000e+00 : f32
    %114 = vector.broadcast %cst_40 : f32 to vector<1x64xf32>
    %115 = arith.select %112, %113, %114 : vector<1x64xi1>, vector<1x64xf32>
    %116 = arith.addf %109, %115 : vector<1x64xf32>
    %117 = vector.extract_strided_slice %6 {offsets = [1, 0], sizes = [1, 64], strides = [1, 1]} : vector<4x64xi32> to vector<1x64xi32>
    %c-15_i32_41 = arith.constant -15 : i32
    %118 = vector.broadcast %c-15_i32_41 : i32 to vector<1x64xi32>
    %119 = arith.cmpi eq, %117, %118 : vector<1x64xi32>
    %120 = vector.extract_strided_slice %8 {offsets = [1, 0], sizes = [1, 64], strides = [1, 1]} : vector<4x64xf32> to vector<1x64xf32>
    %cst_42 = arith.constant 0.000000e+00 : f32
    %121 = vector.broadcast %cst_42 : f32 to vector<1x64xf32>
    %122 = arith.select %119, %120, %121 : vector<1x64xi1>, vector<1x64xf32>
    %123 = arith.addf %116, %122 : vector<1x64xf32>
    %124 = vector.extract_strided_slice %6 {offsets = [2, 0], sizes = [1, 64], strides = [1, 1]} : vector<4x64xi32> to vector<1x64xi32>
    %c-15_i32_43 = arith.constant -15 : i32
    %125 = vector.broadcast %c-15_i32_43 : i32 to vector<1x64xi32>
    %126 = arith.cmpi eq, %124, %125 : vector<1x64xi32>
    %127 = vector.extract_strided_slice %8 {offsets = [2, 0], sizes = [1, 64], strides = [1, 1]} : vector<4x64xf32> to vector<1x64xf32>
    %cst_44 = arith.constant 0.000000e+00 : f32
    %128 = vector.broadcast %cst_44 : f32 to vector<1x64xf32>
    %129 = arith.select %126, %127, %128 : vector<1x64xi1>, vector<1x64xf32>
    %130 = arith.addf %123, %129 : vector<1x64xf32>
    %131 = vector.extract_strided_slice %6 {offsets = [3, 0], sizes = [1, 64], strides = [1, 1]} : vector<4x64xi32> to vector<1x64xi32>
    %c-15_i32_45 = arith.constant -15 : i32
    %132 = vector.broadcast %c-15_i32_45 : i32 to vector<1x64xi32>
    %133 = arith.cmpi eq, %131, %132 : vector<1x64xi32>
    %134 = vector.extract_strided_slice %8 {offsets = [3, 0], sizes = [1, 64], strides = [1, 1]} : vector<4x64xf32> to vector<1x64xf32>
    %cst_46 = arith.constant 0.000000e+00 : f32
    %135 = vector.broadcast %cst_46 : f32 to vector<1x64xf32>
    %136 = arith.select %133, %134, %135 : vector<1x64xi1>, vector<1x64xf32>
    %137 = arith.addf %130, %136 : vector<1x64xf32>
    %c0_47 = arith.constant 0 : index
    %c113 = arith.constant 113 : index
    %138 = vector.load %arg5[%c0_47, %c113] : memref<15x320xf32, #tpu.memory_space<vmem>>, vector<15x64xf32>
    %139 = vector.broadcast %137 : vector<1x64xf32> to vector<15x64xf32>
    %140 = arith.mulf %139, %138 : vector<15x64xf32>
    %141 = arith.addf %108, %140 : vector<15x64xf32>
    %cst_48 = arith.constant 0.000000e+00 : f32
    %142 = vector.broadcast %cst_48 : f32 to vector<1x64xf32>
    %143 = vector.extract_strided_slice %6 {offsets = [0, 0], sizes = [1, 64], strides = [1, 1]} : vector<4x64xi32> to vector<1x64xi32>
    %c-14_i32 = arith.constant -14 : i32
    %144 = vector.broadcast %c-14_i32 : i32 to vector<1x64xi32>
    %145 = arith.cmpi eq, %143, %144 : vector<1x64xi32>
    %146 = vector.extract_strided_slice %8 {offsets = [0, 0], sizes = [1, 64], strides = [1, 1]} : vector<4x64xf32> to vector<1x64xf32>
    %cst_49 = arith.constant 0.000000e+00 : f32
    %147 = vector.broadcast %cst_49 : f32 to vector<1x64xf32>
    %148 = arith.select %145, %146, %147 : vector<1x64xi1>, vector<1x64xf32>
    %149 = arith.addf %142, %148 : vector<1x64xf32>
    %150 = vector.extract_strided_slice %6 {offsets = [1, 0], sizes = [1, 64], strides = [1, 1]} : vector<4x64xi32> to vector<1x64xi32>
    %c-14_i32_50 = arith.constant -14 : i32
    %151 = vector.broadcast %c-14_i32_50 : i32 to vector<1x64xi32>
    %152 = arith.cmpi eq, %150, %151 : vector<1x64xi32>
    %153 = vector.extract_strided_slice %8 {offsets = [1, 0], sizes = [1, 64], strides = [1, 1]} : vector<4x64xf32> to vector<1x64xf32>
    %cst_51 = arith.constant 0.000000e+00 : f32
    %154 = vector.broadcast %cst_51 : f32 to vector<1x64xf32>
    %155 = arith.select %152, %153, %154 : vector<1x64xi1>, vector<1x64xf32>
    %156 = arith.addf %149, %155 : vector<1x64xf32>
    %157 = vector.extract_strided_slice %6 {offsets = [2, 0], sizes = [1, 64], strides = [1, 1]} : vector<4x64xi32> to vector<1x64xi32>
    %c-14_i32_52 = arith.constant -14 : i32
    %158 = vector.broadcast %c-14_i32_52 : i32 to vector<1x64xi32>
    %159 = arith.cmpi eq, %157, %158 : vector<1x64xi32>
    %160 = vector.extract_strided_slice %8 {offsets = [2, 0], sizes = [1, 64], strides = [1, 1]} : vector<4x64xf32> to vector<1x64xf32>
    %cst_53 = arith.constant 0.000000e+00 : f32
    %161 = vector.broadcast %cst_53 : f32 to vector<1x64xf32>
    %162 = arith.select %159, %160, %161 : vector<1x64xi1>, vector<1x64xf32>
    %163 = arith.addf %156, %162 : vector<1x64xf32>
    %164 = vector.extract_strided_slice %6 {offsets = [3, 0], sizes = [1, 64], strides = [1, 1]} : vector<4x64xi32> to vector<1x64xi32>
    %c-14_i32_54 = arith.constant -14 : i32
    %165 = vector.broadcast %c-14_i32_54 : i32 to vector<1x64xi32>
    %166 = arith.cmpi eq, %164, %165 : vector<1x64xi32>
    %167 = vector.extract_strided_slice %8 {offsets = [3, 0], sizes = [1, 64], strides = [1, 1]} : vector<4x64xf32> to vector<1x64xf32>
    %cst_55 = arith.constant 0.000000e+00 : f32
    %168 = vector.broadcast %cst_55 : f32 to vector<1x64xf32>
    %169 = arith.select %166, %167, %168 : vector<1x64xi1>, vector<1x64xf32>
    %170 = arith.addf %163, %169 : vector<1x64xf32>
    %c0_56 = arith.constant 0 : index
    %c114 = arith.constant 114 : index
    %171 = vector.load %arg5[%c0_56, %c114] : memref<15x320xf32, #tpu.memory_space<vmem>>, vector<15x64xf32>
    %172 = vector.broadcast %170 : vector<1x64xf32> to vector<15x64xf32>
    %173 = arith.mulf %172, %171 : vector<15x64xf32>
    %174 = arith.addf %141, %173 : vector<15x64xf32>
    %cst_57 = arith.constant 0.000000e+00 : f32
    %175 = vector.broadcast %cst_57 : f32 to vector<1x64xf32>
    %176 = vector.extract_strided_slice %6 {offsets = [0, 0], sizes = [1, 64], strides = [1, 1]} : vector<4x64xi32> to vector<1x64xi32>
    %c-10_i32 = arith.constant -10 : i32
    %177 = vector.broadcast %c-10_i32 : i32 to vector<1x64xi32>
    %178 = arith.cmpi eq, %176, %177 : vector<1x64xi32>
    %179 = vector.extract_strided_slice %8 {offsets = [0, 0], sizes = [1, 64], strides = [1, 1]} : vector<4x64xf32> to vector<1x64xf32>
    %cst_58 = arith.constant 0.000000e+00 : f32
    %180 = vector.broadcast %cst_58 : f32 to vector<1x64xf32>
    %181 = arith.select %178, %179, %180 : vector<1x64xi1>, vector<1x64xf32>
    %182 = arith.addf %175, %181 : vector<1x64xf32>
    %183 = vector.extract_strided_slice %6 {offsets = [1, 0], sizes = [1, 64], strides = [1, 1]} : vector<4x64xi32> to vector<1x64xi32>
    %c-10_i32_59 = arith.constant -10 : i32
    %184 = vector.broadcast %c-10_i32_59 : i32 to vector<1x64xi32>
    %185 = arith.cmpi eq, %183, %184 : vector<1x64xi32>
    %186 = vector.extract_strided_slice %8 {offsets = [1, 0], sizes = [1, 64], strides = [1, 1]} : vector<4x64xf32> to vector<1x64xf32>
    %cst_60 = arith.constant 0.000000e+00 : f32
    %187 = vector.broadcast %cst_60 : f32 to vector<1x64xf32>
    %188 = arith.select %185, %186, %187 : vector<1x64xi1>, vector<1x64xf32>
    %189 = arith.addf %182, %188 : vector<1x64xf32>
    %190 = vector.extract_strided_slice %6 {offsets = [2, 0], sizes = [1, 64], strides = [1, 1]} : vector<4x64xi32> to vector<1x64xi32>
    %c-10_i32_61 = arith.constant -10 : i32
    %191 = vector.broadcast %c-10_i32_61 : i32 to vector<1x64xi32>
    %192 = arith.cmpi eq, %190, %191 : vector<1x64xi32>
    %193 = vector.extract_strided_slice %8 {offsets = [2, 0], sizes = [1, 64], strides = [1, 1]} : vector<4x64xf32> to vector<1x64xf32>
    %cst_62 = arith.constant 0.000000e+00 : f32
    %194 = vector.broadcast %cst_62 : f32 to vector<1x64xf32>
    %195 = arith.select %192, %193, %194 : vector<1x64xi1>, vector<1x64xf32>
    %196 = arith.addf %189, %195 : vector<1x64xf32>
    %197 = vector.extract_strided_slice %6 {offsets = [3, 0], sizes = [1, 64], strides = [1, 1]} : vector<4x64xi32> to vector<1x64xi32>
    %c-10_i32_63 = arith.constant -10 : i32
    %198 = vector.broadcast %c-10_i32_63 : i32 to vector<1x64xi32>
    %199 = arith.cmpi eq, %197, %198 : vector<1x64xi32>
    %200 = vector.extract_strided_slice %8 {offsets = [3, 0], sizes = [1, 64], strides = [1, 1]} : vector<4x64xf32> to vector<1x64xf32>
    %cst_64 = arith.constant 0.000000e+00 : f32
    %201 = vector.broadcast %cst_64 : f32 to vector<1x64xf32>
    %202 = arith.select %199, %200, %201 : vector<1x64xi1>, vector<1x64xf32>
    %203 = arith.addf %196, %202 : vector<1x64xf32>
    %c0_65 = arith.constant 0 : index
    %c118 = arith.constant 118 : index
    %204 = vector.load %arg5[%c0_65, %c118] : memref<15x320xf32, #tpu.memory_space<vmem>>, vector<15x64xf32>
    %205 = vector.broadcast %203 : vector<1x64xf32> to vector<15x64xf32>
    %206 = arith.mulf %205, %204 : vector<15x64xf32>
    %207 = arith.addf %174, %206 : vector<15x64xf32>
    %cst_66 = arith.constant 0.000000e+00 : f32
    %208 = vector.broadcast %cst_66 : f32 to vector<1x64xf32>
    %209 = vector.extract_strided_slice %6 {offsets = [0, 0], sizes = [1, 64], strides = [1, 1]} : vector<4x64xi32> to vector<1x64xi32>
    %c-9_i32 = arith.constant -9 : i32
    %210 = vector.broadcast %c-9_i32 : i32 to vector<1x64xi32>
    %211 = arith.cmpi eq, %209, %210 : vector<1x64xi32>
    %212 = vector.extract_strided_slice %8 {offsets = [0, 0], sizes = [1, 64], strides = [1, 1]} : vector<4x64xf32> to vector<1x64xf32>
    %cst_67 = arith.constant 0.000000e+00 : f32
    %213 = vector.broadcast %cst_67 : f32 to vector<1x64xf32>
    %214 = arith.select %211, %212, %213 : vector<1x64xi1>, vector<1x64xf32>
    %215 = arith.addf %208, %214 : vector<1x64xf32>
    %216 = vector.extract_strided_slice %6 {offsets = [1, 0], sizes = [1, 64], strides = [1, 1]} : vector<4x64xi32> to vector<1x64xi32>
    %c-9_i32_68 = arith.constant -9 : i32
    %217 = vector.broadcast %c-9_i32_68 : i32 to vector<1x64xi32>
    %218 = arith.cmpi eq, %216, %217 : vector<1x64xi32>
    %219 = vector.extract_strided_slice %8 {offsets = [1, 0], sizes = [1, 64], strides = [1, 1]} : vector<4x64xf32> to vector<1x64xf32>
    %cst_69 = arith.constant 0.000000e+00 : f32
    %220 = vector.broadcast %cst_69 : f32 to vector<1x64xf32>
    %221 = arith.select %218, %219, %220 : vector<1x64xi1>, vector<1x64xf32>
    %222 = arith.addf %215, %221 : vector<1x64xf32>
    %223 = vector.extract_strided_slice %6 {offsets = [2, 0], sizes = [1, 64], strides = [1, 1]} : vector<4x64xi32> to vector<1x64xi32>
    %c-9_i32_70 = arith.constant -9 : i32
    %224 = vector.broadcast %c-9_i32_70 : i32 to vector<1x64xi32>
    %225 = arith.cmpi eq, %223, %224 : vector<1x64xi32>
    %226 = vector.extract_strided_slice %8 {offsets = [2, 0], sizes = [1, 64], strides = [1, 1]} : vector<4x64xf32> to vector<1x64xf32>
    %cst_71 = arith.constant 0.000000e+00 : f32
    %227 = vector.broadcast %cst_71 : f32 to vector<1x64xf32>
    %228 = arith.select %225, %226, %227 : vector<1x64xi1>, vector<1x64xf32>
    %229 = arith.addf %222, %228 : vector<1x64xf32>
    %230 = vector.extract_strided_slice %6 {offsets = [3, 0], sizes = [1, 64], strides = [1, 1]} : vector<4x64xi32> to vector<1x64xi32>
    %c-9_i32_72 = arith.constant -9 : i32
    %231 = vector.broadcast %c-9_i32_72 : i32 to vector<1x64xi32>
    %232 = arith.cmpi eq, %230, %231 : vector<1x64xi32>
    %233 = vector.extract_strided_slice %8 {offsets = [3, 0], sizes = [1, 64], strides = [1, 1]} : vector<4x64xf32> to vector<1x64xf32>
    %cst_73 = arith.constant 0.000000e+00 : f32
    %234 = vector.broadcast %cst_73 : f32 to vector<1x64xf32>
    %235 = arith.select %232, %233, %234 : vector<1x64xi1>, vector<1x64xf32>
    %236 = arith.addf %229, %235 : vector<1x64xf32>
    %c0_74 = arith.constant 0 : index
    %c119 = arith.constant 119 : index
    %237 = vector.load %arg5[%c0_74, %c119] : memref<15x320xf32, #tpu.memory_space<vmem>>, vector<15x64xf32>
    %238 = vector.broadcast %236 : vector<1x64xf32> to vector<15x64xf32>
    %239 = arith.mulf %238, %237 : vector<15x64xf32>
    %240 = arith.addf %207, %239 : vector<15x64xf32>
    %cst_75 = arith.constant 0.000000e+00 : f32
    %241 = vector.broadcast %cst_75 : f32 to vector<1x64xf32>
    %242 = vector.extract_strided_slice %6 {offsets = [0, 0], sizes = [1, 64], strides = [1, 1]} : vector<4x64xi32> to vector<1x64xi32>
    %c-8_i32 = arith.constant -8 : i32
    %243 = vector.broadcast %c-8_i32 : i32 to vector<1x64xi32>
    %244 = arith.cmpi eq, %242, %243 : vector<1x64xi32>
    %245 = vector.extract_strided_slice %8 {offsets = [0, 0], sizes = [1, 64], strides = [1, 1]} : vector<4x64xf32> to vector<1x64xf32>
    %cst_76 = arith.constant 0.000000e+00 : f32
    %246 = vector.broadcast %cst_76 : f32 to vector<1x64xf32>
    %247 = arith.select %244, %245, %246 : vector<1x64xi1>, vector<1x64xf32>
    %248 = arith.addf %241, %247 : vector<1x64xf32>
    %249 = vector.extract_strided_slice %6 {offsets = [1, 0], sizes = [1, 64], strides = [1, 1]} : vector<4x64xi32> to vector<1x64xi32>
    %c-8_i32_77 = arith.constant -8 : i32
    %250 = vector.broadcast %c-8_i32_77 : i32 to vector<1x64xi32>
    %251 = arith.cmpi eq, %249, %250 : vector<1x64xi32>
    %252 = vector.extract_strided_slice %8 {offsets = [1, 0], sizes = [1, 64], strides = [1, 1]} : vector<4x64xf32> to vector<1x64xf32>
    %cst_78 = arith.constant 0.000000e+00 : f32
    %253 = vector.broadcast %cst_78 : f32 to vector<1x64xf32>
    %254 = arith.select %251, %252, %253 : vector<1x64xi1>, vector<1x64xf32>
    %255 = arith.addf %248, %254 : vector<1x64xf32>
    %256 = vector.extract_strided_slice %6 {offsets = [2, 0], sizes = [1, 64], strides = [1, 1]} : vector<4x64xi32> to vector<1x64xi32>
    %c-8_i32_79 = arith.constant -8 : i32
    %257 = vector.broadcast %c-8_i32_79 : i32 to vector<1x64xi32>
    %258 = arith.cmpi eq, %256, %257 : vector<1x64xi32>
    %259 = vector.extract_strided_slice %8 {offsets = [2, 0], sizes = [1, 64], strides = [1, 1]} : vector<4x64xf32> to vector<1x64xf32>
    %cst_80 = arith.constant 0.000000e+00 : f32
    %260 = vector.broadcast %cst_80 : f32 to vector<1x64xf32>
    %261 = arith.select %258, %259, %260 : vector<1x64xi1>, vector<1x64xf32>
    %262 = arith.addf %255, %261 : vector<1x64xf32>
    %263 = vector.extract_strided_slice %6 {offsets = [3, 0], sizes = [1, 64], strides = [1, 1]} : vector<4x64xi32> to vector<1x64xi32>
    %c-8_i32_81 = arith.constant -8 : i32
    %264 = vector.broadcast %c-8_i32_81 : i32 to vector<1x64xi32>
    %265 = arith.cmpi eq, %263, %264 : vector<1x64xi32>
    %266 = vector.extract_strided_slice %8 {offsets = [3, 0], sizes = [1, 64], strides = [1, 1]} : vector<4x64xf32> to vector<1x64xf32>
    %cst_82 = arith.constant 0.000000e+00 : f32
    %267 = vector.broadcast %cst_82 : f32 to vector<1x64xf32>
    %268 = arith.select %265, %266, %267 : vector<1x64xi1>, vector<1x64xf32>
    %269 = arith.addf %262, %268 : vector<1x64xf32>
    %c0_83 = arith.constant 0 : index
    %c120 = arith.constant 120 : index
    %270 = vector.load %arg5[%c0_83, %c120] : memref<15x320xf32, #tpu.memory_space<vmem>>, vector<15x64xf32>
    %271 = vector.broadcast %269 : vector<1x64xf32> to vector<15x64xf32>
    %272 = arith.mulf %271, %270 : vector<15x64xf32>
    %273 = arith.addf %240, %272 : vector<15x64xf32>
    %cst_84 = arith.constant 0.000000e+00 : f32
    %274 = vector.broadcast %cst_84 : f32 to vector<1x64xf32>
    %275 = vector.extract_strided_slice %6 {offsets = [0, 0], sizes = [1, 64], strides = [1, 1]} : vector<4x64xi32> to vector<1x64xi32>
    %c-7_i32 = arith.constant -7 : i32
    %276 = vector.broadcast %c-7_i32 : i32 to vector<1x64xi32>
    %277 = arith.cmpi eq, %275, %276 : vector<1x64xi32>
    %278 = vector.extract_strided_slice %8 {offsets = [0, 0], sizes = [1, 64], strides = [1, 1]} : vector<4x64xf32> to vector<1x64xf32>
    %cst_85 = arith.constant 0.000000e+00 : f32
    %279 = vector.broadcast %cst_85 : f32 to vector<1x64xf32>
    %280 = arith.select %277, %278, %279 : vector<1x64xi1>, vector<1x64xf32>
    %281 = arith.addf %274, %280 : vector<1x64xf32>
    %282 = vector.extract_strided_slice %6 {offsets = [1, 0], sizes = [1, 64], strides = [1, 1]} : vector<4x64xi32> to vector<1x64xi32>
    %c-7_i32_86 = arith.constant -7 : i32
    %283 = vector.broadcast %c-7_i32_86 : i32 to vector<1x64xi32>
    %284 = arith.cmpi eq, %282, %283 : vector<1x64xi32>
    %285 = vector.extract_strided_slice %8 {offsets = [1, 0], sizes = [1, 64], strides = [1, 1]} : vector<4x64xf32> to vector<1x64xf32>
    %cst_87 = arith.constant 0.000000e+00 : f32
    %286 = vector.broadcast %cst_87 : f32 to vector<1x64xf32>
    %287 = arith.select %284, %285, %286 : vector<1x64xi1>, vector<1x64xf32>
    %288 = arith.addf %281, %287 : vector<1x64xf32>
    %289 = vector.extract_strided_slice %6 {offsets = [2, 0], sizes = [1, 64], strides = [1, 1]} : vector<4x64xi32> to vector<1x64xi32>
    %c-7_i32_88 = arith.constant -7 : i32
    %290 = vector.broadcast %c-7_i32_88 : i32 to vector<1x64xi32>
    %291 = arith.cmpi eq, %289, %290 : vector<1x64xi32>
    %292 = vector.extract_strided_slice %8 {offsets = [2, 0], sizes = [1, 64], strides = [1, 1]} : vector<4x64xf32> to vector<1x64xf32>
    %cst_89 = arith.constant 0.000000e+00 : f32
    %293 = vector.broadcast %cst_89 : f32 to vector<1x64xf32>
    %294 = arith.select %291, %292, %293 : vector<1x64xi1>, vector<1x64xf32>
    %295 = arith.addf %288, %294 : vector<1x64xf32>
    %296 = vector.extract_strided_slice %6 {offsets = [3, 0], sizes = [1, 64], strides = [1, 1]} : vector<4x64xi32> to vector<1x64xi32>
    %c-7_i32_90 = arith.constant -7 : i32
    %297 = vector.broadcast %c-7_i32_90 : i32 to vector<1x64xi32>
    %298 = arith.cmpi eq, %296, %297 : vector<1x64xi32>
    %299 = vector.extract_strided_slice %8 {offsets = [3, 0], sizes = [1, 64], strides = [1, 1]} : vector<4x64xf32> to vector<1x64xf32>
    %cst_91 = arith.constant 0.000000e+00 : f32
    %300 = vector.broadcast %cst_91 : f32 to vector<1x64xf32>
    %301 = arith.select %298, %299, %300 : vector<1x64xi1>, vector<1x64xf32>
    %302 = arith.addf %295, %301 : vector<1x64xf32>
    %c0_92 = arith.constant 0 : index
    %c121 = arith.constant 121 : index
    %303 = vector.load %arg5[%c0_92, %c121] : memref<15x320xf32, #tpu.memory_space<vmem>>, vector<15x64xf32>
    %304 = vector.broadcast %302 : vector<1x64xf32> to vector<15x64xf32>
    %305 = arith.mulf %304, %303 : vector<15x64xf32>
    %306 = arith.addf %273, %305 : vector<15x64xf32>
    %cst_93 = arith.constant 0.000000e+00 : f32
    %307 = vector.broadcast %cst_93 : f32 to vector<1x64xf32>
    %308 = vector.extract_strided_slice %6 {offsets = [0, 0], sizes = [1, 64], strides = [1, 1]} : vector<4x64xi32> to vector<1x64xi32>
    %c-6_i32 = arith.constant -6 : i32
    %309 = vector.broadcast %c-6_i32 : i32 to vector<1x64xi32>
    %310 = arith.cmpi eq, %308, %309 : vector<1x64xi32>
    %311 = vector.extract_strided_slice %8 {offsets = [0, 0], sizes = [1, 64], strides = [1, 1]} : vector<4x64xf32> to vector<1x64xf32>
    %cst_94 = arith.constant 0.000000e+00 : f32
    %312 = vector.broadcast %cst_94 : f32 to vector<1x64xf32>
    %313 = arith.select %310, %311, %312 : vector<1x64xi1>, vector<1x64xf32>
    %314 = arith.addf %307, %313 : vector<1x64xf32>
    %315 = vector.extract_strided_slice %6 {offsets = [1, 0], sizes = [1, 64], strides = [1, 1]} : vector<4x64xi32> to vector<1x64xi32>
    %c-6_i32_95 = arith.constant -6 : i32
    %316 = vector.broadcast %c-6_i32_95 : i32 to vector<1x64xi32>
    %317 = arith.cmpi eq, %315, %316 : vector<1x64xi32>
    %318 = vector.extract_strided_slice %8 {offsets = [1, 0], sizes = [1, 64], strides = [1, 1]} : vector<4x64xf32> to vector<1x64xf32>
    %cst_96 = arith.constant 0.000000e+00 : f32
    %319 = vector.broadcast %cst_96 : f32 to vector<1x64xf32>
    %320 = arith.select %317, %318, %319 : vector<1x64xi1>, vector<1x64xf32>
    %321 = arith.addf %314, %320 : vector<1x64xf32>
    %322 = vector.extract_strided_slice %6 {offsets = [2, 0], sizes = [1, 64], strides = [1, 1]} : vector<4x64xi32> to vector<1x64xi32>
    %c-6_i32_97 = arith.constant -6 : i32
    %323 = vector.broadcast %c-6_i32_97 : i32 to vector<1x64xi32>
    %324 = arith.cmpi eq, %322, %323 : vector<1x64xi32>
    %325 = vector.extract_strided_slice %8 {offsets = [2, 0], sizes = [1, 64], strides = [1, 1]} : vector<4x64xf32> to vector<1x64xf32>
    %cst_98 = arith.constant 0.000000e+00 : f32
    %326 = vector.broadcast %cst_98 : f32 to vector<1x64xf32>
    %327 = arith.select %324, %325, %326 : vector<1x64xi1>, vector<1x64xf32>
    %328 = arith.addf %321, %327 : vector<1x64xf32>
    %329 = vector.extract_strided_slice %6 {offsets = [3, 0], sizes = [1, 64], strides = [1, 1]} : vector<4x64xi32> to vector<1x64xi32>
    %c-6_i32_99 = arith.constant -6 : i32
    %330 = vector.broadcast %c-6_i32_99 : i32 to vector<1x64xi32>
    %331 = arith.cmpi eq, %329, %330 : vector<1x64xi32>
    %332 = vector.extract_strided_slice %8 {offsets = [3, 0], sizes = [1, 64], strides = [1, 1]} : vector<4x64xf32> to vector<1x64xf32>
    %cst_100 = arith.constant 0.000000e+00 : f32
    %333 = vector.broadcast %cst_100 : f32 to vector<1x64xf32>
    %334 = arith.select %331, %332, %333 : vector<1x64xi1>, vector<1x64xf32>
    %335 = arith.addf %328, %334 : vector<1x64xf32>
    %c0_101 = arith.constant 0 : index
    %c122 = arith.constant 122 : index
    %336 = vector.load %arg5[%c0_101, %c122] : memref<15x320xf32, #tpu.memory_space<vmem>>, vector<15x64xf32>
    %337 = vector.broadcast %335 : vector<1x64xf32> to vector<15x64xf32>
    %338 = arith.mulf %337, %336 : vector<15x64xf32>
    %339 = arith.addf %306, %338 : vector<15x64xf32>
    %cst_102 = arith.constant 0.000000e+00 : f32
    %340 = vector.broadcast %cst_102 : f32 to vector<1x64xf32>
    %341 = vector.extract_strided_slice %6 {offsets = [0, 0], sizes = [1, 64], strides = [1, 1]} : vector<4x64xi32> to vector<1x64xi32>
    %c-2_i32 = arith.constant -2 : i32
    %342 = vector.broadcast %c-2_i32 : i32 to vector<1x64xi32>
    %343 = arith.cmpi eq, %341, %342 : vector<1x64xi32>
    %344 = vector.extract_strided_slice %8 {offsets = [0, 0], sizes = [1, 64], strides = [1, 1]} : vector<4x64xf32> to vector<1x64xf32>
    %cst_103 = arith.constant 0.000000e+00 : f32
    %345 = vector.broadcast %cst_103 : f32 to vector<1x64xf32>
    %346 = arith.select %343, %344, %345 : vector<1x64xi1>, vector<1x64xf32>
    %347 = arith.addf %340, %346 : vector<1x64xf32>
    %348 = vector.extract_strided_slice %6 {offsets = [1, 0], sizes = [1, 64], strides = [1, 1]} : vector<4x64xi32> to vector<1x64xi32>
    %c-2_i32_104 = arith.constant -2 : i32
    %349 = vector.broadcast %c-2_i32_104 : i32 to vector<1x64xi32>
    %350 = arith.cmpi eq, %348, %349 : vector<1x64xi32>
    %351 = vector.extract_strided_slice %8 {offsets = [1, 0], sizes = [1, 64], strides = [1, 1]} : vector<4x64xf32> to vector<1x64xf32>
    %cst_105 = arith.constant 0.000000e+00 : f32
    %352 = vector.broadcast %cst_105 : f32 to vector<1x64xf32>
    %353 = arith.select %350, %351, %352 : vector<1x64xi1>, vector<1x64xf32>
    %354 = arith.addf %347, %353 : vector<1x64xf32>
    %355 = vector.extract_strided_slice %6 {offsets = [2, 0], sizes = [1, 64], strides = [1, 1]} : vector<4x64xi32> to vector<1x64xi32>
    %c-2_i32_106 = arith.constant -2 : i32
    %356 = vector.broadcast %c-2_i32_106 : i32 to vector<1x64xi32>
    %357 = arith.cmpi eq, %355, %356 : vector<1x64xi32>
    %358 = vector.extract_strided_slice %8 {offsets = [2, 0], sizes = [1, 64], strides = [1, 1]} : vector<4x64xf32> to vector<1x64xf32>
    %cst_107 = arith.constant 0.000000e+00 : f32
    %359 = vector.broadcast %cst_107 : f32 to vector<1x64xf32>
    %360 = arith.select %357, %358, %359 : vector<1x64xi1>, vector<1x64xf32>
    %361 = arith.addf %354, %360 : vector<1x64xf32>
    %362 = vector.extract_strided_slice %6 {offsets = [3, 0], sizes = [1, 64], strides = [1, 1]} : vector<4x64xi32> to vector<1x64xi32>
    %c-2_i32_108 = arith.constant -2 : i32
    %363 = vector.broadcast %c-2_i32_108 : i32 to vector<1x64xi32>
    %364 = arith.cmpi eq, %362, %363 : vector<1x64xi32>
    %365 = vector.extract_strided_slice %8 {offsets = [3, 0], sizes = [1, 64], strides = [1, 1]} : vector<4x64xf32> to vector<1x64xf32>
    %cst_109 = arith.constant 0.000000e+00 : f32
    %366 = vector.broadcast %cst_109 : f32 to vector<1x64xf32>
    %367 = arith.select %364, %365, %366 : vector<1x64xi1>, vector<1x64xf32>
    %368 = arith.addf %361, %367 : vector<1x64xf32>
    %c0_110 = arith.constant 0 : index
    %c126 = arith.constant 126 : index
    %369 = vector.load %arg5[%c0_110, %c126] : memref<15x320xf32, #tpu.memory_space<vmem>>, vector<15x64xf32>
    %370 = vector.broadcast %368 : vector<1x64xf32> to vector<15x64xf32>
    %371 = arith.mulf %370, %369 : vector<15x64xf32>
    %372 = arith.addf %339, %371 : vector<15x64xf32>
    %cst_111 = arith.constant 0.000000e+00 : f32
    %373 = vector.broadcast %cst_111 : f32 to vector<1x64xf32>
    %374 = vector.extract_strided_slice %6 {offsets = [0, 0], sizes = [1, 64], strides = [1, 1]} : vector<4x64xi32> to vector<1x64xi32>
    %c-1_i32 = arith.constant -1 : i32
    %375 = vector.broadcast %c-1_i32 : i32 to vector<1x64xi32>
    %376 = arith.cmpi eq, %374, %375 : vector<1x64xi32>
    %377 = vector.extract_strided_slice %8 {offsets = [0, 0], sizes = [1, 64], strides = [1, 1]} : vector<4x64xf32> to vector<1x64xf32>
    %cst_112 = arith.constant 0.000000e+00 : f32
    %378 = vector.broadcast %cst_112 : f32 to vector<1x64xf32>
    %379 = arith.select %376, %377, %378 : vector<1x64xi1>, vector<1x64xf32>
    %380 = arith.addf %373, %379 : vector<1x64xf32>
    %381 = vector.extract_strided_slice %6 {offsets = [1, 0], sizes = [1, 64], strides = [1, 1]} : vector<4x64xi32> to vector<1x64xi32>
    %c-1_i32_113 = arith.constant -1 : i32
    %382 = vector.broadcast %c-1_i32_113 : i32 to vector<1x64xi32>
    %383 = arith.cmpi eq, %381, %382 : vector<1x64xi32>
    %384 = vector.extract_strided_slice %8 {offsets = [1, 0], sizes = [1, 64], strides = [1, 1]} : vector<4x64xf32> to vector<1x64xf32>
    %cst_114 = arith.constant 0.000000e+00 : f32
    %385 = vector.broadcast %cst_114 : f32 to vector<1x64xf32>
    %386 = arith.select %383, %384, %385 : vector<1x64xi1>, vector<1x64xf32>
    %387 = arith.addf %380, %386 : vector<1x64xf32>
    %388 = vector.extract_strided_slice %6 {offsets = [2, 0], sizes = [1, 64], strides = [1, 1]} : vector<4x64xi32> to vector<1x64xi32>
    %c-1_i32_115 = arith.constant -1 : i32
    %389 = vector.broadcast %c-1_i32_115 : i32 to vector<1x64xi32>
    %390 = arith.cmpi eq, %388, %389 : vector<1x64xi32>
    %391 = vector.extract_strided_slice %8 {offsets = [2, 0], sizes = [1, 64], strides = [1, 1]} : vector<4x64xf32> to vector<1x64xf32>
    %cst_116 = arith.constant 0.000000e+00 : f32
    %392 = vector.broadcast %cst_116 : f32 to vector<1x64xf32>
    %393 = arith.select %390, %391, %392 : vector<1x64xi1>, vector<1x64xf32>
    %394 = arith.addf %387, %393 : vector<1x64xf32>
    %395 = vector.extract_strided_slice %6 {offsets = [3, 0], sizes = [1, 64], strides = [1, 1]} : vector<4x64xi32> to vector<1x64xi32>
    %c-1_i32_117 = arith.constant -1 : i32
    %396 = vector.broadcast %c-1_i32_117 : i32 to vector<1x64xi32>
    %397 = arith.cmpi eq, %395, %396 : vector<1x64xi32>
    %398 = vector.extract_strided_slice %8 {offsets = [3, 0], sizes = [1, 64], strides = [1, 1]} : vector<4x64xf32> to vector<1x64xf32>
    %cst_118 = arith.constant 0.000000e+00 : f32
    %399 = vector.broadcast %cst_118 : f32 to vector<1x64xf32>
    %400 = arith.select %397, %398, %399 : vector<1x64xi1>, vector<1x64xf32>
    %401 = arith.addf %394, %400 : vector<1x64xf32>
    %c0_119 = arith.constant 0 : index
    %c127 = arith.constant 127 : index
    %402 = vector.load %arg5[%c0_119, %c127] : memref<15x320xf32, #tpu.memory_space<vmem>>, vector<15x64xf32>
    %403 = vector.broadcast %401 : vector<1x64xf32> to vector<15x64xf32>
    %404 = arith.mulf %403, %402 : vector<15x64xf32>
    %405 = arith.addf %372, %404 : vector<15x64xf32>
    %cst_120 = arith.constant 0.000000e+00 : f32
    %406 = vector.broadcast %cst_120 : f32 to vector<1x64xf32>
    %407 = vector.extract_strided_slice %6 {offsets = [0, 0], sizes = [1, 64], strides = [1, 1]} : vector<4x64xi32> to vector<1x64xi32>
    %c0_i32 = arith.constant 0 : i32
    %408 = vector.broadcast %c0_i32 : i32 to vector<1x64xi32>
    %409 = arith.cmpi eq, %407, %408 : vector<1x64xi32>
    %410 = vector.extract_strided_slice %8 {offsets = [0, 0], sizes = [1, 64], strides = [1, 1]} : vector<4x64xf32> to vector<1x64xf32>
    %cst_121 = arith.constant 0.000000e+00 : f32
    %411 = vector.broadcast %cst_121 : f32 to vector<1x64xf32>
    %412 = arith.select %409, %410, %411 : vector<1x64xi1>, vector<1x64xf32>
    %413 = arith.addf %406, %412 : vector<1x64xf32>
    %414 = vector.extract_strided_slice %6 {offsets = [1, 0], sizes = [1, 64], strides = [1, 1]} : vector<4x64xi32> to vector<1x64xi32>
    %c0_i32_122 = arith.constant 0 : i32
    %415 = vector.broadcast %c0_i32_122 : i32 to vector<1x64xi32>
    %416 = arith.cmpi eq, %414, %415 : vector<1x64xi32>
    %417 = vector.extract_strided_slice %8 {offsets = [1, 0], sizes = [1, 64], strides = [1, 1]} : vector<4x64xf32> to vector<1x64xf32>
    %cst_123 = arith.constant 0.000000e+00 : f32
    %418 = vector.broadcast %cst_123 : f32 to vector<1x64xf32>
    %419 = arith.select %416, %417, %418 : vector<1x64xi1>, vector<1x64xf32>
    %420 = arith.addf %413, %419 : vector<1x64xf32>
    %421 = vector.extract_strided_slice %6 {offsets = [2, 0], sizes = [1, 64], strides = [1, 1]} : vector<4x64xi32> to vector<1x64xi32>
    %c0_i32_124 = arith.constant 0 : i32
    %422 = vector.broadcast %c0_i32_124 : i32 to vector<1x64xi32>
    %423 = arith.cmpi eq, %421, %422 : vector<1x64xi32>
    %424 = vector.extract_strided_slice %8 {offsets = [2, 0], sizes = [1, 64], strides = [1, 1]} : vector<4x64xf32> to vector<1x64xf32>
    %cst_125 = arith.constant 0.000000e+00 : f32
    %425 = vector.broadcast %cst_125 : f32 to vector<1x64xf32>
    %426 = arith.select %423, %424, %425 : vector<1x64xi1>, vector<1x64xf32>
    %427 = arith.addf %420, %426 : vector<1x64xf32>
    %428 = vector.extract_strided_slice %6 {offsets = [3, 0], sizes = [1, 64], strides = [1, 1]} : vector<4x64xi32> to vector<1x64xi32>
    %c0_i32_126 = arith.constant 0 : i32
    %429 = vector.broadcast %c0_i32_126 : i32 to vector<1x64xi32>
    %430 = arith.cmpi eq, %428, %429 : vector<1x64xi32>
    %431 = vector.extract_strided_slice %8 {offsets = [3, 0], sizes = [1, 64], strides = [1, 1]} : vector<4x64xf32> to vector<1x64xf32>
    %cst_127 = arith.constant 0.000000e+00 : f32
    %432 = vector.broadcast %cst_127 : f32 to vector<1x64xf32>
    %433 = arith.select %430, %431, %432 : vector<1x64xi1>, vector<1x64xf32>
    %434 = arith.addf %427, %433 : vector<1x64xf32>
    %c0_128 = arith.constant 0 : index
    %c128_129 = arith.constant 128 : index
    %435 = vector.load %arg5[%c0_128, %c128_129] : memref<15x320xf32, #tpu.memory_space<vmem>>, vector<15x64xf32>
    %436 = vector.broadcast %434 : vector<1x64xf32> to vector<15x64xf32>
    %437 = arith.mulf %436, %435 : vector<15x64xf32>
    %438 = arith.addf %405, %437 : vector<15x64xf32>
    %cst_130 = arith.constant 0.000000e+00 : f32
    %439 = vector.broadcast %cst_130 : f32 to vector<1x64xf32>
    %440 = vector.extract_strided_slice %6 {offsets = [0, 0], sizes = [1, 64], strides = [1, 1]} : vector<4x64xi32> to vector<1x64xi32>
    %c1_i32 = arith.constant 1 : i32
    %441 = vector.broadcast %c1_i32 : i32 to vector<1x64xi32>
    %442 = arith.cmpi eq, %440, %441 : vector<1x64xi32>
    %443 = vector.extract_strided_slice %8 {offsets = [0, 0], sizes = [1, 64], strides = [1, 1]} : vector<4x64xf32> to vector<1x64xf32>
    %cst_131 = arith.constant 0.000000e+00 : f32
    %444 = vector.broadcast %cst_131 : f32 to vector<1x64xf32>
    %445 = arith.select %442, %443, %444 : vector<1x64xi1>, vector<1x64xf32>
    %446 = arith.addf %439, %445 : vector<1x64xf32>
    %447 = vector.extract_strided_slice %6 {offsets = [1, 0], sizes = [1, 64], strides = [1, 1]} : vector<4x64xi32> to vector<1x64xi32>
    %c1_i32_132 = arith.constant 1 : i32
    %448 = vector.broadcast %c1_i32_132 : i32 to vector<1x64xi32>
    %449 = arith.cmpi eq, %447, %448 : vector<1x64xi32>
    %450 = vector.extract_strided_slice %8 {offsets = [1, 0], sizes = [1, 64], strides = [1, 1]} : vector<4x64xf32> to vector<1x64xf32>
    %cst_133 = arith.constant 0.000000e+00 : f32
    %451 = vector.broadcast %cst_133 : f32 to vector<1x64xf32>
    %452 = arith.select %449, %450, %451 : vector<1x64xi1>, vector<1x64xf32>
    %453 = arith.addf %446, %452 : vector<1x64xf32>
    %454 = vector.extract_strided_slice %6 {offsets = [2, 0], sizes = [1, 64], strides = [1, 1]} : vector<4x64xi32> to vector<1x64xi32>
    %c1_i32_134 = arith.constant 1 : i32
    %455 = vector.broadcast %c1_i32_134 : i32 to vector<1x64xi32>
    %456 = arith.cmpi eq, %454, %455 : vector<1x64xi32>
    %457 = vector.extract_strided_slice %8 {offsets = [2, 0], sizes = [1, 64], strides = [1, 1]} : vector<4x64xf32> to vector<1x64xf32>
    %cst_135 = arith.constant 0.000000e+00 : f32
    %458 = vector.broadcast %cst_135 : f32 to vector<1x64xf32>
    %459 = arith.select %456, %457, %458 : vector<1x64xi1>, vector<1x64xf32>
    %460 = arith.addf %453, %459 : vector<1x64xf32>
    %461 = vector.extract_strided_slice %6 {offsets = [3, 0], sizes = [1, 64], strides = [1, 1]} : vector<4x64xi32> to vector<1x64xi32>
    %c1_i32_136 = arith.constant 1 : i32
    %462 = vector.broadcast %c1_i32_136 : i32 to vector<1x64xi32>
    %463 = arith.cmpi eq, %461, %462 : vector<1x64xi32>
    %464 = vector.extract_strided_slice %8 {offsets = [3, 0], sizes = [1, 64], strides = [1, 1]} : vector<4x64xf32> to vector<1x64xf32>
    %cst_137 = arith.constant 0.000000e+00 : f32
    %465 = vector.broadcast %cst_137 : f32 to vector<1x64xf32>
    %466 = arith.select %463, %464, %465 : vector<1x64xi1>, vector<1x64xf32>
    %467 = arith.addf %460, %466 : vector<1x64xf32>
    %c0_138 = arith.constant 0 : index
    %c129 = arith.constant 129 : index
    %468 = vector.load %arg5[%c0_138, %c129] : memref<15x320xf32, #tpu.memory_space<vmem>>, vector<15x64xf32>
    %469 = vector.broadcast %467 : vector<1x64xf32> to vector<15x64xf32>
    %470 = arith.mulf %469, %468 : vector<15x64xf32>
    %471 = arith.addf %438, %470 : vector<15x64xf32>
    %cst_139 = arith.constant 0.000000e+00 : f32
    %472 = vector.broadcast %cst_139 : f32 to vector<1x64xf32>
    %473 = vector.extract_strided_slice %6 {offsets = [0, 0], sizes = [1, 64], strides = [1, 1]} : vector<4x64xi32> to vector<1x64xi32>
    %c2_i32 = arith.constant 2 : i32
    %474 = vector.broadcast %c2_i32 : i32 to vector<1x64xi32>
    %475 = arith.cmpi eq, %473, %474 : vector<1x64xi32>
    %476 = vector.extract_strided_slice %8 {offsets = [0, 0], sizes = [1, 64], strides = [1, 1]} : vector<4x64xf32> to vector<1x64xf32>
    %cst_140 = arith.constant 0.000000e+00 : f32
    %477 = vector.broadcast %cst_140 : f32 to vector<1x64xf32>
    %478 = arith.select %475, %476, %477 : vector<1x64xi1>, vector<1x64xf32>
    %479 = arith.addf %472, %478 : vector<1x64xf32>
    %480 = vector.extract_strided_slice %6 {offsets = [1, 0], sizes = [1, 64], strides = [1, 1]} : vector<4x64xi32> to vector<1x64xi32>
    %c2_i32_141 = arith.constant 2 : i32
    %481 = vector.broadcast %c2_i32_141 : i32 to vector<1x64xi32>
    %482 = arith.cmpi eq, %480, %481 : vector<1x64xi32>
    %483 = vector.extract_strided_slice %8 {offsets = [1, 0], sizes = [1, 64], strides = [1, 1]} : vector<4x64xf32> to vector<1x64xf32>
    %cst_142 = arith.constant 0.000000e+00 : f32
    %484 = vector.broadcast %cst_142 : f32 to vector<1x64xf32>
    %485 = arith.select %482, %483, %484 : vector<1x64xi1>, vector<1x64xf32>
    %486 = arith.addf %479, %485 : vector<1x64xf32>
    %487 = vector.extract_strided_slice %6 {offsets = [2, 0], sizes = [1, 64], strides = [1, 1]} : vector<4x64xi32> to vector<1x64xi32>
    %c2_i32_143 = arith.constant 2 : i32
    %488 = vector.broadcast %c2_i32_143 : i32 to vector<1x64xi32>
    %489 = arith.cmpi eq, %487, %488 : vector<1x64xi32>
    %490 = vector.extract_strided_slice %8 {offsets = [2, 0], sizes = [1, 64], strides = [1, 1]} : vector<4x64xf32> to vector<1x64xf32>
    %cst_144 = arith.constant 0.000000e+00 : f32
    %491 = vector.broadcast %cst_144 : f32 to vector<1x64xf32>
    %492 = arith.select %489, %490, %491 : vector<1x64xi1>, vector<1x64xf32>
    %493 = arith.addf %486, %492 : vector<1x64xf32>
    %494 = vector.extract_strided_slice %6 {offsets = [3, 0], sizes = [1, 64], strides = [1, 1]} : vector<4x64xi32> to vector<1x64xi32>
    %c2_i32_145 = arith.constant 2 : i32
    %495 = vector.broadcast %c2_i32_145 : i32 to vector<1x64xi32>
    %496 = arith.cmpi eq, %494, %495 : vector<1x64xi32>
    %497 = vector.extract_strided_slice %8 {offsets = [3, 0], sizes = [1, 64], strides = [1, 1]} : vector<4x64xf32> to vector<1x64xf32>
    %cst_146 = arith.constant 0.000000e+00 : f32
    %498 = vector.broadcast %cst_146 : f32 to vector<1x64xf32>
    %499 = arith.select %496, %497, %498 : vector<1x64xi1>, vector<1x64xf32>
    %500 = arith.addf %493, %499 : vector<1x64xf32>
    %c0_147 = arith.constant 0 : index
    %c130 = arith.constant 130 : index
    %501 = vector.load %arg5[%c0_147, %c130] : memref<15x320xf32, #tpu.memory_space<vmem>>, vector<15x64xf32>
    %502 = vector.broadcast %500 : vector<1x64xf32> to vector<15x64xf32>
    %503 = arith.mulf %502, %501 : vector<15x64xf32>
    %504 = arith.addf %471, %503 : vector<15x64xf32>
    %cst_148 = arith.constant 0.000000e+00 : f32
    %505 = vector.broadcast %cst_148 : f32 to vector<1x64xf32>
    %506 = vector.extract_strided_slice %6 {offsets = [0, 0], sizes = [1, 64], strides = [1, 1]} : vector<4x64xi32> to vector<1x64xi32>
    %c6_i32 = arith.constant 6 : i32
    %507 = vector.broadcast %c6_i32 : i32 to vector<1x64xi32>
    %508 = arith.cmpi eq, %506, %507 : vector<1x64xi32>
    %509 = vector.extract_strided_slice %8 {offsets = [0, 0], sizes = [1, 64], strides = [1, 1]} : vector<4x64xf32> to vector<1x64xf32>
    %cst_149 = arith.constant 0.000000e+00 : f32
    %510 = vector.broadcast %cst_149 : f32 to vector<1x64xf32>
    %511 = arith.select %508, %509, %510 : vector<1x64xi1>, vector<1x64xf32>
    %512 = arith.addf %505, %511 : vector<1x64xf32>
    %513 = vector.extract_strided_slice %6 {offsets = [1, 0], sizes = [1, 64], strides = [1, 1]} : vector<4x64xi32> to vector<1x64xi32>
    %c6_i32_150 = arith.constant 6 : i32
    %514 = vector.broadcast %c6_i32_150 : i32 to vector<1x64xi32>
    %515 = arith.cmpi eq, %513, %514 : vector<1x64xi32>
    %516 = vector.extract_strided_slice %8 {offsets = [1, 0], sizes = [1, 64], strides = [1, 1]} : vector<4x64xf32> to vector<1x64xf32>
    %cst_151 = arith.constant 0.000000e+00 : f32
    %517 = vector.broadcast %cst_151 : f32 to vector<1x64xf32>
    %518 = arith.select %515, %516, %517 : vector<1x64xi1>, vector<1x64xf32>
    %519 = arith.addf %512, %518 : vector<1x64xf32>
    %520 = vector.extract_strided_slice %6 {offsets = [2, 0], sizes = [1, 64], strides = [1, 1]} : vector<4x64xi32> to vector<1x64xi32>
    %c6_i32_152 = arith.constant 6 : i32
    %521 = vector.broadcast %c6_i32_152 : i32 to vector<1x64xi32>
    %522 = arith.cmpi eq, %520, %521 : vector<1x64xi32>
    %523 = vector.extract_strided_slice %8 {offsets = [2, 0], sizes = [1, 64], strides = [1, 1]} : vector<4x64xf32> to vector<1x64xf32>
    %cst_153 = arith.constant 0.000000e+00 : f32
    %524 = vector.broadcast %cst_153 : f32 to vector<1x64xf32>
    %525 = arith.select %522, %523, %524 : vector<1x64xi1>, vector<1x64xf32>
    %526 = arith.addf %519, %525 : vector<1x64xf32>
    %527 = vector.extract_strided_slice %6 {offsets = [3, 0], sizes = [1, 64], strides = [1, 1]} : vector<4x64xi32> to vector<1x64xi32>
    %c6_i32_154 = arith.constant 6 : i32
    %528 = vector.broadcast %c6_i32_154 : i32 to vector<1x64xi32>
    %529 = arith.cmpi eq, %527, %528 : vector<1x64xi32>
    %530 = vector.extract_strided_slice %8 {offsets = [3, 0], sizes = [1, 64], strides = [1, 1]} : vector<4x64xf32> to vector<1x64xf32>
    %cst_155 = arith.constant 0.000000e+00 : f32
    %531 = vector.broadcast %cst_155 : f32 to vector<1x64xf32>
    %532 = arith.select %529, %530, %531 : vector<1x64xi1>, vector<1x64xf32>
    %533 = arith.addf %526, %532 : vector<1x64xf32>
    %c0_156 = arith.constant 0 : index
    %c134 = arith.constant 134 : index
    %534 = vector.load %arg5[%c0_156, %c134] : memref<15x320xf32, #tpu.memory_space<vmem>>, vector<15x64xf32>
    %535 = vector.broadcast %533 : vector<1x64xf32> to vector<15x64xf32>
    %536 = arith.mulf %535, %534 : vector<15x64xf32>
    %537 = arith.addf %504, %536 : vector<15x64xf32>
    %cst_157 = arith.constant 0.000000e+00 : f32
    %538 = vector.broadcast %cst_157 : f32 to vector<1x64xf32>
    %539 = vector.extract_strided_slice %6 {offsets = [0, 0], sizes = [1, 64], strides = [1, 1]} : vector<4x64xi32> to vector<1x64xi32>
    %c7_i32 = arith.constant 7 : i32
    %540 = vector.broadcast %c7_i32 : i32 to vector<1x64xi32>
    %541 = arith.cmpi eq, %539, %540 : vector<1x64xi32>
    %542 = vector.extract_strided_slice %8 {offsets = [0, 0], sizes = [1, 64], strides = [1, 1]} : vector<4x64xf32> to vector<1x64xf32>
    %cst_158 = arith.constant 0.000000e+00 : f32
    %543 = vector.broadcast %cst_158 : f32 to vector<1x64xf32>
    %544 = arith.select %541, %542, %543 : vector<1x64xi1>, vector<1x64xf32>
    %545 = arith.addf %538, %544 : vector<1x64xf32>
    %546 = vector.extract_strided_slice %6 {offsets = [1, 0], sizes = [1, 64], strides = [1, 1]} : vector<4x64xi32> to vector<1x64xi32>
    %c7_i32_159 = arith.constant 7 : i32
    %547 = vector.broadcast %c7_i32_159 : i32 to vector<1x64xi32>
    %548 = arith.cmpi eq, %546, %547 : vector<1x64xi32>
    %549 = vector.extract_strided_slice %8 {offsets = [1, 0], sizes = [1, 64], strides = [1, 1]} : vector<4x64xf32> to vector<1x64xf32>
    %cst_160 = arith.constant 0.000000e+00 : f32
    %550 = vector.broadcast %cst_160 : f32 to vector<1x64xf32>
    %551 = arith.select %548, %549, %550 : vector<1x64xi1>, vector<1x64xf32>
    %552 = arith.addf %545, %551 : vector<1x64xf32>
    %553 = vector.extract_strided_slice %6 {offsets = [2, 0], sizes = [1, 64], strides = [1, 1]} : vector<4x64xi32> to vector<1x64xi32>
    %c7_i32_161 = arith.constant 7 : i32
    %554 = vector.broadcast %c7_i32_161 : i32 to vector<1x64xi32>
    %555 = arith.cmpi eq, %553, %554 : vector<1x64xi32>
    %556 = vector.extract_strided_slice %8 {offsets = [2, 0], sizes = [1, 64], strides = [1, 1]} : vector<4x64xf32> to vector<1x64xf32>
    %cst_162 = arith.constant 0.000000e+00 : f32
    %557 = vector.broadcast %cst_162 : f32 to vector<1x64xf32>
    %558 = arith.select %555, %556, %557 : vector<1x64xi1>, vector<1x64xf32>
    %559 = arith.addf %552, %558 : vector<1x64xf32>
    %560 = vector.extract_strided_slice %6 {offsets = [3, 0], sizes = [1, 64], strides = [1, 1]} : vector<4x64xi32> to vector<1x64xi32>
    %c7_i32_163 = arith.constant 7 : i32
    %561 = vector.broadcast %c7_i32_163 : i32 to vector<1x64xi32>
    %562 = arith.cmpi eq, %560, %561 : vector<1x64xi32>
    %563 = vector.extract_strided_slice %8 {offsets = [3, 0], sizes = [1, 64], strides = [1, 1]} : vector<4x64xf32> to vector<1x64xf32>
    %cst_164 = arith.constant 0.000000e+00 : f32
    %564 = vector.broadcast %cst_164 : f32 to vector<1x64xf32>
    %565 = arith.select %562, %563, %564 : vector<1x64xi1>, vector<1x64xf32>
    %566 = arith.addf %559, %565 : vector<1x64xf32>
    %c0_165 = arith.constant 0 : index
    %c135 = arith.constant 135 : index
    %567 = vector.load %arg5[%c0_165, %c135] : memref<15x320xf32, #tpu.memory_space<vmem>>, vector<15x64xf32>
    %568 = vector.broadcast %566 : vector<1x64xf32> to vector<15x64xf32>
    %569 = arith.mulf %568, %567 : vector<15x64xf32>
    %570 = arith.addf %537, %569 : vector<15x64xf32>
    %cst_166 = arith.constant 0.000000e+00 : f32
    %571 = vector.broadcast %cst_166 : f32 to vector<1x64xf32>
    %572 = vector.extract_strided_slice %6 {offsets = [0, 0], sizes = [1, 64], strides = [1, 1]} : vector<4x64xi32> to vector<1x64xi32>
    %c8_i32 = arith.constant 8 : i32
    %573 = vector.broadcast %c8_i32 : i32 to vector<1x64xi32>
    %574 = arith.cmpi eq, %572, %573 : vector<1x64xi32>
    %575 = vector.extract_strided_slice %8 {offsets = [0, 0], sizes = [1, 64], strides = [1, 1]} : vector<4x64xf32> to vector<1x64xf32>
    %cst_167 = arith.constant 0.000000e+00 : f32
    %576 = vector.broadcast %cst_167 : f32 to vector<1x64xf32>
    %577 = arith.select %574, %575, %576 : vector<1x64xi1>, vector<1x64xf32>
    %578 = arith.addf %571, %577 : vector<1x64xf32>
    %579 = vector.extract_strided_slice %6 {offsets = [1, 0], sizes = [1, 64], strides = [1, 1]} : vector<4x64xi32> to vector<1x64xi32>
    %c8_i32_168 = arith.constant 8 : i32
    %580 = vector.broadcast %c8_i32_168 : i32 to vector<1x64xi32>
    %581 = arith.cmpi eq, %579, %580 : vector<1x64xi32>
    %582 = vector.extract_strided_slice %8 {offsets = [1, 0], sizes = [1, 64], strides = [1, 1]} : vector<4x64xf32> to vector<1x64xf32>
    %cst_169 = arith.constant 0.000000e+00 : f32
    %583 = vector.broadcast %cst_169 : f32 to vector<1x64xf32>
    %584 = arith.select %581, %582, %583 : vector<1x64xi1>, vector<1x64xf32>
    %585 = arith.addf %578, %584 : vector<1x64xf32>
    %586 = vector.extract_strided_slice %6 {offsets = [2, 0], sizes = [1, 64], strides = [1, 1]} : vector<4x64xi32> to vector<1x64xi32>
    %c8_i32_170 = arith.constant 8 : i32
    %587 = vector.broadcast %c8_i32_170 : i32 to vector<1x64xi32>
    %588 = arith.cmpi eq, %586, %587 : vector<1x64xi32>
    %589 = vector.extract_strided_slice %8 {offsets = [2, 0], sizes = [1, 64], strides = [1, 1]} : vector<4x64xf32> to vector<1x64xf32>
    %cst_171 = arith.constant 0.000000e+00 : f32
    %590 = vector.broadcast %cst_171 : f32 to vector<1x64xf32>
    %591 = arith.select %588, %589, %590 : vector<1x64xi1>, vector<1x64xf32>
    %592 = arith.addf %585, %591 : vector<1x64xf32>
    %593 = vector.extract_strided_slice %6 {offsets = [3, 0], sizes = [1, 64], strides = [1, 1]} : vector<4x64xi32> to vector<1x64xi32>
    %c8_i32_172 = arith.constant 8 : i32
    %594 = vector.broadcast %c8_i32_172 : i32 to vector<1x64xi32>
    %595 = arith.cmpi eq, %593, %594 : vector<1x64xi32>
    %596 = vector.extract_strided_slice %8 {offsets = [3, 0], sizes = [1, 64], strides = [1, 1]} : vector<4x64xf32> to vector<1x64xf32>
    %cst_173 = arith.constant 0.000000e+00 : f32
    %597 = vector.broadcast %cst_173 : f32 to vector<1x64xf32>
    %598 = arith.select %595, %596, %597 : vector<1x64xi1>, vector<1x64xf32>
    %599 = arith.addf %592, %598 : vector<1x64xf32>
    %c0_174 = arith.constant 0 : index
    %c136 = arith.constant 136 : index
    %600 = vector.load %arg5[%c0_174, %c136] : memref<15x320xf32, #tpu.memory_space<vmem>>, vector<15x64xf32>
    %601 = vector.broadcast %599 : vector<1x64xf32> to vector<15x64xf32>
    %602 = arith.mulf %601, %600 : vector<15x64xf32>
    %603 = arith.addf %570, %602 : vector<15x64xf32>
    %cst_175 = arith.constant 0.000000e+00 : f32
    %604 = vector.broadcast %cst_175 : f32 to vector<1x64xf32>
    %605 = vector.extract_strided_slice %6 {offsets = [0, 0], sizes = [1, 64], strides = [1, 1]} : vector<4x64xi32> to vector<1x64xi32>
    %c9_i32 = arith.constant 9 : i32
    %606 = vector.broadcast %c9_i32 : i32 to vector<1x64xi32>
    %607 = arith.cmpi eq, %605, %606 : vector<1x64xi32>
    %608 = vector.extract_strided_slice %8 {offsets = [0, 0], sizes = [1, 64], strides = [1, 1]} : vector<4x64xf32> to vector<1x64xf32>
    %cst_176 = arith.constant 0.000000e+00 : f32
    %609 = vector.broadcast %cst_176 : f32 to vector<1x64xf32>
    %610 = arith.select %607, %608, %609 : vector<1x64xi1>, vector<1x64xf32>
    %611 = arith.addf %604, %610 : vector<1x64xf32>
    %612 = vector.extract_strided_slice %6 {offsets = [1, 0], sizes = [1, 64], strides = [1, 1]} : vector<4x64xi32> to vector<1x64xi32>
    %c9_i32_177 = arith.constant 9 : i32
    %613 = vector.broadcast %c9_i32_177 : i32 to vector<1x64xi32>
    %614 = arith.cmpi eq, %612, %613 : vector<1x64xi32>
    %615 = vector.extract_strided_slice %8 {offsets = [1, 0], sizes = [1, 64], strides = [1, 1]} : vector<4x64xf32> to vector<1x64xf32>
    %cst_178 = arith.constant 0.000000e+00 : f32
    %616 = vector.broadcast %cst_178 : f32 to vector<1x64xf32>
    %617 = arith.select %614, %615, %616 : vector<1x64xi1>, vector<1x64xf32>
    %618 = arith.addf %611, %617 : vector<1x64xf32>
    %619 = vector.extract_strided_slice %6 {offsets = [2, 0], sizes = [1, 64], strides = [1, 1]} : vector<4x64xi32> to vector<1x64xi32>
    %c9_i32_179 = arith.constant 9 : i32
    %620 = vector.broadcast %c9_i32_179 : i32 to vector<1x64xi32>
    %621 = arith.cmpi eq, %619, %620 : vector<1x64xi32>
    %622 = vector.extract_strided_slice %8 {offsets = [2, 0], sizes = [1, 64], strides = [1, 1]} : vector<4x64xf32> to vector<1x64xf32>
    %cst_180 = arith.constant 0.000000e+00 : f32
    %623 = vector.broadcast %cst_180 : f32 to vector<1x64xf32>
    %624 = arith.select %621, %622, %623 : vector<1x64xi1>, vector<1x64xf32>
    %625 = arith.addf %618, %624 : vector<1x64xf32>
    %626 = vector.extract_strided_slice %6 {offsets = [3, 0], sizes = [1, 64], strides = [1, 1]} : vector<4x64xi32> to vector<1x64xi32>
    %c9_i32_181 = arith.constant 9 : i32
    %627 = vector.broadcast %c9_i32_181 : i32 to vector<1x64xi32>
    %628 = arith.cmpi eq, %626, %627 : vector<1x64xi32>
    %629 = vector.extract_strided_slice %8 {offsets = [3, 0], sizes = [1, 64], strides = [1, 1]} : vector<4x64xf32> to vector<1x64xf32>
    %cst_182 = arith.constant 0.000000e+00 : f32
    %630 = vector.broadcast %cst_182 : f32 to vector<1x64xf32>
    %631 = arith.select %628, %629, %630 : vector<1x64xi1>, vector<1x64xf32>
    %632 = arith.addf %625, %631 : vector<1x64xf32>
    %c0_183 = arith.constant 0 : index
    %c137 = arith.constant 137 : index
    %633 = vector.load %arg5[%c0_183, %c137] : memref<15x320xf32, #tpu.memory_space<vmem>>, vector<15x64xf32>
    %634 = vector.broadcast %632 : vector<1x64xf32> to vector<15x64xf32>
    %635 = arith.mulf %634, %633 : vector<15x64xf32>
    %636 = arith.addf %603, %635 : vector<15x64xf32>
    %cst_184 = arith.constant 0.000000e+00 : f32
    %637 = vector.broadcast %cst_184 : f32 to vector<1x64xf32>
    %638 = vector.extract_strided_slice %6 {offsets = [0, 0], sizes = [1, 64], strides = [1, 1]} : vector<4x64xi32> to vector<1x64xi32>
    %c10_i32 = arith.constant 10 : i32
    %639 = vector.broadcast %c10_i32 : i32 to vector<1x64xi32>
    %640 = arith.cmpi eq, %638, %639 : vector<1x64xi32>
    %641 = vector.extract_strided_slice %8 {offsets = [0, 0], sizes = [1, 64], strides = [1, 1]} : vector<4x64xf32> to vector<1x64xf32>
    %cst_185 = arith.constant 0.000000e+00 : f32
    %642 = vector.broadcast %cst_185 : f32 to vector<1x64xf32>
    %643 = arith.select %640, %641, %642 : vector<1x64xi1>, vector<1x64xf32>
    %644 = arith.addf %637, %643 : vector<1x64xf32>
    %645 = vector.extract_strided_slice %6 {offsets = [1, 0], sizes = [1, 64], strides = [1, 1]} : vector<4x64xi32> to vector<1x64xi32>
    %c10_i32_186 = arith.constant 10 : i32
    %646 = vector.broadcast %c10_i32_186 : i32 to vector<1x64xi32>
    %647 = arith.cmpi eq, %645, %646 : vector<1x64xi32>
    %648 = vector.extract_strided_slice %8 {offsets = [1, 0], sizes = [1, 64], strides = [1, 1]} : vector<4x64xf32> to vector<1x64xf32>
    %cst_187 = arith.constant 0.000000e+00 : f32
    %649 = vector.broadcast %cst_187 : f32 to vector<1x64xf32>
    %650 = arith.select %647, %648, %649 : vector<1x64xi1>, vector<1x64xf32>
    %651 = arith.addf %644, %650 : vector<1x64xf32>
    %652 = vector.extract_strided_slice %6 {offsets = [2, 0], sizes = [1, 64], strides = [1, 1]} : vector<4x64xi32> to vector<1x64xi32>
    %c10_i32_188 = arith.constant 10 : i32
    %653 = vector.broadcast %c10_i32_188 : i32 to vector<1x64xi32>
    %654 = arith.cmpi eq, %652, %653 : vector<1x64xi32>
    %655 = vector.extract_strided_slice %8 {offsets = [2, 0], sizes = [1, 64], strides = [1, 1]} : vector<4x64xf32> to vector<1x64xf32>
    %cst_189 = arith.constant 0.000000e+00 : f32
    %656 = vector.broadcast %cst_189 : f32 to vector<1x64xf32>
    %657 = arith.select %654, %655, %656 : vector<1x64xi1>, vector<1x64xf32>
    %658 = arith.addf %651, %657 : vector<1x64xf32>
    %659 = vector.extract_strided_slice %6 {offsets = [3, 0], sizes = [1, 64], strides = [1, 1]} : vector<4x64xi32> to vector<1x64xi32>
    %c10_i32_190 = arith.constant 10 : i32
    %660 = vector.broadcast %c10_i32_190 : i32 to vector<1x64xi32>
    %661 = arith.cmpi eq, %659, %660 : vector<1x64xi32>
    %662 = vector.extract_strided_slice %8 {offsets = [3, 0], sizes = [1, 64], strides = [1, 1]} : vector<4x64xf32> to vector<1x64xf32>
    %cst_191 = arith.constant 0.000000e+00 : f32
    %663 = vector.broadcast %cst_191 : f32 to vector<1x64xf32>
    %664 = arith.select %661, %662, %663 : vector<1x64xi1>, vector<1x64xf32>
    %665 = arith.addf %658, %664 : vector<1x64xf32>
    %c0_192 = arith.constant 0 : index
    %c138 = arith.constant 138 : index
    %666 = vector.load %arg5[%c0_192, %c138] : memref<15x320xf32, #tpu.memory_space<vmem>>, vector<15x64xf32>
    %667 = vector.broadcast %665 : vector<1x64xf32> to vector<15x64xf32>
    %668 = arith.mulf %667, %666 : vector<15x64xf32>
    %669 = arith.addf %636, %668 : vector<15x64xf32>
    %cst_193 = arith.constant 0.000000e+00 : f32
    %670 = vector.broadcast %cst_193 : f32 to vector<1x64xf32>
    %671 = vector.extract_strided_slice %6 {offsets = [0, 0], sizes = [1, 64], strides = [1, 1]} : vector<4x64xi32> to vector<1x64xi32>
    %c14_i32 = arith.constant 14 : i32
    %672 = vector.broadcast %c14_i32 : i32 to vector<1x64xi32>
    %673 = arith.cmpi eq, %671, %672 : vector<1x64xi32>
    %674 = vector.extract_strided_slice %8 {offsets = [0, 0], sizes = [1, 64], strides = [1, 1]} : vector<4x64xf32> to vector<1x64xf32>
    %cst_194 = arith.constant 0.000000e+00 : f32
    %675 = vector.broadcast %cst_194 : f32 to vector<1x64xf32>
    %676 = arith.select %673, %674, %675 : vector<1x64xi1>, vector<1x64xf32>
    %677 = arith.addf %670, %676 : vector<1x64xf32>
    %678 = vector.extract_strided_slice %6 {offsets = [1, 0], sizes = [1, 64], strides = [1, 1]} : vector<4x64xi32> to vector<1x64xi32>
    %c14_i32_195 = arith.constant 14 : i32
    %679 = vector.broadcast %c14_i32_195 : i32 to vector<1x64xi32>
    %680 = arith.cmpi eq, %678, %679 : vector<1x64xi32>
    %681 = vector.extract_strided_slice %8 {offsets = [1, 0], sizes = [1, 64], strides = [1, 1]} : vector<4x64xf32> to vector<1x64xf32>
    %cst_196 = arith.constant 0.000000e+00 : f32
    %682 = vector.broadcast %cst_196 : f32 to vector<1x64xf32>
    %683 = arith.select %680, %681, %682 : vector<1x64xi1>, vector<1x64xf32>
    %684 = arith.addf %677, %683 : vector<1x64xf32>
    %685 = vector.extract_strided_slice %6 {offsets = [2, 0], sizes = [1, 64], strides = [1, 1]} : vector<4x64xi32> to vector<1x64xi32>
    %c14_i32_197 = arith.constant 14 : i32
    %686 = vector.broadcast %c14_i32_197 : i32 to vector<1x64xi32>
    %687 = arith.cmpi eq, %685, %686 : vector<1x64xi32>
    %688 = vector.extract_strided_slice %8 {offsets = [2, 0], sizes = [1, 64], strides = [1, 1]} : vector<4x64xf32> to vector<1x64xf32>
    %cst_198 = arith.constant 0.000000e+00 : f32
    %689 = vector.broadcast %cst_198 : f32 to vector<1x64xf32>
    %690 = arith.select %687, %688, %689 : vector<1x64xi1>, vector<1x64xf32>
    %691 = arith.addf %684, %690 : vector<1x64xf32>
    %692 = vector.extract_strided_slice %6 {offsets = [3, 0], sizes = [1, 64], strides = [1, 1]} : vector<4x64xi32> to vector<1x64xi32>
    %c14_i32_199 = arith.constant 14 : i32
    %693 = vector.broadcast %c14_i32_199 : i32 to vector<1x64xi32>
    %694 = arith.cmpi eq, %692, %693 : vector<1x64xi32>
    %695 = vector.extract_strided_slice %8 {offsets = [3, 0], sizes = [1, 64], strides = [1, 1]} : vector<4x64xf32> to vector<1x64xf32>
    %cst_200 = arith.constant 0.000000e+00 : f32
    %696 = vector.broadcast %cst_200 : f32 to vector<1x64xf32>
    %697 = arith.select %694, %695, %696 : vector<1x64xi1>, vector<1x64xf32>
    %698 = arith.addf %691, %697 : vector<1x64xf32>
    %c0_201 = arith.constant 0 : index
    %c142 = arith.constant 142 : index
    %699 = vector.load %arg5[%c0_201, %c142] : memref<15x320xf32, #tpu.memory_space<vmem>>, vector<15x64xf32>
    %700 = vector.broadcast %698 : vector<1x64xf32> to vector<15x64xf32>
    %701 = arith.mulf %700, %699 : vector<15x64xf32>
    %702 = arith.addf %669, %701 : vector<15x64xf32>
    %cst_202 = arith.constant 0.000000e+00 : f32
    %703 = vector.broadcast %cst_202 : f32 to vector<1x64xf32>
    %704 = vector.extract_strided_slice %6 {offsets = [0, 0], sizes = [1, 64], strides = [1, 1]} : vector<4x64xi32> to vector<1x64xi32>
    %c15_i32 = arith.constant 15 : i32
    %705 = vector.broadcast %c15_i32 : i32 to vector<1x64xi32>
    %706 = arith.cmpi eq, %704, %705 : vector<1x64xi32>
    %707 = vector.extract_strided_slice %8 {offsets = [0, 0], sizes = [1, 64], strides = [1, 1]} : vector<4x64xf32> to vector<1x64xf32>
    %cst_203 = arith.constant 0.000000e+00 : f32
    %708 = vector.broadcast %cst_203 : f32 to vector<1x64xf32>
    %709 = arith.select %706, %707, %708 : vector<1x64xi1>, vector<1x64xf32>
    %710 = arith.addf %703, %709 : vector<1x64xf32>
    %711 = vector.extract_strided_slice %6 {offsets = [1, 0], sizes = [1, 64], strides = [1, 1]} : vector<4x64xi32> to vector<1x64xi32>
    %c15_i32_204 = arith.constant 15 : i32
    %712 = vector.broadcast %c15_i32_204 : i32 to vector<1x64xi32>
    %713 = arith.cmpi eq, %711, %712 : vector<1x64xi32>
    %714 = vector.extract_strided_slice %8 {offsets = [1, 0], sizes = [1, 64], strides = [1, 1]} : vector<4x64xf32> to vector<1x64xf32>
    %cst_205 = arith.constant 0.000000e+00 : f32
    %715 = vector.broadcast %cst_205 : f32 to vector<1x64xf32>
    %716 = arith.select %713, %714, %715 : vector<1x64xi1>, vector<1x64xf32>
    %717 = arith.addf %710, %716 : vector<1x64xf32>
    %718 = vector.extract_strided_slice %6 {offsets = [2, 0], sizes = [1, 64], strides = [1, 1]} : vector<4x64xi32> to vector<1x64xi32>
    %c15_i32_206 = arith.constant 15 : i32
    %719 = vector.broadcast %c15_i32_206 : i32 to vector<1x64xi32>
    %720 = arith.cmpi eq, %718, %719 : vector<1x64xi32>
    %721 = vector.extract_strided_slice %8 {offsets = [2, 0], sizes = [1, 64], strides = [1, 1]} : vector<4x64xf32> to vector<1x64xf32>
    %cst_207 = arith.constant 0.000000e+00 : f32
    %722 = vector.broadcast %cst_207 : f32 to vector<1x64xf32>
    %723 = arith.select %720, %721, %722 : vector<1x64xi1>, vector<1x64xf32>
    %724 = arith.addf %717, %723 : vector<1x64xf32>
    %725 = vector.extract_strided_slice %6 {offsets = [3, 0], sizes = [1, 64], strides = [1, 1]} : vector<4x64xi32> to vector<1x64xi32>
    %c15_i32_208 = arith.constant 15 : i32
    %726 = vector.broadcast %c15_i32_208 : i32 to vector<1x64xi32>
    %727 = arith.cmpi eq, %725, %726 : vector<1x64xi32>
    %728 = vector.extract_strided_slice %8 {offsets = [3, 0], sizes = [1, 64], strides = [1, 1]} : vector<4x64xf32> to vector<1x64xf32>
    %cst_209 = arith.constant 0.000000e+00 : f32
    %729 = vector.broadcast %cst_209 : f32 to vector<1x64xf32>
    %730 = arith.select %727, %728, %729 : vector<1x64xi1>, vector<1x64xf32>
    %731 = arith.addf %724, %730 : vector<1x64xf32>
    %c0_210 = arith.constant 0 : index
    %c143 = arith.constant 143 : index
    %732 = vector.load %arg5[%c0_210, %c143] : memref<15x320xf32, #tpu.memory_space<vmem>>, vector<15x64xf32>
    %733 = vector.broadcast %731 : vector<1x64xf32> to vector<15x64xf32>
    %734 = arith.mulf %733, %732 : vector<15x64xf32>
    %735 = arith.addf %702, %734 : vector<15x64xf32>
    %cst_211 = arith.constant 0.000000e+00 : f32
    %736 = vector.broadcast %cst_211 : f32 to vector<1x64xf32>
    %737 = vector.extract_strided_slice %6 {offsets = [0, 0], sizes = [1, 64], strides = [1, 1]} : vector<4x64xi32> to vector<1x64xi32>
    %c16_i32 = arith.constant 16 : i32
    %738 = vector.broadcast %c16_i32 : i32 to vector<1x64xi32>
    %739 = arith.cmpi eq, %737, %738 : vector<1x64xi32>
    %740 = vector.extract_strided_slice %8 {offsets = [0, 0], sizes = [1, 64], strides = [1, 1]} : vector<4x64xf32> to vector<1x64xf32>
    %cst_212 = arith.constant 0.000000e+00 : f32
    %741 = vector.broadcast %cst_212 : f32 to vector<1x64xf32>
    %742 = arith.select %739, %740, %741 : vector<1x64xi1>, vector<1x64xf32>
    %743 = arith.addf %736, %742 : vector<1x64xf32>
    %744 = vector.extract_strided_slice %6 {offsets = [1, 0], sizes = [1, 64], strides = [1, 1]} : vector<4x64xi32> to vector<1x64xi32>
    %c16_i32_213 = arith.constant 16 : i32
    %745 = vector.broadcast %c16_i32_213 : i32 to vector<1x64xi32>
    %746 = arith.cmpi eq, %744, %745 : vector<1x64xi32>
    %747 = vector.extract_strided_slice %8 {offsets = [1, 0], sizes = [1, 64], strides = [1, 1]} : vector<4x64xf32> to vector<1x64xf32>
    %cst_214 = arith.constant 0.000000e+00 : f32
    %748 = vector.broadcast %cst_214 : f32 to vector<1x64xf32>
    %749 = arith.select %746, %747, %748 : vector<1x64xi1>, vector<1x64xf32>
    %750 = arith.addf %743, %749 : vector<1x64xf32>
    %751 = vector.extract_strided_slice %6 {offsets = [2, 0], sizes = [1, 64], strides = [1, 1]} : vector<4x64xi32> to vector<1x64xi32>
    %c16_i32_215 = arith.constant 16 : i32
    %752 = vector.broadcast %c16_i32_215 : i32 to vector<1x64xi32>
    %753 = arith.cmpi eq, %751, %752 : vector<1x64xi32>
    %754 = vector.extract_strided_slice %8 {offsets = [2, 0], sizes = [1, 64], strides = [1, 1]} : vector<4x64xf32> to vector<1x64xf32>
    %cst_216 = arith.constant 0.000000e+00 : f32
    %755 = vector.broadcast %cst_216 : f32 to vector<1x64xf32>
    %756 = arith.select %753, %754, %755 : vector<1x64xi1>, vector<1x64xf32>
    %757 = arith.addf %750, %756 : vector<1x64xf32>
    %758 = vector.extract_strided_slice %6 {offsets = [3, 0], sizes = [1, 64], strides = [1, 1]} : vector<4x64xi32> to vector<1x64xi32>
    %c16_i32_217 = arith.constant 16 : i32
    %759 = vector.broadcast %c16_i32_217 : i32 to vector<1x64xi32>
    %760 = arith.cmpi eq, %758, %759 : vector<1x64xi32>
    %761 = vector.extract_strided_slice %8 {offsets = [3, 0], sizes = [1, 64], strides = [1, 1]} : vector<4x64xf32> to vector<1x64xf32>
    %cst_218 = arith.constant 0.000000e+00 : f32
    %762 = vector.broadcast %cst_218 : f32 to vector<1x64xf32>
    %763 = arith.select %760, %761, %762 : vector<1x64xi1>, vector<1x64xf32>
    %764 = arith.addf %757, %763 : vector<1x64xf32>
    %c0_219 = arith.constant 0 : index
    %c144 = arith.constant 144 : index
    %765 = vector.load %arg5[%c0_219, %c144] : memref<15x320xf32, #tpu.memory_space<vmem>>, vector<15x64xf32>
    %766 = vector.broadcast %764 : vector<1x64xf32> to vector<15x64xf32>
    %767 = arith.mulf %766, %765 : vector<15x64xf32>
    %768 = arith.addf %735, %767 : vector<15x64xf32>
    %cst_220 = arith.constant 0.000000e+00 : f32
    %769 = vector.broadcast %cst_220 : f32 to vector<1x64xf32>
    %770 = vector.extract_strided_slice %6 {offsets = [0, 0], sizes = [1, 64], strides = [1, 1]} : vector<4x64xi32> to vector<1x64xi32>
    %c17_i32 = arith.constant 17 : i32
    %771 = vector.broadcast %c17_i32 : i32 to vector<1x64xi32>
    %772 = arith.cmpi eq, %770, %771 : vector<1x64xi32>
    %773 = vector.extract_strided_slice %8 {offsets = [0, 0], sizes = [1, 64], strides = [1, 1]} : vector<4x64xf32> to vector<1x64xf32>
    %cst_221 = arith.constant 0.000000e+00 : f32
    %774 = vector.broadcast %cst_221 : f32 to vector<1x64xf32>
    %775 = arith.select %772, %773, %774 : vector<1x64xi1>, vector<1x64xf32>
    %776 = arith.addf %769, %775 : vector<1x64xf32>
    %777 = vector.extract_strided_slice %6 {offsets = [1, 0], sizes = [1, 64], strides = [1, 1]} : vector<4x64xi32> to vector<1x64xi32>
    %c17_i32_222 = arith.constant 17 : i32
    %778 = vector.broadcast %c17_i32_222 : i32 to vector<1x64xi32>
    %779 = arith.cmpi eq, %777, %778 : vector<1x64xi32>
    %780 = vector.extract_strided_slice %8 {offsets = [1, 0], sizes = [1, 64], strides = [1, 1]} : vector<4x64xf32> to vector<1x64xf32>
    %cst_223 = arith.constant 0.000000e+00 : f32
    %781 = vector.broadcast %cst_223 : f32 to vector<1x64xf32>
    %782 = arith.select %779, %780, %781 : vector<1x64xi1>, vector<1x64xf32>
    %783 = arith.addf %776, %782 : vector<1x64xf32>
    %784 = vector.extract_strided_slice %6 {offsets = [2, 0], sizes = [1, 64], strides = [1, 1]} : vector<4x64xi32> to vector<1x64xi32>
    %c17_i32_224 = arith.constant 17 : i32
    %785 = vector.broadcast %c17_i32_224 : i32 to vector<1x64xi32>
    %786 = arith.cmpi eq, %784, %785 : vector<1x64xi32>
    %787 = vector.extract_strided_slice %8 {offsets = [2, 0], sizes = [1, 64], strides = [1, 1]} : vector<4x64xf32> to vector<1x64xf32>
    %cst_225 = arith.constant 0.000000e+00 : f32
    %788 = vector.broadcast %cst_225 : f32 to vector<1x64xf32>
    %789 = arith.select %786, %787, %788 : vector<1x64xi1>, vector<1x64xf32>
    %790 = arith.addf %783, %789 : vector<1x64xf32>
    %791 = vector.extract_strided_slice %6 {offsets = [3, 0], sizes = [1, 64], strides = [1, 1]} : vector<4x64xi32> to vector<1x64xi32>
    %c17_i32_226 = arith.constant 17 : i32
    %792 = vector.broadcast %c17_i32_226 : i32 to vector<1x64xi32>
    %793 = arith.cmpi eq, %791, %792 : vector<1x64xi32>
    %794 = vector.extract_strided_slice %8 {offsets = [3, 0], sizes = [1, 64], strides = [1, 1]} : vector<4x64xf32> to vector<1x64xf32>
    %cst_227 = arith.constant 0.000000e+00 : f32
    %795 = vector.broadcast %cst_227 : f32 to vector<1x64xf32>
    %796 = arith.select %793, %794, %795 : vector<1x64xi1>, vector<1x64xf32>
    %797 = arith.addf %790, %796 : vector<1x64xf32>
    %c0_228 = arith.constant 0 : index
    %c145 = arith.constant 145 : index
    %798 = vector.load %arg5[%c0_228, %c145] : memref<15x320xf32, #tpu.memory_space<vmem>>, vector<15x64xf32>
    %799 = vector.broadcast %797 : vector<1x64xf32> to vector<15x64xf32>
    %800 = arith.mulf %799, %798 : vector<15x64xf32>
    %801 = arith.addf %768, %800 : vector<15x64xf32>
    %cst_229 = arith.constant 0.000000e+00 : f32
    %802 = vector.broadcast %cst_229 : f32 to vector<1x64xf32>
    %803 = vector.extract_strided_slice %6 {offsets = [0, 0], sizes = [1, 64], strides = [1, 1]} : vector<4x64xi32> to vector<1x64xi32>
    %c18_i32 = arith.constant 18 : i32
    %804 = vector.broadcast %c18_i32 : i32 to vector<1x64xi32>
    %805 = arith.cmpi eq, %803, %804 : vector<1x64xi32>
    %806 = vector.extract_strided_slice %8 {offsets = [0, 0], sizes = [1, 64], strides = [1, 1]} : vector<4x64xf32> to vector<1x64xf32>
    %cst_230 = arith.constant 0.000000e+00 : f32
    %807 = vector.broadcast %cst_230 : f32 to vector<1x64xf32>
    %808 = arith.select %805, %806, %807 : vector<1x64xi1>, vector<1x64xf32>
    %809 = arith.addf %802, %808 : vector<1x64xf32>
    %810 = vector.extract_strided_slice %6 {offsets = [1, 0], sizes = [1, 64], strides = [1, 1]} : vector<4x64xi32> to vector<1x64xi32>
    %c18_i32_231 = arith.constant 18 : i32
    %811 = vector.broadcast %c18_i32_231 : i32 to vector<1x64xi32>
    %812 = arith.cmpi eq, %810, %811 : vector<1x64xi32>
    %813 = vector.extract_strided_slice %8 {offsets = [1, 0], sizes = [1, 64], strides = [1, 1]} : vector<4x64xf32> to vector<1x64xf32>
    %cst_232 = arith.constant 0.000000e+00 : f32
    %814 = vector.broadcast %cst_232 : f32 to vector<1x64xf32>
    %815 = arith.select %812, %813, %814 : vector<1x64xi1>, vector<1x64xf32>
    %816 = arith.addf %809, %815 : vector<1x64xf32>
    %817 = vector.extract_strided_slice %6 {offsets = [2, 0], sizes = [1, 64], strides = [1, 1]} : vector<4x64xi32> to vector<1x64xi32>
    %c18_i32_233 = arith.constant 18 : i32
    %818 = vector.broadcast %c18_i32_233 : i32 to vector<1x64xi32>
    %819 = arith.cmpi eq, %817, %818 : vector<1x64xi32>
    %820 = vector.extract_strided_slice %8 {offsets = [2, 0], sizes = [1, 64], strides = [1, 1]} : vector<4x64xf32> to vector<1x64xf32>
    %cst_234 = arith.constant 0.000000e+00 : f32
    %821 = vector.broadcast %cst_234 : f32 to vector<1x64xf32>
    %822 = arith.select %819, %820, %821 : vector<1x64xi1>, vector<1x64xf32>
    %823 = arith.addf %816, %822 : vector<1x64xf32>
    %824 = vector.extract_strided_slice %6 {offsets = [3, 0], sizes = [1, 64], strides = [1, 1]} : vector<4x64xi32> to vector<1x64xi32>
    %c18_i32_235 = arith.constant 18 : i32
    %825 = vector.broadcast %c18_i32_235 : i32 to vector<1x64xi32>
    %826 = arith.cmpi eq, %824, %825 : vector<1x64xi32>
    %827 = vector.extract_strided_slice %8 {offsets = [3, 0], sizes = [1, 64], strides = [1, 1]} : vector<4x64xf32> to vector<1x64xf32>
    %cst_236 = arith.constant 0.000000e+00 : f32
    %828 = vector.broadcast %cst_236 : f32 to vector<1x64xf32>
    %829 = arith.select %826, %827, %828 : vector<1x64xi1>, vector<1x64xf32>
    %830 = arith.addf %823, %829 : vector<1x64xf32>
    %c0_237 = arith.constant 0 : index
    %c146 = arith.constant 146 : index
    %831 = vector.load %arg5[%c0_237, %c146] : memref<15x320xf32, #tpu.memory_space<vmem>>, vector<15x64xf32>
    %832 = vector.broadcast %830 : vector<1x64xf32> to vector<15x64xf32>
    %833 = arith.mulf %832, %831 : vector<15x64xf32>
    %834 = arith.addf %801, %833 : vector<15x64xf32>
    %c0_238 = arith.constant 0 : index
    %c0_239 = arith.constant 0 : index
    %c0_240 = arith.constant 0 : index
    %835 = vector.load %arg4[%c0_238, %c0_239, %c0_240] : memref<1x15x64xf32, #tpu.memory_space<vmem>>, vector<1x15x64xf32>
    %836 = vector.shape_cast %835 : vector<1x15x64xf32> to vector<15x64xf32>
    %837 = vector.shape_cast %834 : vector<15x64xf32> to vector<1x15x64xf32>
    tpu.vector_store %arg4[%c0_238, %c0_239, %c0_240], %837 {strides = array<i32>} : memref<1x15x64xf32, #tpu.memory_space<vmem>>, vector<1x15x64xf32>,
    return
  }
  func.func @transform_0(%arg0: i32) -> (i32, i32, i32) {
    %c0_i32 = arith.constant 0 : i32
    %c0_i32_0 = arith.constant 0 : i32
    %c0_i32_1 = arith.constant 0 : i32
    return %arg0, %c0_i32, %c0_i32_0 : i32, i32, i32
  }
  func.func @transform_1(%arg0: i32) -> (i32, i32, i32) {
    %c0_i32 = arith.constant 0 : i32
    %c0_i32_0 = arith.constant 0 : i32
    %c0_i32_1 = arith.constant 0 : i32
    return %arg0, %c0_i32, %c0_i32_0 : i32, i32, i32
  }
  func.func @transform_2(%arg0: i32) -> (i32, i32, i32) {
    %c0_i32 = arith.constant 0 : i32
    %c0_i32_0 = arith.constant 0 : i32
    %c0_i32_1 = arith.constant 0 : i32
    return %arg0, %c0_i32, %c0_i32_0 : i32, i32, i32
  }
  func.func @transform_3(%arg0: i32) -> (i32, i32, i32) {
    %c0_i32 = arith.constant 0 : i32
    %c0_i32_0 = arith.constant 0 : i32
    %c0_i32_1 = arith.constant 0 : i32
    return %arg0, %c0_i32, %c0_i32_0 : i32, i32, i32
  }
}

module attributes {stable_mosaic.version = 11 : i64} {
  func.func @head2_kernel(%arg0: i32, %arg1: memref<8x32xf32, #tpu.memory_space<vmem>>, %arg2: memref<480x120xf32, #tpu.memory_space<vmem>>, %arg3: memref<480x120xf32, #tpu.memory_space<vmem>>, %arg4: memref<1x120x8xf32, #tpu.memory_space<vmem>>, %arg5: memref<1x120x8xf32, #tpu.memory_space<vmem>>, %arg6: memref<480x1xf32, #tpu.memory_space<vmem>>, %arg7: memref<1x480x32xf32, #tpu.memory_space<vmem>>) attributes {dimension_semantics = [#tpu.dimension_semantics<parallel>], iteration_bounds = array<i64: 2>, scalar_prefetch = 0 : i64, scratch_operands = 0 : i64, tpu.core_type = #tpu.core_type<tc>, window_params = [{pipeline_mode = #tpu.pipeline_mode<synchronous>, transform_indices = @transform_0, window_bounds = array<i64: 8, 32>}, {pipeline_mode = #tpu.pipeline_mode<synchronous>, transform_indices = @transform_1, window_bounds = array<i64: 480, 120>}, {pipeline_mode = #tpu.pipeline_mode<synchronous>, transform_indices = @transform_2, window_bounds = array<i64: 480, 120>}, {transform_indices = @transform_3, window_bounds = array<i64: 1, 120, 8>}, {transform_indices = @transform_4, window_bounds = array<i64: 1, 120, 8>}, {pipeline_mode = #tpu.pipeline_mode<synchronous>, transform_indices = @transform_5, window_bounds = array<i64: 480, 1>}, {transform_indices = @transform_6, window_bounds = array<i64: 1, 480, 32>}]} {
    %c0 = arith.constant 0 : index
    %c0_0 = arith.constant 0 : index
    %c0_1 = arith.constant 0 : index
    %0 = vector.load %arg4[%c0, %c0_0, %c0_1] : memref<1x120x8xf32, #tpu.memory_space<vmem>>, vector<1x120x8xf32>
    %1 = vector.shape_cast %0 : vector<1x120x8xf32> to vector<120x8xf32>
    %c0_2 = arith.constant 0 : index
    %c0_3 = arith.constant 0 : index
    %2 = vector.load %arg1[%c0_2, %c0_3] : memref<8x32xf32, #tpu.memory_space<vmem>>, vector<8x32xf32>
    %cst = arith.constant dense<0.000000e+00> : vector<120x32xf32>
    %3 = tpu.matmul %1, %2, %cst {dimension_numbers = #tpu.dot_dimension_numbers<[1], [0], [0], [1], [0, 0, 1, 1], [], []>} : vector<120x8xf32>, vector<8x32xf32>, vector<120x32xf32> -> vector<120x32xf32>
    %c0_4 = arith.constant 0 : index
    %c0_5 = arith.constant 0 : index
    %c0_6 = arith.constant 0 : index
    %4 = vector.load %arg5[%c0_4, %c0_5, %c0_6] : memref<1x120x8xf32, #tpu.memory_space<vmem>>, vector<1x120x8xf32>
    %5 = vector.shape_cast %4 : vector<1x120x8xf32> to vector<120x8xf32>
    %c0_7 = arith.constant 0 : index
    %c0_8 = arith.constant 0 : index
    %6 = vector.load %arg1[%c0_7, %c0_8] : memref<8x32xf32, #tpu.memory_space<vmem>>, vector<8x32xf32>
    %cst_9 = arith.constant dense<0.000000e+00> : vector<120x32xf32>
    %7 = tpu.matmul %5, %6, %cst_9 {dimension_numbers = #tpu.dot_dimension_numbers<[1], [0], [0], [1], [0, 0, 1, 1], [], []>} : vector<120x8xf32>, vector<8x32xf32>, vector<120x32xf32> -> vector<120x32xf32>
    %c0_10 = arith.constant 0 : index
    %c0_11 = arith.constant 0 : index
    %8 = vector.load %arg2[%c0_10, %c0_11] : memref<480x120xf32, #tpu.memory_space<vmem>>, vector<480x120xf32>
    %cst_12 = arith.constant dense<0.000000e+00> : vector<480x32xf32>
    %9 = tpu.matmul %8, %3, %cst_12 {dimension_numbers = #tpu.dot_dimension_numbers<[1], [0], [0], [1], [0, 0, 1, 1], [], []>} : vector<480x120xf32>, vector<120x32xf32>, vector<480x32xf32> -> vector<480x32xf32>
    %c0_13 = arith.constant 0 : index
    %c0_14 = arith.constant 0 : index
    %10 = vector.load %arg3[%c0_13, %c0_14] : memref<480x120xf32, #tpu.memory_space<vmem>>, vector<480x120xf32>
    %cst_15 = arith.constant dense<0.000000e+00> : vector<480x32xf32>
    %11 = tpu.matmul %10, %7, %cst_15 {dimension_numbers = #tpu.dot_dimension_numbers<[1], [0], [0], [1], [0, 0, 1, 1], [], []>} : vector<480x120xf32>, vector<120x32xf32>, vector<480x32xf32> -> vector<480x32xf32>
    %12 = arith.addf %9, %11 : vector<480x32xf32>
    %c0_16 = arith.constant 0 : index
    %c0_17 = arith.constant 0 : index
    %13 = vector.load %arg6[%c0_16, %c0_17] : memref<480x1xf32, #tpu.memory_space<vmem>>, vector<480x1xf32>
    %14 = vector.broadcast %13 : vector<480x1xf32> to vector<480x32xf32>
    %15 = arith.addf %12, %14 : vector<480x32xf32>
    %c0_18 = arith.constant 0 : index
    %c0_19 = arith.constant 0 : index
    %c0_20 = arith.constant 0 : index
    %16 = vector.load %arg7[%c0_18, %c0_19, %c0_20] : memref<1x480x32xf32, #tpu.memory_space<vmem>>, vector<1x480x32xf32>
    %17 = vector.shape_cast %16 : vector<1x480x32xf32> to vector<480x32xf32>
    %18 = vector.shape_cast %15 : vector<480x32xf32> to vector<1x480x32xf32>
    tpu.vector_store %arg7[%c0_18, %c0_19, %c0_20], %18 {strides = array<i32>} : memref<1x480x32xf32, #tpu.memory_space<vmem>>, vector<1x480x32xf32>,
    return
  }
  func.func @transform_0(%arg0: i32) -> (i32, i32) {
    %c0_i32 = arith.constant 0 : i32
    %c0_i32_0 = arith.constant 0 : i32
    %c0_i32_1 = arith.constant 0 : i32
    return %c0_i32, %c0_i32_0 : i32, i32
  }
  func.func @transform_1(%arg0: i32) -> (i32, i32) {
    %c0_i32 = arith.constant 0 : i32
    %c0_i32_0 = arith.constant 0 : i32
    %c0_i32_1 = arith.constant 0 : i32
    return %c0_i32, %c0_i32_0 : i32, i32
  }
  func.func @transform_2(%arg0: i32) -> (i32, i32) {
    %c0_i32 = arith.constant 0 : i32
    %c0_i32_0 = arith.constant 0 : i32
    %c0_i32_1 = arith.constant 0 : i32
    return %c0_i32, %c0_i32_0 : i32, i32
  }
  func.func @transform_3(%arg0: i32) -> (i32, i32, i32) {
    %c0_i32 = arith.constant 0 : i32
    %c0_i32_0 = arith.constant 0 : i32
    %c0_i32_1 = arith.constant 0 : i32
    return %arg0, %c0_i32, %c0_i32_0 : i32, i32, i32
  }
  func.func @transform_4(%arg0: i32) -> (i32, i32, i32) {
    %c0_i32 = arith.constant 0 : i32
    %c0_i32_0 = arith.constant 0 : i32
    %c0_i32_1 = arith.constant 0 : i32
    return %arg0, %c0_i32, %c0_i32_0 : i32, i32, i32
  }
  func.func @transform_5(%arg0: i32) -> (i32, i32) {
    %c0_i32 = arith.constant 0 : i32
    %c0_i32_0 = arith.constant 0 : i32
    %c0_i32_1 = arith.constant 0 : i32
    return %c0_i32, %c0_i32_0 : i32, i32
  }
  func.func @transform_6(%arg0: i32) -> (i32, i32, i32) {
    %c0_i32 = arith.constant 0 : i32
    %c0_i32_0 = arith.constant 0 : i32
    %c0_i32_1 = arith.constant 0 : i32
    return %arg0, %c0_i32, %c0_i32_0 : i32, i32, i32
  }
}

</mosaic_0001>

<llo_original>
// kernel: accel101_forward.10
$region0: #{accel101_forward.10}
  #allocation0 [shape = 'u32[]', space=smem, size = 0x4, offset = 0x4, fixed_abs, tag = 'smem constant byte address 0x4 - core index']
  #allocation1 [shape = 'u32[144,128]{1,0:T(1,128)}', space=vmem, size = 0x12000, scoped, tag = 'internal scratch']
  %s0 = inlined_call_operand.vmem [shape: f32[32,8], index: 0, kind: input, shape index: {}]
  %s1 = inlined_call_operand.vmem [shape: f32[16,96], index: 1, kind: input, shape index: {}]
  %s2 = inlined_call_operand.vmem [shape: f32[16,96], index: 2, kind: input, shape index: {}]
  %s3 = inlined_call_operand.vmem [shape: f32[2,96,32], index: 3, kind: input, shape index: {}]
  %s4 = inlined_call_operand.vmem [shape: f32[2,96,32], index: 4, kind: input, shape index: {}]
  %s5 = inlined_call_operand.vmem [shape: f32[16,1], index: 5, kind: input, shape index: {}]
  %s6 = inlined_call_operand.vmem [shape: f32[2,16,8], index: 6, kind: output, shape index: {}]
  %s7 = sld [smem:[#allocation0]]
  $region57: #{accel101_forward.10} parent=0
    _
  %s9 = ssub.s32 1, %s7
  %s10 = scalar_select 0, %s9, %s7
  loop: start=0, step=1, limit=4
  $region2: #{accel101_forward.10} parent=0 // loop_pre_header
    _
  $region3: #{accel101_forward.10} parent=0 // loop_header
    %s12 = sphi 0, %s16
    %p13 = scmp.ge.s32.totalorder %s12, 4
    %s20 = sphi 0, %s20
    %s22 = sphi 0, %s20
    %s23 = sphi 0, %s22
    %s37 = sphi 0, %s23
    %s41 = sphi 0, %s41
    %s43 = sphi 0, %s41
    %s44 = sphi 0, %s43
    %s58 = sphi 0, %s44
    %s62 = sphi 0, %s62
    %s64 = sphi 0, %s62
    %s65 = sphi 0, %s64
    %s79 = sphi 0, %s65
    %s85 = sphi 0, %s87
    %s88 = sphi 0, %s85
    %s89 = sphi 0, %s88
    %s105 = sphi 0, %s89
    %s111 = sphi 0, %s113
    %s114 = sphi 0, %s111
    %s115 = sphi 0, %s114
    %s131 = sphi 0, %s115
    %s135 = sphi 0, %s135
    %s137 = sphi 0, %s135
    %s138 = sphi 0, %s137
    %s152 = sphi 0, %s138
    %s158 = sphi 0, %s160
    %s161 = sphi 0, %s158
    %s162 = sphi 0, %s161
    %s178 = sphi 0, %s162
  $region4: #{accel101_forward.10} parent=0 // loop_header_branch
    %15 = sbr.rel (%p13) target = $region8
  $region5: #{accel101_forward.10} parent=0 // loop_body
    %s17 = ssub.s32 %s12, 1
    %s18 = ssub.s32 %s12, 2
    %s19 = sadd.s32 %s12, 1
    %s21 = sadd.s32 %s20, 1
    %p24 = scmp.eq.s32.totalorder %s12, 1
    %p25 = scmp.ne.s32.totalorder %s20, %s22
    %p26 = scmp.eq.s32.totalorder %s12, 0
    %p27 = por %p25, %p26
    %p28 = scmp.ne.s32.totalorder %s20, %s22
    %p29 = scmp.eq.s32.totalorder %s17, 1
    %p30 = por %p28, %p29
    %p31 = scmp.ne.s32.totalorder %s22, %s23
    %p32 = scmp.eq.s32.totalorder %s17, 0
    %p33 = por %p31, %p32
    %p34 = scmp.ne.s32.totalorder %s22, %s23
    %p35 = scmp.eq.s32.totalorder %s18, 1
    %p36 = por %p34, %p35
    %p38 = scmp.ne.s32.totalorder %s23, %s37
    %p39 = scmp.eq.s32.totalorder %s18, 0
    %p40 = por %p38, %p39
    %s42 = sadd.s32 %s41, 1
    %p45 = scmp.eq.s32.totalorder %s12, 1
    %p46 = scmp.ne.s32.totalorder %s41, %s43
    %p47 = scmp.eq.s32.totalorder %s12, 0
    %p48 = por %p46, %p47
    %p49 = scmp.ne.s32.totalorder %s41, %s43
    %p50 = scmp.eq.s32.totalorder %s17, 1
    %p51 = por %p49, %p50
    %p52 = scmp.ne.s32.totalorder %s43, %s44
    %p53 = scmp.eq.s32.totalorder %s17, 0
    %p54 = por %p52, %p53
    %p55 = scmp.ne.s32.totalorder %s43, %s44
    %p56 = scmp.eq.s32.totalorder %s18, 1
    %p57 = por %p55, %p56
    %p59 = scmp.ne.s32.totalorder %s44, %s58
    %p60 = scmp.eq.s32.totalorder %s18, 0
    %p61 = por %p59, %p60
    %s63 = sadd.s32 %s62, 1
    %p66 = scmp.eq.s32.totalorder %s12, 1
    %p67 = scmp.ne.s32.totalorder %s62, %s64
    %p68 = scmp.eq.s32.totalorder %s12, 0
    %p69 = por %p67, %p68
    %p70 = scmp.ne.s32.totalorder %s62, %s64
    %p71 = scmp.eq.s32.totalorder %s17, 1
    %p72 = por %p70, %p71
    %p73 = scmp.ne.s32.totalorder %s64, %s65
    %p74 = scmp.eq.s32.totalorder %s17, 0
    %p75 = por %p73, %p74
    %p76 = scmp.ne.s32.totalorder %s64, %s65
    %p77 = scmp.eq.s32.totalorder %s18, 1
    %p78 = por %p76, %p77
    %p80 = scmp.ne.s32.totalorder %s65, %s79
    %p81 = scmp.eq.s32.totalorder %s18, 0
    %p82 = por %p80, %p81
    %s83 = ssub.s32 %s12, %s19
    %p84 = scmp.eq.s32.totalorder %s83, 0
    %s86 = sadd.s32 %s85, 1
    %s87 = scalar_select %p84, %s85, %s86
    %p90 = pneg %p84
    %p91 = scmp.eq.s32.totalorder %s12, 1
    %p92 = por %p90, %p91
    %p93 = scmp.ne.s32.totalorder %s85, %s88
    %p94 = scmp.eq.s32.totalorder %s12, 0
    %p95 = por %p93, %p94
    %p96 = scmp.ne.s32.totalorder %s85, %s88
    %p97 = scmp.eq.s32.totalorder %s17, 1
    %p98 = por %p96, %p97
    %p99 = scmp.ne.s32.totalorder %s88, %s89
    %p100 = scmp.eq.s32.totalorder %s17, 0
    %p101 = por %p99, %p100
    %p102 = scmp.ne.s32.totalorder %s88, %s89
    %p103 = scmp.eq.s32.totalorder %s18, 1
    %p104 = por %p102, %p103
    %p106 = scmp.ne.s32.totalorder %s89, %s105
    %p107 = scmp.eq.s32.totalorder %s18, 0
    %p108 = por %p106, %p107
    %s109 = ssub.s32 %s12, %s19
    %p110 = scmp.eq.s32.totalorder %s109, 0
    %s112 = sadd.s32 %s111, 1
    %s113 = scalar_select %p110, %s111, %s112
    %p116 = pneg %p110
    %p117 = scmp.eq.s32.totalorder %s12, 1
    %p118 = por %p116, %p117
    %p119 = scmp.ne.s32.totalorder %s111, %s114
    %p120 = scmp.eq.s32.totalorder %s12, 0
    %p121 = por %p119, %p120
    %p122 = scmp.ne.s32.totalorder %s111, %s114
    %p123 = scmp.eq.s32.totalorder %s17, 1
    %p124 = por %p122, %p123
    %p125 = scmp.ne.s32.totalorder %s114, %s115
    %p126 = scmp.eq.s32.totalorder %s17, 0
    %p127 = por %p125, %p126
    %p128 = scmp.ne.s32.totalorder %s114, %s115
    %p129 = scmp.eq.s32.totalorder %s18, 1
    %p130 = por %p128, %p129
    %p132 = scmp.ne.s32.totalorder %s115, %s131
    %p133 = scmp.eq.s32.totalorder %s18, 0
    %p134 = por %p132, %p133
    %s136 = sadd.s32 %s135, 1
    %p139 = scmp.eq.s32.totalorder %s12, 1
    %p140 = scmp.ne.s32.totalorder %s135, %s137
    %p141 = scmp.eq.s32.totalorder %s12, 0
    %p142 = por %p140, %p141
    %p143 = scmp.ne.s32.totalorder %s135, %s137
    %p144 = scmp.eq.s32.totalorder %s17, 1
    %p145 = por %p143, %p144
    %p146 = scmp.ne.s32.totalorder %s137, %s138
    %p147 = scmp.eq.s32.totalorder %s17, 0
    %p148 = por %p146, %p147
    %p149 = scmp.ne.s32.totalorder %s137, %s138
    %p150 = scmp.eq.s32.totalorder %s18, 1
    %p151 = por %p149, %p150
    %p153 = scmp.ne.s32.totalorder %s138, %s152
    %p154 = scmp.eq.s32.totalorder %s18, 0
    %p155 = por %p153, %p154
    %s156 = ssub.s32 %s12, %s19
    %p157 = scmp.eq.s32.totalorder %s156, 0
    %s159 = sadd.s32 %s158, 1
    %s160 = scalar_select %p157, %s158, %s159
    %p163 = pneg %p157
    %p164 = scmp.eq.s32.totalorder %s12, 1
    %p165 = por %p163, %p164
    %p166 = scmp.ne.s32.totalorder %s158, %s161
    %p167 = scmp.eq.s32.totalorder %s12, 0
    %p168 = por %p166, %p167
    %p169 = scmp.ne.s32.totalorder %s158, %s161
    %p170 = scmp.eq.s32.totalorder %s17, 1
    %p171 = por %p169, %p170
    %p172 = scmp.ne.s32.totalorder %s161, %s162
    %p173 = scmp.eq.s32.totalorder %s17, 0
    %p174 = por %p172, %p173
    %p175 = scmp.ne.s32.totalorder %s161, %s162
    %p176 = scmp.eq.s32.totalorder %s18, 1
    %p177 = por %p175, %p176
    %p179 = scmp.ne.s32.totalorder %s162, %s178
    %p180 = scmp.eq.s32.totalorder %s18, 0
    %p181 = por %p179, %p180
    %p182 = scmp.le.s32.totalorder 1, %s12
    %p183 = scmp.lt.s32.totalorder %s12, 3
    %p184 = pnand %p182, %p183
    %p185 = pneg %p184
    // Predicated region
    $region9: #{accel101_forward.10} parent=5 // pred_check
      _
    $region10: #{accel101_forward.10} parent=5 // pred_check_branch
      %187 = sbr.rel (%p184) target = $region12
    $region11: #{accel101_forward.10} parent=5 // pred_region
      %s188 = ssub.s32 %s12, 1
      // Predicated region
      $region13: #{accel101_forward.10} parent=11 // pred_check
        %p189 = pneg %p33
      $region14: #{accel101_forward.10} parent=11 // pred_check_branch
        %191 = sbr.rel (%p189) target = $region16
      $region15: #{accel101_forward.10} parent=11 // pred_region
        _
      $region16: #{accel101_forward.10} parent=11 // pred_fallthru
        _
      // Predicated region
      $region17: #{accel101_forward.10} parent=11 // pred_check
        %p192 = pneg %p54
      $region18: #{accel101_forward.10} parent=11 // pred_check_branch
        %194 = sbr.rel (%p192) target = $region20
      $region19: #{accel101_forward.10} parent=11 // pred_region
        _
      $region20: #{accel101_forward.10} parent=11 // pred_fallthru
        _
      // Predicated region
      $region21: #{accel101_forward.10} parent=11 // pred_check
        %p195 = pneg %p75
      $region22: #{accel101_forward.10} parent=11 // pred_check_branch
        %197 = sbr.rel (%p195) target = $region24
      $region23: #{accel101_forward.10} parent=11 // pred_region
        _
      $region24: #{accel101_forward.10} parent=11 // pred_fallthru
        _
      // Predicated region
      $region25: #{accel101_forward.10} parent=11 // pred_check
        %p198 = pneg %p148
      $region26: #{accel101_forward.10} parent=11 // pred_check_branch
        %200 = sbr.rel (%p198) target = $region28
      $region27: #{accel101_forward.10} parent=11 // pred_region
        _
      $region28: #{accel101_forward.10} parent=11 // pred_fallthru
        _
    $region12: #{accel101_forward.10} parent=5 // pred_fallthru
      _
    %p201 = scmp.lt.s32.totalorder %s12, 2
    // Predicated region
    $region29: #{accel101_forward.10} parent=5 // pred_check
      %p202 = pneg %p201
    $region30: #{accel101_forward.10} parent=5 // pred_check_branch
      %204 = sbr.rel (%p202) target = $region32
    $region31: #{accel101_forward.10} parent=5 // pred_region
      // Predicated region
      $region33: #{accel101_forward.10} parent=31 // pred_check
        %p205 = pneg %p95
      $region34: #{accel101_forward.10} parent=31 // pred_check_branch
        %207 = sbr.rel (%p205) target = $region36
      $region35: #{accel101_forward.10} parent=31 // pred_region
        %p208 = scmp.lt.s32.totalorder %s12, 1
        %s209 = scalar_select %p208, %s12, 1
        %s210 = smul.addr %s209, 12
        %s211 = smul.addr %s210, 8
        %s212 = scalar_lea.vmem %s3, %s211
      $region36: #{accel101_forward.10} parent=31 // pred_fallthru
        _
      // Predicated region
      $region37: #{accel101_forward.10} parent=31 // pred_check
        %p213 = pneg %p121
      $region38: #{accel101_forward.10} parent=31 // pred_check_branch
        %215 = sbr.rel (%p213) target = $region40
      $region39: #{accel101_forward.10} parent=31 // pred_region
        %p216 = scmp.lt.s32.totalorder %s12, 1
        %s217 = scalar_select %p216, %s12, 1
        %s218 = smul.addr %s217, 12
        %s219 = smul.addr %s218, 8
        %s220 = scalar_lea.vmem %s4, %s219
      $region40: #{accel101_forward.10} parent=31 // pred_fallthru
        _
    $region32: #{accel101_forward.10} parent=5 // pred_fallthru
      _
    %p221 = scmp.le.s32.totalorder 1, %s12
    %p222 = scmp.lt.s32.totalorder %s12, 3
    %p223 = pnand %p221, %p222
    %p224 = pneg %p223
    // Predicated region
    $region41: #{accel101_forward.10} parent=5 // pred_check
      _
    $region42: #{accel101_forward.10} parent=5 // pred_check_branch
      %226 = sbr.rel (%p223) target = $region44
    $region43: #{accel101_forward.10} parent=5 // pred_region
      %s227 = ssub.s32 %s12, 1
      %p228 = pneg %p33
      %p229 = pneg %p30
      %p230 = pneg %p54
      %p231 = pneg %p51
      %p232 = pneg %p75
      %p233 = pneg %p72
      %p234 = scmp.lt.s32.totalorder %s17, 1
      %s235 = scalar_select %p234, %s17, 1
      %s236 = smul.addr %s235, 12
      %s237 = smul.addr %s236, 8
      %s238 = scalar_lea.vmem %s3, %s237
      %p239 = pneg %p101
      %p240 = pneg %p98
      %p241 = scmp.lt.s32.totalorder %s17, 1
      %s242 = scalar_select %p241, %s17, 1
      %s243 = smul.addr %s242, 12
      %s244 = smul.addr %s243, 8
      %s245 = scalar_lea.vmem %s4, %s244
      %p246 = pneg %p127
      %p247 = pneg %p124
      %p248 = pneg %p148
      %p249 = pneg %p145
      %p250 = pneg %p174
      %p251 = pneg %p171
      %p252 = scmp.lt.s32.totalorder %s17, 1
      %s253 = scalar_select %p252, %s17, 1
      %s254 = smul.addr %s253, 2
      %s255 = smul.addr %s254, 8
      %s256 = scalar_lea.vmem %s6, %s255
      %p257 = scmp.lt.s32.totalorder %s17, 1
      %s258 = scalar_select %p257, %s17, 1
      %s259 = smul.addr %s258, 12
      %s260 = smul.addr %s259, 8
      %s261 = scalar_lea.vmem %s3, %s260
      %p262 = scmp.lt.s32.totalorder %s17, 1
      %s263 = scalar_select %p262, %s17, 1
      %s264 = smul.addr %s263, 12
      %s265 = smul.addr %s264, 8
      %s266 = scalar_lea.vmem %s4, %s265
      %p267 = scmp.lt.s32.totalorder %s17, 1
      %s268 = scalar_select %p267, %s17, 1
      %s269 = smul.addr %s268, 2
      %s270 = smul.addr %s269, 8
      %s271 = scalar_lea.vmem %s6, %s270
      %v272 = vld [vmem:[%s261] sm:$0xff]
      %v273 = vld [vmem:[%s261 + $0x8] sm:$0xff]
      %v274 = vld [vmem:[%s261 + $0x10] sm:$0xff]
      %v275 = vld [vmem:[%s261 + $0x18] sm:$0xff]
      %v276 = vld [vmem:[%s261 + $0x20] sm:$0xff]
      %v277 = vld [vmem:[%s261 + $0x28] sm:$0xff]
      %v278 = vld [vmem:[%s261 + $0x30] sm:$0xff]
      %v279 = vld [vmem:[%s261 + $0x38] sm:$0xff]
      %v280 = vld [vmem:[%s261 + $0x40] sm:$0xff]
      %v281 = vld [vmem:[%s261 + $0x48] sm:$0xff]
      %v282 = vld [vmem:[%s261 + $0x50] sm:$0xff]
      %v283 = vld [vmem:[%s261 + $0x58] sm:$0xff]
      %v284 = vld [vmem:[%s0] sm:$0xff]
      %v285 = vld [vmem:[%s0 + $0x8] sm:$0xff]
      %v286 = vld [vmem:[%s0 + $0x10] sm:$0xff]
      %v287 = vld [vmem:[%s0 + $0x18] sm:$0xff]
      %vm288 = vcmask 261120
      %v290 = vsel %vm288, %v272, 0
      %v293 = vsel %vm288, %v273, 0
      %v296 = vsel %vm288, %v274, 0
      %v299 = vsel %vm288, %v275, 0
      %v302 = vsel %vm288, %v276, 0
      %v305 = vsel %vm288, %v277, 0
      %v308 = vsel %vm288, %v278, 0
      %v311 = vsel %vm288, %v279, 0
      %v314 = vsel %vm288, %v280, 0
      %v317 = vsel %vm288, %v281, 0
      %v320 = vsel %vm288, %v282, 0
      %v323 = vsel %vm288, %v283, 0
      %325 = vmatprep.subr.mxu0 0.0
      %326 = vmatpush1.msra.mxu0 0.0
      %327 = vmatprep.subr.mxu0 0.0
      %328 = vmatpush1.msra.mxu0 0.0
      %329 = vmatprep.subr.mxu0 0.0
      %330 = vmatpush1.msra.mxu0 0.0
      %331 = vmatprep.subr.mxu0 0.0
      %332 = vmatpush1.msra.mxu0 0.0
      %333 = vmatprep.subr.mxu0 0.0
      %334 = vmatpush1.msra.mxu0 0.0
      %335 = vmatprep.subr.mxu0 0.0
      %336 = vmatpush1.msra.mxu0 0.0
      %337 = vmatprep.subr.mxu0 0.0
      %338 = vmatpush1.msra.mxu0 0.0
      %339 = vmatprep.subr.mxu0 0.0
      %340 = vmatpush1.msra.mxu0 0.0
      %341 = vmatprep.subr.mxu0 0.0
      %342 = vmatpush1.msra.mxu0 0.0
      %343 = vmatprep.subr.mxu0 0.0
      %344 = vmatpush1.msra.mxu0 0.0
      %345 = vmatprep.subr.mxu0 0.0
      %346 = vmatpush1.msra.mxu0 0.0
      %347 = vmatprep.subr.mxu0 0.0
      %348 = vmatpush1.msra.mxu0 0.0
      %349 = vmatprep.subr.mxu0 0.0
      %350 = vmatpush1.msra.mxu0 %v287
      %351 = vmatprep.subr.mxu0 0.0
      %352 = vmatpush1.msra.mxu0 %v286
      %353 = vmatprep.subr.mxu0 0.0
      %354 = vmatpush1.msra.mxu0 %v285
      %355 = vmatprep.subr.mxu0 0.0
      %356 = vmatpush1.msra.mxu0 %v284
      %357 = vmatprep.subr.mxu0 0.0
      %358 = vmatpush2.msra.mxu0 0.0
      %359 = vmatprep.subr.mxu0 0.0
      %360 = vmatpush2.msra.mxu0 0.0
      %361 = vmatprep.subr.mxu0 0.0
      %362 = vmatpush2.msra.mxu0 0.0
      %363 = vmatprep.subr.mxu0 0.0
      %364 = vmatpush2.msra.mxu0 0.0
      %365 = vmatprep.subr.mxu0 0.0
      %366 = vmatpush2.msra.mxu0 0.0
      %367 = vmatprep.subr.mxu0 0.0
      %368 = vmatpush2.msra.mxu0 0.0
      %369 = vmatprep.subr.mxu0 0.0
      %370 = vmatpush2.msra.mxu0 0.0
      %371 = vmatprep.subr.mxu0 0.0
      %372 = vmatpush2.msra.mxu0 0.0
      %373 = vmatprep.subr.mxu0 0.0
      %374 = vmatpush2.msra.mxu0 0.0
      %375 = vmatprep.subr.mxu0 0.0
      %376 = vmatpush2.msra.mxu0 0.0
      %377 = vmatprep.subr.mxu0 0.0
      %378 = vmatpush2.msra.mxu0 0.0
      %379 = vmatprep.subr.mxu0 0.0
      %380 = vmatpush2.msra.mxu0 0.0
      %381 = vmatprep.subr.mxu0 0.0
      %382 = vmatpush2.msra.mxu0 0.0
      %383 = vmatprep.subr.mxu0 0.0
      %384 = vmatpush2.msra.mxu0 0.0
      %385 = vmatprep.subr.mxu0 0.0
      %386 = vmatpush2.msra.mxu0 0.0
      %387 = vmatprep.subr.mxu0 0.0
      %388 = vmatpush2.msra.mxu0 0.0
      %389 = vmatprep.mubr.f32.mxu0 0.0
      %390 = vmatmul.mubr.f32.gmra.mxu0 %v290
      %v391 = vpop.f32.mrf.mxu0
      %v392 = vadd.f32 0.0, %v391
      %v393 = vpop.f32.mrf.mxu0
      %394 = vmatprep.mubr.f32.mxu0 0.0
      %395 = vmatmul.mubr.f32.gmra.mxu0 %v293
      %v396 = vpop.f32.mrf.mxu0
      %v397 = vadd.f32 0.0, %v396
      %v398 = vpop.f32.mrf.mxu0
      %399 = vmatprep.mubr.f32.mxu0 0.0
      %400 = vmatmul.mubr.f32.gmra.mxu0 %v296
      %v401 = vpop.f32.mrf.mxu0
      %v402 = vadd.f32 0.0, %v401
      %v403 = vpop.f32.mrf.mxu0
      %404 = vmatprep.mubr.f32.mxu0 0.0
      %405 = vmatmul.mubr.f32.gmra.mxu0 %v299
      %v406 = vpop.f32.mrf.mxu0
      %v407 = vadd.f32 0.0, %v406
      %v408 = vpop.f32.mrf.mxu0
      %409 = vmatprep.mubr.f32.mxu0 0.0
      %410 = vmatmul.mubr.f32.gmra.mxu0 %v302
      %v411 = vpop.f32.mrf.mxu0
      %v412 = vadd.f32 0.0, %v411
      %v413 = vpop.f32.mrf.mxu0
      %414 = vmatprep.mubr.f32.mxu0 0.0
      %415 = vmatmul.mubr.f32.gmra.mxu0 %v305
      %v416 = vpop.f32.mrf.mxu0
      %v417 = vadd.f32 0.0, %v416
      %v418 = vpop.f32.mrf.mxu0
      %419 = vmatprep.mubr.f32.mxu0 0.0
      %420 = vmatmul.mubr.f32.gmra.mxu0 %v308
      %v421 = vpop.f32.mrf.mxu0
      %v422 = vadd.f32 0.0, %v421
      %v423 = vpop.f32.mrf.mxu0
      %424 = vmatprep.mubr.f32.mxu0 0.0
      %425 = vmatmul.mubr.f32.gmra.mxu0 %v311
      %v426 = vpop.f32.mrf.mxu0
      %v427 = vadd.f32 0.0, %v426
      %v428 = vpop.f32.mrf.mxu0
      %429 = vmatprep.mubr.f32.mxu0 0.0
      %430 = vmatmul.mubr.f32.gmra.mxu0 %v314
      %v431 = vpop.f32.mrf.mxu0
      %v432 = vadd.f32 0.0, %v431
      %v433 = vpop.f32.mrf.mxu0
      %434 = vmatprep.mubr.f32.mxu0 0.0
      %435 = vmatmul.mubr.f32.gmra.mxu0 %v317
      %v436 = vpop.f32.mrf.mxu0
      %v437 = vadd.f32 0.0, %v436
      %v438 = vpop.f32.mrf.mxu0
      %439 = vmatprep.mubr.f32.mxu0 0.0
      %440 = vmatmul.mubr.f32.gmra.mxu0 %v320
      %v441 = vpop.f32.mrf.mxu0
      %v442 = vadd.f32 0.0, %v441
      %v443 = vpop.f32.mrf.mxu0
      %444 = vmatprep.mubr.f32.mxu0 0.0
      %445 = vmatmul.mubr.f32.gmra.mxu0 %v323
      %v446 = vpop.f32.mrf.mxu0
      %v447 = vadd.f32 0.0, %v446
      %v448 = vpop.f32.mrf.mxu0
      %449 = vdwg.mxu0
      %v450 = vld [vmem:[%s266] sm:$0xff]
      %v451 = vld [vmem:[%s266 + $0x8] sm:$0xff]
      %v452 = vld [vmem:[%s266 + $0x10] sm:$0xff]
      %v453 = vld [vmem:[%s266 + $0x18] sm:$0xff]
      %v454 = vld [vmem:[%s266 + $0x20] sm:$0xff]
      %v455 = vld [vmem:[%s266 + $0x28] sm:$0xff]
      %v456 = vld [vmem:[%s266 + $0x30] sm:$0xff]
      %v457 = vld [vmem:[%s266 + $0x38] sm:$0xff]
      %v458 = vld [vmem:[%s266 + $0x40] sm:$0xff]
      %v459 = vld [vmem:[%s266 + $0x48] sm:$0xff]
      %v460 = vld [vmem:[%s266 + $0x50] sm:$0xff]
      %v461 = vld [vmem:[%s266 + $0x58] sm:$0xff]
      %v463 = vsel %vm288, %v450, 0
      %v466 = vsel %vm288, %v451, 0
      %v469 = vsel %vm288, %v452, 0
      %v472 = vsel %vm288, %v453, 0
      %v475 = vsel %vm288, %v454, 0
      %v478 = vsel %vm288, %v455, 0
      %v481 = vsel %vm288, %v456, 0
      %v484 = vsel %vm288, %v457, 0
      %v487 = vsel %vm288, %v458, 0
      %v490 = vsel %vm288, %v459, 0
      %v493 = vsel %vm288, %v460, 0
      %v496 = vsel %vm288, %v461, 0
      %498 = vmatprep.subr.mxu0 0.0
      %499 = vmatpush1.msra.mxu0 0.0
      %500 = vmatprep.subr.mxu0 0.0
      %501 = vmatpush1.msra.mxu0 0.0
      %502 = vmatprep.subr.mxu0 0.0
      %503 = vmatpush1.msra.mxu0 0.0
      %504 = vmatprep.subr.mxu0 0.0
      %505 = vmatpush1.msra.mxu0 0.0
      %506 = vmatprep.subr.mxu0 0.0
      %507 = vmatpush1.msra.mxu0 0.0
      %508 = vmatprep.subr.mxu0 0.0
      %509 = vmatpush1.msra.mxu0 0.0
      %510 = vmatprep.subr.mxu0 0.0
      %511 = vmatpush1.msra.mxu0 0.0
      %512 = vmatprep.subr.mxu0 0.0
      %513 = vmatpush1.msra.mxu0 0.0
      %514 = vmatprep.subr.mxu0 0.0
      %515 = vmatpush1.msra.mxu0 0.0
      %516 = vmatprep.subr.mxu0 0.0
      %517 = vmatpush1.msra.mxu0 0.0
      %518 = vmatprep.subr.mxu0 0.0
      %519 = vmatpush1.msra.mxu0 0.0
      %520 = vmatprep.subr.mxu0 0.0
      %521 = vmatpush1.msra.mxu0 0.0
      %522 = vmatprep.subr.mxu0 0.0
      %523 = vmatpush1.msra.mxu0 %v287
      %524 = vmatprep.subr.mxu0 0.0
      %525 = vmatpush1.msra.mxu0 %v286
      %526 = vmatprep.subr.mxu0 0.0
      %527 = vmatpush1.msra.mxu0 %v285
      %528 = vmatprep.subr.mxu0 0.0
      %529 = vmatpush1.msra.mxu0 %v284
      %530 = vmatprep.subr.mxu0 0.0
      %531 = vmatpush2.msra.mxu0 0.0
      %532 = vmatprep.subr.mxu0 0.0
      %533 = vmatpush2.msra.mxu0 0.0
      %534 = vmatprep.subr.mxu0 0.0
      %535 = vmatpush2.msra.mxu0 0.0
      %536 = vmatprep.subr.mxu0 0.0
      %537 = vmatpush2.msra.mxu0 0.0
      %538 = vmatprep.subr.mxu0 0.0
      %539 = vmatpush2.msra.mxu0 0.0
      %540 = vmatprep.subr.mxu0 0.0
      %541 = vmatpush2.msra.mxu0 0.0
      %542 = vmatprep.subr.mxu0 0.0
      %543 = vmatpush2.msra.mxu0 0.0
      %544 = vmatprep.subr.mxu0 0.0
      %545 = vmatpush2.msra.mxu0 0.0
      %546 = vmatprep.subr.mxu0 0.0
      %547 = vmatpush2.msra.mxu0 0.0
      %548 = vmatprep.subr.mxu0 0.0
      %549 = vmatpush2.msra.mxu0 0.0
      %550 = vmatprep.subr.mxu0 0.0
      %551 = vmatpush2.msra.mxu0 0.0
      %552 = vmatprep.subr.mxu0 0.0
      %553 = vmatpush2.msra.mxu0 0.0
      %554 = vmatprep.subr.mxu0 0.0
      %555 = vmatpush2.msra.mxu0 0.0
      %556 = vmatprep.subr.mxu0 0.0
      %557 = vmatpush2.msra.mxu0 0.0
      %558 = vmatprep.subr.mxu0 0.0
      %559 = vmatpush2.msra.mxu0 0.0
      %560 = vmatprep.subr.mxu0 0.0
      %561 = vmatpush2.msra.mxu0 0.0
      %562 = vmatprep.mubr.f32.mxu0 0.0
      %563 = vmatmul.mubr.f32.gmra.mxu0 %v463
      %v564 = vpop.f32.mrf.mxu0
      %v565 = vadd.f32 0.0, %v564
      %v566 = vpop.f32.mrf.mxu0
      %567 = vmatprep.mubr.f32.mxu0 0.0
      %568 = vmatmul.mubr.f32.gmra.mxu0 %v466
      %v569 = vpop.f32.mrf.mxu0
      %v570 = vadd.f32 0.0, %v569
      %v571 = vpop.f32.mrf.mxu0
      %572 = vmatprep.mubr.f32.mxu0 0.0
      %573 = vmatmul.mubr.f32.gmra.mxu0 %v469
      %v574 = vpop.f32.mrf.mxu0
      %v575 = vadd.f32 0.0, %v574
      %v576 = vpop.f32.mrf.mxu0
      %577 = vmatprep.mubr.f32.mxu0 0.0
      %578 = vmatmul.mubr.f32.gmra.mxu0 %v472
      %v579 = vpop.f32.mrf.mxu0
      %v580 = vadd.f32 0.0, %v579
      %v581 = vpop.f32.mrf.mxu0
      %582 = vmatprep.mubr.f32.mxu0 0.0
      %583 = vmatmul.mubr.f32.gmra.mxu0 %v475
      %v584 = vpop.f32.mrf.mxu0
      %v585 = vadd.f32 0.0, %v584
      %v586 = vpop.f32.mrf.mxu0
      %587 = vmatprep.mubr.f32.mxu0 0.0
      %588 = vmatmul.mubr.f32.gmra.mxu0 %v478
      %v589 = vpop.f32.mrf.mxu0
      %v590 = vadd.f32 0.0, %v589
      %v591 = vpop.f32.mrf.mxu0
      %592 = vmatprep.mubr.f32.mxu0 0.0
      %593 = vmatmul.mubr.f32.gmra.mxu0 %v481
      %v594 = vpop.f32.mrf.mxu0
      %v595 = vadd.f32 0.0, %v594
      %v596 = vpop.f32.mrf.mxu0
      %597 = vmatprep.mubr.f32.mxu0 0.0
      %598 = vmatmul.mubr.f32.gmra.mxu0 %v484
      %v599 = vpop.f32.mrf.mxu0
      %v600 = vadd.f32 0.0, %v599
      %v601 = vpop.f32.mrf.mxu0
      %602 = vmatprep.mubr.f32.mxu0 0.0
      %603 = vmatmul.mubr.f32.gmra.mxu0 %v487
      %v604 = vpop.f32.mrf.mxu0
      %v605 = vadd.f32 0.0, %v604
      %v606 = vpop.f32.mrf.mxu0
      %607 = vmatprep.mubr.f32.mxu0 0.0
      %608 = vmatmul.mubr.f32.gmra.mxu0 %v490
      %v609 = vpop.f32.mrf.mxu0
      %v610 = vadd.f32 0.0, %v609
      %v611 = vpop.f32.mrf.mxu0
      %612 = vmatprep.mubr.f32.mxu0 0.0
      %613 = vmatmul.mubr.f32.gmra.mxu0 %v493
      %v614 = vpop.f32.mrf.mxu0
      %v615 = vadd.f32 0.0, %v614
      %v616 = vpop.f32.mrf.mxu0
      %617 = vmatprep.mubr.f32.mxu0 0.0
      %618 = vmatmul.mubr.f32.gmra.mxu0 %v496
      %v619 = vpop.f32.mrf.mxu0
      %v620 = vadd.f32 0.0, %v619
      %v621 = vpop.f32.mrf.mxu0
      %622 = vdwg.mxu0
      %v623 = vld [vmem:[%s1] sm:$0xff]
      %v624 = vld [vmem:[%s1 + $0x8] sm:$0xff]
      %v625 = vld [vmem:[%s2] sm:$0xff]
      %v626 = vld [vmem:[%s2 + $0x8] sm:$0xff]
      %vm627 = vcmask 785408
      %v629 = vsel %vm627, %v625, 0
      %v632 = vsel %vm627, %v626, 0
      %634 = vmatprep.subr.mxu0 0.0
      %635 = vmatpush1.msra.mxu0 0.0
      %636 = vmatprep.subr.mxu0 0.0
      %637 = vmatpush1.msra.mxu0 0.0
      %638 = vmatprep.subr.mxu0 0.0
      %639 = vmatpush1.msra.mxu0 0.0
      %640 = vmatprep.subr.mxu0 0.0
      %641 = vmatpush1.msra.mxu0 0.0
      %642 = vmatprep.subr.mxu0 0.0
      %643 = vmatpush1.msra.mxu0 %v620
      %644 = vmatprep.subr.mxu0 0.0
      %645 = vmatpush1.msra.mxu0 %v615
      %646 = vmatprep.subr.mxu0 0.0
      %647 = vmatpush1.msra.mxu0 %v610
      %648 = vmatprep.subr.mxu0 0.0
      %649 = vmatpush1.msra.mxu0 %v605
      %650 = vmatprep.subr.mxu0 0.0
      %651 = vmatpush1.msra.mxu0 %v600
      %652 = vmatprep.subr.mxu0 0.0
      %653 = vmatpush1.msra.mxu0 %v595
      %654 = vmatprep.subr.mxu0 0.0
      %655 = vmatpush1.msra.mxu0 %v590
      %656 = vmatprep.subr.mxu0 0.0
      %657 = vmatpush1.msra.mxu0 %v585
      %658 = vmatprep.subr.mxu0 0.0
      %659 = vmatpush1.msra.mxu0 %v580
      %660 = vmatprep.subr.mxu0 0.0
      %661 = vmatpush1.msra.mxu0 %v575
      %662 = vmatprep.subr.mxu0 0.0
      %663 = vmatpush1.msra.mxu0 %v570
      %664 = vmatprep.subr.mxu0 0.0
      %665 = vmatpush1.msra.mxu0 %v565
      %666 = vmatprep.subr.mxu0 0.0
      %667 = vmatpush2.msra.mxu0 0.0
      %668 = vmatprep.subr.mxu0 0.0
      %669 = vmatpush2.msra.mxu0 0.0
      %670 = vmatprep.subr.mxu0 0.0
      %671 = vmatpush2.msra.mxu0 0.0
      %672 = vmatprep.subr.mxu0 0.0
      %673 = vmatpush2.msra.mxu0 0.0
      %674 = vmatprep.subr.mxu0 0.0
      %675 = vmatpush2.msra.mxu0 0.0
      %676 = vmatprep.subr.mxu0 0.0
      %677 = vmatpush2.msra.mxu0 0.0
      %678 = vmatprep.subr.mxu0 0.0
      %679 = vmatpush2.msra.mxu0 0.0
      %680 = vmatprep.subr.mxu0 0.0
      %681 = vmatpush2.msra.mxu0 0.0
      %682 = vmatprep.subr.mxu0 0.0
      %683 = vmatpush2.msra.mxu0 0.0
      %684 = vmatprep.subr.mxu0 0.0
      %685 = vmatpush2.msra.mxu0 0.0
      %686 = vmatprep.subr.mxu0 0.0
      %687 = vmatpush2.msra.mxu0 0.0
      %688 = vmatprep.subr.mxu0 0.0
      %689 = vmatpush2.msra.mxu0 0.0
      %690 = vmatprep.subr.mxu0 0.0
      %691 = vmatpush2.msra.mxu0 0.0
      %692 = vmatprep.subr.mxu0 0.0
      %693 = vmatpush2.msra.mxu0 0.0
      %694 = vmatprep.subr.mxu0 0.0
      %695 = vmatpush2.msra.mxu0 0.0
      %696 = vmatprep.subr.mxu0 0.0
      %697 = vmatpush2.msra.mxu0 0.0
      %698 = vmatprep.mubr.f32.mxu0 0.0
      %699 = vmatmul.mubr.f32.gmra.mxu0 %v629
      %v700 = vpop.f32.mrf.mxu0
      %v701 = vadd.f32 0.0, %v700
      %v702 = vpop.f32.mrf.mxu0
      %703 = vmatprep.mubr.f32.mxu0 0.0
      %704 = vmatmul.mubr.f32.gmra.mxu0 %v632
      %v705 = vpop.f32.mrf.mxu0
      %v706 = vadd.f32 0.0, %v705
      %v707 = vpop.f32.mrf.mxu0
      %708 = vdwg.mxu0
      %v710 = vsel %vm627, %v623, 0
      %v713 = vsel %vm627, %v624, 0
      %715 = vmatprep.subr.mxu0 0.0
      %716 = vmatpush1.msra.mxu0 0.0
      %717 = vmatprep.subr.mxu0 0.0
      %718 = vmatpush1.msra.mxu0 0.0
      %719 = vmatprep.subr.mxu0 0.0
      %720 = vmatpush1.msra.mxu0 0.0
      %721 = vmatprep.subr.mxu0 0.0
      %722 = vmatpush1.msra.mxu0 0.0
      %723 = vmatprep.subr.mxu0 0.0
      %724 = vmatpush1.msra.mxu0 %v447
      %725 = vmatprep.subr.mxu0 0.0
      %726 = vmatpush1.msra.mxu0 %v442
      %727 = vmatprep.subr.mxu0 0.0
      %728 = vmatpush1.msra.mxu0 %v437
      %729 = vmatprep.subr.mxu0 0.0
      %730 = vmatpush1.msra.mxu0 %v432
      %731 = vmatprep.subr.mxu0 0.0
      %732 = vmatpush1.msra.mxu0 %v427
      %733 = vmatprep.subr.mxu0 0.0
      %734 = vmatpush1.msra.mxu0 %v422
      %735 = vmatprep.subr.mxu0 0.0
      %736 = vmatpush1.msra.mxu0 %v417
      %737 = vmatprep.subr.mxu0 0.0
      %738 = vmatpush1.msra.mxu0 %v412
      %739 = vmatprep.subr.mxu0 0.0
      %740 = vmatpush1.msra.mxu0 %v407
      %741 = vmatprep.subr.mxu0 0.0
      %742 = vmatpush1.msra.mxu0 %v402
      %743 = vmatprep.subr.mxu0 0.0
      %744 = vmatpush1.msra.mxu0 %v397
      %745 = vmatprep.subr.mxu0 0.0
      %746 = vmatpush1.msra.mxu0 %v392
      %747 = vmatprep.subr.mxu0 0.0
      %748 = vmatpush2.msra.mxu0 0.0
      %749 = vmatprep.subr.mxu0 0.0
      %750 = vmatpush2.msra.mxu0 0.0
      %751 = vmatprep.subr.mxu0 0.0
      %752 = vmatpush2.msra.mxu0 0.0
      %753 = vmatprep.subr.mxu0 0.0
      %754 = vmatpush2.msra.mxu0 0.0
      %755 = vmatprep.subr.mxu0 0.0
      %756 = vmatpush2.msra.mxu0 0.0
      %757 = vmatprep.subr.mxu0 0.0
      %758 = vmatpush2.msra.mxu0 0.0
      %759 = vmatprep.subr.mxu0 0.0
      %760 = vmatpush2.msra.mxu0 0.0
      %761 = vmatprep.subr.mxu0 0.0
      %762 = vmatpush2.msra.mxu0 0.0
      %763 = vmatprep.subr.mxu0 0.0
      %764 = vmatpush2.msra.mxu0 0.0
      %765 = vmatprep.subr.mxu0 0.0
      %766 = vmatpush2.msra.mxu0 0.0
      %767 = vmatprep.subr.mxu0 0.0
      %768 = vmatpush2.msra.mxu0 0.0
      %769 = vmatprep.subr.mxu0 0.0
      %770 = vmatpush2.msra.mxu0 0.0
      %771 = vmatprep.subr.mxu0 0.0
      %772 = vmatpush2.msra.mxu0 0.0
      %773 = vmatprep.subr.mxu0 0.0
      %774 = vmatpush2.msra.mxu0 0.0
      %775 = vmatprep.subr.mxu0 0.0
      %776 = vmatpush2.msra.mxu0 0.0
      %777 = vmatprep.subr.mxu0 0.0
      %778 = vmatpush2.msra.mxu0 0.0
      %779 = vmatprep.mubr.f32.mxu0 0.0
      %780 = vmatmul.mubr.f32.gmra.mxu0 %v710
      %v781 = vpop.f32.mrf.mxu0
      %v782 = vadd.f32 %v701, %v781
      %v783 = vpop.f32.mrf.mxu0
      %784 = vmatprep.mubr.f32.mxu0 0.0
      %785 = vmatmul.mubr.f32.gmra.mxu0 %v713
      %v786 = vpop.f32.mrf.mxu0
      %v787 = vadd.f32 %v706, %v786
      %v788 = vpop.f32.mrf.mxu0
      %789 = vdwg.mxu0
      %v790 = vld [vmem:[%s5] sm:$0xff]
      %v791 = vld [vmem:[%s5 + $0x8] sm:$0xff]
      %793 = vset.pattern.permute.xlu0 0
      %794 = vperm.xlu0 %793, %v790
      %v795 = vpop.permute.xlu0 %794
      %798 = vset.pattern.permute.xlu0 0
      %799 = vperm.xlu0 %798, %v791
      %v800 = vpop.permute.xlu0 %799
      %v802 = vadd.f32 %v782, %v795
      %v803 = vadd.f32 %v787, %v800
      %v804 = vtanh.pop %v802
      %v805 = vtanh.pop %v803
      %v806 = vmul.f32 %v804, 1.5
      %v807 = vmul.f32 %v805, 1.5
      %vm808 = vcmask 64512
      %809 = vst.msk [vmem:[%s271] sm:$0xff] %vm808, %v806
      %810 = vst.msk [vmem:[%s271 + $0x8] sm:$0xff] %vm808, %v807
      %p811 = scmp.lt.s32.totalorder %s17, 1
      %s812 = scalar_select %p811, %s17, 1
      %s813 = smul.addr %s812, 2
      %s814 = smul.addr %s813, 8
      %s815 = scalar_lea.vmem %s6, %s814
      // Predicated region
      $region45: #{accel101_forward.10} parent=43 // pred_check
        %p816 = pneg %p171
      $region46: #{accel101_forward.10} parent=43 // pred_check_branch
        %818 = sbr.rel (%p816) target = $region48
      $region47: #{accel101_forward.10} parent=43 // pred_region
        _
      $region48: #{accel101_forward.10} parent=43 // pred_fallthru
        _
    $region44: #{accel101_forward.10} parent=5 // pred_fallthru
      _
    %p819 = scmp.le.s32.totalorder 2, %s12
    // Predicated region
    $region49: #{accel101_forward.10} parent=5 // pred_check
      %p820 = pneg %p819
    $region50: #{accel101_forward.10} parent=5 // pred_check_branch
      %822 = sbr.rel (%p820) target = $region52
    $region51: #{accel101_forward.10} parent=5 // pred_region
      %s823 = ssub.s32 %s12, 2
      // Predicated region
      $region53: #{accel101_forward.10} parent=51 // pred_check
        %p824 = pneg %p177
      $region54: #{accel101_forward.10} parent=51 // pred_check_branch
        %826 = sbr.rel (%p824) target = $region56
      $region55: #{accel101_forward.10} parent=51 // pred_region
        %p827 = scmp.lt.s32.totalorder %s18, 1
        %s828 = scalar_select %p827, %s18, 1
        %s829 = smul.addr %s828, 2
        %s830 = smul.addr %s829, 8
        %s831 = scalar_lea.vmem %s6, %s830
      $region56: #{accel101_forward.10} parent=51 // pred_fallthru
        _
    $region52: #{accel101_forward.10} parent=5 // pred_fallthru
      _
  $region6: #{accel101_forward.10} parent=0 // loop_footer
    %s16 = sadd.s32 1, %s12
  $region7: #{accel101_forward.10} parent=0 // loop_footer_branch
    %11 = sbr.rel target = $region3
  $region8: #{accel101_forward.10} parent=0 // loop_exit
    _

// kernel: accel101_forward.7
$region0: #{accel101_forward.7}
  #allocation0 [shape = 'u32[]', space=smem, size = 0x4, offset = 0x4, fixed_abs, tag = 'smem constant byte address 0x4 - core index']
  #allocation1 [shape = 'u32[144,128]{1,0:T(1,128)}', space=vmem, size = 0x12000, scoped, tag = 'internal scratch']
  %s0 = inlined_call_operand.vmem [shape: f32[32,8], index: 0, kind: input, shape index: {}]
  %s1 = inlined_call_operand.vmem [shape: f32[120,96], index: 1, kind: input, shape index: {}]
  %s2 = inlined_call_operand.vmem [shape: f32[2,96,32], index: 2, kind: input, shape index: {}]
  %s3 = inlined_call_operand.vmem [shape: f32[120,1], index: 3, kind: input, shape index: {}]
  %s4 = inlined_call_operand.vmem [shape: f32[2,120,8], index: 4, kind: output, shape index: {}]
  %s5 = sld [smem:[#allocation0]]
  $region49: #{accel101_forward.7} parent=0
    _
  %s7 = ssub.s32 1, %s5
  %s8 = scalar_select 0, %s7, %s5
  loop: start=0, step=1, limit=4
  $region2: #{accel101_forward.7} parent=0 // loop_pre_header
    _
  $region3: #{accel101_forward.7} parent=0 // loop_header
    %s10 = sphi 0, %s14
    %p11 = scmp.ge.s32.totalorder %s10, 4
    %s18 = sphi 0, %s18
    %s20 = sphi 0, %s18
    %s21 = sphi 0, %s20
    %s35 = sphi 0, %s21
    %s39 = sphi 0, %s39
    %s41 = sphi 0, %s39
    %s42 = sphi 0, %s41
    %s56 = sphi 0, %s42
    %s62 = sphi 0, %s64
    %s65 = sphi 0, %s62
    %s66 = sphi 0, %s65
    %s82 = sphi 0, %s66
    %s86 = sphi 0, %s86
    %s88 = sphi 0, %s86
    %s89 = sphi 0, %s88
    %s103 = sphi 0, %s89
    %s109 = sphi 0, %s111
    %s112 = sphi 0, %s109
    %s113 = sphi 0, %s112
    %s129 = sphi 0, %s113
  $region4: #{accel101_forward.7} parent=0 // loop_header_branch
    %13 = sbr.rel (%p11) target = $region8
  $region5: #{accel101_forward.7} parent=0 // loop_body
    %s15 = ssub.s32 %s10, 1
    %s16 = ssub.s32 %s10, 2
    %s17 = sadd.s32 %s10, 1
    %s19 = sadd.s32 %s18, 1
    %p22 = scmp.eq.s32.totalorder %s10, 1
    %p23 = scmp.ne.s32.totalorder %s18, %s20
    %p24 = scmp.eq.s32.totalorder %s10, 0
    %p25 = por %p23, %p24
    %p26 = scmp.ne.s32.totalorder %s18, %s20
    %p27 = scmp.eq.s32.totalorder %s15, 1
    %p28 = por %p26, %p27
    %p29 = scmp.ne.s32.totalorder %s20, %s21
    %p30 = scmp.eq.s32.totalorder %s15, 0
    %p31 = por %p29, %p30
    %p32 = scmp.ne.s32.totalorder %s20, %s21
    %p33 = scmp.eq.s32.totalorder %s16, 1
    %p34 = por %p32, %p33
    %p36 = scmp.ne.s32.totalorder %s21, %s35
    %p37 = scmp.eq.s32.totalorder %s16, 0
    %p38 = por %p36, %p37
    %s40 = sadd.s32 %s39, 1
    %p43 = scmp.eq.s32.totalorder %s10, 1
    %p44 = scmp.ne.s32.totalorder %s39, %s41
    %p45 = scmp.eq.s32.totalorder %s10, 0
    %p46 = por %p44, %p45
    %p47 = scmp.ne.s32.totalorder %s39, %s41
    %p48 = scmp.eq.s32.totalorder %s15, 1
    %p49 = por %p47, %p48
    %p50 = scmp.ne.s32.totalorder %s41, %s42
    %p51 = scmp.eq.s32.totalorder %s15, 0
    %p52 = por %p50, %p51
    %p53 = scmp.ne.s32.totalorder %s41, %s42
    %p54 = scmp.eq.s32.totalorder %s16, 1
    %p55 = por %p53, %p54
    %p57 = scmp.ne.s32.totalorder %s42, %s56
    %p58 = scmp.eq.s32.totalorder %s16, 0
    %p59 = por %p57, %p58
    %s60 = ssub.s32 %s10, %s17
    %p61 = scmp.eq.s32.totalorder %s60, 0
    %s63 = sadd.s32 %s62, 1
    %s64 = scalar_select %p61, %s62, %s63
    %p67 = pneg %p61
    %p68 = scmp.eq.s32.totalorder %s10, 1
    %p69 = por %p67, %p68
    %p70 = scmp.ne.s32.totalorder %s62, %s65
    %p71 = scmp.eq.s32.totalorder %s10, 0
    %p72 = por %p70, %p71
    %p73 = scmp.ne.s32.totalorder %s62, %s65
    %p74 = scmp.eq.s32.totalorder %s15, 1
    %p75 = por %p73, %p74
    %p76 = scmp.ne.s32.totalorder %s65, %s66
    %p77 = scmp.eq.s32.totalorder %s15, 0
    %p78 = por %p76, %p77
    %p79 = scmp.ne.s32.totalorder %s65, %s66
    %p80 = scmp.eq.s32.totalorder %s16, 1
    %p81 = por %p79, %p80
    %p83 = scmp.ne.s32.totalorder %s66, %s82
    %p84 = scmp.eq.s32.totalorder %s16, 0
    %p85 = por %p83, %p84
    %s87 = sadd.s32 %s86, 1
    %p90 = scmp.eq.s32.totalorder %s10, 1
    %p91 = scmp.ne.s32.totalorder %s86, %s88
    %p92 = scmp.eq.s32.totalorder %s10, 0
    %p93 = por %p91, %p92
    %p94 = scmp.ne.s32.totalorder %s86, %s88
    %p95 = scmp.eq.s32.totalorder %s15, 1
    %p96 = por %p94, %p95
    %p97 = scmp.ne.s32.totalorder %s88, %s89
    %p98 = scmp.eq.s32.totalorder %s15, 0
    %p99 = por %p97, %p98
    %p100 = scmp.ne.s32.totalorder %s88, %s89
    %p101 = scmp.eq.s32.totalorder %s16, 1
    %p102 = por %p100, %p101
    %p104 = scmp.ne.s32.totalorder %s89, %s103
    %p105 = scmp.eq.s32.totalorder %s16, 0
    %p106 = por %p104, %p105
    %s107 = ssub.s32 %s10, %s17
    %p108 = scmp.eq.s32.totalorder %s107, 0
    %s110 = sadd.s32 %s109, 1
    %s111 = scalar_select %p108, %s109, %s110
    %p114 = pneg %p108
    %p115 = scmp.eq.s32.totalorder %s10, 1
    %p116 = por %p114, %p115
    %p117 = scmp.ne.s32.totalorder %s109, %s112
    %p118 = scmp.eq.s32.totalorder %s10, 0
    %p119 = por %p117, %p118
    %p120 = scmp.ne.s32.totalorder %s109, %s112
    %p121 = scmp.eq.s32.totalorder %s15, 1
    %p122 = por %p120, %p121
    %p123 = scmp.ne.s32.totalorder %s112, %s113
    %p124 = scmp.eq.s32.totalorder %s15, 0
    %p125 = por %p123, %p124
    %p126 = scmp.ne.s32.totalorder %s112, %s113
    %p127 = scmp.eq.s32.totalorder %s16, 1
    %p128 = por %p126, %p127
    %p130 = scmp.ne.s32.totalorder %s113, %s129
    %p131 = scmp.eq.s32.totalorder %s16, 0
    %p132 = por %p130, %p131
    %p133 = scmp.le.s32.totalorder 1, %s10
    %p134 = scmp.lt.s32.totalorder %s10, 3
    %p135 = pnand %p133, %p134
    %p136 = pneg %p135
    // Predicated region
    $region9: #{accel101_forward.7} parent=5 // pred_check
      _
    $region10: #{accel101_forward.7} parent=5 // pred_check_branch
      %138 = sbr.rel (%p135) target = $region12
    $region11: #{accel101_forward.7} parent=5 // pred_region
      %s139 = ssub.s32 %s10, 1
      // Predicated region
      $region13: #{accel101_forward.7} parent=11 // pred_check
        %p140 = pneg %p31
      $region14: #{accel101_forward.7} parent=11 // pred_check_branch
        %142 = sbr.rel (%p140) target = $region16
      $region15: #{accel101_forward.7} parent=11 // pred_region
        _
      $region16: #{accel101_forward.7} parent=11 // pred_fallthru
        _
      // Predicated region
      $region17: #{accel101_forward.7} parent=11 // pred_check
        %p143 = pneg %p52
      $region18: #{accel101_forward.7} parent=11 // pred_check_branch
        %145 = sbr.rel (%p143) target = $region20
      $region19: #{accel101_forward.7} parent=11 // pred_region
        _
      $region20: #{accel101_forward.7} parent=11 // pred_fallthru
        _
      // Predicated region
      $region21: #{accel101_forward.7} parent=11 // pred_check
        %p146 = pneg %p99
      $region22: #{accel101_forward.7} parent=11 // pred_check_branch
        %148 = sbr.rel (%p146) target = $region24
      $region23: #{accel101_forward.7} parent=11 // pred_region
        _
      $region24: #{accel101_forward.7} parent=11 // pred_fallthru
        _
    $region12: #{accel101_forward.7} parent=5 // pred_fallthru
      _
    %p149 = scmp.lt.s32.totalorder %s10, 2
    // Predicated region
    $region25: #{accel101_forward.7} parent=5 // pred_check
      %p150 = pneg %p149
    $region26: #{accel101_forward.7} parent=5 // pred_check_branch
      %152 = sbr.rel (%p150) target = $region28
    $region27: #{accel101_forward.7} parent=5 // pred_region
      // Predicated region
      $region29: #{accel101_forward.7} parent=27 // pred_check
        %p153 = pneg %p72
      $region30: #{accel101_forward.7} parent=27 // pred_check_branch
        %155 = sbr.rel (%p153) target = $region32
      $region31: #{accel101_forward.7} parent=27 // pred_region
        %p156 = scmp.lt.s32.totalorder %s10, 1
        %s157 = scalar_select %p156, %s10, 1
        %s158 = smul.addr %s157, 12
        %s159 = smul.addr %s158, 8
        %s160 = scalar_lea.vmem %s2, %s159
      $region32: #{accel101_forward.7} parent=27 // pred_fallthru
        _
    $region28: #{accel101_forward.7} parent=5 // pred_fallthru
      _
    %p161 = scmp.le.s32.totalorder 1, %s10
    %p162 = scmp.lt.s32.totalorder %s10, 3
    %p163 = pnand %p161, %p162
    %p164 = pneg %p163
    // Predicated region
    $region33: #{accel101_forward.7} parent=5 // pred_check
      _
    $region34: #{accel101_forward.7} parent=5 // pred_check_branch
      %166 = sbr.rel (%p163) target = $region36
    $region35: #{accel101_forward.7} parent=5 // pred_region
      %s167 = ssub.s32 %s10, 1
      %p168 = pneg %p31
      %p169 = pneg %p28
      %p170 = pneg %p52
      %p171 = pneg %p49
      %p172 = scmp.lt.s32.totalorder %s15, 1
      %s173 = scalar_select %p172, %s15, 1
      %s174 = smul.addr %s173, 12
      %s175 = smul.addr %s174, 8
      %s176 = scalar_lea.vmem %s2, %s175
      %p177 = pneg %p78
      %p178 = pneg %p75
      %p179 = pneg %p99
      %p180 = pneg %p96
      %p181 = pneg %p125
      %p182 = pneg %p122
      %p183 = scmp.lt.s32.totalorder %s15, 1
      %s184 = scalar_select %p183, %s15, 1
      %s185 = smul.addr %s184, 15
      %s186 = smul.addr %s185, 8
      %s187 = scalar_lea.vmem %s4, %s186
      %p188 = scmp.lt.s32.totalorder %s15, 1
      %s189 = scalar_select %p188, %s15, 1
      %s190 = smul.addr %s189, 12
      %s191 = smul.addr %s190, 8
      %s192 = scalar_lea.vmem %s2, %s191
      %p193 = scmp.lt.s32.totalorder %s15, 1
      %s194 = scalar_select %p193, %s15, 1
      %s195 = smul.addr %s194, 15
      %s196 = smul.addr %s195, 8
      %s197 = scalar_lea.vmem %s4, %s196
      %v198 = vld [vmem:[%s192] sm:$0xff]
      %v199 = vld [vmem:[%s192 + $0x8] sm:$0xff]
      %v200 = vld [vmem:[%s192 + $0x10] sm:$0xff]
      %v201 = vld [vmem:[%s192 + $0x18] sm:$0xff]
      %v202 = vld [vmem:[%s192 + $0x20] sm:$0xff]
      %v203 = vld [vmem:[%s192 + $0x28] sm:$0xff]
      %v204 = vld [vmem:[%s192 + $0x30] sm:$0xff]
      %v205 = vld [vmem:[%s192 + $0x38] sm:$0xff]
      %v206 = vld [vmem:[%s192 + $0x40] sm:$0xff]
      %v207 = vld [vmem:[%s192 + $0x48] sm:$0xff]
      %v208 = vld [vmem:[%s192 + $0x50] sm:$0xff]
      %v209 = vld [vmem:[%s192 + $0x58] sm:$0xff]
      %v210 = vld [vmem:[%s0] sm:$0xff]
      %v211 = vld [vmem:[%s0 + $0x8] sm:$0xff]
      %v212 = vld [vmem:[%s0 + $0x10] sm:$0xff]
      %v213 = vld [vmem:[%s0 + $0x18] sm:$0xff]
      %vm214 = vcmask 261120
      %v216 = vsel %vm214, %v198, 0
      %v219 = vsel %vm214, %v199, 0
      %v222 = vsel %vm214, %v200, 0
      %v225 = vsel %vm214, %v201, 0
      %v228 = vsel %vm214, %v202, 0
      %v231 = vsel %vm214, %v203, 0
      %v234 = vsel %vm214, %v204, 0
      %v237 = vsel %vm214, %v205, 0
      %v240 = vsel %vm214, %v206, 0
      %v243 = vsel %vm214, %v207, 0
      %v246 = vsel %vm214, %v208, 0
      %v249 = vsel %vm214, %v209, 0
      %251 = vmatprep.subr.mxu0 0.0
      %252 = vmatpush1.msra.mxu0 0.0
      %253 = vmatprep.subr.mxu0 0.0
      %254 = vmatpush1.msra.mxu0 0.0
      %255 = vmatprep.subr.mxu0 0.0
      %256 = vmatpush1.msra.mxu0 0.0
      %257 = vmatprep.subr.mxu0 0.0
      %258 = vmatpush1.msra.mxu0 0.0
      %259 = vmatprep.subr.mxu0 0.0
      %260 = vmatpush1.msra.mxu0 0.0
      %261 = vmatprep.subr.mxu0 0.0
      %262 = vmatpush1.msra.mxu0 0.0
      %263 = vmatprep.subr.mxu0 0.0
      %264 = vmatpush1.msra.mxu0 0.0
      %265 = vmatprep.subr.mxu0 0.0
      %266 = vmatpush1.msra.mxu0 0.0
      %267 = vmatprep.subr.mxu0 0.0
      %268 = vmatpush1.msra.mxu0 0.0
      %269 = vmatprep.subr.mxu0 0.0
      %270 = vmatpush1.msra.mxu0 0.0
      %271 = vmatprep.subr.mxu0 0.0
      %272 = vmatpush1.msra.mxu0 0.0
      %273 = vmatprep.subr.mxu0 0.0
      %274 = vmatpush1.msra.mxu0 0.0
      %275 = vmatprep.subr.mxu0 0.0
      %276 = vmatpush1.msra.mxu0 %v213
      %277 = vmatprep.subr.mxu0 0.0
      %278 = vmatpush1.msra.mxu0 %v212
      %279 = vmatprep.subr.mxu0 0.0
      %280 = vmatpush1.msra.mxu0 %v211
      %281 = vmatprep.subr.mxu0 0.0
      %282 = vmatpush1.msra.mxu0 %v210
      %283 = vmatprep.subr.mxu0 0.0
      %284 = vmatpush2.msra.mxu0 0.0
      %285 = vmatprep.subr.mxu0 0.0
      %286 = vmatpush2.msra.mxu0 0.0
      %287 = vmatprep.subr.mxu0 0.0
      %288 = vmatpush2.msra.mxu0 0.0
      %289 = vmatprep.subr.mxu0 0.0
      %290 = vmatpush2.msra.mxu0 0.0
      %291 = vmatprep.subr.mxu0 0.0
      %292 = vmatpush2.msra.mxu0 0.0
      %293 = vmatprep.subr.mxu0 0.0
      %294 = vmatpush2.msra.mxu0 0.0
      %295 = vmatprep.subr.mxu0 0.0
      %296 = vmatpush2.msra.mxu0 0.0
      %297 = vmatprep.subr.mxu0 0.0
      %298 = vmatpush2.msra.mxu0 0.0
      %299 = vmatprep.subr.mxu0 0.0
      %300 = vmatpush2.msra.mxu0 0.0
      %301 = vmatprep.subr.mxu0 0.0
      %302 = vmatpush2.msra.mxu0 0.0
      %303 = vmatprep.subr.mxu0 0.0
      %304 = vmatpush2.msra.mxu0 0.0
      %305 = vmatprep.subr.mxu0 0.0
      %306 = vmatpush2.msra.mxu0 0.0
      %307 = vmatprep.subr.mxu0 0.0
      %308 = vmatpush2.msra.mxu0 0.0
      %309 = vmatprep.subr.mxu0 0.0
      %310 = vmatpush2.msra.mxu0 0.0
      %311 = vmatprep.subr.mxu0 0.0
      %312 = vmatpush2.msra.mxu0 0.0
      %313 = vmatprep.subr.mxu0 0.0
      %314 = vmatpush2.msra.mxu0 0.0
      %315 = vmatprep.mubr.f32.mxu0 0.0
      %316 = vmatmul.mubr.f32.gmra.mxu0 %v216
      %v317 = vpop.f32.mrf.mxu0
      %v318 = vadd.f32 0.0, %v317
      %v319 = vpop.f32.mrf.mxu0
      %320 = vmatprep.mubr.f32.mxu0 0.0
      %321 = vmatmul.mubr.f32.gmra.mxu0 %v219
      %v322 = vpop.f32.mrf.mxu0
      %v323 = vadd.f32 0.0, %v322
      %v324 = vpop.f32.mrf.mxu0
      %325 = vmatprep.mubr.f32.mxu0 0.0
      %326 = vmatmul.mubr.f32.gmra.mxu0 %v222
      %v327 = vpop.f32.mrf.mxu0
      %v328 = vadd.f32 0.0, %v327
      %v329 = vpop.f32.mrf.mxu0
      %330 = vmatprep.mubr.f32.mxu0 0.0
      %331 = vmatmul.mubr.f32.gmra.mxu0 %v225
      %v332 = vpop.f32.mrf.mxu0
      %v333 = vadd.f32 0.0, %v332
      %v334 = vpop.f32.mrf.mxu0
      %335 = vmatprep.mubr.f32.mxu0 0.0
      %336 = vmatmul.mubr.f32.gmra.mxu0 %v228
      %v337 = vpop.f32.mrf.mxu0
      %v338 = vadd.f32 0.0, %v337
      %v339 = vpop.f32.mrf.mxu0
      %340 = vmatprep.mubr.f32.mxu0 0.0
      %341 = vmatmul.mubr.f32.gmra.mxu0 %v231
      %v342 = vpop.f32.mrf.mxu0
      %v343 = vadd.f32 0.0, %v342
      %v344 = vpop.f32.mrf.mxu0
      %345 = vmatprep.mubr.f32.mxu0 0.0
      %346 = vmatmul.mubr.f32.gmra.mxu0 %v234
      %v347 = vpop.f32.mrf.mxu0
      %v348 = vadd.f32 0.0, %v347
      %v349 = vpop.f32.mrf.mxu0
      %350 = vmatprep.mubr.f32.mxu0 0.0
      %351 = vmatmul.mubr.f32.gmra.mxu0 %v237
      %v352 = vpop.f32.mrf.mxu0
      %v353 = vadd.f32 0.0, %v352
      %v354 = vpop.f32.mrf.mxu0
      %355 = vmatprep.mubr.f32.mxu0 0.0
      %356 = vmatmul.mubr.f32.gmra.mxu0 %v240
      %v357 = vpop.f32.mrf.mxu0
      %v358 = vadd.f32 0.0, %v357
      %v359 = vpop.f32.mrf.mxu0
      %360 = vmatprep.mubr.f32.mxu0 0.0
      %361 = vmatmul.mubr.f32.gmra.mxu0 %v243
      %v362 = vpop.f32.mrf.mxu0
      %v363 = vadd.f32 0.0, %v362
      %v364 = vpop.f32.mrf.mxu0
      %365 = vmatprep.mubr.f32.mxu0 0.0
      %366 = vmatmul.mubr.f32.gmra.mxu0 %v246
      %v367 = vpop.f32.mrf.mxu0
      %v368 = vadd.f32 0.0, %v367
      %v369 = vpop.f32.mrf.mxu0
      %370 = vmatprep.mubr.f32.mxu0 0.0
      %371 = vmatmul.mubr.f32.gmra.mxu0 %v249
      %v372 = vpop.f32.mrf.mxu0
      %v373 = vadd.f32 0.0, %v372
      %v374 = vpop.f32.mrf.mxu0
      %375 = vdwg.mxu0
      %v376 = vld [vmem:[%s1] sm:$0xff]
      %v377 = vld [vmem:[%s1 + $0x8] sm:$0xff]
      %v378 = vld [vmem:[%s1 + $0x10] sm:$0xff]
      %v379 = vld [vmem:[%s1 + $0x18] sm:$0xff]
      %v380 = vld [vmem:[%s1 + $0x20] sm:$0xff]
      %v381 = vld [vmem:[%s1 + $0x28] sm:$0xff]
      %v382 = vld [vmem:[%s1 + $0x30] sm:$0xff]
      %v383 = vld [vmem:[%s1 + $0x38] sm:$0xff]
      %v384 = vld [vmem:[%s1 + $0x40] sm:$0xff]
      %v385 = vld [vmem:[%s1 + $0x48] sm:$0xff]
      %v386 = vld [vmem:[%s1 + $0x50] sm:$0xff]
      %v387 = vld [vmem:[%s1 + $0x58] sm:$0xff]
      %v388 = vld [vmem:[%s1 + $0x60] sm:$0xff]
      %v389 = vld [vmem:[%s1 + $0x68] sm:$0xff]
      %v390 = vld [vmem:[%s1 + $0x70] sm:$0xff]
      %v391 = vld [vmem:[%s3] sm:$0xff]
      %v392 = vld [vmem:[%s3 + $0x8] sm:$0xff]
      %v393 = vld [vmem:[%s3 + $0x10] sm:$0xff]
      %v394 = vld [vmem:[%s3 + $0x18] sm:$0xff]
      %v395 = vld [vmem:[%s3 + $0x20] sm:$0xff]
      %v396 = vld [vmem:[%s3 + $0x28] sm:$0xff]
      %v397 = vld [vmem:[%s3 + $0x30] sm:$0xff]
      %v398 = vld [vmem:[%s3 + $0x38] sm:$0xff]
      %v399 = vld [vmem:[%s3 + $0x40] sm:$0xff]
      %v400 = vld [vmem:[%s3 + $0x48] sm:$0xff]
      %v401 = vld [vmem:[%s3 + $0x50] sm:$0xff]
      %v402 = vld [vmem:[%s3 + $0x58] sm:$0xff]
      %v403 = vld [vmem:[%s3 + $0x60] sm:$0xff]
      %v404 = vld [vmem:[%s3 + $0x68] sm:$0xff]
      %v405 = vld [vmem:[%s3 + $0x70] sm:$0xff]
      %407 = vset.pattern.permute.xlu0 0
      %408 = vperm.xlu0 %407, %v391
      %v409 = vpop.permute.xlu0 %408
      %412 = vset.pattern.permute.xlu0 0
      %413 = vperm.xlu0 %412, %v392
      %v414 = vpop.permute.xlu0 %413
      %417 = vset.pattern.permute.xlu0 0
      %418 = vperm.xlu0 %417, %v393
      %v419 = vpop.permute.xlu0 %418
      %422 = vset.pattern.permute.xlu0 0
      %423 = vperm.xlu0 %422, %v394
      %v424 = vpop.permute.xlu0 %423
      %427 = vset.pattern.permute.xlu0 0
      %428 = vperm.xlu0 %427, %v395
      %v429 = vpop.permute.xlu0 %428
      %432 = vset.pattern.permute.xlu0 0
      %433 = vperm.xlu0 %432, %v396
      %v434 = vpop.permute.xlu0 %433
      %437 = vset.pattern.permute.xlu0 0
      %438 = vperm.xlu0 %437, %v397
      %v439 = vpop.permute.xlu0 %438
      %442 = vset.pattern.permute.xlu0 0
      %443 = vperm.xlu0 %442, %v398
      %v444 = vpop.permute.xlu0 %443
      %447 = vset.pattern.permute.xlu0 0
      %448 = vperm.xlu0 %447, %v399
      %v449 = vpop.permute.xlu0 %448
      %452 = vset.pattern.permute.xlu0 0
      %453 = vperm.xlu0 %452, %v400
      %v454 = vpop.permute.xlu0 %453
      %457 = vset.pattern.permute.xlu0 0
      %458 = vperm.xlu0 %457, %v401
      %v459 = vpop.permute.xlu0 %458
      %462 = vset.pattern.permute.xlu0 0
      %463 = vperm.xlu0 %462, %v402
      %v464 = vpop.permute.xlu0 %463
      %467 = vset.pattern.permute.xlu0 0
      %468 = vperm.xlu0 %467, %v403
      %v469 = vpop.permute.xlu0 %468
      %472 = vset.pattern.permute.xlu0 0
      %473 = vperm.xlu0 %472, %v404
      %v474 = vpop.permute.xlu0 %473
      %477 = vset.pattern.permute.xlu0 0
      %478 = vperm.xlu0 %477, %v405
      %v479 = vpop.permute.xlu0 %478
      %vm481 = vcmask 785408
      %v483 = vsel %vm481, %v376, 0
      %v486 = vsel %vm481, %v377, 0
      %v489 = vsel %vm481, %v378, 0
      %v492 = vsel %vm481, %v379, 0
      %v495 = vsel %vm481, %v380, 0
      %v498 = vsel %vm481, %v381, 0
      %v501 = vsel %vm481, %v382, 0
      %v504 = vsel %vm481, %v383, 0
      %v507 = vsel %vm481, %v384, 0
      %v510 = vsel %vm481, %v385, 0
      %v513 = vsel %vm481, %v386, 0
      %v516 = vsel %vm481, %v387, 0
      %v519 = vsel %vm481, %v388, 0
      %v522 = vsel %vm481, %v389, 0
      %v525 = vsel %vm481, %v390, 0
      %527 = vmatprep.subr.mxu0 0.0
      %528 = vmatpush1.msra.mxu0 0.0
      %529 = vmatprep.subr.mxu0 0.0
      %530 = vmatpush1.msra.mxu0 0.0
      %531 = vmatprep.subr.mxu0 0.0
      %532 = vmatpush1.msra.mxu0 0.0
      %533 = vmatprep.subr.mxu0 0.0
      %534 = vmatpush1.msra.mxu0 0.0
      %535 = vmatprep.subr.mxu0 0.0
      %536 = vmatpush1.msra.mxu0 %v373
      %537 = vmatprep.subr.mxu0 0.0
      %538 = vmatpush1.msra.mxu0 %v368
      %539 = vmatprep.subr.mxu0 0.0
      %540 = vmatpush1.msra.mxu0 %v363
      %541 = vmatprep.subr.mxu0 0.0
      %542 = vmatpush1.msra.mxu0 %v358
      %543 = vmatprep.subr.mxu0 0.0
      %544 = vmatpush1.msra.mxu0 %v353
      %545 = vmatprep.subr.mxu0 0.0
      %546 = vmatpush1.msra.mxu0 %v348
      %547 = vmatprep.subr.mxu0 0.0
      %548 = vmatpush1.msra.mxu0 %v343
      %549 = vmatprep.subr.mxu0 0.0
      %550 = vmatpush1.msra.mxu0 %v338
      %551 = vmatprep.subr.mxu0 0.0
      %552 = vmatpush1.msra.mxu0 %v333
      %553 = vmatprep.subr.mxu0 0.0
      %554 = vmatpush1.msra.mxu0 %v328
      %555 = vmatprep.subr.mxu0 0.0
      %556 = vmatpush1.msra.mxu0 %v323
      %557 = vmatprep.subr.mxu0 0.0
      %558 = vmatpush1.msra.mxu0 %v318
      %559 = vmatprep.subr.mxu0 0.0
      %560 = vmatpush2.msra.mxu0 0.0
      %561 = vmatprep.subr.mxu0 0.0
      %562 = vmatpush2.msra.mxu0 0.0
      %563 = vmatprep.subr.mxu0 0.0
      %564 = vmatpush2.msra.mxu0 0.0
      %565 = vmatprep.subr.mxu0 0.0
      %566 = vmatpush2.msra.mxu0 0.0
      %567 = vmatprep.subr.mxu0 0.0
      %568 = vmatpush2.msra.mxu0 0.0
      %569 = vmatprep.subr.mxu0 0.0
      %570 = vmatpush2.msra.mxu0 0.0
      %571 = vmatprep.subr.mxu0 0.0
      %572 = vmatpush2.msra.mxu0 0.0
      %573 = vmatprep.subr.mxu0 0.0
      %574 = vmatpush2.msra.mxu0 0.0
      %575 = vmatprep.subr.mxu0 0.0
      %576 = vmatpush2.msra.mxu0 0.0
      %577 = vmatprep.subr.mxu0 0.0
      %578 = vmatpush2.msra.mxu0 0.0
      %579 = vmatprep.subr.mxu0 0.0
      %580 = vmatpush2.msra.mxu0 0.0
      %581 = vmatprep.subr.mxu0 0.0
      %582 = vmatpush2.msra.mxu0 0.0
      %583 = vmatprep.subr.mxu0 0.0
      %584 = vmatpush2.msra.mxu0 0.0
      %585 = vmatprep.subr.mxu0 0.0
      %586 = vmatpush2.msra.mxu0 0.0
      %587 = vmatprep.subr.mxu0 0.0
      %588 = vmatpush2.msra.mxu0 0.0
      %589 = vmatprep.subr.mxu0 0.0
      %590 = vmatpush2.msra.mxu0 0.0
      %591 = vmatprep.mubr.f32.mxu0 0.0
      %592 = vmatmul.mubr.f32.gmra.mxu0 %v483
      %v593 = vpop.f32.mrf.mxu0
      %v594 = vadd.f32 %v409, %v593
      %v595 = vpop.f32.mrf.mxu0
      %596 = vmatprep.mubr.f32.mxu0 0.0
      %597 = vmatmul.mubr.f32.gmra.mxu0 %v486
      %v598 = vpop.f32.mrf.mxu0
      %v599 = vadd.f32 %v414, %v598
      %v600 = vpop.f32.mrf.mxu0
      %601 = vmatprep.mubr.f32.mxu0 0.0
      %602 = vmatmul.mubr.f32.gmra.mxu0 %v489
      %v603 = vpop.f32.mrf.mxu0
      %v604 = vadd.f32 %v419, %v603
      %v605 = vpop.f32.mrf.mxu0
      %606 = vmatprep.mubr.f32.mxu0 0.0
      %607 = vmatmul.mubr.f32.gmra.mxu0 %v492
      %v608 = vpop.f32.mrf.mxu0
      %v609 = vadd.f32 %v424, %v608
      %v610 = vpop.f32.mrf.mxu0
      %611 = vmatprep.mubr.f32.mxu0 0.0
      %612 = vmatmul.mubr.f32.gmra.mxu0 %v495
      %v613 = vpop.f32.mrf.mxu0
      %v614 = vadd.f32 %v429, %v613
      %v615 = vpop.f32.mrf.mxu0
      %616 = vmatprep.mubr.f32.mxu0 0.0
      %617 = vmatmul.mubr.f32.gmra.mxu0 %v498
      %v618 = vpop.f32.mrf.mxu0
      %v619 = vadd.f32 %v434, %v618
      %v620 = vpop.f32.mrf.mxu0
      %621 = vmatprep.mubr.f32.mxu0 0.0
      %622 = vmatmul.mubr.f32.gmra.mxu0 %v501
      %v623 = vpop.f32.mrf.mxu0
      %v624 = vadd.f32 %v439, %v623
      %v625 = vpop.f32.mrf.mxu0
      %626 = vmatprep.mubr.f32.mxu0 0.0
      %627 = vmatmul.mubr.f32.gmra.mxu0 %v504
      %v628 = vpop.f32.mrf.mxu0
      %v629 = vadd.f32 %v444, %v628
      %v630 = vpop.f32.mrf.mxu0
      %631 = vmatprep.mubr.f32.mxu0 0.0
      %632 = vmatmul.mubr.f32.gmra.mxu0 %v507
      %v633 = vpop.f32.mrf.mxu0
      %v634 = vadd.f32 %v449, %v633
      %v635 = vpop.f32.mrf.mxu0
      %636 = vmatprep.mubr.f32.mxu0 0.0
      %637 = vmatmul.mubr.f32.gmra.mxu0 %v510
      %v638 = vpop.f32.mrf.mxu0
      %v639 = vadd.f32 %v454, %v638
      %v640 = vpop.f32.mrf.mxu0
      %641 = vmatprep.mubr.f32.mxu0 0.0
      %642 = vmatmul.mubr.f32.gmra.mxu0 %v513
      %v643 = vpop.f32.mrf.mxu0
      %v644 = vadd.f32 %v459, %v643
      %v645 = vpop.f32.mrf.mxu0
      %646 = vmatprep.mubr.f32.mxu0 0.0
      %647 = vmatmul.mubr.f32.gmra.mxu0 %v516
      %v648 = vpop.f32.mrf.mxu0
      %v649 = vadd.f32 %v464, %v648
      %v650 = vpop.f32.mrf.mxu0
      %651 = vmatprep.mubr.f32.mxu0 0.0
      %652 = vmatmul.mubr.f32.gmra.mxu0 %v519
      %v653 = vpop.f32.mrf.mxu0
      %v654 = vadd.f32 %v469, %v653
      %v655 = vpop.f32.mrf.mxu0
      %656 = vmatprep.mubr.f32.mxu0 0.0
      %657 = vmatmul.mubr.f32.gmra.mxu0 %v522
      %v658 = vpop.f32.mrf.mxu0
      %v659 = vadd.f32 %v474, %v658
      %v660 = vpop.f32.mrf.mxu0
      %661 = vmatprep.mubr.f32.mxu0 0.0
      %662 = vmatmul.mubr.f32.gmra.mxu0 %v525
      %v663 = vpop.f32.mrf.mxu0
      %v664 = vadd.f32 %v479, %v663
      %v665 = vpop.f32.mrf.mxu0
      %666 = vdwg.mxu0
      %vm667 = vcmask 64512
      %668 = vst.msk [vmem:[%s197] sm:$0xff] %vm667, %v594
      %669 = vst.msk [vmem:[%s197 + $0x8] sm:$0xff] %vm667, %v599
      %670 = vst.msk [vmem:[%s197 + $0x10] sm:$0xff] %vm667, %v604
      %671 = vst.msk [vmem:[%s197 + $0x18] sm:$0xff] %vm667, %v609
      %672 = vst.msk [vmem:[%s197 + $0x20] sm:$0xff] %vm667, %v614
      %673 = vst.msk [vmem:[%s197 + $0x28] sm:$0xff] %vm667, %v619
      %674 = vst.msk [vmem:[%s197 + $0x30] sm:$0xff] %vm667, %v624
      %675 = vst.msk [vmem:[%s197 + $0x38] sm:$0xff] %vm667, %v629
      %676 = vst.msk [vmem:[%s197 + $0x40] sm:$0xff] %vm667, %v634
      %677 = vst.msk [vmem:[%s197 + $0x48] sm:$0xff] %vm667, %v639
      %678 = vst.msk [vmem:[%s197 + $0x50] sm:$0xff] %vm667, %v644
      %679 = vst.msk [vmem:[%s197 + $0x58] sm:$0xff] %vm667, %v649
      %680 = vst.msk [vmem:[%s197 + $0x60] sm:$0xff] %vm667, %v654
      %681 = vst.msk [vmem:[%s197 + $0x68] sm:$0xff] %vm667, %v659
      %682 = vst.msk [vmem:[%s197 + $0x70] sm:$0xff] %vm667, %v664
      %p683 = scmp.lt.s32.totalorder %s15, 1
      %s684 = scalar_select %p683, %s15, 1
      %s685 = smul.addr %s684, 15
      %s686 = smul.addr %s685, 8
      %s687 = scalar_lea.vmem %s4, %s686
      // Predicated region
      $region37: #{accel101_forward.7} parent=35 // pred_check
        %p688 = pneg %p122
      $region38: #{accel101_forward.7} parent=35 // pred_check_branch
        %690 = sbr.rel (%p688) target = $region40
      $region39: #{accel101_forward.7} parent=35 // pred_region
        _
      $region40: #{accel101_forward.7} parent=35 // pred_fallthru
        _
    $region36: #{accel101_forward.7} parent=5 // pred_fallthru
      _
    %p691 = scmp.le.s32.totalorder 2, %s10
    // Predicated region
    $region41: #{accel101_forward.7} parent=5 // pred_check
      %p692 = pneg %p691
    $region42: #{accel101_forward.7} parent=5 // pred_check_branch
      %694 = sbr.rel (%p692) target = $region44
    $region43: #{accel101_forward.7} parent=5 // pred_region
      %s695 = ssub.s32 %s10, 2
      // Predicated region
      $region45: #{accel101_forward.7} parent=43 // pred_check
        %p696 = pneg %p128
      $region46: #{accel101_forward.7} parent=43 // pred_check_branch
        %698 = sbr.rel (%p696) target = $region48
      $region47: #{accel101_forward.7} parent=43 // pred_region
        %p699 = scmp.lt.s32.totalorder %s16, 1
        %s700 = scalar_select %p699, %s16, 1
        %s701 = smul.addr %s700, 15
        %s702 = smul.addr %s701, 8
        %s703 = scalar_lea.vmem %s4, %s702
      $region48: #{accel101_forward.7} parent=43 // pred_fallthru
        _
    $region44: #{accel101_forward.7} parent=5 // pred_fallthru
      _
  $region6: #{accel101_forward.7} parent=0 // loop_footer
    %s14 = sadd.s32 1, %s10
  $region7: #{accel101_forward.7} parent=0 // loop_footer_branch
    %9 = sbr.rel target = $region3
  $region8: #{accel101_forward.7} parent=0 // loop_exit
    _

// kernel: accel101_forward.9
$region0: #{accel101_forward.9}
  #allocation0 [shape = 'u32[]', space=smem, size = 0x4, offset = 0x4, fixed_abs, tag = 'smem constant byte address 0x4 - core index']
  #allocation1 [shape = 'u32[144,128]{1,0:T(1,128)}', space=vmem, size = 0x12000, scoped, tag = 'internal scratch']
  #allocation2 [shape = 'f32[15,320]{1,0:T(8,128)}', space=vmem, size = 0x6000, scoped, tag = 'scratch operand']
  %s0 = inlined_call_operand.vmem [shape: f32[2,15,64], index: 0, kind: input, shape index: {}]
  %s1 = inlined_call_operand.vmem [shape: s32[2,4,64], index: 1, kind: input, shape index: {}]
  %s2 = inlined_call_operand.vmem [shape: f32[2,4,64], index: 2, kind: input, shape index: {}]
  %s3 = inlined_call_operand.vmem [shape: f32[2,15,64], index: 3, kind: output, shape index: {}]
  %s4 = sld [smem:[#allocation0]]
  $region45: #{accel101_forward.9} parent=0
    _
  %s6 = ssub.s32 1, %s4
  %s7 = scalar_select 0, %s6, %s4
  loop: start=0, step=1, limit=4
  $region2: #{accel101_forward.9} parent=0 // loop_pre_header
    _
  $region3: #{accel101_forward.9} parent=0 // loop_header
    %s9 = sphi 0, %s13
    %p10 = scmp.ge.s32.totalorder %s9, 4
    %s19 = sphi 0, %s21
    %s22 = sphi 0, %s19
    %s23 = sphi 0, %s22
    %s39 = sphi 0, %s23
    %s45 = sphi 0, %s47
    %s48 = sphi 0, %s45
    %s49 = sphi 0, %s48
    %s65 = sphi 0, %s49
    %s71 = sphi 0, %s73
    %s74 = sphi 0, %s71
    %s75 = sphi 0, %s74
    %s91 = sphi 0, %s75
    %s97 = sphi 0, %s99
    %s100 = sphi 0, %s97
    %s101 = sphi 0, %s100
    %s117 = sphi 0, %s101
  $region4: #{accel101_forward.9} parent=0 // loop_header_branch
    %12 = sbr.rel (%p10) target = $region8
  $region5: #{accel101_forward.9} parent=0 // loop_body
    %s14 = ssub.s32 %s9, 1
    %s15 = ssub.s32 %s9, 2
    %s16 = sadd.s32 %s9, 1
    %s17 = ssub.s32 %s9, %s16
    %p18 = scmp.eq.s32.totalorder %s17, 0
    %s20 = sadd.s32 %s19, 1
    %s21 = scalar_select %p18, %s19, %s20
    %p24 = pneg %p18
    %p25 = scmp.eq.s32.totalorder %s9, 1
    %p26 = por %p24, %p25
    %p27 = scmp.ne.s32.totalorder %s19, %s22
    %p28 = scmp.eq.s32.totalorder %s9, 0
    %p29 = por %p27, %p28
    %p30 = scmp.ne.s32.totalorder %s19, %s22
    %p31 = scmp.eq.s32.totalorder %s14, 1
    %p32 = por %p30, %p31
    %p33 = scmp.ne.s32.totalorder %s22, %s23
    %p34 = scmp.eq.s32.totalorder %s14, 0
    %p35 = por %p33, %p34
    %p36 = scmp.ne.s32.totalorder %s22, %s23
    %p37 = scmp.eq.s32.totalorder %s15, 1
    %p38 = por %p36, %p37
    %p40 = scmp.ne.s32.totalorder %s23, %s39
    %p41 = scmp.eq.s32.totalorder %s15, 0
    %p42 = por %p40, %p41
    %s43 = ssub.s32 %s9, %s16
    %p44 = scmp.eq.s32.totalorder %s43, 0
    %s46 = sadd.s32 %s45, 1
    %s47 = scalar_select %p44, %s45, %s46
    %p50 = pneg %p44
    %p51 = scmp.eq.s32.totalorder %s9, 1
    %p52 = por %p50, %p51
    %p53 = scmp.ne.s32.totalorder %s45, %s48
    %p54 = scmp.eq.s32.totalorder %s9, 0
    %p55 = por %p53, %p54
    %p56 = scmp.ne.s32.totalorder %s45, %s48
    %p57 = scmp.eq.s32.totalorder %s14, 1
    %p58 = por %p56, %p57
    %p59 = scmp.ne.s32.totalorder %s48, %s49
    %p60 = scmp.eq.s32.totalorder %s14, 0
    %p61 = por %p59, %p60
    %p62 = scmp.ne.s32.totalorder %s48, %s49
    %p63 = scmp.eq.s32.totalorder %s15, 1
    %p64 = por %p62, %p63
    %p66 = scmp.ne.s32.totalorder %s49, %s65
    %p67 = scmp.eq.s32.totalorder %s15, 0
    %p68 = por %p66, %p67
    %s69 = ssub.s32 %s9, %s16
    %p70 = scmp.eq.s32.totalorder %s69, 0
    %s72 = sadd.s32 %s71, 1
    %s73 = scalar_select %p70, %s71, %s72
    %p76 = pneg %p70
    %p77 = scmp.eq.s32.totalorder %s9, 1
    %p78 = por %p76, %p77
    %p79 = scmp.ne.s32.totalorder %s71, %s74
    %p80 = scmp.eq.s32.totalorder %s9, 0
    %p81 = por %p79, %p80
    %p82 = scmp.ne.s32.totalorder %s71, %s74
    %p83 = scmp.eq.s32.totalorder %s14, 1
    %p84 = por %p82, %p83
    %p85 = scmp.ne.s32.totalorder %s74, %s75
    %p86 = scmp.eq.s32.totalorder %s14, 0
    %p87 = por %p85, %p86
    %p88 = scmp.ne.s32.totalorder %s74, %s75
    %p89 = scmp.eq.s32.totalorder %s15, 1
    %p90 = por %p88, %p89
    %p92 = scmp.ne.s32.totalorder %s75, %s91
    %p93 = scmp.eq.s32.totalorder %s15, 0
    %p94 = por %p92, %p93
    %s95 = ssub.s32 %s9, %s16
    %p96 = scmp.eq.s32.totalorder %s95, 0
    %s98 = sadd.s32 %s97, 1
    %s99 = scalar_select %p96, %s97, %s98
    %p102 = pneg %p96
    %p103 = scmp.eq.s32.totalorder %s9, 1
    %p104 = por %p102, %p103
    %p105 = scmp.ne.s32.totalorder %s97, %s100
    %p106 = scmp.eq.s32.totalorder %s9, 0
    %p107 = por %p105, %p106
    %p108 = scmp.ne.s32.totalorder %s97, %s100
    %p109 = scmp.eq.s32.totalorder %s14, 1
    %p110 = por %p108, %p109
    %p111 = scmp.ne.s32.totalorder %s100, %s101
    %p112 = scmp.eq.s32.totalorder %s14, 0
    %p113 = por %p111, %p112
    %p114 = scmp.ne.s32.totalorder %s100, %s101
    %p115 = scmp.eq.s32.totalorder %s15, 1
    %p116 = por %p114, %p115
    %p118 = scmp.ne.s32.totalorder %s101, %s117
    %p119 = scmp.eq.s32.totalorder %s15, 0
    %p120 = por %p118, %p119
    %p121 = scmp.le.s32.totalorder 1, %s9
    %p122 = scmp.lt.s32.totalorder %s9, 3
    %p123 = pnand %p121, %p122
    %p124 = pneg %p123
    // Predicated region
    $region9: #{accel101_forward.9} parent=5 // pred_check
      _
    $region10: #{accel101_forward.9} parent=5 // pred_check_branch
      %126 = sbr.rel (%p123) target = $region12
    $region11: #{accel101_forward.9} parent=5 // pred_region
      %s127 = ssub.s32 %s9, 1
    $region12: #{accel101_forward.9} parent=5 // pred_fallthru
      _
    %p128 = scmp.lt.s32.totalorder %s9, 2
    // Predicated region
    $region13: #{accel101_forward.9} parent=5 // pred_check
      %p129 = pneg %p128
    $region14: #{accel101_forward.9} parent=5 // pred_check_branch
      %131 = sbr.rel (%p129) target = $region16
    $region15: #{accel101_forward.9} parent=5 // pred_region
      // Predicated region
      $region17: #{accel101_forward.9} parent=15 // pred_check
        %p132 = pneg %p29
      $region18: #{accel101_forward.9} parent=15 // pred_check_branch
        %134 = sbr.rel (%p132) target = $region20
      $region19: #{accel101_forward.9} parent=15 // pred_region
        %p135 = scmp.lt.s32.totalorder %s9, 1
        %s136 = scalar_select %p135, %s9, 1
        %s137 = smul.addr %s136, 2
        %s138 = smul.addr %s137, 8
        %s139 = scalar_lea.vmem %s0, %s138
      $region20: #{accel101_forward.9} parent=15 // pred_fallthru
        _
      // Predicated region
      $region21: #{accel101_forward.9} parent=15 // pred_check
        %p140 = pneg %p55
      $region22: #{accel101_forward.9} parent=15 // pred_check_branch
        %142 = sbr.rel (%p140) target = $region24
      $region23: #{accel101_forward.9} parent=15 // pred_region
        %p143 = scmp.lt.s32.totalorder %s9, 1
        %s144 = scalar_select %p143, %s9, 1
        %s145 = smul.addr %s144, 4
        %s146 = scalar_lea.vmem %s1, %s145
      $region24: #{accel101_forward.9} parent=15 // pred_fallthru
        _
      // Predicated region
      $region25: #{accel101_forward.9} parent=15 // pred_check
        %p147 = pneg %p81
      $region26: #{accel101_forward.9} parent=15 // pred_check_branch
        %149 = sbr.rel (%p147) target = $region28
      $region27: #{accel101_forward.9} parent=15 // pred_region
        %p150 = scmp.lt.s32.totalorder %s9, 1
        %s151 = scalar_select %p150, %s9, 1
        %s152 = smul.addr %s151, 4
        %s153 = scalar_lea.vmem %s2, %s152
      $region28: #{accel101_forward.9} parent=15 // pred_fallthru
        _
    $region16: #{accel101_forward.9} parent=5 // pred_fallthru
      _
    %p154 = scmp.le.s32.totalorder 1, %s9
    %p155 = scmp.lt.s32.totalorder %s9, 3
    %p156 = pnand %p154, %p155
    %p157 = pneg %p156
    // Predicated region
    $region29: #{accel101_forward.9} parent=5 // pred_check
      _
    $region30: #{accel101_forward.9} parent=5 // pred_check_branch
      %159 = sbr.rel (%p156) target = $region32
    $region31: #{accel101_forward.9} parent=5 // pred_region
      %s160 = ssub.s32 %s9, 1
      %p161 = scmp.lt.s32.totalorder %s14, 1
      %s162 = scalar_select %p161, %s14, 1
      %s163 = smul.addr %s162, 2
      %s164 = smul.addr %s163, 8
      %s165 = scalar_lea.vmem %s0, %s164
      %p166 = pneg %p35
      %p167 = pneg %p32
      %p168 = scmp.lt.s32.totalorder %s14, 1
      %s169 = scalar_select %p168, %s14, 1
      %s170 = smul.addr %s169, 4
      %s171 = scalar_lea.vmem %s1, %s170
      %p172 = pneg %p61
      %p173 = pneg %p58
      %p174 = scmp.lt.s32.totalorder %s14, 1
      %s175 = scalar_select %p174, %s14, 1
      %s176 = smul.addr %s175, 4
      %s177 = scalar_lea.vmem %s2, %s176
      %p178 = pneg %p87
      %p179 = pneg %p84
      %p180 = pneg %p113
      %p181 = pneg %p110
      %p182 = scmp.lt.s32.totalorder %s14, 1
      %s183 = scalar_select %p182, %s14, 1
      %s184 = smul.addr %s183, 2
      %s185 = smul.addr %s184, 8
      %s186 = scalar_lea.vmem %s3, %s185
      %p187 = scmp.lt.s32.totalorder %s14, 1
      %s188 = scalar_select %p187, %s14, 1
      %s189 = smul.addr %s188, 2
      %s190 = smul.addr %s189, 8
      %s191 = scalar_lea.vmem %s0, %s190
      %p192 = scmp.lt.s32.totalorder %s14, 1
      %s193 = scalar_select %p192, %s14, 1
      %s194 = smul.addr %s193, 4
      %s195 = scalar_lea.vmem %s1, %s194
      %p196 = scmp.lt.s32.totalorder %s14, 1
      %s197 = scalar_select %p196, %s14, 1
      %s198 = smul.addr %s197, 4
      %s199 = scalar_lea.vmem %s2, %s198
      %p200 = scmp.lt.s32.totalorder %s14, 1
      %s201 = scalar_select %p200, %s14, 1
      %s202 = smul.addr %s201, 2
      %s203 = smul.addr %s202, 8
      %s204 = scalar_lea.vmem %s3, %s203
      %205 = vst [vmem:[#allocation2] sm:$0xff] 0.0
      %206 = vst [vmem:[#allocation2 + $0x8] sm:$0xff] 0.0
      %vm207 = vcmask 523264
      %208 = vst.msk [vmem:[#allocation2 + $0x10] sm:$0xff] %vm207, 0.0
      %209 = vst [vmem:[#allocation2 + $0x18] sm:$0x7f] 0.0
      %210 = vst [vmem:[#allocation2 + $0x20] sm:$0x7f] 0.0
      %vm211 = vcmask 522240
      %212 = vst.msk [vmem:[#allocation2 + $0x28] sm:$0x7f] %vm211, 0.0
      %v213 = vld [vmem:[%s191] sm:$0xff]
      %v214 = vld [vmem:[%s191 + $0x8] sm:$0x7f]
      %215 = vst.msk [vmem:[#allocation2 + $0x8] sm:$0xff] %vm207, %v213
      %216 = vst.msk [vmem:[#allocation2 + $0x20] sm:$0x7f] %vm211, %v214
      %v217 = vld [vmem:[%s195] sm:$0xf]
      %v218 = vld [vmem:[%s199] sm:$0xf]
      %vm219 = vcmp.eq.s32.totalorder %v217, 4294967278
      %v220 = vsel %vm219, %v218, 0.0
      %v221 = vadd.f32 %v220, 0.0
      %v223 = vrot.slane %v220, 1
      %v225 = vadd.f32 %v221, %v223
      %v226 = vrot.slane %v220, 2
      %v228 = vadd.f32 %v225, %v226
      %v229 = vrot.slane %v220, 3
      %v231 = vadd.f32 %v228, %v229
      %v232 = vld [vmem:[#allocation2] sm:$0xff]
      %v233 = vld [vmem:[#allocation2 + $0x8] sm:$0xff]
      %v234 = vld [vmem:[#allocation2 + $0x18] sm:$0x7f]
      %v235 = vld [vmem:[#allocation2 + $0x20] sm:$0x7f]
      %v236 = vlaneseq
      %v237 = vshrl.u32 %v236, 7
      %v238 = vsub.s32 0, %v237
      %v239 = vrot.slane %v231, %v238
      %244 = vrot.lane.b32.xlu0 %v232, 18
      %v245 = vpop.permute.xlu0 %244
      %246 = vrot.lane.b32.xlu0 %v233, 18
      %v247 = vpop.permute.xlu0 %246
      %248 = vrot.lane.b32.xlu0 %v234, 18
      %v249 = vpop.permute.xlu0 %248
      %250 = vrot.lane.b32.xlu0 %v235, 18
      %v251 = vpop.permute.xlu0 %250
      %vm252 = vcmask 146432
      %v253 = vsel %vm252, %v245, %v247
      %v254 = vsel %vm252, %v249, %v251
      %v257 = vmul.f32 %v239, %v253
      %v258 = vmul.f32 %v239, %v254
      %v259 = vadd.f32 %v257, 0.0
      %v260 = vadd.f32 %v258, 0.0
      %vm261 = vcmp.eq.s32.totalorder %v217, 4294967279
      %v262 = vsel %vm261, %v218, 0.0
      %v263 = vadd.f32 %v262, 0.0
      %v265 = vrot.slane %v262, 1
      %v267 = vadd.f32 %v263, %v265
      %v268 = vrot.slane %v262, 2
      %v270 = vadd.f32 %v267, %v268
      %v271 = vrot.slane %v262, 3
      %v273 = vadd.f32 %v270, %v271
      %v274 = vlaneseq
      %v275 = vshrl.u32 %v274, 7
      %v276 = vsub.s32 0, %v275
      %v277 = vrot.slane %v273, %v276
      %278 = vrot.lane.b32.xlu0 %v232, 17
      %v279 = vpop.permute.xlu0 %278
      %280 = vrot.lane.b32.xlu0 %v233, 17
      %v281 = vpop.permute.xlu0 %280
      %282 = vrot.lane.b32.xlu0 %v234, 17
      %v283 = vpop.permute.xlu0 %282
      %284 = vrot.lane.b32.xlu0 %v235, 17
      %v285 = vpop.permute.xlu0 %284
      %vm286 = vcmask 138240
      %v287 = vsel %vm286, %v279, %v281
      %v288 = vsel %vm286, %v283, %v285
      %v291 = vmul.f32 %v277, %v287
      %v292 = vmul.f32 %v277, %v288
      %v293 = vadd.f32 %v259, %v291
      %v294 = vadd.f32 %v260, %v292
      %vm295 = vcmp.eq.s32.totalorder %v217, 4294967280
      %v296 = vsel %vm295, %v218, 0.0
      %v297 = vadd.f32 %v296, 0.0
      %v299 = vrot.slane %v296, 1
      %v301 = vadd.f32 %v297, %v299
      %v302 = vrot.slane %v296, 2
      %v304 = vadd.f32 %v301, %v302
      %v305 = vrot.slane %v296, 3
      %v307 = vadd.f32 %v304, %v305
      %v308 = vlaneseq
      %v309 = vshrl.u32 %v308, 7
      %v310 = vsub.s32 0, %v309
      %v311 = vrot.slane %v307, %v310
      %312 = vrot.lane.b32.xlu0 %v232, 16
      %v313 = vpop.permute.xlu0 %312
      %314 = vrot.lane.b32.xlu0 %v233, 16
      %v315 = vpop.permute.xlu0 %314
      %316 = vrot.lane.b32.xlu0 %v234, 16
      %v317 = vpop.permute.xlu0 %316
      %318 = vrot.lane.b32.xlu0 %v235, 16
      %v319 = vpop.permute.xlu0 %318
      %vm320 = vcmask 130048
      %v321 = vsel %vm320, %v313, %v315
      %v322 = vsel %vm320, %v317, %v319
      %v325 = vmul.f32 %v311, %v321
      %v326 = vmul.f32 %v311, %v322
      %v327 = vadd.f32 %v293, %v325
      %v328 = vadd.f32 %v294, %v326
      %vm329 = vcmp.eq.s32.totalorder %v217, 4294967281
      %v330 = vsel %vm329, %v218, 0.0
      %v331 = vadd.f32 %v330, 0.0
      %v333 = vrot.slane %v330, 1
      %v335 = vadd.f32 %v331, %v333
      %v336 = vrot.slane %v330, 2
      %v338 = vadd.f32 %v335, %v336
      %v339 = vrot.slane %v330, 3
      %v341 = vadd.f32 %v338, %v339
      %v342 = vlaneseq
      %v343 = vshrl.u32 %v342, 7
      %v344 = vsub.s32 0, %v343
      %v345 = vrot.slane %v341, %v344
      %346 = vrot.lane.b32.xlu0 %v232, 15
      %v347 = vpop.permute.xlu0 %346
      %348 = vrot.lane.b32.xlu0 %v233, 15
      %v349 = vpop.permute.xlu0 %348
      %350 = vrot.lane.b32.xlu0 %v234, 15
      %v351 = vpop.permute.xlu0 %350
      %352 = vrot.lane.b32.xlu0 %v235, 15
      %v353 = vpop.permute.xlu0 %352
      %vm354 = vcmask 121856
      %v355 = vsel %vm354, %v347, %v349
      %v356 = vsel %vm354, %v351, %v353
      %v359 = vmul.f32 %v345, %v355
      %v360 = vmul.f32 %v345, %v356
      %v361 = vadd.f32 %v327, %v359
      %v362 = vadd.f32 %v328, %v360
      %vm363 = vcmp.eq.s32.totalorder %v217, 4294967282
      %v364 = vsel %vm363, %v218, 0.0
      %v365 = vadd.f32 %v364, 0.0
      %v367 = vrot.slane %v364, 1
      %v369 = vadd.f32 %v365, %v367
      %v370 = vrot.slane %v364, 2
      %v372 = vadd.f32 %v369, %v370
      %v373 = vrot.slane %v364, 3
      %v375 = vadd.f32 %v372, %v373
      %v376 = vlaneseq
      %v377 = vshrl.u32 %v376, 7
      %v378 = vsub.s32 0, %v377
      %v379 = vrot.slane %v375, %v378
      %380 = vrot.lane.b32.xlu0 %v232, 14
      %v381 = vpop.permute.xlu0 %380
      %382 = vrot.lane.b32.xlu0 %v233, 14
      %v383 = vpop.permute.xlu0 %382
      %384 = vrot.lane.b32.xlu0 %v234, 14
      %v385 = vpop.permute.xlu0 %384
      %386 = vrot.lane.b32.xlu0 %v235, 14
      %v387 = vpop.permute.xlu0 %386
      %vm388 = vcmask 113664
      %v389 = vsel %vm388, %v381, %v383
      %v390 = vsel %vm388, %v385, %v387
      %v393 = vmul.f32 %v379, %v389
      %v394 = vmul.f32 %v379, %v390
      %v395 = vadd.f32 %v361, %v393
      %v396 = vadd.f32 %v362, %v394
      %vm397 = vcmp.eq.s32.totalorder %v217, 4294967286
      %v398 = vsel %vm397, %v218, 0.0
      %v399 = vadd.f32 %v398, 0.0
      %v401 = vrot.slane %v398, 1
      %v403 = vadd.f32 %v399, %v401
      %v404 = vrot.slane %v398, 2
      %v406 = vadd.f32 %v403, %v404
      %v407 = vrot.slane %v398, 3
      %v409 = vadd.f32 %v406, %v407
      %v410 = vlaneseq
      %v411 = vshrl.u32 %v410, 7
      %v412 = vsub.s32 0, %v411
      %v413 = vrot.slane %v409, %v412
      %414 = vrot.lane.b32.xlu0 %v232, 10
      %v415 = vpop.permute.xlu0 %414
      %416 = vrot.lane.b32.xlu0 %v233, 10
      %v417 = vpop.permute.xlu0 %416
      %418 = vrot.lane.b32.xlu0 %v234, 10
      %v419 = vpop.permute.xlu0 %418
      %420 = vrot.lane.b32.xlu0 %v235, 10
      %v421 = vpop.permute.xlu0 %420
      %vm422 = vcmask 80896
      %v423 = vsel %vm422, %v415, %v417
      %v424 = vsel %vm422, %v419, %v421
      %v427 = vmul.f32 %v413, %v423
      %v428 = vmul.f32 %v413, %v424
      %v429 = vadd.f32 %v395, %v427
      %v430 = vadd.f32 %v396, %v428
      %vm431 = vcmp.eq.s32.totalorder %v217, 4294967287
      %v432 = vsel %vm431, %v218, 0.0
      %v433 = vadd.f32 %v432, 0.0
      %v435 = vrot.slane %v432, 1
      %v437 = vadd.f32 %v433, %v435
      %v438 = vrot.slane %v432, 2
      %v440 = vadd.f32 %v437, %v438
      %v441 = vrot.slane %v432, 3
      %v443 = vadd.f32 %v440, %v441
      %v444 = vlaneseq
      %v445 = vshrl.u32 %v444, 7
      %v446 = vsub.s32 0, %v445
      %v447 = vrot.slane %v443, %v446
      %448 = vrot.lane.b32.xlu0 %v232, 9
      %v449 = vpop.permute.xlu0 %448
      %450 = vrot.lane.b32.xlu0 %v233, 9
      %v451 = vpop.permute.xlu0 %450
      %452 = vrot.lane.b32.xlu0 %v234, 9
      %v453 = vpop.permute.xlu0 %452
      %454 = vrot.lane.b32.xlu0 %v235, 9
      %v455 = vpop.permute.xlu0 %454
      %vm456 = vcmask 72704
      %v457 = vsel %vm456, %v449, %v451
      %v458 = vsel %vm456, %v453, %v455
      %v461 = vmul.f32 %v447, %v457
      %v462 = vmul.f32 %v447, %v458
      %v463 = vadd.f32 %v429, %v461
      %v464 = vadd.f32 %v430, %v462
      %vm465 = vcmp.eq.s32.totalorder %v217, 4294967288
      %v466 = vsel %vm465, %v218, 0.0
      %v467 = vadd.f32 %v466, 0.0
      %v469 = vrot.slane %v466, 1
      %v471 = vadd.f32 %v467, %v469
      %v472 = vrot.slane %v466, 2
      %v474 = vadd.f32 %v471, %v472
      %v475 = vrot.slane %v466, 3
      %v477 = vadd.f32 %v474, %v475
      %v478 = vlaneseq
      %v479 = vshrl.u32 %v478, 7
      %v480 = vsub.s32 0, %v479
      %v481 = vrot.slane %v477, %v480
      %482 = vrot.lane.b32.xlu0 %v232, 8
      %v483 = vpop.permute.xlu0 %482
      %484 = vrot.lane.b32.xlu0 %v233, 8
      %v485 = vpop.permute.xlu0 %484
      %486 = vrot.lane.b32.xlu0 %v234, 8
      %v487 = vpop.permute.xlu0 %486
      %488 = vrot.lane.b32.xlu0 %v235, 8
      %v489 = vpop.permute.xlu0 %488
      %vm490 = vcmask 64512
      %v491 = vsel %vm490, %v483, %v485
      %v492 = vsel %vm490, %v487, %v489
      %v495 = vmul.f32 %v481, %v491
      %v496 = vmul.f32 %v481, %v492
      %v497 = vadd.f32 %v463, %v495
      %v498 = vadd.f32 %v464, %v496
      %vm499 = vcmp.eq.s32.totalorder %v217, 4294967289
      %v500 = vsel %vm499, %v218, 0.0
      %v501 = vadd.f32 %v500, 0.0
      %v503 = vrot.slane %v500, 1
      %v505 = vadd.f32 %v501, %v503
      %v506 = vrot.slane %v500, 2
      %v508 = vadd.f32 %v505, %v506
      %v509 = vrot.slane %v500, 3
      %v511 = vadd.f32 %v508, %v509
      %v512 = vlaneseq
      %v513 = vshrl.u32 %v512, 7
      %v514 = vsub.s32 0, %v513
      %v515 = vrot.slane %v511, %v514
      %516 = vrot.lane.b32.xlu0 %v232, 7
      %v517 = vpop.permute.xlu0 %516
      %518 = vrot.lane.b32.xlu0 %v233, 7
      %v519 = vpop.permute.xlu0 %518
      %520 = vrot.lane.b32.xlu0 %v234, 7
      %v521 = vpop.permute.xlu0 %520
      %522 = vrot.lane.b32.xlu0 %v235, 7
      %v523 = vpop.permute.xlu0 %522
      %vm524 = vcmask 56320
      %v525 = vsel %vm524, %v517, %v519
      %v526 = vsel %vm524, %v521, %v523
      %v529 = vmul.f32 %v515, %v525
      %v530 = vmul.f32 %v515, %v526
      %v531 = vadd.f32 %v497, %v529
      %v532 = vadd.f32 %v498, %v530
      %vm533 = vcmp.eq.s32.totalorder %v217, 4294967290
      %v534 = vsel %vm533, %v218, 0.0
      %v535 = vadd.f32 %v534, 0.0
      %v537 = vrot.slane %v534, 1
      %v539 = vadd.f32 %v535, %v537
      %v540 = vrot.slane %v534, 2
      %v542 = vadd.f32 %v539, %v540
      %v543 = vrot.slane %v534, 3
      %v545 = vadd.f32 %v542, %v543
      %v546 = vlaneseq
      %v547 = vshrl.u32 %v546, 7
      %v548 = vsub.s32 0, %v547
      %v549 = vrot.slane %v545, %v548
      %550 = vrot.lane.b32.xlu0 %v232, 6
      %v551 = vpop.permute.xlu0 %550
      %552 = vrot.lane.b32.xlu0 %v233, 6
      %v553 = vpop.permute.xlu0 %552
      %554 = vrot.lane.b32.xlu0 %v234, 6
      %v555 = vpop.permute.xlu0 %554
      %556 = vrot.lane.b32.xlu0 %v235, 6
      %v557 = vpop.permute.xlu0 %556
      %vm558 = vcmask 48128
      %v559 = vsel %vm558, %v551, %v553
      %v560 = vsel %vm558, %v555, %v557
      %v563 = vmul.f32 %v549, %v559
      %v564 = vmul.f32 %v549, %v560
      %v565 = vadd.f32 %v531, %v563
      %v566 = vadd.f32 %v532, %v564
      %vm567 = vcmp.eq.s32.totalorder %v217, 4294967294
      %v568 = vsel %vm567, %v218, 0.0
      %v569 = vadd.f32 %v568, 0.0
      %v571 = vrot.slane %v568, 1
      %v573 = vadd.f32 %v569, %v571
      %v574 = vrot.slane %v568, 2
      %v576 = vadd.f32 %v573, %v574
      %v577 = vrot.slane %v568, 3
      %v579 = vadd.f32 %v576, %v577
      %v580 = vlaneseq
      %v581 = vshrl.u32 %v580, 7
      %v582 = vsub.s32 0, %v581
      %v583 = vrot.slane %v579, %v582
      %584 = vrot.lane.b32.xlu0 %v232, 2
      %v585 = vpop.permute.xlu0 %584
      %586 = vrot.lane.b32.xlu0 %v233, 2
      %v587 = vpop.permute.xlu0 %586
      %588 = vrot.lane.b32.xlu0 %v234, 2
      %v589 = vpop.permute.xlu0 %588
      %590 = vrot.lane.b32.xlu0 %v235, 2
      %v591 = vpop.permute.xlu0 %590
      %vm592 = vcmask 15360
      %v593 = vsel %vm592, %v585, %v587
      %v594 = vsel %vm592, %v589, %v591
      %v597 = vmul.f32 %v583, %v593
      %v598 = vmul.f32 %v583, %v594
      %v599 = vadd.f32 %v565, %v597
      %v600 = vadd.f32 %v566, %v598
      %vm601 = vcmp.eq.s32.totalorder %v217, 4294967295
      %v602 = vsel %vm601, %v218, 0.0
      %v603 = vadd.f32 %v602, 0.0
      %v605 = vrot.slane %v602, 1
      %v607 = vadd.f32 %v603, %v605
      %v608 = vrot.slane %v602, 2
      %v610 = vadd.f32 %v607, %v608
      %v611 = vrot.slane %v602, 3
      %v613 = vadd.f32 %v610, %v611
      %v614 = vlaneseq
      %v615 = vshrl.u32 %v614, 7
      %v616 = vsub.s32 0, %v615
      %v617 = vrot.slane %v613, %v616
      %618 = vrot.lane.b32.xlu0 %v232, 1
      %v619 = vpop.permute.xlu0 %618
      %620 = vrot.lane.b32.xlu0 %v233, 1
      %v621 = vpop.permute.xlu0 %620
      %622 = vrot.lane.b32.xlu0 %v234, 1
      %v623 = vpop.permute.xlu0 %622
      %624 = vrot.lane.b32.xlu0 %v235, 1
      %v625 = vpop.permute.xlu0 %624
      %vm626 = vcmask 7168
      %v627 = vsel %vm626, %v619, %v621
      %v628 = vsel %vm626, %v623, %v625
      %v631 = vmul.f32 %v617, %v627
      %v632 = vmul.f32 %v617, %v628
      %v633 = vadd.f32 %v599, %v631
      %v634 = vadd.f32 %v600, %v632
      %vm635 = vcmp.eq.s32.totalorder %v217, 0
      %v636 = vsel %vm635, %v218, 0.0
      %v637 = vadd.f32 %v636, 0.0
      %v639 = vrot.slane %v636, 1
      %v641 = vadd.f32 %v637, %v639
      %v642 = vrot.slane %v636, 2
      %v644 = vadd.f32 %v641, %v642
      %v645 = vrot.slane %v636, 3
      %v647 = vadd.f32 %v644, %v645
      %v648 = vlaneseq
      %v649 = vshrl.u32 %v648, 7
      %v650 = vsub.s32 0, %v649
      %v651 = vrot.slane %v647, %v650
      %v652 = vmul.f32 %v651, %v233
      %v653 = vmul.f32 %v651, %v235
      %v654 = vadd.f32 %v633, %v652
      %v655 = vadd.f32 %v634, %v653
      %vm656 = vcmp.eq.s32.totalorder %v217, 1
      %v657 = vsel %vm656, %v218, 0.0
      %v658 = vadd.f32 %v657, 0.0
      %v660 = vrot.slane %v657, 1
      %v662 = vadd.f32 %v658, %v660
      %v663 = vrot.slane %v657, 2
      %v665 = vadd.f32 %v662, %v663
      %v666 = vrot.slane %v657, 3
      %v668 = vadd.f32 %v665, %v666
      %v669 = vlaneseq
      %v670 = vshrl.u32 %v669, 7
      %v671 = vsub.s32 0, %v670
      %v672 = vrot.slane %v668, %v671
      %673 = vrot.lane.b32.xlu0 %v233, 127
      %v674 = vpop.permute.xlu0 %673
      %675 = vrot.lane.b32.xlu0 %v235, 127
      %v676 = vpop.permute.xlu0 %675
      %v679 = vmul.f32 %v672, %v674
      %v680 = vmul.f32 %v672, %v676
      %v681 = vadd.f32 %v654, %v679
      %v682 = vadd.f32 %v655, %v680
      %vm683 = vcmp.eq.s32.totalorder %v217, 2
      %v684 = vsel %vm683, %v218, 0.0
      %v685 = vadd.f32 %v684, 0.0
      %v687 = vrot.slane %v684, 1
      %v689 = vadd.f32 %v685, %v687
      %v690 = vrot.slane %v684, 2
      %v692 = vadd.f32 %v689, %v690
      %v693 = vrot.slane %v684, 3
      %v695 = vadd.f32 %v692, %v693
      %v696 = vlaneseq
      %v697 = vshrl.u32 %v696, 7
      %v698 = vsub.s32 0, %v697
      %v699 = vrot.slane %v695, %v698
      %700 = vrot.lane.b32.xlu0 %v233, 126
      %v701 = vpop.permute.xlu0 %700
      %702 = vrot.lane.b32.xlu0 %v235, 126
      %v703 = vpop.permute.xlu0 %702
      %v706 = vmul.f32 %v699, %v701
      %v707 = vmul.f32 %v699, %v703
      %v708 = vadd.f32 %v681, %v706
      %v709 = vadd.f32 %v682, %v707
      %vm710 = vcmp.eq.s32.totalorder %v217, 6
      %v711 = vsel %vm710, %v218, 0.0
      %v712 = vadd.f32 %v711, 0.0
      %v714 = vrot.slane %v711, 1
      %v716 = vadd.f32 %v712, %v714
      %v717 = vrot.slane %v711, 2
      %v719 = vadd.f32 %v716, %v717
      %v720 = vrot.slane %v711, 3
      %v722 = vadd.f32 %v719, %v720
      %v723 = vlaneseq
      %v724 = vshrl.u32 %v723, 7
      %v725 = vsub.s32 0, %v724
      %v726 = vrot.slane %v722, %v725
      %727 = vrot.lane.b32.xlu0 %v233, 122
      %v728 = vpop.permute.xlu0 %727
      %729 = vrot.lane.b32.xlu0 %v235, 122
      %v730 = vpop.permute.xlu0 %729
      %v733 = vmul.f32 %v726, %v728
      %v734 = vmul.f32 %v726, %v730
      %v735 = vadd.f32 %v708, %v733
      %v736 = vadd.f32 %v709, %v734
      %vm737 = vcmp.eq.s32.totalorder %v217, 7
      %v738 = vsel %vm737, %v218, 0.0
      %v739 = vadd.f32 %v738, 0.0
      %v741 = vrot.slane %v738, 1
      %v743 = vadd.f32 %v739, %v741
      %v744 = vrot.slane %v738, 2
      %v746 = vadd.f32 %v743, %v744
      %v747 = vrot.slane %v738, 3
      %v749 = vadd.f32 %v746, %v747
      %v750 = vlaneseq
      %v751 = vshrl.u32 %v750, 7
      %v752 = vsub.s32 0, %v751
      %v753 = vrot.slane %v749, %v752
      %754 = vrot.lane.b32.xlu0 %v233, 121
      %v755 = vpop.permute.xlu0 %754
      %756 = vrot.lane.b32.xlu0 %v235, 121
      %v757 = vpop.permute.xlu0 %756
      %v760 = vmul.f32 %v753, %v755
      %v761 = vmul.f32 %v753, %v757
      %v762 = vadd.f32 %v735, %v760
      %v763 = vadd.f32 %v736, %v761
      %vm764 = vcmp.eq.s32.totalorder %v217, 8
      %v765 = vsel %vm764, %v218, 0.0
      %v766 = vadd.f32 %v765, 0.0
      %v768 = vrot.slane %v765, 1
      %v770 = vadd.f32 %v766, %v768
      %v771 = vrot.slane %v765, 2
      %v773 = vadd.f32 %v770, %v771
      %v774 = vrot.slane %v765, 3
      %v776 = vadd.f32 %v773, %v774
      %v777 = vlaneseq
      %v778 = vshrl.u32 %v777, 7
      %v779 = vsub.s32 0, %v778
      %v780 = vrot.slane %v776, %v779
      %781 = vrot.lane.b32.xlu0 %v233, 120
      %v782 = vpop.permute.xlu0 %781
      %783 = vrot.lane.b32.xlu0 %v235, 120
      %v784 = vpop.permute.xlu0 %783
      %v787 = vmul.f32 %v780, %v782
      %v788 = vmul.f32 %v780, %v784
      %v789 = vadd.f32 %v762, %v787
      %v790 = vadd.f32 %v763, %v788
      %vm791 = vcmp.eq.s32.totalorder %v217, 9
      %v792 = vsel %vm791, %v218, 0.0
      %v793 = vadd.f32 %v792, 0.0
      %v795 = vrot.slane %v792, 1
      %v797 = vadd.f32 %v793, %v795
      %v798 = vrot.slane %v792, 2
      %v800 = vadd.f32 %v797, %v798
      %v801 = vrot.slane %v792, 3
      %v803 = vadd.f32 %v800, %v801
      %v804 = vlaneseq
      %v805 = vshrl.u32 %v804, 7
      %v806 = vsub.s32 0, %v805
      %v807 = vrot.slane %v803, %v806
      %808 = vrot.lane.b32.xlu0 %v233, 119
      %v809 = vpop.permute.xlu0 %808
      %810 = vrot.lane.b32.xlu0 %v235, 119
      %v811 = vpop.permute.xlu0 %810
      %v814 = vmul.f32 %v807, %v809
      %v815 = vmul.f32 %v807, %v811
      %v816 = vadd.f32 %v789, %v814
      %v817 = vadd.f32 %v790, %v815
      %vm818 = vcmp.eq.s32.totalorder %v217, 10
      %v819 = vsel %vm818, %v218, 0.0
      %v820 = vadd.f32 %v819, 0.0
      %v822 = vrot.slane %v819, 1
      %v824 = vadd.f32 %v820, %v822
      %v825 = vrot.slane %v819, 2
      %v827 = vadd.f32 %v824, %v825
      %v828 = vrot.slane %v819, 3
      %v830 = vadd.f32 %v827, %v828
      %v831 = vlaneseq
      %v832 = vshrl.u32 %v831, 7
      %v833 = vsub.s32 0, %v832
      %v834 = vrot.slane %v830, %v833
      %835 = vrot.lane.b32.xlu0 %v233, 118
      %v836 = vpop.permute.xlu0 %835
      %837 = vrot.lane.b32.xlu0 %v235, 118
      %v838 = vpop.permute.xlu0 %837
      %v841 = vmul.f32 %v834, %v836
      %v842 = vmul.f32 %v834, %v838
      %v843 = vadd.f32 %v816, %v841
      %v844 = vadd.f32 %v817, %v842
      %vm845 = vcmp.eq.s32.totalorder %v217, 14
      %v846 = vsel %vm845, %v218, 0.0
      %v847 = vadd.f32 %v846, 0.0
      %v849 = vrot.slane %v846, 1
      %v851 = vadd.f32 %v847, %v849
      %v852 = vrot.slane %v846, 2
      %v854 = vadd.f32 %v851, %v852
      %v855 = vrot.slane %v846, 3
      %v857 = vadd.f32 %v854, %v855
      %v858 = vlaneseq
      %v859 = vshrl.u32 %v858, 7
      %v860 = vsub.s32 0, %v859
      %v861 = vrot.slane %v857, %v860
      %862 = vrot.lane.b32.xlu0 %v233, 114
      %v863 = vpop.permute.xlu0 %862
      %864 = vrot.lane.b32.xlu0 %v235, 114
      %v865 = vpop.permute.xlu0 %864
      %v868 = vmul.f32 %v861, %v863
      %v869 = vmul.f32 %v861, %v865
      %v870 = vadd.f32 %v843, %v868
      %v871 = vadd.f32 %v844, %v869
      %vm872 = vcmp.eq.s32.totalorder %v217, 15
      %v873 = vsel %vm872, %v218, 0.0
      %v874 = vadd.f32 %v873, 0.0
      %v876 = vrot.slane %v873, 1
      %v878 = vadd.f32 %v874, %v876
      %v879 = vrot.slane %v873, 2
      %v881 = vadd.f32 %v878, %v879
      %v882 = vrot.slane %v873, 3
      %v884 = vadd.f32 %v881, %v882
      %v885 = vlaneseq
      %v886 = vshrl.u32 %v885, 7
      %v887 = vsub.s32 0, %v886
      %v888 = vrot.slane %v884, %v887
      %889 = vrot.lane.b32.xlu0 %v233, 113
      %v890 = vpop.permute.xlu0 %889
      %891 = vrot.lane.b32.xlu0 %v235, 113
      %v892 = vpop.permute.xlu0 %891
      %v895 = vmul.f32 %v888, %v890
      %v896 = vmul.f32 %v888, %v892
      %v897 = vadd.f32 %v870, %v895
      %v898 = vadd.f32 %v871, %v896
      %vm899 = vcmp.eq.s32.totalorder %v217, 16
      %v900 = vsel %vm899, %v218, 0.0
      %v901 = vadd.f32 %v900, 0.0
      %v903 = vrot.slane %v900, 1
      %v905 = vadd.f32 %v901, %v903
      %v906 = vrot.slane %v900, 2
      %v908 = vadd.f32 %v905, %v906
      %v909 = vrot.slane %v900, 3
      %v911 = vadd.f32 %v908, %v909
      %v912 = vlaneseq
      %v913 = vshrl.u32 %v912, 7
      %v914 = vsub.s32 0, %v913
      %v915 = vrot.slane %v911, %v914
      %916 = vrot.lane.b32.xlu0 %v233, 112
      %v917 = vpop.permute.xlu0 %916
      %918 = vrot.lane.b32.xlu0 %v235, 112
      %v919 = vpop.permute.xlu0 %918
      %v922 = vmul.f32 %v915, %v917
      %v923 = vmul.f32 %v915, %v919
      %v924 = vadd.f32 %v897, %v922
      %v925 = vadd.f32 %v898, %v923
      %vm926 = vcmp.eq.s32.totalorder %v217, 17
      %v927 = vsel %vm926, %v218, 0.0
      %v928 = vadd.f32 %v927, 0.0
      %v930 = vrot.slane %v927, 1
      %v932 = vadd.f32 %v928, %v930
      %v933 = vrot.slane %v927, 2
      %v935 = vadd.f32 %v932, %v933
      %v936 = vrot.slane %v927, 3
      %v938 = vadd.f32 %v935, %v936
      %v939 = vlaneseq
      %v940 = vshrl.u32 %v939, 7
      %v941 = vsub.s32 0, %v940
      %v942 = vrot.slane %v938, %v941
      %943 = vrot.lane.b32.xlu0 %v233, 111
      %v944 = vpop.permute.xlu0 %943
      %945 = vrot.lane.b32.xlu0 %v235, 111
      %v946 = vpop.permute.xlu0 %945
      %v949 = vmul.f32 %v942, %v944
      %v950 = vmul.f32 %v942, %v946
      %v951 = vadd.f32 %v924, %v949
      %v952 = vadd.f32 %v925, %v950
      %vm953 = vcmp.eq.s32.totalorder %v217, 18
      %v954 = vsel %vm953, %v218, 0.0
      %v955 = vadd.f32 %v954, 0.0
      %v957 = vrot.slane %v954, 1
      %v959 = vadd.f32 %v955, %v957
      %v960 = vrot.slane %v954, 2
      %v962 = vadd.f32 %v959, %v960
      %v963 = vrot.slane %v954, 3
      %v965 = vadd.f32 %v962, %v963
      %v966 = vlaneseq
      %v967 = vshrl.u32 %v966, 7
      %v968 = vsub.s32 0, %v967
      %v969 = vrot.slane %v965, %v968
      %970 = vrot.lane.b32.xlu0 %v233, 110
      %v971 = vpop.permute.xlu0 %970
      %972 = vrot.lane.b32.xlu0 %v235, 110
      %v973 = vpop.permute.xlu0 %972
      %v976 = vmul.f32 %v969, %v971
      %v977 = vmul.f32 %v969, %v973
      %v978 = vadd.f32 %v951, %v976
      %v979 = vadd.f32 %v952, %v977
      %980 = vst.msk [vmem:[%s204] sm:$0xff] %vm207, %v978
      %981 = vst.msk [vmem:[%s204 + $0x8] sm:$0x7f] %vm211, %v979
      %p982 = scmp.lt.s32.totalorder %s14, 1
      %s983 = scalar_select %p982, %s14, 1
      %s984 = smul.addr %s983, 2
      %s985 = smul.addr %s984, 8
      %s986 = scalar_lea.vmem %s3, %s985
      // Predicated region
      $region33: #{accel101_forward.9} parent=31 // pred_check
        %p987 = pneg %p110
      $region34: #{accel101_forward.9} parent=31 // pred_check_branch
        %989 = sbr.rel (%p987) target = $region36
      $region35: #{accel101_forward.9} parent=31 // pred_region
        _
      $region36: #{accel101_forward.9} parent=31 // pred_fallthru
        _
    $region32: #{accel101_forward.9} parent=5 // pred_fallthru
      _
    %p990 = scmp.le.s32.totalorder 2, %s9
    // Predicated region
    $region37: #{accel101_forward.9} parent=5 // pred_check
      %p991 = pneg %p990
    $region38: #{accel101_forward.9} parent=5 // pred_check_branch
      %993 = sbr.rel (%p991) target = $region40
    $region39: #{accel101_forward.9} parent=5 // pred_region
      %s994 = ssub.s32 %s9, 2
      // Predicated region
      $region41: #{accel101_forward.9} parent=39 // pred_check
        %p995 = pneg %p116
      $region42: #{accel101_forward.9} parent=39 // pred_check_branch
        %997 = sbr.rel (%p995) target = $region44
      $region43: #{accel101_forward.9} parent=39 // pred_region
        %p998 = scmp.lt.s32.totalorder %s15, 1
        %s999 = scalar_select %p998, %s15, 1
        %s1000 = smul.addr %s999, 2
        %s1001 = smul.addr %s1000, 8
        %s1002 = scalar_lea.vmem %s3, %s1001
      $region44: #{accel101_forward.9} parent=39 // pred_fallthru
        _
    $region40: #{accel101_forward.9} parent=5 // pred_fallthru
      _
  $region6: #{accel101_forward.9} parent=0 // loop_footer
    %s13 = sadd.s32 1, %s9
  $region7: #{accel101_forward.9} parent=0 // loop_footer_branch
    %8 = sbr.rel target = $region3
  $region8: #{accel101_forward.9} parent=0 // loop_exit
    _

// kernel: accel101_forward.13
$region0: #{accel101_forward.13}
  #allocation0 [shape = 'u32[]', space=smem, size = 0x4, offset = 0x4, fixed_abs, tag = 'smem constant byte address 0x4 - core index']
  #allocation1 [shape = 'u32[144,128]{1,0:T(1,128)}', space=vmem, size = 0x12000, scoped, tag = 'internal scratch']
  %s0 = inlined_call_operand.vmem [shape: f32[8,32], index: 0, kind: input, shape index: {}]
  %s1 = inlined_call_operand.vmem [shape: f32[480,120], index: 1, kind: input, shape index: {}]
  %s2 = inlined_call_operand.vmem [shape: f32[480,120], index: 2, kind: input, shape index: {}]
  %s3 = inlined_call_operand.vmem [shape: f32[2,120,8], index: 3, kind: input, shape index: {}]
  %s4 = inlined_call_operand.vmem [shape: f32[2,120,8], index: 4, kind: input, shape index: {}]
  %s5 = inlined_call_operand.vmem [shape: f32[480,1], index: 5, kind: input, shape index: {}]
  %s6 = inlined_call_operand.hbm [shape: f32[2,480,32], index: 6, kind: output, shape index: {}]
  %s7 = sld [smem:[#allocation0]]
  $region57: #{accel101_forward.13} parent=0
    _
  %s9 = ssub.s32 1, %s7
  %s10 = scalar_select 0, %s9, %s7
  $region1: #{accel101_forward.13} parent=0
    #allocation2 [shape = 'u8[491520]{0}', space=vmem, size = 0x78000, scoped, tag = 'output window, operand 0']
    #allocation3 [shape = 's32[2]{0}', space=sflag, size = 0x8, scoped, tag = 'scoped memory for accel101_forward.13']
    %11 = vsyncpa [#allocation3], 0
    %s12 = scalar_lea.sflag [#allocation3], 1
    %13 = vsyncpa %s12, 0
    loop: start=0, step=1, limit=4
    $region2: #{accel101_forward.13} parent=1 // loop_pre_header
      _
    $region3: #{accel101_forward.13} parent=1 // loop_header
      %s15 = sphi 0, %s19
      %p16 = scmp.ge.s32.totalorder %s15, 4
      %s23 = sphi 0, %s23
      %s25 = sphi 0, %s23
      %s26 = sphi 0, %s25
      %s40 = sphi 0, %s26
      %s44 = sphi 0, %s44
      %s46 = sphi 0, %s44
      %s47 = sphi 0, %s46
      %s61 = sphi 0, %s47
      %s65 = sphi 0, %s65
      %s67 = sphi 0, %s65
      %s68 = sphi 0, %s67
      %s82 = sphi 0, %s68
      %s88 = sphi 0, %s90
      %s91 = sphi 0, %s88
      %s92 = sphi 0, %s91
      %s108 = sphi 0, %s92
      %s114 = sphi 0, %s116
      %s117 = sphi 0, %s114
      %s118 = sphi 0, %s117
      %s134 = sphi 0, %s118
      %s138 = sphi 0, %s138
      %s140 = sphi 0, %s138
      %s141 = sphi 0, %s140
      %s155 = sphi 0, %s141
      %s161 = sphi 0, %s163
      %s164 = sphi 0, %s161
      %s165 = sphi 0, %s164
      %s181 = sphi 0, %s165
    $region4: #{accel101_forward.13} parent=1 // loop_header_branch
      %18 = sbr.rel (%p16) target = $region8
    $region5: #{accel101_forward.13} parent=1 // loop_body
      %s20 = ssub.s32 %s15, 1
      %s21 = ssub.s32 %s15, 2
      %s22 = sadd.s32 %s15, 1
      %s24 = sadd.s32 %s23, 1
      %p27 = scmp.eq.s32.totalorder %s15, 1
      %p28 = scmp.ne.s32.totalorder %s23, %s25
      %p29 = scmp.eq.s32.totalorder %s15, 0
      %p30 = por %p28, %p29
      %p31 = scmp.ne.s32.totalorder %s23, %s25
      %p32 = scmp.eq.s32.totalorder %s20, 1
      %p33 = por %p31, %p32
      %p34 = scmp.ne.s32.totalorder %s25, %s26
      %p35 = scmp.eq.s32.totalorder %s20, 0
      %p36 = por %p34, %p35
      %p37 = scmp.ne.s32.totalorder %s25, %s26
      %p38 = scmp.eq.s32.totalorder %s21, 1
      %p39 = por %p37, %p38
      %p41 = scmp.ne.s32.totalorder %s26, %s40
      %p42 = scmp.eq.s32.totalorder %s21, 0
      %p43 = por %p41, %p42
      %s45 = sadd.s32 %s44, 1
      %p48 = scmp.eq.s32.totalorder %s15, 1
      %p49 = scmp.ne.s32.totalorder %s44, %s46
      %p50 = scmp.eq.s32.totalorder %s15, 0
      %p51 = por %p49, %p50
      %p52 = scmp.ne.s32.totalorder %s44, %s46
      %p53 = scmp.eq.s32.totalorder %s20, 1
      %p54 = por %p52, %p53
      %p55 = scmp.ne.s32.totalorder %s46, %s47
      %p56 = scmp.eq.s32.totalorder %s20, 0
      %p57 = por %p55, %p56
      %p58 = scmp.ne.s32.totalorder %s46, %s47
      %p59 = scmp.eq.s32.totalorder %s21, 1
      %p60 = por %p58, %p59
      %p62 = scmp.ne.s32.totalorder %s47, %s61
      %p63 = scmp.eq.s32.totalorder %s21, 0
      %p64 = por %p62, %p63
      %s66 = sadd.s32 %s65, 1
      %p69 = scmp.eq.s32.totalorder %s15, 1
      %p70 = scmp.ne.s32.totalorder %s65, %s67
      %p71 = scmp.eq.s32.totalorder %s15, 0
      %p72 = por %p70, %p71
      %p73 = scmp.ne.s32.totalorder %s65, %s67
      %p74 = scmp.eq.s32.totalorder %s20, 1
      %p75 = por %p73, %p74
      %p76 = scmp.ne.s32.totalorder %s67, %s68
      %p77 = scmp.eq.s32.totalorder %s20, 0
      %p78 = por %p76, %p77
      %p79 = scmp.ne.s32.totalorder %s67, %s68
      %p80 = scmp.eq.s32.totalorder %s21, 1
      %p81 = por %p79, %p80
      %p83 = scmp.ne.s32.totalorder %s68, %s82
      %p84 = scmp.eq.s32.totalorder %s21, 0
      %p85 = por %p83, %p84
      %s86 = ssub.s32 %s15, %s22
      %p87 = scmp.eq.s32.totalorder %s86, 0
      %s89 = sadd.s32 %s88, 1
      %s90 = scalar_select %p87, %s88, %s89
      %p93 = pneg %p87
      %p94 = scmp.eq.s32.totalorder %s15, 1
      %p95 = por %p93, %p94
      %p96 = scmp.ne.s32.totalorder %s88, %s91
      %p97 = scmp.eq.s32.totalorder %s15, 0
      %p98 = por %p96, %p97
      %p99 = scmp.ne.s32.totalorder %s88, %s91
      %p100 = scmp.eq.s32.totalorder %s20, 1
      %p101 = por %p99, %p100
      %p102 = scmp.ne.s32.totalorder %s91, %s92
      %p103 = scmp.eq.s32.totalorder %s20, 0
      %p104 = por %p102, %p103
      %p105 = scmp.ne.s32.totalorder %s91, %s92
      %p106 = scmp.eq.s32.totalorder %s21, 1
      %p107 = por %p105, %p106
      %p109 = scmp.ne.s32.totalorder %s92, %s108
      %p110 = scmp.eq.s32.totalorder %s21, 0
      %p111 = por %p109, %p110
      %s112 = ssub.s32 %s15, %s22
      %p113 = scmp.eq.s32.totalorder %s112, 0
      %s115 = sadd.s32 %s114, 1
      %s116 = scalar_select %p113, %s114, %s115
      %p119 = pneg %p113
      %p120 = scmp.eq.s32.totalorder %s15, 1
      %p121 = por %p119, %p120
      %p122 = scmp.ne.s32.totalorder %s114, %s117
      %p123 = scmp.eq.s32.totalorder %s15, 0
      %p124 = por %p122, %p123
      %p125 = scmp.ne.s32.totalorder %s114, %s117
      %p126 = scmp.eq.s32.totalorder %s20, 1
      %p127 = por %p125, %p126
      %p128 = scmp.ne.s32.totalorder %s117, %s118
      %p129 = scmp.eq.s32.totalorder %s20, 0
      %p130 = por %p128, %p129
      %p131 = scmp.ne.s32.totalorder %s117, %s118
      %p132 = scmp.eq.s32.totalorder %s21, 1
      %p133 = por %p131, %p132
      %p135 = scmp.ne.s32.totalorder %s118, %s134
      %p136 = scmp.eq.s32.totalorder %s21, 0
      %p137 = por %p135, %p136
      %s139 = sadd.s32 %s138, 1
      %p142 = scmp.eq.s32.totalorder %s15, 1
      %p143 = scmp.ne.s32.totalorder %s138, %s140
      %p144 = scmp.eq.s32.totalorder %s15, 0
      %p145 = por %p143, %p144
      %p146 = scmp.ne.s32.totalorder %s138, %s140
      %p147 = scmp.eq.s32.totalorder %s20, 1
      %p148 = por %p146, %p147
      %p149 = scmp.ne.s32.totalorder %s140, %s141
      %p150 = scmp.eq.s32.totalorder %s20, 0
      %p151 = por %p149, %p150
      %p152 = scmp.ne.s32.totalorder %s140, %s141
      %p153 = scmp.eq.s32.totalorder %s21, 1
      %p154 = por %p152, %p153
      %p156 = scmp.ne.s32.totalorder %s141, %s155
      %p157 = scmp.eq.s32.totalorder %s21, 0
      %p158 = por %p156, %p157
      %s159 = ssub.s32 %s15, %s22
      %p160 = scmp.eq.s32.totalorder %s159, 0
      %s162 = sadd.s32 %s161, 1
      %s163 = scalar_select %p160, %s161, %s162
      %p166 = pneg %p160
      %p167 = scmp.eq.s32.totalorder %s15, 1
      %p168 = por %p166, %p167
      %p169 = scmp.ne.s32.totalorder %s161, %s164
      %p170 = scmp.eq.s32.totalorder %s15, 0
      %p171 = por %p169, %p170
      %p172 = scmp.ne.s32.totalorder %s161, %s164
      %p173 = scmp.eq.s32.totalorder %s20, 1
      %p174 = por %p172, %p173
      %p175 = scmp.ne.s32.totalorder %s164, %s165
      %p176 = scmp.eq.s32.totalorder %s20, 0
      %p177 = por %p175, %p176
      %p178 = scmp.ne.s32.totalorder %s164, %s165
      %p179 = scmp.eq.s32.totalorder %s21, 1
      %p180 = por %p178, %p179
      %p182 = scmp.ne.s32.totalorder %s165, %s181
      %p183 = scmp.eq.s32.totalorder %s21, 0
      %p184 = por %p182, %p183
      %p185 = scmp.le.s32.totalorder 1, %s15
      %p186 = scmp.lt.s32.totalorder %s15, 3
      %p187 = pnand %p185, %p186
      %p188 = pneg %p187
      // Predicated region
      $region9: #{accel101_forward.13} parent=5 // pred_check
        _
      $region10: #{accel101_forward.13} parent=5 // pred_check_branch
        %190 = sbr.rel (%p187) target = $region12
      $region11: #{accel101_forward.13} parent=5 // pred_region
        %s191 = ssub.s32 %s15, 1
        // Predicated region
        $region13: #{accel101_forward.13} parent=11 // pred_check
          %p192 = pneg %p36
        $region14: #{accel101_forward.13} parent=11 // pred_check_branch
          %194 = sbr.rel (%p192) target = $region16
        $region15: #{accel101_forward.13} parent=11 // pred_region
          _
        $region16: #{accel101_forward.13} parent=11 // pred_fallthru
          _
        // Predicated region
        $region17: #{accel101_forward.13} parent=11 // pred_check
          %p195 = pneg %p57
        $region18: #{accel101_forward.13} parent=11 // pred_check_branch
          %197 = sbr.rel (%p195) target = $region20
        $region19: #{accel101_forward.13} parent=11 // pred_region
          _
        $region20: #{accel101_forward.13} parent=11 // pred_fallthru
          _
        // Predicated region
        $region21: #{accel101_forward.13} parent=11 // pred_check
          %p198 = pneg %p78
        $region22: #{accel101_forward.13} parent=11 // pred_check_branch
          %200 = sbr.rel (%p198) target = $region24
        $region23: #{accel101_forward.13} parent=11 // pred_region
          _
        $region24: #{accel101_forward.13} parent=11 // pred_fallthru
          _
        // Predicated region
        $region25: #{accel101_forward.13} parent=11 // pred_check
          %p201 = pneg %p151
        $region26: #{accel101_forward.13} parent=11 // pred_check_branch
          %203 = sbr.rel (%p201) target = $region28
        $region27: #{accel101_forward.13} parent=11 // pred_region
          _
        $region28: #{accel101_forward.13} parent=11 // pred_fallthru
          _
      $region12: #{accel101_forward.13} parent=5 // pred_fallthru
        _
      %p204 = scmp.lt.s32.totalorder %s15, 2
      // Predicated region
      $region29: #{accel101_forward.13} parent=5 // pred_check
        %p205 = pneg %p204
      $region30: #{accel101_forward.13} parent=5 // pred_check_branch
        %207 = sbr.rel (%p205) target = $region32
      $region31: #{accel101_forward.13} parent=5 // pred_region
        // Predicated region
        $region33: #{accel101_forward.13} parent=31 // pred_check
          %p208 = pneg %p98
        $region34: #{accel101_forward.13} parent=31 // pred_check_branch
          %210 = sbr.rel (%p208) target = $region36
        $region35: #{accel101_forward.13} parent=31 // pred_region
          %p211 = scmp.lt.s32.totalorder %s15, 1
          %s212 = scalar_select %p211, %s15, 1
          %s213 = smul.addr %s212, 15
          %s214 = smul.addr %s213, 8
          %s215 = scalar_lea.vmem %s3, %s214
        $region36: #{accel101_forward.13} parent=31 // pred_fallthru
          _
        // Predicated region
        $region37: #{accel101_forward.13} parent=31 // pred_check
          %p216 = pneg %p124
        $region38: #{accel101_forward.13} parent=31 // pred_check_branch
          %218 = sbr.rel (%p216) target = $region40
        $region39: #{accel101_forward.13} parent=31 // pred_region
          %p219 = scmp.lt.s32.totalorder %s15, 1
          %s220 = scalar_select %p219, %s15, 1
          %s221 = smul.addr %s220, 15
          %s222 = smul.addr %s221, 8
          %s223 = scalar_lea.vmem %s4, %s222
        $region40: #{accel101_forward.13} parent=31 // pred_fallthru
          _
      $region32: #{accel101_forward.13} parent=5 // pred_fallthru
        _
      %p224 = scmp.le.s32.totalorder 1, %s15
      %p225 = scmp.lt.s32.totalorder %s15, 3
      %p226 = pnand %p224, %p225
      %p227 = pneg %p226
      // Predicated region
      $region41: #{accel101_forward.13} parent=5 // pred_check
        _
      $region42: #{accel101_forward.13} parent=5 // pred_check_branch
        %229 = sbr.rel (%p226) target = $region44
      $region43: #{accel101_forward.13} parent=5 // pred_region
        %s230 = ssub.s32 %s15, 1
        %p231 = pneg %p36
        %p232 = pneg %p33
        %p233 = pneg %p57
        %p234 = pneg %p54
        %p235 = pneg %p78
        %p236 = pneg %p75
        %p237 = scmp.lt.s32.totalorder %s20, 1
        %s238 = scalar_select %p237, %s20, 1
        %s239 = smul.addr %s238, 15
        %s240 = smul.addr %s239, 8
        %s241 = scalar_lea.vmem %s3, %s240
        %p242 = pneg %p104
        %p243 = pneg %p101
        %p244 = scmp.lt.s32.totalorder %s20, 1
        %s245 = scalar_select %p244, %s20, 1
        %s246 = smul.addr %s245, 15
        %s247 = smul.addr %s246, 8
        %s248 = scalar_lea.vmem %s4, %s247
        %p249 = pneg %p130
        %p250 = pneg %p127
        %p251 = pneg %p151
        %p252 = pneg %p148
        %p253 = pneg %p177
        %p254 = pneg %p174
        %s255 = sand.u32 %s164, 1
        %s256 = scalar_lea.sflag [#allocation3], %s255
        %s257 = sand.u32 %s164, 1
        %s258 = smul.addr %s257, 480
        %s259 = scalar_lea.vmem [#allocation2], %s258
        %p260 = scmp.lt.s32.totalorder %s20, 1
        %s261 = scalar_select %p260, %s20, 1
        %s262 = smul.addr %s261, 15
        %s263 = smul.addr %s262, 8
        %s264 = scalar_lea.vmem %s3, %s263
        %p265 = scmp.lt.s32.totalorder %s20, 1
        %s266 = scalar_select %p265, %s20, 1
        %s267 = smul.addr %s266, 15
        %s268 = smul.addr %s267, 8
        %s269 = scalar_lea.vmem %s4, %s268
        %v270 = vld [vmem:[%s264] sm:$0xff]
        %v271 = vld [vmem:[%s264 + $0x8] sm:$0xff]
        %v272 = vld [vmem:[%s264 + $0x10] sm:$0xff]
        %v273 = vld [vmem:[%s264 + $0x18] sm:$0xff]
        %v274 = vld [vmem:[%s264 + $0x20] sm:$0xff]
        %v275 = vld [vmem:[%s264 + $0x28] sm:$0xff]
        %v276 = vld [vmem:[%s264 + $0x30] sm:$0xff]
        %v277 = vld [vmem:[%s264 + $0x38] sm:$0xff]
        %v278 = vld [vmem:[%s264 + $0x40] sm:$0xff]
        %v279 = vld [vmem:[%s264 + $0x48] sm:$0xff]
        %v280 = vld [vmem:[%s264 + $0x50] sm:$0xff]
        %v281 = vld [vmem:[%s264 + $0x58] sm:$0xff]
        %v282 = vld [vmem:[%s264 + $0x60] sm:$0xff]
        %v283 = vld [vmem:[%s264 + $0x68] sm:$0xff]
        %v284 = vld [vmem:[%s264 + $0x70] sm:$0xff]
        %v285 = vld [vmem:[%s0] sm:$0xff]
        %vm286 = vcmask 64512
        %v288 = vsel %vm286, %v270, 0
        %v291 = vsel %vm286, %v271, 0
        %v294 = vsel %vm286, %v272, 0
        %v297 = vsel %vm286, %v273, 0
        %v300 = vsel %vm286, %v274, 0
        %v303 = vsel %vm286, %v275, 0
        %v306 = vsel %vm286, %v276, 0
        %v309 = vsel %vm286, %v277, 0
        %v312 = vsel %vm286, %v278, 0
        %v315 = vsel %vm286, %v279, 0
        %v318 = vsel %vm286, %v280, 0
        %v321 = vsel %vm286, %v281, 0
        %v324 = vsel %vm286, %v282, 0
        %v327 = vsel %vm286, %v283, 0
        %v330 = vsel %vm286, %v284, 0
        %332 = vmatprep.subr.mxu0 0.0
        %333 = vmatpush1.msra.mxu0 0.0
        %334 = vmatprep.subr.mxu0 0.0
        %335 = vmatpush1.msra.mxu0 0.0
        %336 = vmatprep.subr.mxu0 0.0
        %337 = vmatpush1.msra.mxu0 0.0
        %338 = vmatprep.subr.mxu0 0.0
        %339 = vmatpush1.msra.mxu0 0.0
        %340 = vmatprep.subr.mxu0 0.0
        %341 = vmatpush1.msra.mxu0 0.0
        %342 = vmatprep.subr.mxu0 0.0
        %343 = vmatpush1.msra.mxu0 0.0
        %344 = vmatprep.subr.mxu0 0.0
        %345 = vmatpush1.msra.mxu0 0.0
        %346 = vmatprep.subr.mxu0 0.0
        %347 = vmatpush1.msra.mxu0 0.0
        %348 = vmatprep.subr.mxu0 0.0
        %349 = vmatpush1.msra.mxu0 0.0
        %350 = vmatprep.subr.mxu0 0.0
        %351 = vmatpush1.msra.mxu0 0.0
        %352 = vmatprep.subr.mxu0 0.0
        %353 = vmatpush1.msra.mxu0 0.0
        %354 = vmatprep.subr.mxu0 0.0
        %355 = vmatpush1.msra.mxu0 0.0
        %356 = vmatprep.subr.mxu0 0.0
        %357 = vmatpush1.msra.mxu0 0.0
        %358 = vmatprep.subr.mxu0 0.0
        %359 = vmatpush1.msra.mxu0 0.0
        %360 = vmatprep.subr.mxu0 0.0
        %361 = vmatpush1.msra.mxu0 0.0
        %362 = vmatprep.subr.mxu0 0.0
        %363 = vmatpush1.msra.mxu0 %v285
        %364 = vmatprep.subr.mxu0 0.0
        %365 = vmatpush2.msra.mxu0 0.0
        %366 = vmatprep.subr.mxu0 0.0
        %367 = vmatpush2.msra.mxu0 0.0
        %368 = vmatprep.subr.mxu0 0.0
        %369 = vmatpush2.msra.mxu0 0.0
        %370 = vmatprep.subr.mxu0 0.0
        %371 = vmatpush2.msra.mxu0 0.0
        %372 = vmatprep.subr.mxu0 0.0
        %373 = vmatpush2.msra.mxu0 0.0
        %374 = vmatprep.subr.mxu0 0.0
        %375 = vmatpush2.msra.mxu0 0.0
        %376 = vmatprep.subr.mxu0 0.0
        %377 = vmatpush2.msra.mxu0 0.0
        %378 = vmatprep.subr.mxu0 0.0
        %379 = vmatpush2.msra.mxu0 0.0
        %380 = vmatprep.subr.mxu0 0.0
        %381 = vmatpush2.msra.mxu0 0.0
        %382 = vmatprep.subr.mxu0 0.0
        %383 = vmatpush2.msra.mxu0 0.0
        %384 = vmatprep.subr.mxu0 0.0
        %385 = vmatpush2.msra.mxu0 0.0
        %386 = vmatprep.subr.mxu0 0.0
        %387 = vmatpush2.msra.mxu0 0.0
        %388 = vmatprep.subr.mxu0 0.0
        %389 = vmatpush2.msra.mxu0 0.0
        %390 = vmatprep.subr.mxu0 0.0
        %391 = vmatpush2.msra.mxu0 0.0
        %392 = vmatprep.subr.mxu0 0.0
        %393 = vmatpush2.msra.mxu0 0.0
        %394 = vmatprep.subr.mxu0 0.0
        %395 = vmatpush2.msra.mxu0 0.0
        %396 = vmatprep.mubr.f32.mxu0 0.0
        %397 = vmatmul.mubr.f32.gmra.mxu0 %v288
        %v398 = vpop.f32.mrf.mxu0
        %v399 = vadd.f32 0.0, %v398
        %v400 = vpop.f32.mrf.mxu0
        %401 = vmatprep.mubr.f32.mxu0 0.0
        %402 = vmatmul.mubr.f32.gmra.mxu0 %v291
        %v403 = vpop.f32.mrf.mxu0
        %v404 = vadd.f32 0.0, %v403
        %v405 = vpop.f32.mrf.mxu0
        %406 = vmatprep.mubr.f32.mxu0 0.0
        %407 = vmatmul.mubr.f32.gmra.mxu0 %v294
        %v408 = vpop.f32.mrf.mxu0
        %v409 = vadd.f32 0.0, %v408
        %v410 = vpop.f32.mrf.mxu0
        %411 = vmatprep.mubr.f32.mxu0 0.0
        %412 = vmatmul.mubr.f32.gmra.mxu0 %v297
        %v413 = vpop.f32.mrf.mxu0
        %v414 = vadd.f32 0.0, %v413
        %v415 = vpop.f32.mrf.mxu0
        %416 = vmatprep.mubr.f32.mxu0 0.0
        %417 = vmatmul.mubr.f32.gmra.mxu0 %v300
        %v418 = vpop.f32.mrf.mxu0
        %v419 = vadd.f32 0.0, %v418
        %v420 = vpop.f32.mrf.mxu0
        %421 = vmatprep.mubr.f32.mxu0 0.0
        %422 = vmatmul.mubr.f32.gmra.mxu0 %v303
        %v423 = vpop.f32.mrf.mxu0
        %v424 = vadd.f32 0.0, %v423
        %v425 = vpop.f32.mrf.mxu0
        %426 = vmatprep.mubr.f32.mxu0 0.0
        %427 = vmatmul.mubr.f32.gmra.mxu0 %v306
        %v428 = vpop.f32.mrf.mxu0
        %v429 = vadd.f32 0.0, %v428
        %v430 = vpop.f32.mrf.mxu0
        %431 = vmatprep.mubr.f32.mxu0 0.0
        %432 = vmatmul.mubr.f32.gmra.mxu0 %v309
        %v433 = vpop.f32.mrf.mxu0
        %v434 = vadd.f32 0.0, %v433
        %v435 = vpop.f32.mrf.mxu0
        %436 = vmatprep.mubr.f32.mxu0 0.0
        %437 = vmatmul.mubr.f32.gmra.mxu0 %v312
        %v438 = vpop.f32.mrf.mxu0
        %v439 = vadd.f32 0.0, %v438
        %v440 = vpop.f32.mrf.mxu0
        %441 = vmatprep.mubr.f32.mxu0 0.0
        %442 = vmatmul.mubr.f32.gmra.mxu0 %v315
        %v443 = vpop.f32.mrf.mxu0
        %v444 = vadd.f32 0.0, %v443
        %v445 = vpop.f32.mrf.mxu0
        %446 = vmatprep.mubr.f32.mxu0 0.0
        %447 = vmatmul.mubr.f32.gmra.mxu0 %v318
        %v448 = vpop.f32.mrf.mxu0
        %v449 = vadd.f32 0.0, %v448
        %v450 = vpop.f32.mrf.mxu0
        %451 = vmatprep.mubr.f32.mxu0 0.0
        %452 = vmatmul.mubr.f32.gmra.mxu0 %v321
        %v453 = vpop.f32.mrf.mxu0
        %v454 = vadd.f32 0.0, %v453
        %v455 = vpop.f32.mrf.mxu0
        %456 = vmatprep.mubr.f32.mxu0 0.0
        %457 = vmatmul.mubr.f32.gmra.mxu0 %v324
        %v458 = vpop.f32.mrf.mxu0
        %v459 = vadd.f32 0.0, %v458
        %v460 = vpop.f32.mrf.mxu0
        %461 = vmatprep.mubr.f32.mxu0 0.0
        %462 = vmatmul.mubr.f32.gmra.mxu0 %v327
        %v463 = vpop.f32.mrf.mxu0
        %v464 = vadd.f32 0.0, %v463
        %v465 = vpop.f32.mrf.mxu0
        %466 = vmatprep.mubr.f32.mxu0 0.0
        %467 = vmatmul.mubr.f32.gmra.mxu0 %v330
        %v468 = vpop.f32.mrf.mxu0
        %v469 = vadd.f32 0.0, %v468
        %v470 = vpop.f32.mrf.mxu0
        %471 = vdwg.mxu0
        %v472 = vld [vmem:[%s269] sm:$0xff]
        %v473 = vld [vmem:[%s269 + $0x8] sm:$0xff]
        %v474 = vld [vmem:[%s269 + $0x10] sm:$0xff]
        %v475 = vld [vmem:[%s269 + $0x18] sm:$0xff]
        %v476 = vld [vmem:[%s269 + $0x20] sm:$0xff]
        %v477 = vld [vmem:[%s269 + $0x28] sm:$0xff]
        %v478 = vld [vmem:[%s269 + $0x30] sm:$0xff]
        %v479 = vld [vmem:[%s269 + $0x38] sm:$0xff]
        %v480 = vld [vmem:[%s269 + $0x40] sm:$0xff]
        %v481 = vld [vmem:[%s269 + $0x48] sm:$0xff]
        %v482 = vld [vmem:[%s269 + $0x50] sm:$0xff]
        %v483 = vld [vmem:[%s269 + $0x58] sm:$0xff]
        %v484 = vld [vmem:[%s269 + $0x60] sm:$0xff]
        %v485 = vld [vmem:[%s269 + $0x68] sm:$0xff]
        %v486 = vld [vmem:[%s269 + $0x70] sm:$0xff]
        %v488 = vsel %vm286, %v472, 0
        %v491 = vsel %vm286, %v473, 0
        %v494 = vsel %vm286, %v474, 0
        %v497 = vsel %vm286, %v475, 0
        %v500 = vsel %vm286, %v476, 0
        %v503 = vsel %vm286, %v477, 0
        %v506 = vsel %vm286, %v478, 0
        %v509 = vsel %vm286, %v479, 0
        %v512 = vsel %vm286, %v480, 0
        %v515 = vsel %vm286, %v481, 0
        %v518 = vsel %vm286, %v482, 0
        %v521 = vsel %vm286, %v483, 0
        %v524 = vsel %vm286, %v484, 0
        %v527 = vsel %vm286, %v485, 0
        %v530 = vsel %vm286, %v486, 0
        %532 = vmatprep.subr.mxu0 0.0
        %533 = vmatpush1.msra.mxu0 0.0
        %534 = vmatprep.subr.mxu0 0.0
        %535 = vmatpush1.msra.mxu0 0.0
        %536 = vmatprep.subr.mxu0 0.0
        %537 = vmatpush1.msra.mxu0 0.0
        %538 = vmatprep.subr.mxu0 0.0
        %539 = vmatpush1.msra.mxu0 0.0
        %540 = vmatprep.subr.mxu0 0.0
        %541 = vmatpush1.msra.mxu0 0.0
        %542 = vmatprep.subr.mxu0 0.0
        %543 = vmatpush1.msra.mxu0 0.0
        %544 = vmatprep.subr.mxu0 0.0
        %545 = vmatpush1.msra.mxu0 0.0
        %546 = vmatprep.subr.mxu0 0.0
        %547 = vmatpush1.msra.mxu0 0.0
        %548 = vmatprep.subr.mxu0 0.0
        %549 = vmatpush1.msra.mxu0 0.0
        %550 = vmatprep.subr.mxu0 0.0
        %551 = vmatpush1.msra.mxu0 0.0
        %552 = vmatprep.subr.mxu0 0.0
        %553 = vmatpush1.msra.mxu0 0.0
        %554 = vmatprep.subr.mxu0 0.0
        %555 = vmatpush1.msra.mxu0 0.0
        %556 = vmatprep.subr.mxu0 0.0
        %557 = vmatpush1.msra.mxu0 0.0
        %558 = vmatprep.subr.mxu0 0.0
        %559 = vmatpush1.msra.mxu0 0.0
        %560 = vmatprep.subr.mxu0 0.0
        %561 = vmatpush1.msra.mxu0 0.0
        %562 = vmatprep.subr.mxu0 0.0
        %563 = vmatpush1.msra.mxu0 %v285
        %564 = vmatprep.subr.mxu0 0.0
        %565 = vmatpush2.msra.mxu0 0.0
        %566 = vmatprep.subr.mxu0 0.0
        %567 = vmatpush2.msra.mxu0 0.0
        %568 = vmatprep.subr.mxu0 0.0
        %569 = vmatpush2.msra.mxu0 0.0
        %570 = vmatprep.subr.mxu0 0.0
        %571 = vmatpush2.msra.mxu0 0.0
        %572 = vmatprep.subr.mxu0 0.0
        %573 = vmatpush2.msra.mxu0 0.0
        %574 = vmatprep.subr.mxu0 0.0
        %575 = vmatpush2.msra.mxu0 0.0
        %576 = vmatprep.subr.mxu0 0.0
        %577 = vmatpush2.msra.mxu0 0.0
        %578 = vmatprep.subr.mxu0 0.0
        %579 = vmatpush2.msra.mxu0 0.0
        %580 = vmatprep.subr.mxu0 0.0
        %581 = vmatpush2.msra.mxu0 0.0
        %582 = vmatprep.subr.mxu0 0.0
        %583 = vmatpush2.msra.mxu0 0.0
        %584 = vmatprep.subr.mxu0 0.0
        %585 = vmatpush2.msra.mxu0 0.0
        %586 = vmatprep.subr.mxu0 0.0
        %587 = vmatpush2.msra.mxu0 0.0
        %588 = vmatprep.subr.mxu0 0.0
        %589 = vmatpush2.msra.mxu0 0.0
        %590 = vmatprep.subr.mxu0 0.0
        %591 = vmatpush2.msra.mxu0 0.0
        %592 = vmatprep.subr.mxu0 0.0
        %593 = vmatpush2.msra.mxu0 0.0
        %594 = vmatprep.subr.mxu0 0.0
        %595 = vmatpush2.msra.mxu0 0.0
        %596 = vmatprep.mubr.f32.mxu0 0.0
        %597 = vmatmul.mubr.f32.gmra.mxu0 %v488
        %v598 = vpop.f32.mrf.mxu0
        %v599 = vadd.f32 0.0, %v598
        %v600 = vpop.f32.mrf.mxu0
        %601 = vmatprep.mubr.f32.mxu0 0.0
        %602 = vmatmul.mubr.f32.gmra.mxu0 %v491
        %v603 = vpop.f32.mrf.mxu0
        %v604 = vadd.f32 0.0, %v603
        %v605 = vpop.f32.mrf.mxu0
        %606 = vmatprep.mubr.f32.mxu0 0.0
        %607 = vmatmul.mubr.f32.gmra.mxu0 %v494
        %v608 = vpop.f32.mrf.mxu0
        %v609 = vadd.f32 0.0, %v608
        %v610 = vpop.f32.mrf.mxu0
        %611 = vmatprep.mubr.f32.mxu0 0.0
        %612 = vmatmul.mubr.f32.gmra.mxu0 %v497
        %v613 = vpop.f32.mrf.mxu0
        %v614 = vadd.f32 0.0, %v613
        %v615 = vpop.f32.mrf.mxu0
        %616 = vmatprep.mubr.f32.mxu0 0.0
        %617 = vmatmul.mubr.f32.gmra.mxu0 %v500
        %v618 = vpop.f32.mrf.mxu0
        %v619 = vadd.f32 0.0, %v618
        %v620 = vpop.f32.mrf.mxu0
        %621 = vmatprep.mubr.f32.mxu0 0.0
        %622 = vmatmul.mubr.f32.gmra.mxu0 %v503
        %v623 = vpop.f32.mrf.mxu0
        %v624 = vadd.f32 0.0, %v623
        %v625 = vpop.f32.mrf.mxu0
        %626 = vmatprep.mubr.f32.mxu0 0.0
        %627 = vmatmul.mubr.f32.gmra.mxu0 %v506
        %v628 = vpop.f32.mrf.mxu0
        %v629 = vadd.f32 0.0, %v628
        %v630 = vpop.f32.mrf.mxu0
        %631 = vmatprep.mubr.f32.mxu0 0.0
        %632 = vmatmul.mubr.f32.gmra.mxu0 %v509
        %v633 = vpop.f32.mrf.mxu0
        %v634 = vadd.f32 0.0, %v633
        %v635 = vpop.f32.mrf.mxu0
        %636 = vmatprep.mubr.f32.mxu0 0.0
        %637 = vmatmul.mubr.f32.gmra.mxu0 %v512
        %v638 = vpop.f32.mrf.mxu0
        %v639 = vadd.f32 0.0, %v638
        %v640 = vpop.f32.mrf.mxu0
        %641 = vmatprep.mubr.f32.mxu0 0.0
        %642 = vmatmul.mubr.f32.gmra.mxu0 %v515
        %v643 = vpop.f32.mrf.mxu0
        %v644 = vadd.f32 0.0, %v643
        %v645 = vpop.f32.mrf.mxu0
        %646 = vmatprep.mubr.f32.mxu0 0.0
        %647 = vmatmul.mubr.f32.gmra.mxu0 %v518
        %v648 = vpop.f32.mrf.mxu0
        %v649 = vadd.f32 0.0, %v648
        %v650 = vpop.f32.mrf.mxu0
        %651 = vmatprep.mubr.f32.mxu0 0.0
        %652 = vmatmul.mubr.f32.gmra.mxu0 %v521
        %v653 = vpop.f32.mrf.mxu0
        %v654 = vadd.f32 0.0, %v653
        %v655 = vpop.f32.mrf.mxu0
        %656 = vmatprep.mubr.f32.mxu0 0.0
        %657 = vmatmul.mubr.f32.gmra.mxu0 %v524
        %v658 = vpop.f32.mrf.mxu0
        %v659 = vadd.f32 0.0, %v658
        %v660 = vpop.f32.mrf.mxu0
        %661 = vmatprep.mubr.f32.mxu0 0.0
        %662 = vmatmul.mubr.f32.gmra.mxu0 %v527
        %v663 = vpop.f32.mrf.mxu0
        %v664 = vadd.f32 0.0, %v663
        %v665 = vpop.f32.mrf.mxu0
        %666 = vmatprep.mubr.f32.mxu0 0.0
        %667 = vmatmul.mubr.f32.gmra.mxu0 %v530
        %v668 = vpop.f32.mrf.mxu0
        %v669 = vadd.f32 0.0, %v668
        %v670 = vpop.f32.mrf.mxu0
        %671 = vdwg.mxu0
        %v672 = vld [vmem:[%s1] sm:$0xff]
        %v673 = vld [vmem:[%s1 + $0x8] sm:$0xff]
        %v674 = vld [vmem:[%s1 + $0x10] sm:$0xff]
        %v675 = vld [vmem:[%s1 + $0x18] sm:$0xff]
        %v676 = vld [vmem:[%s1 + $0x20] sm:$0xff]
        %v677 = vld [vmem:[%s1 + $0x28] sm:$0xff]
        %v678 = vld [vmem:[%s1 + $0x30] sm:$0xff]
        %v679 = vld [vmem:[%s1 + $0x38] sm:$0xff]
        %v680 = vld [vmem:[%s1 + $0x40] sm:$0xff]
        %v681 = vld [vmem:[%s1 + $0x48] sm:$0xff]
        %v682 = vld [vmem:[%s1 + $0x50] sm:$0xff]
        %v683 = vld [vmem:[%s1 + $0x58] sm:$0xff]
        %v684 = vld [vmem:[%s1 + $0x60] sm:$0xff]
        %v685 = vld [vmem:[%s1 + $0x68] sm:$0xff]
        %v686 = vld [vmem:[%s1 + $0x70] sm:$0xff]
        %v687 = vld [vmem:[%s1 + $0x78] sm:$0xff]
        %v688 = vld [vmem:[%s1 + $0x80] sm:$0xff]
        %v689 = vld [vmem:[%s1 + $0x88] sm:$0xff]
        %v690 = vld [vmem:[%s1 + $0x90] sm:$0xff]
        %v691 = vld [vmem:[%s1 + $0x98] sm:$0xff]
        %v692 = vld [vmem:[%s1 + $0xa0] sm:$0xff]
        %v693 = vld [vmem:[%s1 + $0xa8] sm:$0xff]
        %v694 = vld [vmem:[%s1 + $0xb0] sm:$0xff]
        %v695 = vld [vmem:[%s1 + $0xb8] sm:$0xff]
        %v696 = vld [vmem:[%s1 + $0xc0] sm:$0xff]
        %v697 = vld [vmem:[%s1 + $0xc8] sm:$0xff]
        %v698 = vld [vmem:[%s1 + $0xd0] sm:$0xff]
        %v699 = vld [vmem:[%s1 + $0xd8] sm:$0xff]
        %v700 = vld [vmem:[%s1 + $0xe0] sm:$0xff]
        %v701 = vld [vmem:[%s1 + $0xe8] sm:$0xff]
        %v702 = vld [vmem:[%s1 + $0xf0] sm:$0xff]
        %v703 = vld [vmem:[%s1 + $0xf8] sm:$0xff]
        %v704 = vld [vmem:[%s1 + $0x100] sm:$0xff]
        %v705 = vld [vmem:[%s1 + $0x108] sm:$0xff]
        %v706 = vld [vmem:[%s1 + $0x110] sm:$0xff]
        %v707 = vld [vmem:[%s1 + $0x118] sm:$0xff]
        %v708 = vld [vmem:[%s1 + $0x120] sm:$0xff]
        %v709 = vld [vmem:[%s1 + $0x128] sm:$0xff]
        %v710 = vld [vmem:[%s1 + $0x130] sm:$0xff]
        %v711 = vld [vmem:[%s1 + $0x138] sm:$0xff]
        %v712 = vld [vmem:[%s1 + $0x140] sm:$0xff]
        %v713 = vld [vmem:[%s1 + $0x148] sm:$0xff]
        %v714 = vld [vmem:[%s1 + $0x150] sm:$0xff]
        %v715 = vld [vmem:[%s1 + $0x158] sm:$0xff]
        %v716 = vld [vmem:[%s1 + $0x160] sm:$0xff]
        %v717 = vld [vmem:[%s1 + $0x168] sm:$0xff]
        %v718 = vld [vmem:[%s1 + $0x170] sm:$0xff]
        %v719 = vld [vmem:[%s1 + $0x178] sm:$0xff]
        %v720 = vld [vmem:[%s1 + $0x180] sm:$0xff]
        %v721 = vld [vmem:[%s1 + $0x188] sm:$0xff]
        %v722 = vld [vmem:[%s1 + $0x190] sm:$0xff]
        %v723 = vld [vmem:[%s1 + $0x198] sm:$0xff]
        %v724 = vld [vmem:[%s1 + $0x1a0] sm:$0xff]
        %v725 = vld [vmem:[%s1 + $0x1a8] sm:$0xff]
        %v726 = vld [vmem:[%s1 + $0x1b0] sm:$0xff]
        %v727 = vld [vmem:[%s1 + $0x1b8] sm:$0xff]
        %v728 = vld [vmem:[%s1 + $0x1c0] sm:$0xff]
        %v729 = vld [vmem:[%s1 + $0x1c8] sm:$0xff]
        %v730 = vld [vmem:[%s1 + $0x1d0] sm:$0xff]
        %v731 = vld [vmem:[%s1 + $0x1d8] sm:$0xff]
        %v732 = vld [vmem:[%s2] sm:$0xff]
        %v733 = vld [vmem:[%s2 + $0x8] sm:$0xff]
        %v734 = vld [vmem:[%s2 + $0x10] sm:$0xff]
        %v735 = vld [vmem:[%s2 + $0x18] sm:$0xff]
        %v736 = vld [vmem:[%s2 + $0x20] sm:$0xff]
        %v737 = vld [vmem:[%s2 + $0x28] sm:$0xff]
        %v738 = vld [vmem:[%s2 + $0x30] sm:$0xff]
        %v739 = vld [vmem:[%s2 + $0x38] sm:$0xff]
        %v740 = vld [vmem:[%s2 + $0x40] sm:$0xff]
        %v741 = vld [vmem:[%s2 + $0x48] sm:$0xff]
        %v742 = vld [vmem:[%s2 + $0x50] sm:$0xff]
        %v743 = vld [vmem:[%s2 + $0x58] sm:$0xff]
        %v744 = vld [vmem:[%s2 + $0x60] sm:$0xff]
        %v745 = vld [vmem:[%s2 + $0x68] sm:$0xff]
        %v746 = vld [vmem:[%s2 + $0x70] sm:$0xff]
        %v747 = vld [vmem:[%s2 + $0x78] sm:$0xff]
        %v748 = vld [vmem:[%s2 + $0x80] sm:$0xff]
        %v749 = vld [vmem:[%s2 + $0x88] sm:$0xff]
        %v750 = vld [vmem:[%s2 + $0x90] sm:$0xff]
        %v751 = vld [vmem:[%s2 + $0x98] sm:$0xff]
        %v752 = vld [vmem:[%s2 + $0xa0] sm:$0xff]
        %v753 = vld [vmem:[%s2 + $0xa8] sm:$0xff]
        %v754 = vld [vmem:[%s2 + $0xb0] sm:$0xff]
        %v755 = vld [vmem:[%s2 + $0xb8] sm:$0xff]
        %v756 = vld [vmem:[%s2 + $0xc0] sm:$0xff]
        %v757 = vld [vmem:[%s2 + $0xc8] sm:$0xff]
        %v758 = vld [vmem:[%s2 + $0xd0] sm:$0xff]
        %v759 = vld [vmem:[%s2 + $0xd8] sm:$0xff]
        %v760 = vld [vmem:[%s2 + $0xe0] sm:$0xff]
        %v761 = vld [vmem:[%s2 + $0xe8] sm:$0xff]
        %v762 = vld [vmem:[%s2 + $0xf0] sm:$0xff]
        %v763 = vld [vmem:[%s2 + $0xf8] sm:$0xff]
        %v764 = vld [vmem:[%s2 + $0x100] sm:$0xff]
        %v765 = vld [vmem:[%s2 + $0x108] sm:$0xff]
        %v766 = vld [vmem:[%s2 + $0x110] sm:$0xff]
        %v767 = vld [vmem:[%s2 + $0x118] sm:$0xff]
        %v768 = vld [vmem:[%s2 + $0x120] sm:$0xff]
        %v769 = vld [vmem:[%s2 + $0x128] sm:$0xff]
        %v770 = vld [vmem:[%s2 + $0x130] sm:$0xff]
        %v771 = vld [vmem:[%s2 + $0x138] sm:$0xff]
        %v772 = vld [vmem:[%s2 + $0x140] sm:$0xff]
        %v773 = vld [vmem:[%s2 + $0x148] sm:$0xff]
        %v774 = vld [vmem:[%s2 + $0x150] sm:$0xff]
        %v775 = vld [vmem:[%s2 + $0x158] sm:$0xff]
        %v776 = vld [vmem:[%s2 + $0x160] sm:$0xff]
        %v777 = vld [vmem:[%s2 + $0x168] sm:$0xff]
        %v778 = vld [vmem:[%s2 + $0x170] sm:$0xff]
        %v779 = vld [vmem:[%s2 + $0x178] sm:$0xff]
        %v780 = vld [vmem:[%s2 + $0x180] sm:$0xff]
        %v781 = vld [vmem:[%s2 + $0x188] sm:$0xff]
        %v782 = vld [vmem:[%s2 + $0x190] sm:$0xff]
        %v783 = vld [vmem:[%s2 + $0x198] sm:$0xff]
        %v784 = vld [vmem:[%s2 + $0x1a0] sm:$0xff]
        %v785 = vld [vmem:[%s2 + $0x1a8] sm:$0xff]
        %v786 = vld [vmem:[%s2 + $0x1b0] sm:$0xff]
        %v787 = vld [vmem:[%s2 + $0x1b8] sm:$0xff]
        %v788 = vld [vmem:[%s2 + $0x1c0] sm:$0xff]
        %v789 = vld [vmem:[%s2 + $0x1c8] sm:$0xff]
        %v790 = vld [vmem:[%s2 + $0x1d0] sm:$0xff]
        %v791 = vld [vmem:[%s2 + $0x1d8] sm:$0xff]
        %vm792 = vcmask 982016
        %v794 = vsel %vm792, %v732, 0
        %v797 = vsel %vm792, %v733, 0
        %v800 = vsel %vm792, %v734, 0
        %v803 = vsel %vm792, %v735, 0
        %v806 = vsel %vm792, %v736, 0
        %v809 = vsel %vm792, %v737, 0
        %v812 = vsel %vm792, %v738, 0
        %v815 = vsel %vm792, %v739, 0
        %v818 = vsel %vm792, %v740, 0
        %v821 = vsel %vm792, %v741, 0
        %v824 = vsel %vm792, %v742, 0
        %v827 = vsel %vm792, %v743, 0
        %v830 = vsel %vm792, %v744, 0
        %v833 = vsel %vm792, %v745, 0
        %v836 = vsel %vm792, %v746, 0
        %v839 = vsel %vm792, %v747, 0
        %v842 = vsel %vm792, %v748, 0
        %v845 = vsel %vm792, %v749, 0
        %v848 = vsel %vm792, %v750, 0
        %v851 = vsel %vm792, %v751, 0
        %v854 = vsel %vm792, %v752, 0
        %v857 = vsel %vm792, %v753, 0
        %v860 = vsel %vm792, %v754, 0
        %v863 = vsel %vm792, %v755, 0
        %v866 = vsel %vm792, %v756, 0
        %v869 = vsel %vm792, %v757, 0
        %v872 = vsel %vm792, %v758, 0
        %v875 = vsel %vm792, %v759, 0
        %v878 = vsel %vm792, %v760, 0
        %v881 = vsel %vm792, %v761, 0
        %v884 = vsel %vm792, %v762, 0
        %v887 = vsel %vm792, %v763, 0
        %v890 = vsel %vm792, %v764, 0
        %v893 = vsel %vm792, %v765, 0
        %v896 = vsel %vm792, %v766, 0
        %v899 = vsel %vm792, %v767, 0
        %v902 = vsel %vm792, %v768, 0
        %v905 = vsel %vm792, %v769, 0
        %v908 = vsel %vm792, %v770, 0
        %v911 = vsel %vm792, %v771, 0
        %v914 = vsel %vm792, %v772, 0
        %v917 = vsel %vm792, %v773, 0
        %v920 = vsel %vm792, %v774, 0
        %v923 = vsel %vm792, %v775, 0
        %v926 = vsel %vm792, %v776, 0
        %v929 = vsel %vm792, %v777, 0
        %v932 = vsel %vm792, %v778, 0
        %v935 = vsel %vm792, %v779, 0
        %v938 = vsel %vm792, %v780, 0
        %v941 = vsel %vm792, %v781, 0
        %v944 = vsel %vm792, %v782, 0
        %v947 = vsel %vm792, %v783, 0
        %v950 = vsel %vm792, %v784, 0
        %v953 = vsel %vm792, %v785, 0
        %v956 = vsel %vm792, %v786, 0
        %v959 = vsel %vm792, %v787, 0
        %v962 = vsel %vm792, %v788, 0
        %v965 = vsel %vm792, %v789, 0
        %v968 = vsel %vm792, %v790, 0
        %v971 = vsel %vm792, %v791, 0
        %973 = vmatprep.subr.mxu0 0.0
        %974 = vmatpush1.msra.mxu0 0.0
        %975 = vmatprep.subr.mxu0 0.0
        %976 = vmatpush1.msra.mxu0 %v669
        %977 = vmatprep.subr.mxu0 0.0
        %978 = vmatpush1.msra.mxu0 %v664
        %979 = vmatprep.subr.mxu0 0.0
        %980 = vmatpush1.msra.mxu0 %v659
        %981 = vmatprep.subr.mxu0 0.0
        %982 = vmatpush1.msra.mxu0 %v654
        %983 = vmatprep.subr.mxu0 0.0
        %984 = vmatpush1.msra.mxu0 %v649
        %985 = vmatprep.subr.mxu0 0.0
        %986 = vmatpush1.msra.mxu0 %v644
        %987 = vmatprep.subr.mxu0 0.0
        %988 = vmatpush1.msra.mxu0 %v639
        %989 = vmatprep.subr.mxu0 0.0
        %990 = vmatpush1.msra.mxu0 %v634
        %991 = vmatprep.subr.mxu0 0.0
        %992 = vmatpush1.msra.mxu0 %v629
        %993 = vmatprep.subr.mxu0 0.0
        %994 = vmatpush1.msra.mxu0 %v624
        %995 = vmatprep.subr.mxu0 0.0
        %996 = vmatpush1.msra.mxu0 %v619
        %997 = vmatprep.subr.mxu0 0.0
        %998 = vmatpush1.msra.mxu0 %v614
        %999 = vmatprep.subr.mxu0 0.0
        %1000 = vmatpush1.msra.mxu0 %v609
        %1001 = vmatprep.subr.mxu0 0.0
        %1002 = vmatpush1.msra.mxu0 %v604
        %1003 = vmatprep.subr.mxu0 0.0
        %1004 = vmatpush1.msra.mxu0 %v599
        %1005 = vmatprep.subr.mxu0 0.0
        %1006 = vmatpush2.msra.mxu0 0.0
        %1007 = vmatprep.subr.mxu0 0.0
        %1008 = vmatpush2.msra.mxu0 0.0
        %1009 = vmatprep.subr.mxu0 0.0
        %1010 = vmatpush2.msra.mxu0 0.0
        %1011 = vmatprep.subr.mxu0 0.0
        %1012 = vmatpush2.msra.mxu0 0.0
        %1013 = vmatprep.subr.mxu0 0.0
        %1014 = vmatpush2.msra.mxu0 0.0
        %1015 = vmatprep.subr.mxu0 0.0
        %1016 = vmatpush2.msra.mxu0 0.0
        %1017 = vmatprep.subr.mxu0 0.0
        %1018 = vmatpush2.msra.mxu0 0.0
        %1019 = vmatprep.subr.mxu0 0.0
        %1020 = vmatpush2.msra.mxu0 0.0
        %1021 = vmatprep.subr.mxu0 0.0
        %1022 = vmatpush2.msra.mxu0 0.0
        %1023 = vmatprep.subr.mxu0 0.0
        %1024 = vmatpush2.msra.mxu0 0.0
        %1025 = vmatprep.subr.mxu0 0.0
        %1026 = vmatpush2.msra.mxu0 0.0
        %1027 = vmatprep.subr.mxu0 0.0
        %1028 = vmatpush2.msra.mxu0 0.0
        %1029 = vmatprep.subr.mxu0 0.0
        %1030 = vmatpush2.msra.mxu0 0.0
        %1031 = vmatprep.subr.mxu0 0.0
        %1032 = vmatpush2.msra.mxu0 0.0
        %1033 = vmatprep.subr.mxu0 0.0
        %1034 = vmatpush2.msra.mxu0 0.0
        %1035 = vmatprep.subr.mxu0 0.0
        %1036 = vmatpush2.msra.mxu0 0.0
        %1037 = vmatprep.mubr.f32.mxu0 0.0
        %1038 = vmatmul.mubr.f32.gmra.mxu0 %v794
        %v1039 = vpop.f32.mrf.mxu0
        %v1040 = vadd.f32 0.0, %v1039
        %v1041 = vpop.f32.mrf.mxu0
        %1042 = vmatprep.mubr.f32.mxu0 0.0
        %1043 = vmatmul.mubr.f32.gmra.mxu0 %v797
        %v1044 = vpop.f32.mrf.mxu0
        %v1045 = vadd.f32 0.0, %v1044
        %v1046 = vpop.f32.mrf.mxu0
        %1047 = vmatprep.mubr.f32.mxu0 0.0
        %1048 = vmatmul.mubr.f32.gmra.mxu0 %v800
        %v1049 = vpop.f32.mrf.mxu0
        %v1050 = vadd.f32 0.0, %v1049
        %v1051 = vpop.f32.mrf.mxu0
        %1052 = vmatprep.mubr.f32.mxu0 0.0
        %1053 = vmatmul.mubr.f32.gmra.mxu0 %v803
        %v1054 = vpop.f32.mrf.mxu0
        %v1055 = vadd.f32 0.0, %v1054
        %v1056 = vpop.f32.mrf.mxu0
        %1057 = vmatprep.mubr.f32.mxu0 0.0
        %1058 = vmatmul.mubr.f32.gmra.mxu0 %v806
        %v1059 = vpop.f32.mrf.mxu0
        %v1060 = vadd.f32 0.0, %v1059
        %v1061 = vpop.f32.mrf.mxu0
        %1062 = vmatprep.mubr.f32.mxu0 0.0
        %1063 = vmatmul.mubr.f32.gmra.mxu0 %v809
        %v1064 = vpop.f32.mrf.mxu0
        %v1065 = vadd.f32 0.0, %v1064
        %v1066 = vpop.f32.mrf.mxu0
        %1067 = vmatprep.mubr.f32.mxu0 0.0
        %1068 = vmatmul.mubr.f32.gmra.mxu0 %v812
        %v1069 = vpop.f32.mrf.mxu0
        %v1070 = vadd.f32 0.0, %v1069
        %v1071 = vpop.f32.mrf.mxu0
        %1072 = vmatprep.mubr.f32.mxu0 0.0
        %1073 = vmatmul.mubr.f32.gmra.mxu0 %v815
        %v1074 = vpop.f32.mrf.mxu0
        %v1075 = vadd.f32 0.0, %v1074
        %v1076 = vpop.f32.mrf.mxu0
        %1077 = vmatprep.mubr.f32.mxu0 0.0
        %1078 = vmatmul.mubr.f32.gmra.mxu0 %v818
        %v1079 = vpop.f32.mrf.mxu0
        %v1080 = vadd.f32 0.0, %v1079
        %v1081 = vpop.f32.mrf.mxu0
        %1082 = vmatprep.mubr.f32.mxu0 0.0
        %1083 = vmatmul.mubr.f32.gmra.mxu0 %v821
        %v1084 = vpop.f32.mrf.mxu0
        %v1085 = vadd.f32 0.0, %v1084
        %v1086 = vpop.f32.mrf.mxu0
        %1087 = vmatprep.mubr.f32.mxu0 0.0
        %1088 = vmatmul.mubr.f32.gmra.mxu0 %v824
        %v1089 = vpop.f32.mrf.mxu0
        %v1090 = vadd.f32 0.0, %v1089
        %v1091 = vpop.f32.mrf.mxu0
        %1092 = vmatprep.mubr.f32.mxu0 0.0
        %1093 = vmatmul.mubr.f32.gmra.mxu0 %v827
        %v1094 = vpop.f32.mrf.mxu0
        %v1095 = vadd.f32 0.0, %v1094
        %v1096 = vpop.f32.mrf.mxu0
        %1097 = vmatprep.mubr.f32.mxu0 0.0
        %1098 = vmatmul.mubr.f32.gmra.mxu0 %v830
        %v1099 = vpop.f32.mrf.mxu0
        %v1100 = vadd.f32 0.0, %v1099
        %v1101 = vpop.f32.mrf.mxu0
        %1102 = vmatprep.mubr.f32.mxu0 0.0
        %1103 = vmatmul.mubr.f32.gmra.mxu0 %v833
        %v1104 = vpop.f32.mrf.mxu0
        %v1105 = vadd.f32 0.0, %v1104
        %v1106 = vpop.f32.mrf.mxu0
        %1107 = vmatprep.mubr.f32.mxu0 0.0
        %1108 = vmatmul.mubr.f32.gmra.mxu0 %v836
        %v1109 = vpop.f32.mrf.mxu0
        %v1110 = vadd.f32 0.0, %v1109
        %v1111 = vpop.f32.mrf.mxu0
        %1112 = vmatprep.mubr.f32.mxu0 0.0
        %1113 = vmatmul.mubr.f32.gmra.mxu0 %v839
        %v1114 = vpop.f32.mrf.mxu0
        %v1115 = vadd.f32 0.0, %v1114
        %v1116 = vpop.f32.mrf.mxu0
        %1117 = vmatprep.mubr.f32.mxu0 0.0
        %1118 = vmatmul.mubr.f32.gmra.mxu0 %v842
        %v1119 = vpop.f32.mrf.mxu0
        %v1120 = vadd.f32 0.0, %v1119
        %v1121 = vpop.f32.mrf.mxu0
        %1122 = vmatprep.mubr.f32.mxu0 0.0
        %1123 = vmatmul.mubr.f32.gmra.mxu0 %v845
        %v1124 = vpop.f32.mrf.mxu0
        %v1125 = vadd.f32 0.0, %v1124
        %v1126 = vpop.f32.mrf.mxu0
        %1127 = vmatprep.mubr.f32.mxu0 0.0
        %1128 = vmatmul.mubr.f32.gmra.mxu0 %v848
        %v1129 = vpop.f32.mrf.mxu0
        %v1130 = vadd.f32 0.0, %v1129
        %v1131 = vpop.f32.mrf.mxu0
        %1132 = vmatprep.mubr.f32.mxu0 0.0
        %1133 = vmatmul.mubr.f32.gmra.mxu0 %v851
        %v1134 = vpop.f32.mrf.mxu0
        %v1135 = vadd.f32 0.0, %v1134
        %v1136 = vpop.f32.mrf.mxu0
        %1137 = vmatprep.mubr.f32.mxu0 0.0
        %1138 = vmatmul.mubr.f32.gmra.mxu0 %v854
        %v1139 = vpop.f32.mrf.mxu0
        %v1140 = vadd.f32 0.0, %v1139
        %v1141 = vpop.f32.mrf.mxu0
        %1142 = vmatprep.mubr.f32.mxu0 0.0
        %1143 = vmatmul.mubr.f32.gmra.mxu0 %v857
        %v1144 = vpop.f32.mrf.mxu0
        %v1145 = vadd.f32 0.0, %v1144
        %v1146 = vpop.f32.mrf.mxu0
        %1147 = vmatprep.mubr.f32.mxu0 0.0
        %1148 = vmatmul.mubr.f32.gmra.mxu0 %v860
        %v1149 = vpop.f32.mrf.mxu0
        %v1150 = vadd.f32 0.0, %v1149
        %v1151 = vpop.f32.mrf.mxu0
        %1152 = vmatprep.mubr.f32.mxu0 0.0
        %1153 = vmatmul.mubr.f32.gmra.mxu0 %v863
        %v1154 = vpop.f32.mrf.mxu0
        %v1155 = vadd.f32 0.0, %v1154
        %v1156 = vpop.f32.mrf.mxu0
        %1157 = vmatprep.mubr.f32.mxu0 0.0
        %1158 = vmatmul.mubr.f32.gmra.mxu0 %v866
        %v1159 = vpop.f32.mrf.mxu0
        %v1160 = vadd.f32 0.0, %v1159
        %v1161 = vpop.f32.mrf.mxu0
        %1162 = vmatprep.mubr.f32.mxu0 0.0
        %1163 = vmatmul.mubr.f32.gmra.mxu0 %v869
        %v1164 = vpop.f32.mrf.mxu0
        %v1165 = vadd.f32 0.0, %v1164
        %v1166 = vpop.f32.mrf.mxu0
        %1167 = vmatprep.mubr.f32.mxu0 0.0
        %1168 = vmatmul.mubr.f32.gmra.mxu0 %v872
        %v1169 = vpop.f32.mrf.mxu0
        %v1170 = vadd.f32 0.0, %v1169
        %v1171 = vpop.f32.mrf.mxu0
        %1172 = vmatprep.mubr.f32.mxu0 0.0
        %1173 = vmatmul.mubr.f32.gmra.mxu0 %v875
        %v1174 = vpop.f32.mrf.mxu0
        %v1175 = vadd.f32 0.0, %v1174
        %v1176 = vpop.f32.mrf.mxu0
        %1177 = vmatprep.mubr.f32.mxu0 0.0
        %1178 = vmatmul.mubr.f32.gmra.mxu0 %v878
        %v1179 = vpop.f32.mrf.mxu0
        %v1180 = vadd.f32 0.0, %v1179
        %v1181 = vpop.f32.mrf.mxu0
        %1182 = vmatprep.mubr.f32.mxu0 0.0
        %1183 = vmatmul.mubr.f32.gmra.mxu0 %v881
        %v1184 = vpop.f32.mrf.mxu0
        %v1185 = vadd.f32 0.0, %v1184
        %v1186 = vpop.f32.mrf.mxu0
        %1187 = vmatprep.mubr.f32.mxu0 0.0
        %1188 = vmatmul.mubr.f32.gmra.mxu0 %v884
        %v1189 = vpop.f32.mrf.mxu0
        %v1190 = vadd.f32 0.0, %v1189
        %v1191 = vpop.f32.mrf.mxu0
        %1192 = vmatprep.mubr.f32.mxu0 0.0
        %1193 = vmatmul.mubr.f32.gmra.mxu0 %v887
        %v1194 = vpop.f32.mrf.mxu0
        %v1195 = vadd.f32 0.0, %v1194
        %v1196 = vpop.f32.mrf.mxu0
        %1197 = vmatprep.mubr.f32.mxu0 0.0
        %1198 = vmatmul.mubr.f32.gmra.mxu0 %v890
        %v1199 = vpop.f32.mrf.mxu0
        %v1200 = vadd.f32 0.0, %v1199
        %v1201 = vpop.f32.mrf.mxu0
        %1202 = vmatprep.mubr.f32.mxu0 0.0
        %1203 = vmatmul.mubr.f32.gmra.mxu0 %v893
        %v1204 = vpop.f32.mrf.mxu0
        %v1205 = vadd.f32 0.0, %v1204
        %v1206 = vpop.f32.mrf.mxu0
        %1207 = vmatprep.mubr.f32.mxu0 0.0
        %1208 = vmatmul.mubr.f32.gmra.mxu0 %v896
        %v1209 = vpop.f32.mrf.mxu0
        %v1210 = vadd.f32 0.0, %v1209
        %v1211 = vpop.f32.mrf.mxu0
        %1212 = vmatprep.mubr.f32.mxu0 0.0
        %1213 = vmatmul.mubr.f32.gmra.mxu0 %v899
        %v1214 = vpop.f32.mrf.mxu0
        %v1215 = vadd.f32 0.0, %v1214
        %v1216 = vpop.f32.mrf.mxu0
        %1217 = vmatprep.mubr.f32.mxu0 0.0
        %1218 = vmatmul.mubr.f32.gmra.mxu0 %v902
        %v1219 = vpop.f32.mrf.mxu0
        %v1220 = vadd.f32 0.0, %v1219
        %v1221 = vpop.f32.mrf.mxu0
        %1222 = vmatprep.mubr.f32.mxu0 0.0
        %1223 = vmatmul.mubr.f32.gmra.mxu0 %v905
        %v1224 = vpop.f32.mrf.mxu0
        %v1225 = vadd.f32 0.0, %v1224
        %v1226 = vpop.f32.mrf.mxu0
        %1227 = vmatprep.mubr.f32.mxu0 0.0
        %1228 = vmatmul.mubr.f32.gmra.mxu0 %v908
        %v1229 = vpop.f32.mrf.mxu0
        %v1230 = vadd.f32 0.0, %v1229
        %v1231 = vpop.f32.mrf.mxu0
        %1232 = vmatprep.mubr.f32.mxu0 0.0
        %1233 = vmatmul.mubr.f32.gmra.mxu0 %v911
        %v1234 = vpop.f32.mrf.mxu0
        %v1235 = vadd.f32 0.0, %v1234
        %v1236 = vpop.f32.mrf.mxu0
        %1237 = vmatprep.mubr.f32.mxu0 0.0
        %1238 = vmatmul.mubr.f32.gmra.mxu0 %v914
        %v1239 = vpop.f32.mrf.mxu0
        %v1240 = vadd.f32 0.0, %v1239
        %v1241 = vpop.f32.mrf.mxu0
        %1242 = vmatprep.mubr.f32.mxu0 0.0
        %1243 = vmatmul.mubr.f32.gmra.mxu0 %v917
        %v1244 = vpop.f32.mrf.mxu0
        %v1245 = vadd.f32 0.0, %v1244
        %v1246 = vpop.f32.mrf.mxu0
        %1247 = vmatprep.mubr.f32.mxu0 0.0
        %1248 = vmatmul.mubr.f32.gmra.mxu0 %v920
        %v1249 = vpop.f32.mrf.mxu0
        %v1250 = vadd.f32 0.0, %v1249
        %v1251 = vpop.f32.mrf.mxu0
        %1252 = vmatprep.mubr.f32.mxu0 0.0
        %1253 = vmatmul.mubr.f32.gmra.mxu0 %v923
        %v1254 = vpop.f32.mrf.mxu0
        %v1255 = vadd.f32 0.0, %v1254
        %v1256 = vpop.f32.mrf.mxu0
        %1257 = vmatprep.mubr.f32.mxu0 0.0
        %1258 = vmatmul.mubr.f32.gmra.mxu0 %v926
        %v1259 = vpop.f32.mrf.mxu0
        %v1260 = vadd.f32 0.0, %v1259
        %v1261 = vpop.f32.mrf.mxu0
        %1262 = vmatprep.mubr.f32.mxu0 0.0
        %1263 = vmatmul.mubr.f32.gmra.mxu0 %v929
        %v1264 = vpop.f32.mrf.mxu0
        %v1265 = vadd.f32 0.0, %v1264
        %v1266 = vpop.f32.mrf.mxu0
        %1267 = vmatprep.mubr.f32.mxu0 0.0
        %1268 = vmatmul.mubr.f32.gmra.mxu0 %v932
        %v1269 = vpop.f32.mrf.mxu0
        %v1270 = vadd.f32 0.0, %v1269
        %v1271 = vpop.f32.mrf.mxu0
        %1272 = vmatprep.mubr.f32.mxu0 0.0
        %1273 = vmatmul.mubr.f32.gmra.mxu0 %v935
        %v1274 = vpop.f32.mrf.mxu0
        %v1275 = vadd.f32 0.0, %v1274
        %v1276 = vpop.f32.mrf.mxu0
        %1277 = vmatprep.mubr.f32.mxu0 0.0
        %1278 = vmatmul.mubr.f32.gmra.mxu0 %v938
        %v1279 = vpop.f32.mrf.mxu0
        %v1280 = vadd.f32 0.0, %v1279
        %v1281 = vpop.f32.mrf.mxu0
        %1282 = vmatprep.mubr.f32.mxu0 0.0
        %1283 = vmatmul.mubr.f32.gmra.mxu0 %v941
        %v1284 = vpop.f32.mrf.mxu0
        %v1285 = vadd.f32 0.0, %v1284
        %v1286 = vpop.f32.mrf.mxu0
        %1287 = vmatprep.mubr.f32.mxu0 0.0
        %1288 = vmatmul.mubr.f32.gmra.mxu0 %v944
        %v1289 = vpop.f32.mrf.mxu0
        %v1290 = vadd.f32 0.0, %v1289
        %v1291 = vpop.f32.mrf.mxu0
        %1292 = vmatprep.mubr.f32.mxu0 0.0
        %1293 = vmatmul.mubr.f32.gmra.mxu0 %v947
        %v1294 = vpop.f32.mrf.mxu0
        %v1295 = vadd.f32 0.0, %v1294
        %v1296 = vpop.f32.mrf.mxu0
        %1297 = vmatprep.mubr.f32.mxu0 0.0
        %1298 = vmatmul.mubr.f32.gmra.mxu0 %v950
        %v1299 = vpop.f32.mrf.mxu0
        %v1300 = vadd.f32 0.0, %v1299
        %v1301 = vpop.f32.mrf.mxu0
        %1302 = vmatprep.mubr.f32.mxu0 0.0
        %1303 = vmatmul.mubr.f32.gmra.mxu0 %v953
        %v1304 = vpop.f32.mrf.mxu0
        %v1305 = vadd.f32 0.0, %v1304
        %v1306 = vpop.f32.mrf.mxu0
        %1307 = vmatprep.mubr.f32.mxu0 0.0
        %1308 = vmatmul.mubr.f32.gmra.mxu0 %v956
        %v1309 = vpop.f32.mrf.mxu0
        %v1310 = vadd.f32 0.0, %v1309
        %v1311 = vpop.f32.mrf.mxu0
        %1312 = vmatprep.mubr.f32.mxu0 0.0
        %1313 = vmatmul.mubr.f32.gmra.mxu0 %v959
        %v1314 = vpop.f32.mrf.mxu0
        %v1315 = vadd.f32 0.0, %v1314
        %v1316 = vpop.f32.mrf.mxu0
        %1317 = vmatprep.mubr.f32.mxu0 0.0
        %1318 = vmatmul.mubr.f32.gmra.mxu0 %v962
        %v1319 = vpop.f32.mrf.mxu0
        %v1320 = vadd.f32 0.0, %v1319
        %v1321 = vpop.f32.mrf.mxu0
        %1322 = vmatprep.mubr.f32.mxu0 0.0
        %1323 = vmatmul.mubr.f32.gmra.mxu0 %v965
        %v1324 = vpop.f32.mrf.mxu0
        %v1325 = vadd.f32 0.0, %v1324
        %v1326 = vpop.f32.mrf.mxu0
        %1327 = vmatprep.mubr.f32.mxu0 0.0
        %1328 = vmatmul.mubr.f32.gmra.mxu0 %v968
        %v1329 = vpop.f32.mrf.mxu0
        %v1330 = vadd.f32 0.0, %v1329
        %v1331 = vpop.f32.mrf.mxu0
        %1332 = vmatprep.mubr.f32.mxu0 0.0
        %1333 = vmatmul.mubr.f32.gmra.mxu0 %v971
        %v1334 = vpop.f32.mrf.mxu0
        %v1335 = vadd.f32 0.0, %v1334
        %v1336 = vpop.f32.mrf.mxu0
        %1337 = vdwg.mxu0
        %v1339 = vsel %vm792, %v672, 0
        %v1342 = vsel %vm792, %v673, 0
        %v1345 = vsel %vm792, %v674, 0
        %v1348 = vsel %vm792, %v675, 0
        %v1351 = vsel %vm792, %v676, 0
        %v1354 = vsel %vm792, %v677, 0
        %v1357 = vsel %vm792, %v678, 0
        %v1360 = vsel %vm792, %v679, 0
        %v1363 = vsel %vm792, %v680, 0
        %v1366 = vsel %vm792, %v681, 0
        %v1369 = vsel %vm792, %v682, 0
        %v1372 = vsel %vm792, %v683, 0
        %v1375 = vsel %vm792, %v684, 0
        %v1378 = vsel %vm792, %v685, 0
        %v1381 = vsel %vm792, %v686, 0
        %v1384 = vsel %vm792, %v687, 0
        %v1387 = vsel %vm792, %v688, 0
        %v1390 = vsel %vm792, %v689, 0
        %v1393 = vsel %vm792, %v690, 0
        %v1396 = vsel %vm792, %v691, 0
        %v1399 = vsel %vm792, %v692, 0
        %v1402 = vsel %vm792, %v693, 0
        %v1405 = vsel %vm792, %v694, 0
        %v1408 = vsel %vm792, %v695, 0
        %v1411 = vsel %vm792, %v696, 0
        %v1414 = vsel %vm792, %v697, 0
        %v1417 = vsel %vm792, %v698, 0
        %v1420 = vsel %vm792, %v699, 0
        %v1423 = vsel %vm792, %v700, 0
        %v1426 = vsel %vm792, %v701, 0
        %v1429 = vsel %vm792, %v702, 0
        %v1432 = vsel %vm792, %v703, 0
        %v1435 = vsel %vm792, %v704, 0
        %v1438 = vsel %vm792, %v705, 0
        %v1441 = vsel %vm792, %v706, 0
        %v1444 = vsel %vm792, %v707, 0
        %v1447 = vsel %vm792, %v708, 0
        %v1450 = vsel %vm792, %v709, 0
        %v1453 = vsel %vm792, %v710, 0
        %v1456 = vsel %vm792, %v711, 0
        %v1459 = vsel %vm792, %v712, 0
        %v1462 = vsel %vm792, %v713, 0
        %v1465 = vsel %vm792, %v714, 0
        %v1468 = vsel %vm792, %v715, 0
        %v1471 = vsel %vm792, %v716, 0
        %v1474 = vsel %vm792, %v717, 0
        %v1477 = vsel %vm792, %v718, 0
        %v1480 = vsel %vm792, %v719, 0
        %v1483 = vsel %vm792, %v720, 0
        %v1486 = vsel %vm792, %v721, 0
        %v1489 = vsel %vm792, %v722, 0
        %v1492 = vsel %vm792, %v723, 0
        %v1495 = vsel %vm792, %v724, 0
        %v1498 = vsel %vm792, %v725, 0
        %v1501 = vsel %vm792, %v726, 0
        %v1504 = vsel %vm792, %v727, 0
        %v1507 = vsel %vm792, %v728, 0
        %v1510 = vsel %vm792, %v729, 0
        %v1513 = vsel %vm792, %v730, 0
        %v1516 = vsel %vm792, %v731, 0
        %1518 = vmatprep.subr.mxu0 0.0
        %1519 = vmatpush1.msra.mxu0 0.0
        %1520 = vmatprep.subr.mxu0 0.0
        %1521 = vmatpush1.msra.mxu0 %v469
        %1522 = vmatprep.subr.mxu0 0.0
        %1523 = vmatpush1.msra.mxu0 %v464
        %1524 = vmatprep.subr.mxu0 0.0
        %1525 = vmatpush1.msra.mxu0 %v459
        %1526 = vmatprep.subr.mxu0 0.0
        %1527 = vmatpush1.msra.mxu0 %v454
        %1528 = vmatprep.subr.mxu0 0.0
        %1529 = vmatpush1.msra.mxu0 %v449
        %1530 = vmatprep.subr.mxu0 0.0
        %1531 = vmatpush1.msra.mxu0 %v444
        %1532 = vmatprep.subr.mxu0 0.0
        %1533 = vmatpush1.msra.mxu0 %v439
        %1534 = vmatprep.subr.mxu0 0.0
        %1535 = vmatpush1.msra.mxu0 %v434
        %1536 = vmatprep.subr.mxu0 0.0
        %1537 = vmatpush1.msra.mxu0 %v429
        %1538 = vmatprep.subr.mxu0 0.0
        %1539 = vmatpush1.msra.mxu0 %v424
        %1540 = vmatprep.subr.mxu0 0.0
        %1541 = vmatpush1.msra.mxu0 %v419
        %1542 = vmatprep.subr.mxu0 0.0
        %1543 = vmatpush1.msra.mxu0 %v414
        %1544 = vmatprep.subr.mxu0 0.0
        %1545 = vmatpush1.msra.mxu0 %v409
        %1546 = vmatprep.subr.mxu0 0.0
        %1547 = vmatpush1.msra.mxu0 %v404
        %1548 = vmatprep.subr.mxu0 0.0
        %1549 = vmatpush1.msra.mxu0 %v399
        %1550 = vmatprep.subr.mxu0 0.0
        %1551 = vmatpush2.msra.mxu0 0.0
        %1552 = vmatprep.subr.mxu0 0.0
        %1553 = vmatpush2.msra.mxu0 0.0
        %1554 = vmatprep.subr.mxu0 0.0
        %1555 = vmatpush2.msra.mxu0 0.0
        %1556 = vmatprep.subr.mxu0 0.0
        %1557 = vmatpush2.msra.mxu0 0.0
        %1558 = vmatprep.subr.mxu0 0.0
        %1559 = vmatpush2.msra.mxu0 0.0
        %1560 = vmatprep.subr.mxu0 0.0
        %1561 = vmatpush2.msra.mxu0 0.0
        %1562 = vmatprep.subr.mxu0 0.0
        %1563 = vmatpush2.msra.mxu0 0.0
        %1564 = vmatprep.subr.mxu0 0.0
        %1565 = vmatpush2.msra.mxu0 0.0
        %1566 = vmatprep.subr.mxu0 0.0
        %1567 = vmatpush2.msra.mxu0 0.0
        %1568 = vmatprep.subr.mxu0 0.0
        %1569 = vmatpush2.msra.mxu0 0.0
        %1570 = vmatprep.subr.mxu0 0.0
        %1571 = vmatpush2.msra.mxu0 0.0
        %1572 = vmatprep.subr.mxu0 0.0
        %1573 = vmatpush2.msra.mxu0 0.0
        %1574 = vmatprep.subr.mxu0 0.0
        %1575 = vmatpush2.msra.mxu0 0.0
        %1576 = vmatprep.subr.mxu0 0.0
        %1577 = vmatpush2.msra.mxu0 0.0
        %1578 = vmatprep.subr.mxu0 0.0
        %1579 = vmatpush2.msra.mxu0 0.0
        %1580 = vmatprep.subr.mxu0 0.0
        %1581 = vmatpush2.msra.mxu0 0.0
        %1582 = vmatprep.mubr.f32.mxu0 0.0
        %1583 = vmatmul.mubr.f32.gmra.mxu0 %v1339
        %v1584 = vpop.f32.mrf.mxu0
        %v1585 = vadd.f32 %v1040, %v1584
        %v1586 = vpop.f32.mrf.mxu0
        %1587 = vmatprep.mubr.f32.mxu0 0.0
        %1588 = vmatmul.mubr.f32.gmra.mxu0 %v1342
        %v1589 = vpop.f32.mrf.mxu0
        %v1590 = vadd.f32 %v1045, %v1589
        %v1591 = vpop.f32.mrf.mxu0
        %1592 = vmatprep.mubr.f32.mxu0 0.0
        %1593 = vmatmul.mubr.f32.gmra.mxu0 %v1345
        %v1594 = vpop.f32.mrf.mxu0
        %v1595 = vadd.f32 %v1050, %v1594
        %v1596 = vpop.f32.mrf.mxu0
        %1597 = vmatprep.mubr.f32.mxu0 0.0
        %1598 = vmatmul.mubr.f32.gmra.mxu0 %v1348
        %v1599 = vpop.f32.mrf.mxu0
        %v1600 = vadd.f32 %v1055, %v1599
        %v1601 = vpop.f32.mrf.mxu0
        %1602 = vmatprep.mubr.f32.mxu0 0.0
        %1603 = vmatmul.mubr.f32.gmra.mxu0 %v1351
        %v1604 = vpop.f32.mrf.mxu0
        %v1605 = vadd.f32 %v1060, %v1604
        %v1606 = vpop.f32.mrf.mxu0
        %1607 = vmatprep.mubr.f32.mxu0 0.0
        %1608 = vmatmul.mubr.f32.gmra.mxu0 %v1354
        %v1609 = vpop.f32.mrf.mxu0
        %v1610 = vadd.f32 %v1065, %v1609
        %v1611 = vpop.f32.mrf.mxu0
        %1612 = vmatprep.mubr.f32.mxu0 0.0
        %1613 = vmatmul.mubr.f32.gmra.mxu0 %v1357
        %v1614 = vpop.f32.mrf.mxu0
        %v1615 = vadd.f32 %v1070, %v1614
        %v1616 = vpop.f32.mrf.mxu0
        %1617 = vmatprep.mubr.f32.mxu0 0.0
        %1618 = vmatmul.mubr.f32.gmra.mxu0 %v1360
        %v1619 = vpop.f32.mrf.mxu0
        %v1620 = vadd.f32 %v1075, %v1619
        %v1621 = vpop.f32.mrf.mxu0
        %1622 = vmatprep.mubr.f32.mxu0 0.0
        %1623 = vmatmul.mubr.f32.gmra.mxu0 %v1363
        %v1624 = vpop.f32.mrf.mxu0
        %v1625 = vadd.f32 %v1080, %v1624
        %v1626 = vpop.f32.mrf.mxu0
        %1627 = vmatprep.mubr.f32.mxu0 0.0
        %1628 = vmatmul.mubr.f32.gmra.mxu0 %v1366
        %v1629 = vpop.f32.mrf.mxu0
        %v1630 = vadd.f32 %v1085, %v1629
        %v1631 = vpop.f32.mrf.mxu0
        %1632 = vmatprep.mubr.f32.mxu0 0.0
        %1633 = vmatmul.mubr.f32.gmra.mxu0 %v1369
        %v1634 = vpop.f32.mrf.mxu0
        %v1635 = vadd.f32 %v1090, %v1634
        %v1636 = vpop.f32.mrf.mxu0
        %1637 = vmatprep.mubr.f32.mxu0 0.0
        %1638 = vmatmul.mubr.f32.gmra.mxu0 %v1372
        %v1639 = vpop.f32.mrf.mxu0
        %v1640 = vadd.f32 %v1095, %v1639
        %v1641 = vpop.f32.mrf.mxu0
        %1642 = vmatprep.mubr.f32.mxu0 0.0
        %1643 = vmatmul.mubr.f32.gmra.mxu0 %v1375
        %v1644 = vpop.f32.mrf.mxu0
        %v1645 = vadd.f32 %v1100, %v1644
        %v1646 = vpop.f32.mrf.mxu0
        %1647 = vmatprep.mubr.f32.mxu0 0.0
        %1648 = vmatmul.mubr.f32.gmra.mxu0 %v1378
        %v1649 = vpop.f32.mrf.mxu0
        %v1650 = vadd.f32 %v1105, %v1649
        %v1651 = vpop.f32.mrf.mxu0
        %1652 = vmatprep.mubr.f32.mxu0 0.0
        %1653 = vmatmul.mubr.f32.gmra.mxu0 %v1381
        %v1654 = vpop.f32.mrf.mxu0
        %v1655 = vadd.f32 %v1110, %v1654
        %v1656 = vpop.f32.mrf.mxu0
        %1657 = vmatprep.mubr.f32.mxu0 0.0
        %1658 = vmatmul.mubr.f32.gmra.mxu0 %v1384
        %v1659 = vpop.f32.mrf.mxu0
        %v1660 = vadd.f32 %v1115, %v1659
        %v1661 = vpop.f32.mrf.mxu0
        %1662 = vmatprep.mubr.f32.mxu0 0.0
        %1663 = vmatmul.mubr.f32.gmra.mxu0 %v1387
        %v1664 = vpop.f32.mrf.mxu0
        %v1665 = vadd.f32 %v1120, %v1664
        %v1666 = vpop.f32.mrf.mxu0
        %1667 = vmatprep.mubr.f32.mxu0 0.0
        %1668 = vmatmul.mubr.f32.gmra.mxu0 %v1390
        %v1669 = vpop.f32.mrf.mxu0
        %v1670 = vadd.f32 %v1125, %v1669
        %v1671 = vpop.f32.mrf.mxu0
        %1672 = vmatprep.mubr.f32.mxu0 0.0
        %1673 = vmatmul.mubr.f32.gmra.mxu0 %v1393
        %v1674 = vpop.f32.mrf.mxu0
        %v1675 = vadd.f32 %v1130, %v1674
        %v1676 = vpop.f32.mrf.mxu0
        %1677 = vmatprep.mubr.f32.mxu0 0.0
        %1678 = vmatmul.mubr.f32.gmra.mxu0 %v1396
        %v1679 = vpop.f32.mrf.mxu0
        %v1680 = vadd.f32 %v1135, %v1679
        %v1681 = vpop.f32.mrf.mxu0
        %1682 = vmatprep.mubr.f32.mxu0 0.0
        %1683 = vmatmul.mubr.f32.gmra.mxu0 %v1399
        %v1684 = vpop.f32.mrf.mxu0
        %v1685 = vadd.f32 %v1140, %v1684
        %v1686 = vpop.f32.mrf.mxu0
        %1687 = vmatprep.mubr.f32.mxu0 0.0
        %1688 = vmatmul.mubr.f32.gmra.mxu0 %v1402
        %v1689 = vpop.f32.mrf.mxu0
        %v1690 = vadd.f32 %v1145, %v1689
        %v1691 = vpop.f32.mrf.mxu0
        %1692 = vmatprep.mubr.f32.mxu0 0.0
        %1693 = vmatmul.mubr.f32.gmra.mxu0 %v1405
        %v1694 = vpop.f32.mrf.mxu0
        %v1695 = vadd.f32 %v1150, %v1694
        %v1696 = vpop.f32.mrf.mxu0
        %1697 = vmatprep.mubr.f32.mxu0 0.0
        %1698 = vmatmul.mubr.f32.gmra.mxu0 %v1408
        %v1699 = vpop.f32.mrf.mxu0
        %v1700 = vadd.f32 %v1155, %v1699
        %v1701 = vpop.f32.mrf.mxu0
        %1702 = vmatprep.mubr.f32.mxu0 0.0
        %1703 = vmatmul.mubr.f32.gmra.mxu0 %v1411
        %v1704 = vpop.f32.mrf.mxu0
        %v1705 = vadd.f32 %v1160, %v1704
        %v1706 = vpop.f32.mrf.mxu0
        %1707 = vmatprep.mubr.f32.mxu0 0.0
        %1708 = vmatmul.mubr.f32.gmra.mxu0 %v1414
        %v1709 = vpop.f32.mrf.mxu0
        %v1710 = vadd.f32 %v1165, %v1709
        %v1711 = vpop.f32.mrf.mxu0
        %1712 = vmatprep.mubr.f32.mxu0 0.0
        %1713 = vmatmul.mubr.f32.gmra.mxu0 %v1417
        %v1714 = vpop.f32.mrf.mxu0
        %v1715 = vadd.f32 %v1170, %v1714
        %v1716 = vpop.f32.mrf.mxu0
        %1717 = vmatprep.mubr.f32.mxu0 0.0
        %1718 = vmatmul.mubr.f32.gmra.mxu0 %v1420
        %v1719 = vpop.f32.mrf.mxu0
        %v1720 = vadd.f32 %v1175, %v1719
        %v1721 = vpop.f32.mrf.mxu0
        %1722 = vmatprep.mubr.f32.mxu0 0.0
        %1723 = vmatmul.mubr.f32.gmra.mxu0 %v1423
        %v1724 = vpop.f32.mrf.mxu0
        %v1725 = vadd.f32 %v1180, %v1724
        %v1726 = vpop.f32.mrf.mxu0
        %1727 = vmatprep.mubr.f32.mxu0 0.0
        %1728 = vmatmul.mubr.f32.gmra.mxu0 %v1426
        %v1729 = vpop.f32.mrf.mxu0
        %v1730 = vadd.f32 %v1185, %v1729
        %v1731 = vpop.f32.mrf.mxu0
        %1732 = vmatprep.mubr.f32.mxu0 0.0
        %1733 = vmatmul.mubr.f32.gmra.mxu0 %v1429
        %v1734 = vpop.f32.mrf.mxu0
        %v1735 = vadd.f32 %v1190, %v1734
        %v1736 = vpop.f32.mrf.mxu0
        %1737 = vmatprep.mubr.f32.mxu0 0.0
        %1738 = vmatmul.mubr.f32.gmra.mxu0 %v1432
        %v1739 = vpop.f32.mrf.mxu0
        %v1740 = vadd.f32 %v1195, %v1739
        %v1741 = vpop.f32.mrf.mxu0
        %1742 = vmatprep.mubr.f32.mxu0 0.0
        %1743 = vmatmul.mubr.f32.gmra.mxu0 %v1435
        %v1744 = vpop.f32.mrf.mxu0
        %v1745 = vadd.f32 %v1200, %v1744
        %v1746 = vpop.f32.mrf.mxu0
        %1747 = vmatprep.mubr.f32.mxu0 0.0
        %1748 = vmatmul.mubr.f32.gmra.mxu0 %v1438
        %v1749 = vpop.f32.mrf.mxu0
        %v1750 = vadd.f32 %v1205, %v1749
        %v1751 = vpop.f32.mrf.mxu0
        %1752 = vmatprep.mubr.f32.mxu0 0.0
        %1753 = vmatmul.mubr.f32.gmra.mxu0 %v1441
        %v1754 = vpop.f32.mrf.mxu0
        %v1755 = vadd.f32 %v1210, %v1754
        %v1756 = vpop.f32.mrf.mxu0
        %1757 = vmatprep.mubr.f32.mxu0 0.0
        %1758 = vmatmul.mubr.f32.gmra.mxu0 %v1444
        %v1759 = vpop.f32.mrf.mxu0
        %v1760 = vadd.f32 %v1215, %v1759
        %v1761 = vpop.f32.mrf.mxu0
        %1762 = vmatprep.mubr.f32.mxu0 0.0
        %1763 = vmatmul.mubr.f32.gmra.mxu0 %v1447
        %v1764 = vpop.f32.mrf.mxu0
        %v1765 = vadd.f32 %v1220, %v1764
        %v1766 = vpop.f32.mrf.mxu0
        %1767 = vmatprep.mubr.f32.mxu0 0.0
        %1768 = vmatmul.mubr.f32.gmra.mxu0 %v1450
        %v1769 = vpop.f32.mrf.mxu0
        %v1770 = vadd.f32 %v1225, %v1769
        %v1771 = vpop.f32.mrf.mxu0
        %1772 = vmatprep.mubr.f32.mxu0 0.0
        %1773 = vmatmul.mubr.f32.gmra.mxu0 %v1453
        %v1774 = vpop.f32.mrf.mxu0
        %v1775 = vadd.f32 %v1230, %v1774
        %v1776 = vpop.f32.mrf.mxu0
        %1777 = vmatprep.mubr.f32.mxu0 0.0
        %1778 = vmatmul.mubr.f32.gmra.mxu0 %v1456
        %v1779 = vpop.f32.mrf.mxu0
        %v1780 = vadd.f32 %v1235, %v1779
        %v1781 = vpop.f32.mrf.mxu0
        %1782 = vmatprep.mubr.f32.mxu0 0.0
        %1783 = vmatmul.mubr.f32.gmra.mxu0 %v1459
        %v1784 = vpop.f32.mrf.mxu0
        %v1785 = vadd.f32 %v1240, %v1784
        %v1786 = vpop.f32.mrf.mxu0
        %1787 = vmatprep.mubr.f32.mxu0 0.0
        %1788 = vmatmul.mubr.f32.gmra.mxu0 %v1462
        %v1789 = vpop.f32.mrf.mxu0
        %v1790 = vadd.f32 %v1245, %v1789
        %v1791 = vpop.f32.mrf.mxu0
        %1792 = vmatprep.mubr.f32.mxu0 0.0
        %1793 = vmatmul.mubr.f32.gmra.mxu0 %v1465
        %v1794 = vpop.f32.mrf.mxu0
        %v1795 = vadd.f32 %v1250, %v1794
        %v1796 = vpop.f32.mrf.mxu0
        %1797 = vmatprep.mubr.f32.mxu0 0.0
        %1798 = vmatmul.mubr.f32.gmra.mxu0 %v1468
        %v1799 = vpop.f32.mrf.mxu0
        %v1800 = vadd.f32 %v1255, %v1799
        %v1801 = vpop.f32.mrf.mxu0
        %1802 = vmatprep.mubr.f32.mxu0 0.0
        %1803 = vmatmul.mubr.f32.gmra.mxu0 %v1471
        %v1804 = vpop.f32.mrf.mxu0
        %v1805 = vadd.f32 %v1260, %v1804
        %v1806 = vpop.f32.mrf.mxu0
        %1807 = vmatprep.mubr.f32.mxu0 0.0
        %1808 = vmatmul.mubr.f32.gmra.mxu0 %v1474
        %v1809 = vpop.f32.mrf.mxu0
        %v1810 = vadd.f32 %v1265, %v1809
        %v1811 = vpop.f32.mrf.mxu0
        %1812 = vmatprep.mubr.f32.mxu0 0.0
        %1813 = vmatmul.mubr.f32.gmra.mxu0 %v1477
        %v1814 = vpop.f32.mrf.mxu0
        %v1815 = vadd.f32 %v1270, %v1814
        %v1816 = vpop.f32.mrf.mxu0
        %1817 = vmatprep.mubr.f32.mxu0 0.0
        %1818 = vmatmul.mubr.f32.gmra.mxu0 %v1480
        %v1819 = vpop.f32.mrf.mxu0
        %v1820 = vadd.f32 %v1275, %v1819
        %v1821 = vpop.f32.mrf.mxu0
        %1822 = vmatprep.mubr.f32.mxu0 0.0
        %1823 = vmatmul.mubr.f32.gmra.mxu0 %v1483
        %v1824 = vpop.f32.mrf.mxu0
        %v1825 = vadd.f32 %v1280, %v1824
        %v1826 = vpop.f32.mrf.mxu0
        %1827 = vmatprep.mubr.f32.mxu0 0.0
        %1828 = vmatmul.mubr.f32.gmra.mxu0 %v1486
        %v1829 = vpop.f32.mrf.mxu0
        %v1830 = vadd.f32 %v1285, %v1829
        %v1831 = vpop.f32.mrf.mxu0
        %1832 = vmatprep.mubr.f32.mxu0 0.0
        %1833 = vmatmul.mubr.f32.gmra.mxu0 %v1489
        %v1834 = vpop.f32.mrf.mxu0
        %v1835 = vadd.f32 %v1290, %v1834
        %v1836 = vpop.f32.mrf.mxu0
        %1837 = vmatprep.mubr.f32.mxu0 0.0
        %1838 = vmatmul.mubr.f32.gmra.mxu0 %v1492
        %v1839 = vpop.f32.mrf.mxu0
        %v1840 = vadd.f32 %v1295, %v1839
        %v1841 = vpop.f32.mrf.mxu0
        %1842 = vmatprep.mubr.f32.mxu0 0.0
        %1843 = vmatmul.mubr.f32.gmra.mxu0 %v1495
        %v1844 = vpop.f32.mrf.mxu0
        %v1845 = vadd.f32 %v1300, %v1844
        %v1846 = vpop.f32.mrf.mxu0
        %1847 = vmatprep.mubr.f32.mxu0 0.0
        %1848 = vmatmul.mubr.f32.gmra.mxu0 %v1498
        %v1849 = vpop.f32.mrf.mxu0
        %v1850 = vadd.f32 %v1305, %v1849
        %v1851 = vpop.f32.mrf.mxu0
        %1852 = vmatprep.mubr.f32.mxu0 0.0
        %1853 = vmatmul.mubr.f32.gmra.mxu0 %v1501
        %v1854 = vpop.f32.mrf.mxu0
        %v1855 = vadd.f32 %v1310, %v1854
        %v1856 = vpop.f32.mrf.mxu0
        %1857 = vmatprep.mubr.f32.mxu0 0.0
        %1858 = vmatmul.mubr.f32.gmra.mxu0 %v1504
        %v1859 = vpop.f32.mrf.mxu0
        %v1860 = vadd.f32 %v1315, %v1859
        %v1861 = vpop.f32.mrf.mxu0
        %1862 = vmatprep.mubr.f32.mxu0 0.0
        %1863 = vmatmul.mubr.f32.gmra.mxu0 %v1507
        %v1864 = vpop.f32.mrf.mxu0
        %v1865 = vadd.f32 %v1320, %v1864
        %v1866 = vpop.f32.mrf.mxu0
        %1867 = vmatprep.mubr.f32.mxu0 0.0
        %1868 = vmatmul.mubr.f32.gmra.mxu0 %v1510
        %v1869 = vpop.f32.mrf.mxu0
        %v1870 = vadd.f32 %v1325, %v1869
        %v1871 = vpop.f32.mrf.mxu0
        %1872 = vmatprep.mubr.f32.mxu0 0.0
        %1873 = vmatmul.mubr.f32.gmra.mxu0 %v1513
        %v1874 = vpop.f32.mrf.mxu0
        %v1875 = vadd.f32 %v1330, %v1874
        %v1876 = vpop.f32.mrf.mxu0
        %1877 = vmatprep.mubr.f32.mxu0 0.0
        %1878 = vmatmul.mubr.f32.gmra.mxu0 %v1516
        %v1879 = vpop.f32.mrf.mxu0
        %v1880 = vadd.f32 %v1335, %v1879
        %v1881 = vpop.f32.mrf.mxu0
        %1882 = vdwg.mxu0
        %v1883 = vld [vmem:[%s5] sm:$0xff]
        %v1884 = vld [vmem:[%s5 + $0x8] sm:$0xff]
        %v1885 = vld [vmem:[%s5 + $0x10] sm:$0xff]
        %v1886 = vld [vmem:[%s5 + $0x18] sm:$0xff]
        %v1887 = vld [vmem:[%s5 + $0x20] sm:$0xff]
        %v1888 = vld [vmem:[%s5 + $0x28] sm:$0xff]
        %v1889 = vld [vmem:[%s5 + $0x30] sm:$0xff]
        %v1890 = vld [vmem:[%s5 + $0x38] sm:$0xff]
        %v1891 = vld [vmem:[%s5 + $0x40] sm:$0xff]
        %v1892 = vld [vmem:[%s5 + $0x48] sm:$0xff]
        %v1893 = vld [vmem:[%s5 + $0x50] sm:$0xff]
        %v1894 = vld [vmem:[%s5 + $0x58] sm:$0xff]
        %v1895 = vld [vmem:[%s5 + $0x60] sm:$0xff]
        %v1896 = vld [vmem:[%s5 + $0x68] sm:$0xff]
        %v1897 = vld [vmem:[%s5 + $0x70] sm:$0xff]
        %v1898 = vld [vmem:[%s5 + $0x78] sm:$0xff]
        %v1899 = vld [vmem:[%s5 + $0x80] sm:$0xff]
        %v1900 = vld [vmem:[%s5 + $0x88] sm:$0xff]
        %v1901 = vld [vmem:[%s5 + $0x90] sm:$0xff]
        %v1902 = vld [vmem:[%s5 + $0x98] sm:$0xff]
        %v1903 = vld [vmem:[%s5 + $0xa0] sm:$0xff]
        %v1904 = vld [vmem:[%s5 + $0xa8] sm:$0xff]
        %v1905 = vld [vmem:[%s5 + $0xb0] sm:$0xff]
        %v1906 = vld [vmem:[%s5 + $0xb8] sm:$0xff]
        %v1907 = vld [vmem:[%s5 + $0xc0] sm:$0xff]
        %v1908 = vld [vmem:[%s5 + $0xc8] sm:$0xff]
        %v1909 = vld [vmem:[%s5 + $0xd0] sm:$0xff]
        %v1910 = vld [vmem:[%s5 + $0xd8] sm:$0xff]
        %v1911 = vld [vmem:[%s5 + $0xe0] sm:$0xff]
        %v1912 = vld [vmem:[%s5 + $0xe8] sm:$0xff]
        %v1913 = vld [vmem:[%s5 + $0xf0] sm:$0xff]
        %v1914 = vld [vmem:[%s5 + $0xf8] sm:$0xff]
        %v1915 = vld [vmem:[%s5 + $0x100] sm:$0xff]
        %v1916 = vld [vmem:[%s5 + $0x108] sm:$0xff]
        %v1917 = vld [vmem:[%s5 + $0x110] sm:$0xff]
        %v1918 = vld [vmem:[%s5 + $0x118] sm:$0xff]
        %v1919 = vld [vmem:[%s5 + $0x120] sm:$0xff]
        %v1920 = vld [vmem:[%s5 + $0x128] sm:$0xff]
        %v1921 = vld [vmem:[%s5 + $0x130] sm:$0xff]
        %v1922 = vld [vmem:[%s5 + $0x138] sm:$0xff]
        %v1923 = vld [vmem:[%s5 + $0x140] sm:$0xff]
        %v1924 = vld [vmem:[%s5 + $0x148] sm:$0xff]
        %v1925 = vld [vmem:[%s5 + $0x150] sm:$0xff]
        %v1926 = vld [vmem:[%s5 + $0x158] sm:$0xff]
        %v1927 = vld [vmem:[%s5 + $0x160] sm:$0xff]
        %v1928 = vld [vmem:[%s5 + $0x168] sm:$0xff]
        %v1929 = vld [vmem:[%s5 + $0x170] sm:$0xff]
        %v1930 = vld [vmem:[%s5 + $0x178] sm:$0xff]
        %v1931 = vld [vmem:[%s5 + $0x180] sm:$0xff]
        %v1932 = vld [vmem:[%s5 + $0x188] sm:$0xff]
        %v1933 = vld [vmem:[%s5 + $0x190] sm:$0xff]
        %v1934 = vld [vmem:[%s5 + $0x198] sm:$0xff]
        %v1935 = vld [vmem:[%s5 + $0x1a0] sm:$0xff]
        %v1936 = vld [vmem:[%s5 + $0x1a8] sm:$0xff]
        %v1937 = vld [vmem:[%s5 + $0x1b0] sm:$0xff]
        %v1938 = vld [vmem:[%s5 + $0x1b8] sm:$0xff]
        %v1939 = vld [vmem:[%s5 + $0x1c0] sm:$0xff]
        %v1940 = vld [vmem:[%s5 + $0x1c8] sm:$0xff]
        %v1941 = vld [vmem:[%s5 + $0x1d0] sm:$0xff]
        %v1942 = vld [vmem:[%s5 + $0x1d8] sm:$0xff]
        %1944 = vset.pattern.permute.xlu0 0
        %1945 = vperm.xlu0 %1944, %v1883
        %v1946 = vpop.permute.xlu0 %1945
        %1949 = vset.pattern.permute.xlu0 0
        %1950 = vperm.xlu0 %1949, %v1884
        %v1951 = vpop.permute.xlu0 %1950
        %1954 = vset.pattern.permute.xlu0 0
        %1955 = vperm.xlu0 %1954, %v1885
        %v1956 = vpop.permute.xlu0 %1955
        %1959 = vset.pattern.permute.xlu0 0
        %1960 = vperm.xlu0 %1959, %v1886
        %v1961 = vpop.permute.xlu0 %1960
        %1964 = vset.pattern.permute.xlu0 0
        %1965 = vperm.xlu0 %1964, %v1887
        %v1966 = vpop.permute.xlu0 %1965
        %1969 = vset.pattern.permute.xlu0 0
        %1970 = vperm.xlu0 %1969, %v1888
        %v1971 = vpop.permute.xlu0 %1970
        %1974 = vset.pattern.permute.xlu0 0
        %1975 = vperm.xlu0 %1974, %v1889
        %v1976 = vpop.permute.xlu0 %1975
        %1979 = vset.pattern.permute.xlu0 0
        %1980 = vperm.xlu0 %1979, %v1890
        %v1981 = vpop.permute.xlu0 %1980
        %1984 = vset.pattern.permute.xlu0 0
        %1985 = vperm.xlu0 %1984, %v1891
        %v1986 = vpop.permute.xlu0 %1985
        %1989 = vset.pattern.permute.xlu0 0
        %1990 = vperm.xlu0 %1989, %v1892
        %v1991 = vpop.permute.xlu0 %1990
        %1994 = vset.pattern.permute.xlu0 0
        %1995 = vperm.xlu0 %1994, %v1893
        %v1996 = vpop.permute.xlu0 %1995
        %1999 = vset.pattern.permute.xlu0 0
        %2000 = vperm.xlu0 %1999, %v1894
        %v2001 = vpop.permute.xlu0 %2000
        %2004 = vset.pattern.permute.xlu0 0
        %2005 = vperm.xlu0 %2004, %v1895
        %v2006 = vpop.permute.xlu0 %2005
        %2009 = vset.pattern.permute.xlu0 0
        %2010 = vperm.xlu0 %2009, %v1896
        %v2011 = vpop.permute.xlu0 %2010
        %2014 = vset.pattern.permute.xlu0 0
        %2015 = vperm.xlu0 %2014, %v1897
        %v2016 = vpop.permute.xlu0 %2015
        %2019 = vset.pattern.permute.xlu0 0
        %2020 = vperm.xlu0 %2019, %v1898
        %v2021 = vpop.permute.xlu0 %2020
        %2024 = vset.pattern.permute.xlu0 0
        %2025 = vperm.xlu0 %2024, %v1899
        %v2026 = vpop.permute.xlu0 %2025
        %2029 = vset.pattern.permute.xlu0 0
        %2030 = vperm.xlu0 %2029, %v1900
        %v2031 = vpop.permute.xlu0 %2030
        %2034 = vset.pattern.permute.xlu0 0
        %2035 = vperm.xlu0 %2034, %v1901
        %v2036 = vpop.permute.xlu0 %2035
        %2039 = vset.pattern.permute.xlu0 0
        %2040 = vperm.xlu0 %2039, %v1902
        %v2041 = vpop.permute.xlu0 %2040
        %2044 = vset.pattern.permute.xlu0 0
        %2045 = vperm.xlu0 %2044, %v1903
        %v2046 = vpop.permute.xlu0 %2045
        %2049 = vset.pattern.permute.xlu0 0
        %2050 = vperm.xlu0 %2049, %v1904
        %v2051 = vpop.permute.xlu0 %2050
        %2054 = vset.pattern.permute.xlu0 0
        %2055 = vperm.xlu0 %2054, %v1905
        %v2056 = vpop.permute.xlu0 %2055
        %2059 = vset.pattern.permute.xlu0 0
        %2060 = vperm.xlu0 %2059, %v1906
        %v2061 = vpop.permute.xlu0 %2060
        %2064 = vset.pattern.permute.xlu0 0
        %2065 = vperm.xlu0 %2064, %v1907
        %v2066 = vpop.permute.xlu0 %2065
        %2069 = vset.pattern.permute.xlu0 0
        %2070 = vperm.xlu0 %2069, %v1908
        %v2071 = vpop.permute.xlu0 %2070
        %2074 = vset.pattern.permute.xlu0 0
        %2075 = vperm.xlu0 %2074, %v1909
        %v2076 = vpop.permute.xlu0 %2075
        %2079 = vset.pattern.permute.xlu0 0
        %2080 = vperm.xlu0 %2079, %v1910
        %v2081 = vpop.permute.xlu0 %2080
        %2084 = vset.pattern.permute.xlu0 0
        %2085 = vperm.xlu0 %2084, %v1911
        %v2086 = vpop.permute.xlu0 %2085
        %2089 = vset.pattern.permute.xlu0 0
        %2090 = vperm.xlu0 %2089, %v1912
        %v2091 = vpop.permute.xlu0 %2090
        %2094 = vset.pattern.permute.xlu0 0
        %2095 = vperm.xlu0 %2094, %v1913
        %v2096 = vpop.permute.xlu0 %2095
        %2099 = vset.pattern.permute.xlu0 0
        %2100 = vperm.xlu0 %2099, %v1914
        %v2101 = vpop.permute.xlu0 %2100
        %2104 = vset.pattern.permute.xlu0 0
        %2105 = vperm.xlu0 %2104, %v1915
        %v2106 = vpop.permute.xlu0 %2105
        %2109 = vset.pattern.permute.xlu0 0
        %2110 = vperm.xlu0 %2109, %v1916
        %v2111 = vpop.permute.xlu0 %2110
        %2114 = vset.pattern.permute.xlu0 0
        %2115 = vperm.xlu0 %2114, %v1917
        %v2116 = vpop.permute.xlu0 %2115
        %2119 = vset.pattern.permute.xlu0 0
        %2120 = vperm.xlu0 %2119, %v1918
        %v2121 = vpop.permute.xlu0 %2120
        %2124 = vset.pattern.permute.xlu0 0
        %2125 = vperm.xlu0 %2124, %v1919
        %v2126 = vpop.permute.xlu0 %2125
        %2129 = vset.pattern.permute.xlu0 0
        %2130 = vperm.xlu0 %2129, %v1920
        %v2131 = vpop.permute.xlu0 %2130
        %2134 = vset.pattern.permute.xlu0 0
        %2135 = vperm.xlu0 %2134, %v1921
        %v2136 = vpop.permute.xlu0 %2135
        %2139 = vset.pattern.permute.xlu0 0
        %2140 = vperm.xlu0 %2139, %v1922
        %v2141 = vpop.permute.xlu0 %2140
        %2144 = vset.pattern.permute.xlu0 0
        %2145 = vperm.xlu0 %2144, %v1923
        %v2146 = vpop.permute.xlu0 %2145
        %2149 = vset.pattern.permute.xlu0 0
        %2150 = vperm.xlu0 %2149, %v1924
        %v2151 = vpop.permute.xlu0 %2150
        %2154 = vset.pattern.permute.xlu0 0
        %2155 = vperm.xlu0 %2154, %v1925
        %v2156 = vpop.permute.xlu0 %2155
        %2159 = vset.pattern.permute.xlu0 0
        %2160 = vperm.xlu0 %2159, %v1926
        %v2161 = vpop.permute.xlu0 %2160
        %2164 = vset.pattern.permute.xlu0 0
        %2165 = vperm.xlu0 %2164, %v1927
        %v2166 = vpop.permute.xlu0 %2165
        %2169 = vset.pattern.permute.xlu0 0
        %2170 = vperm.xlu0 %2169, %v1928
        %v2171 = vpop.permute.xlu0 %2170
        %2174 = vset.pattern.permute.xlu0 0
        %2175 = vperm.xlu0 %2174, %v1929
        %v2176 = vpop.permute.xlu0 %2175
        %2179 = vset.pattern.permute.xlu0 0
        %2180 = vperm.xlu0 %2179, %v1930
        %v2181 = vpop.permute.xlu0 %2180
        %2184 = vset.pattern.permute.xlu0 0
        %2185 = vperm.xlu0 %2184, %v1931
        %v2186 = vpop.permute.xlu0 %2185
        %2189 = vset.pattern.permute.xlu0 0
        %2190 = vperm.xlu0 %2189, %v1932
        %v2191 = vpop.permute.xlu0 %2190
        %2194 = vset.pattern.permute.xlu0 0
        %2195 = vperm.xlu0 %2194, %v1933
        %v2196 = vpop.permute.xlu0 %2195
        %2199 = vset.pattern.permute.xlu0 0
        %2200 = vperm.xlu0 %2199, %v1934
        %v2201 = vpop.permute.xlu0 %2200
        %2204 = vset.pattern.permute.xlu0 0
        %2205 = vperm.xlu0 %2204, %v1935
        %v2206 = vpop.permute.xlu0 %2205
        %2209 = vset.pattern.permute.xlu0 0
        %2210 = vperm.xlu0 %2209, %v1936
        %v2211 = vpop.permute.xlu0 %2210
        %2214 = vset.pattern.permute.xlu0 0
        %2215 = vperm.xlu0 %2214, %v1937
        %v2216 = vpop.permute.xlu0 %2215
        %2219 = vset.pattern.permute.xlu0 0
        %2220 = vperm.xlu0 %2219, %v1938
        %v2221 = vpop.permute.xlu0 %2220
        %2224 = vset.pattern.permute.xlu0 0
        %2225 = vperm.xlu0 %2224, %v1939
        %v2226 = vpop.permute.xlu0 %2225
        %2229 = vset.pattern.permute.xlu0 0
        %2230 = vperm.xlu0 %2229, %v1940
        %v2231 = vpop.permute.xlu0 %2230
        %2234 = vset.pattern.permute.xlu0 0
        %2235 = vperm.xlu0 %2234, %v1941
        %v2236 = vpop.permute.xlu0 %2235
        %2239 = vset.pattern.permute.xlu0 0
        %2240 = vperm.xlu0 %2239, %v1942
        %v2241 = vpop.permute.xlu0 %2240
        %v2243 = vadd.f32 %v1585, %v1946
        %v2244 = vadd.f32 %v1590, %v1951
        %v2245 = vadd.f32 %v1595, %v1956
        %v2246 = vadd.f32 %v1600, %v1961
        %v2247 = vadd.f32 %v1605, %v1966
        %v2248 = vadd.f32 %v1610, %v1971
        %v2249 = vadd.f32 %v1615, %v1976
        %v2250 = vadd.f32 %v1620, %v1981
        %v2251 = vadd.f32 %v1625, %v1986
        %v2252 = vadd.f32 %v1630, %v1991
        %v2253 = vadd.f32 %v1635, %v1996
        %v2254 = vadd.f32 %v1640, %v2001
        %v2255 = vadd.f32 %v1645, %v2006
        %v2256 = vadd.f32 %v1650, %v2011
        %v2257 = vadd.f32 %v1655, %v2016
        %v2258 = vadd.f32 %v1660, %v2021
        %v2259 = vadd.f32 %v1665, %v2026
        %v2260 = vadd.f32 %v1670, %v2031
        %v2261 = vadd.f32 %v1675, %v2036
        %v2262 = vadd.f32 %v1680, %v2041
        %v2263 = vadd.f32 %v1685, %v2046
        %v2264 = vadd.f32 %v1690, %v2051
        %v2265 = vadd.f32 %v1695, %v2056
        %v2266 = vadd.f32 %v1700, %v2061
        %v2267 = vadd.f32 %v1705, %v2066
        %v2268 = vadd.f32 %v1710, %v2071
        %v2269 = vadd.f32 %v1715, %v2076
        %v2270 = vadd.f32 %v1720, %v2081
        %v2271 = vadd.f32 %v1725, %v2086
        %v2272 = vadd.f32 %v1730, %v2091
        %v2273 = vadd.f32 %v1735, %v2096
        %v2274 = vadd.f32 %v1740, %v2101
        %v2275 = vadd.f32 %v1745, %v2106
        %v2276 = vadd.f32 %v1750, %v2111
        %v2277 = vadd.f32 %v1755, %v2116
        %v2278 = vadd.f32 %v1760, %v2121
        %v2279 = vadd.f32 %v1765, %v2126
        %v2280 = vadd.f32 %v1770, %v2131
        %v2281 = vadd.f32 %v1775, %v2136
        %v2282 = vadd.f32 %v1780, %v2141
        %v2283 = vadd.f32 %v1785, %v2146
        %v2284 = vadd.f32 %v1790, %v2151
        %v2285 = vadd.f32 %v1795, %v2156
        %v2286 = vadd.f32 %v1800, %v2161
        %v2287 = vadd.f32 %v1805, %v2166
        %v2288 = vadd.f32 %v1810, %v2171
        %v2289 = vadd.f32 %v1815, %v2176
        %v2290 = vadd.f32 %v1820, %v2181
        %v2291 = vadd.f32 %v1825, %v2186
        %v2292 = vadd.f32 %v1830, %v2191
        %v2293 = vadd.f32 %v1835, %v2196
        %v2294 = vadd.f32 %v1840, %v2201
        %v2295 = vadd.f32 %v1845, %v2206
        %v2296 = vadd.f32 %v1850, %v2211
        %v2297 = vadd.f32 %v1855, %v2216
        %v2298 = vadd.f32 %v1860, %v2221
        %v2299 = vadd.f32 %v1865, %v2226
        %v2300 = vadd.f32 %v1870, %v2231
        %v2301 = vadd.f32 %v1875, %v2236
        %v2302 = vadd.f32 %v1880, %v2241
        %vm2303 = vcmask 261120
        %2304 = vst.msk [vmem:[%s259] sm:$0xff] %vm2303, %v2243
        %2305 = vst.msk [vmem:[%s259 + $0x8] sm:$0xff] %vm2303, %v2244
        %2306 = vst.msk [vmem:[%s259 + $0x10] sm:$0xff] %vm2303, %v2245
        %2307 = vst.msk [vmem:[%s259 + $0x18] sm:$0xff] %vm2303, %v2246
        %2308 = vst.msk [vmem:[%s259 + $0x20] sm:$0xff] %vm2303, %v2247
        %2309 = vst.msk [vmem:[%s259 + $0x28] sm:$0xff] %vm2303, %v2248
        %2310 = vst.msk [vmem:[%s259 + $0x30] sm:$0xff] %vm2303, %v2249
        %2311 = vst.msk [vmem:[%s259 + $0x38] sm:$0xff] %vm2303, %v2250
        %2312 = vst.msk [vmem:[%s259 + $0x40] sm:$0xff] %vm2303, %v2251
        %2313 = vst.msk [vmem:[%s259 + $0x48] sm:$0xff] %vm2303, %v2252
        %2314 = vst.msk [vmem:[%s259 + $0x50] sm:$0xff] %vm2303, %v2253
        %2315 = vst.msk [vmem:[%s259 + $0x58] sm:$0xff] %vm2303, %v2254
        %2316 = vst.msk [vmem:[%s259 + $0x60] sm:$0xff] %vm2303, %v2255
        %2317 = vst.msk [vmem:[%s259 + $0x68] sm:$0xff] %vm2303, %v2256
        %2318 = vst.msk [vmem:[%s259 + $0x70] sm:$0xff] %vm2303, %v2257
        %2319 = vst.msk [vmem:[%s259 + $0x78] sm:$0xff] %vm2303, %v2258
        %2320 = vst.msk [vmem:[%s259 + $0x80] sm:$0xff] %vm2303, %v2259
        %2321 = vst.msk [vmem:[%s259 + $0x88] sm:$0xff] %vm2303, %v2260
        %2322 = vst.msk [vmem:[%s259 + $0x90] sm:$0xff] %vm2303, %v2261
        %2323 = vst.msk [vmem:[%s259 + $0x98] sm:$0xff] %vm2303, %v2262
        %2324 = vst.msk [vmem:[%s259 + $0xa0] sm:$0xff] %vm2303, %v2263
        %2325 = vst.msk [vmem:[%s259 + $0xa8] sm:$0xff] %vm2303, %v2264
        %2326 = vst.msk [vmem:[%s259 + $0xb0] sm:$0xff] %vm2303, %v2265
        %2327 = vst.msk [vmem:[%s259 + $0xb8] sm:$0xff] %vm2303, %v2266
        %2328 = vst.msk [vmem:[%s259 + $0xc0] sm:$0xff] %vm2303, %v2267
        %2329 = vst.msk [vmem:[%s259 + $0xc8] sm:$0xff] %vm2303, %v2268
        %2330 = vst.msk [vmem:[%s259 + $0xd0] sm:$0xff] %vm2303, %v2269
        %2331 = vst.msk [vmem:[%s259 + $0xd8] sm:$0xff] %vm2303, %v2270
        %2332 = vst.msk [vmem:[%s259 + $0xe0] sm:$0xff] %vm2303, %v2271
        %2333 = vst.msk [vmem:[%s259 + $0xe8] sm:$0xff] %vm2303, %v2272
        %2334 = vst.msk [vmem:[%s259 + $0xf0] sm:$0xff] %vm2303, %v2273
        %2335 = vst.msk [vmem:[%s259 + $0xf8] sm:$0xff] %vm2303, %v2274
        %2336 = vst.msk [vmem:[%s259 + $0x100] sm:$0xff] %vm2303, %v2275
        %2337 = vst.msk [vmem:[%s259 + $0x108] sm:$0xff] %vm2303, %v2276
        %2338 = vst.msk [vmem:[%s259 + $0x110] sm:$0xff] %vm2303, %v2277
        %2339 = vst.msk [vmem:[%s259 + $0x118] sm:$0xff] %vm2303, %v2278
        %2340 = vst.msk [vmem:[%s259 + $0x120] sm:$0xff] %vm2303, %v2279
        %2341 = vst.msk [vmem:[%s259 + $0x128] sm:$0xff] %vm2303, %v2280
        %2342 = vst.msk [vmem:[%s259 + $0x130] sm:$0xff] %vm2303, %v2281
        %2343 = vst.msk [vmem:[%s259 + $0x138] sm:$0xff] %vm2303, %v2282
        %2344 = vst.msk [vmem:[%s259 + $0x140] sm:$0xff] %vm2303, %v2283
        %2345 = vst.msk [vmem:[%s259 + $0x148] sm:$0xff] %vm2303, %v2284
        %2346 = vst.msk [vmem:[%s259 + $0x150] sm:$0xff] %vm2303, %v2285
        %2347 = vst.msk [vmem:[%s259 + $0x158] sm:$0xff] %vm2303, %v2286
        %2348 = vst.msk [vmem:[%s259 + $0x160] sm:$0xff] %vm2303, %v2287
        %2349 = vst.msk [vmem:[%s259 + $0x168] sm:$0xff] %vm2303, %v2288
        %2350 = vst.msk [vmem:[%s259 + $0x170] sm:$0xff] %vm2303, %v2289
        %2351 = vst.msk [vmem:[%s259 + $0x178] sm:$0xff] %vm2303, %v2290
        %2352 = vst.msk [vmem:[%s259 + $0x180] sm:$0xff] %vm2303, %v2291
        %2353 = vst.msk [vmem:[%s259 + $0x188] sm:$0xff] %vm2303, %v2292
        %2354 = vst.msk [vmem:[%s259 + $0x190] sm:$0xff] %vm2303, %v2293
        %2355 = vst.msk [vmem:[%s259 + $0x198] sm:$0xff] %vm2303, %v2294
        %2356 = vst.msk [vmem:[%s259 + $0x1a0] sm:$0xff] %vm2303, %v2295
        %2357 = vst.msk [vmem:[%s259 + $0x1a8] sm:$0xff] %vm2303, %v2296
        %2358 = vst.msk [vmem:[%s259 + $0x1b0] sm:$0xff] %vm2303, %v2297
        %2359 = vst.msk [vmem:[%s259 + $0x1b8] sm:$0xff] %vm2303, %v2298
        %2360 = vst.msk [vmem:[%s259 + $0x1c0] sm:$0xff] %vm2303, %v2299
        %2361 = vst.msk [vmem:[%s259 + $0x1c8] sm:$0xff] %vm2303, %v2300
        %2362 = vst.msk [vmem:[%s259 + $0x1d0] sm:$0xff] %vm2303, %v2301
        %2363 = vst.msk [vmem:[%s259 + $0x1d8] sm:$0xff] %vm2303, %v2302
        %s2364 = sand.u32 %s164, 1
        %s2365 = scalar_lea.sflag [#allocation3], %s2364
        %s2366 = sand.u32 %s164, 1
        %s2367 = smul.addr %s2366, 480
        %s2368 = scalar_lea.vmem [#allocation2], %s2367
        // Predicated region
        $region45: #{accel101_forward.13} parent=43 // pred_check
          %p2369 = pneg %p174
        $region46: #{accel101_forward.13} parent=43 // pred_check_branch
          %2371 = sbr.rel (%p2369) target = $region48
        $region47: #{accel101_forward.13} parent=43 // pred_region
          %s2373 = ssub.s32 7680, 7680
          %2374 = vsyncadd %s2365, %s2373
          %s2375 = smul.addr %s20, 60
          %s2376 = smul.addr %s2375, 128
          %s2377 = scalar_lea.hbm %s6, %s2376
          %s2378 = sshll.u32 %s2368, 4
          %s2379 = int_to_ptr.vmem [resolvable:$true] %s2378
          %2384 = dma.vmem_to_hbm [thread:$0]  %s2379, 7680, %s2377, %s2365, 128, 128, 8
        $region48: #{accel101_forward.13} parent=43 // pred_fallthru
          _
      $region44: #{accel101_forward.13} parent=5 // pred_fallthru
        _
      %p2385 = scmp.le.s32.totalorder 2, %s15
      // Predicated region
      $region49: #{accel101_forward.13} parent=5 // pred_check
        %p2386 = pneg %p2385
      $region50: #{accel101_forward.13} parent=5 // pred_check_branch
        %2388 = sbr.rel (%p2386) target = $region52
      $region51: #{accel101_forward.13} parent=5 // pred_region
        %s2389 = ssub.s32 %s15, 2
        // Predicated region
        $region53: #{accel101_forward.13} parent=51 // pred_check
          %p2390 = pneg %p180
        $region54: #{accel101_forward.13} parent=51 // pred_check_branch
          %2392 = sbr.rel (%p2390) target = $region56
        $region55: #{accel101_forward.13} parent=51 // pred_region
          %s2393 = sand.u32 %s165, 1
          %s2394 = scalar_lea.sflag [#allocation3], %s2393
          %s2395 = sand.u32 %s165, 1
          %s2396 = smul.addr %s2395, 480
          %s2397 = scalar_lea.vmem [#allocation2], %s2396
          %2398 = dma.done %s2394, 7680
        $region56: #{accel101_forward.13} parent=51 // pred_fallthru
          _
      $region52: #{accel101_forward.13} parent=5 // pred_fallthru
        _
    $region6: #{accel101_forward.13} parent=1 // loop_footer
      %s19 = sadd.s32 1, %s15
    $region7: #{accel101_forward.13} parent=1 // loop_footer_branch
      %14 = sbr.rel target = $region3
    $region8: #{accel101_forward.13} parent=1 // loop_exit
      _
    %2399 = vsyncpa [#allocation3], 1
    %s2400 = scalar_lea.sflag [#allocation3], 1
    %2401 = vsyncpa %s2400, 1

</llo_original>
